<compile_context>
chip_gen: v7x
topology: tpu7x:2x2x1
jax: 0.10.0
libtpu: 0.0.40
codegen_flags: <defaults>
</compile_context>

<pallas_src>
import jax
import jax.numpy as jnp
from jax import lax
from jax.experimental import pallas as pl
from jax.experimental.pallas import tpu as pltpu


def _bottleneck_kernel(x_ref, w1_ref, b1_ref, w2_ref, b2_ref, w3_ref, b3_ref,
                       o_ref):
    # x_ref:  (1, H, W, Cin)  full bf16 image for this batch element (Cin == 4P)
    # w1_ref: (Cin, P)  bf16, bn1 scale folded
    # w2_ref: (9P, P)   bf16, bn2 scale folded, rows ordered (kx, ky, cin)
    # w3_ref: (P, 4P)   bf16, bn3 scale folded
    # b*_ref: (1, C)    f32 folded BN shifts
    # o_ref:  (1, TH, W, 4P)  one bf16 row band of the output
    H, W, Cin = x_ref.shape[1], x_ref.shape[2], x_ref.shape[3]
    P = w1_ref.shape[1]
    TH = o_ref.shape[1]

    t = pl.program_id(1)
    nt = pl.num_programs(1)
    row0 = pl.multiple_of(t * TH, TH)          # first output row of this band

    # ---- conv1 (1x1) + bn1 + relu on the TH-row body (bf16 MXU, f32 acc) ---
    x_mid = x_ref[0, pl.ds(row0, TH)]                            # (TH, W, Cin)
    h1 = jnp.dot(x_mid.reshape(TH * W, Cin).astype(jnp.bfloat16), w1_ref[...],
                 preferred_element_type=jnp.float32)
    out1_mid = jnp.maximum(h1 + b1_ref[...], 0.0).reshape(TH, W, P)

    # ---- conv1 on the 2 halo rows (recomputed from the resident x block) ---
    x_up = x_ref[0, pl.ds(jnp.maximum(row0 - 1, 0), 1)]          # (1, W, Cin)
    x_dn = x_ref[0, pl.ds(jnp.minimum(row0 + TH, H - 1), 1)]     # (1, W, Cin)
    x_halo = jnp.concatenate([x_up, x_dn], axis=0)               # (2, W, Cin)
    hh = jnp.dot(x_halo.reshape(2 * W, Cin).astype(jnp.bfloat16), w1_ref[...],
                 preferred_element_type=jnp.float32)
    out1_halo = jnp.maximum(hh + b1_ref[...], 0.0).reshape(2, W, P)
    # Halo rows outside the image must be the 3x3 conv's *zero padding* of
    # out1: scalar-predicated zeroing of just the two halo rows (no band mask).
    out1_up = jnp.where(t > 0, out1_halo[0:1], 0.0)
    out1_dn = jnp.where(t < nt - 1, out1_halo[1:2], 0.0)
    out1 = jnp.concatenate([out1_up, out1_mid, out1_dn], axis=0)  # (TH+2,W,P) f32

    # ---- W-shifted copies via XLU roll + single-column mask ----------------
    col = lax.broadcasted_iota(jnp.int32, (1, W, 1), 1)

    def shift_w(a, dx):
        # b[:, w, :] = a[:, w + dx, :] with zero fill outside [0, W).
        if dx == 0:
            return a
        rolled = pltpu.roll(a, shift=(-dx) % W, axis=1)
        mask = (col < W - dx) if dx > 0 else (col >= -dx)
        return jnp.where(mask, rolled, 0.0)

    shifted = [shift_w(out1, dx).astype(jnp.bfloat16) for dx in (-1, 0, 1)]

    # ---- conv2 (3x3, pad=1) + bn2 + relu ------------------------------------
    if P % 128 == 0:
        # Lane-aligned taps -> single K = 9P MXU matmul (im2col of the band).
        taps = []
        for kx in range(3):                     # W offset dx = kx - 1
            for ky in range(3):                 # H offset via band-row slice
                taps.append(shifted[kx][ky:ky + TH])
        patches = jnp.concatenate(taps, axis=-1).reshape(TH * W, 9 * P)
        h2 = jnp.dot(patches, w2_ref[...], preferred_element_type=jnp.float32)
    else:
        # P < 128: a 9P lane concat would be lane-misaligned; accumulate nine
        # K = P matmuls into an f32 accumulator instead.
        h2 = jnp.zeros((TH * W, P), jnp.float32)
        for kx in range(3):
            for ky in range(3):
                tap = shifted[kx][ky:ky + TH].reshape(TH * W, P)
                w_tap = w2_ref[(kx * 3 + ky) * P:(kx * 3 + ky + 1) * P, :]
                h2 = h2 + jnp.dot(tap, w_tap,
                                  preferred_element_type=jnp.float32)
    out2 = jnp.maximum(h2 + b2_ref[...], 0.0)

    # ---- conv3 (1x1) + bn3 ---------------------------------------------------
    h3 = jnp.dot(out2.astype(jnp.bfloat16), w3_ref[...],
                 preferred_element_type=jnp.float32)             # (TH*W, 4P)
    out3 = h3 + b3_ref[...]

    # ---- identity residual (downsample=None) + relu --------------------------
    # Re-read x from the resident VMEM block (cheap vld) instead of keeping a
    # copy live across the whole kernel.
    res = x_ref[0, pl.ds(row0, TH)].reshape(TH * W, Cin).astype(jnp.float32)
    y = jnp.maximum(out3 + res, 0.0)
    o_ref[0] = y.reshape(TH, W, Cin).astype(o_ref.dtype)


def _largest_divisor_leq(n, k):
    k = max(1, min(k, n))
    while n % k != 0:
        k -= 1
    return k


def _tpu_defaults():
    """Per-generation (row_block, vmem_limit_bytes)."""
    vmem_phys = 64 * 1024 * 1024            # conservative default if query fails
    try:
        info = pltpu.get_tpu_info()
        vmem_phys = getattr(info, "vmem_capacity_bytes", vmem_phys)
    except Exception:
        pass
    if vmem_phys <= 64 * 1024 * 1024:       # v7x: 64 MiB physical VMEM per core
        return 16, 40 * 1024 * 1024
    return 32, 96 * 1024 * 1024             # v5e / v6e: 128 MiB physical VMEM


def bottleneck_pallas_nhwc(x_nhwc, params, *, row_block=None):
    """Fused Bottleneck forward on an NHWC input. params = prepare_kernel_params(...)."""
    w1, b1, w2, b2, w3, b3 = params
    N, H, W, Cin = x_nhwc.shape
    P = w1.shape[1]
    Cout = 4 * P
    assert Cin == Cout, "identity residual requires inplanes == planes * 4"

    default_rb, vmem_limit = _tpu_defaults()
    if row_block is None:
        row_block = default_rb
    # Largest divisor of H <= row_block (never silently fall back to TH = H).
    # TODO(synk): a pl.cdiv grid with a masked tail band would avoid tiny TH
    # for awkward (e.g. prime) H.
    TH = _largest_divisor_leq(H, row_block)
    NT = H // TH

    # bf16 activations: halve HBM traffic and the resident x block.
    x_nhwc = x_nhwc.astype(jnp.bfloat16)

    def build(single_buffer_weights):
        def const_spec(a):
            nd = a.ndim
            idx = lambda n_, t_, _nd=nd: (0,) * _nd
            if single_buffer_weights:
                # Weights never change across grid steps: single-buffer them to
                # halve their VMEM footprint (matters at real ResNet widths).
                return pl.BlockSpec(a.shape, idx, pipeline_mode=pl.Buffered(1))
            return pl.BlockSpec(a.shape, idx)

        return pl.pallas_call(
            _bottleneck_kernel,
            out_shape=jax.ShapeDtypeStruct((N, H, W, Cout), jnp.bfloat16),
            grid_spec=pltpu.PrefetchScalarGridSpec(
                num_scalar_prefetch=0,
                grid=(N, NT),
                in_specs=[
                    # Full image per batch element; block index is independent
                    # of t, so it is fetched once per n (revisit), not per band.
                    pl.BlockSpec((1, H, W, Cin), lambda n, t: (n, 0, 0, 0)),
                    const_spec(w1), const_spec(b1),
                    const_spec(w2), const_spec(b2),
                    const_spec(w3), const_spec(b3),
                ],
                out_specs=pl.BlockSpec((1, TH, W, Cout),
                                       lambda n, t: (n, t, 0, 0)),
            ),
            compiler_params=pltpu.CompilerParams(
                # Keep the row-band axis "arbitrary": a v7x megacore split then
                # only shards the batch axis, so both cores never re-DMA the
                # same full image (the "fetched once per n" assumption holds).
                dimension_semantics=("parallel", "arbitrary"),
                vmem_limit_bytes=vmem_limit,
            ),
        )

    try:
        return build(True)(x_nhwc, w1, b1, w2, b2, w3, b3)
    except Exception:
        # pl.Buffered(1) support varies across JAX versions; fall back to the
        # default (double-buffered) weight pipelining.
        return build(False)(x_nhwc, w1, b1, w2, b2, w3, b3)


def bottleneck_pallas(x_nchw, params, *, row_block=None):
    """PyTorch-convention NCHW adapter. In a full network, keep activations
    NHWC/bf16 end-to-end and call bottleneck_pallas_nhwc directly."""
    x_nhwc = jnp.transpose(x_nchw, (0, 2, 3, 1))
    out = bottleneck_pallas_nhwc(x_nhwc, params, row_block=row_block)
    return jnp.transpose(out, (0, 3, 1, 2)).astype(x_nchw.dtype)


def _fold_bn(gamma, beta, mean, var, eps=1e-5):
    scale = gamma / jnp.sqrt(var + eps)
    shift = beta - mean * scale
    return scale, shift


def prepare_kernel_params(w1_oihw, w2_oihw, w3_oihw, bn1, bn2, bn3):
    """Fold eval-mode BN scales into the conv weights (in f32), cast weights to
    bf16, and lay them out for the kernel's matmuls."""
    s1, b1 = _fold_bn(*bn1)
    s2, b2 = _fold_bn(*bn2)
    s3, b3 = _fold_bn(*bn3)
    P = w1_oihw.shape[0]

    w1 = jnp.transpose(w1_oihw[:, :, 0, 0] * s1[:, None], (1, 0))        # (Cin, P)
    # (O,I,kh,kw)*s2 -> (kw,kh,I,O) -> (9P, P): rows ordered (kx, ky, cin).
    w2 = jnp.transpose(w2_oihw * s2[:, None, None, None],
                       (3, 2, 1, 0)).reshape(9 * P, P)
    w3 = jnp.transpose(w3_oihw[:, :, 0, 0] * s3[:, None], (1, 0))        # (P, 4P)

    bf16 = lambda a: a.astype(jnp.bfloat16)
    row = lambda a: a.reshape(1, -1).astype(jnp.float32)
    return (bf16(w1), row(b1), bf16(w2), row(b2), bf16(w3), row(b3))


def bottleneck_reference(x_nchw, torch_style):
    """Pure-JAX NCHW reference mirroring the PyTorch forward (eval-mode BN, f32)."""
    w1_oihw, w2_oihw, w3_oihw, bn1, bn2, bn3 = torch_style
    s1, b1 = _fold_bn(*bn1)
    s2, b2 = _fold_bn(*bn2)
    s3, b3 = _fold_bn(*bn3)

    def conv(x, w, padding):
        return lax.conv_general_dilated(
            x, w, window_strides=(1, 1), padding=padding,
            dimension_numbers=("NCHW", "OIHW", "NCHW"))

    def bn(x, s, b):
        return x * s.reshape(1, -1, 1, 1) + b.reshape(1, -1, 1, 1)

    out = jax.nn.relu(bn(conv(x_nchw, w1_oihw, "VALID"), s1, b1))
    out = jax.nn.relu(bn(conv(out, w2_oihw, [(1, 1), (1, 1)]), s2, b2))
    out = bn(conv(out, w3_oihw, "VALID"), s3, b3)
    return jax.nn.relu(out + x_nchw)


if __name__ == "__main__":
    planes = 32                   # P >= 32 keeps the output lane dim at 4P = 128
    inplanes = planes * 4         # identity residual requires inplanes == 4 * planes
    N, H, W = 2, 16, 16

    key = jax.random.PRNGKey(0)
    kx_, kp = jax.random.split(key)
    x = jax.random.normal(kx_, (N, inplanes, H, W), jnp.float32)

    ks = jax.random.split(kp, 15)
    w1_oihw = 0.1 * jax.random.normal(ks[0], (planes, inplanes, 1, 1), jnp.float32)
    w2_oihw = 0.1 * jax.random.normal(ks[1], (planes, planes, 3, 3), jnp.float32)
    w3_oihw = 0.1 * jax.random.normal(ks[2], (planes * 4, planes, 1, 1), jnp.float32)

    def make_bn(k0, k1, k2, k3, c):
        gamma = 1.0 + 0.1 * jax.random.normal(k0, (c,), jnp.float32)
        beta = 0.1 * jax.random.normal(k1, (c,), jnp.float32)
        mean = 0.1 * jax.random.normal(k2, (c,), jnp.float32)
        var = jnp.abs(jax.random.normal(k3, (c,), jnp.float32)) + 0.5
        return gamma, beta, mean, var

    bn1 = make_bn(ks[3], ks[4], ks[5], ks[6], planes)
    bn2 = make_bn(ks[7], ks[8], ks[9], ks[10], planes)
    bn3 = make_bn(ks[11], ks[12], ks[13], ks[14], planes * 4)

    kernel_params = prepare_kernel_params(w1_oihw, w2_oihw, w3_oihw, bn1, bn2, bn3)

    # Run twice: once with the per-generation default band and once with a
    # small explicit band (exercises the multi-band halo / masking paths).
    out_default = jax.block_until_ready(bottleneck_pallas(x, kernel_params))
    out_banded = jax.block_until_ready(
        bottleneck_pallas(x, kernel_params, row_block=8))
    ref = jax.block_until_ready(
        bottleneck_reference(x, (w1_oihw, w2_oihw, w3_oihw, bn1, bn2, bn3)))

    assert out_default.shape == out_banded.shape == ref.shape == (N, inplanes, H, W)
    # bf16 activations + bf16-folded weights vs. an all-f32 reference.
    tol = 5e-2 * max(1.0, float(jnp.max(jnp.abs(ref))))
    for name, out in (("default", out_default), ("row_block=8", out_banded)):
        err = float(jnp.max(jnp.abs(out - ref)))
        if err > tol:
            raise AssertionError(
                f"[{name}] mismatch vs reference: max abs err = {err} (tol {tol})")
    print("KERNEL_OK")
</pallas_src>

<mosaic_0001>
module attributes {stable_mosaic.version = 11 : i64} {
  func.func @_bottleneck_kernel(%arg0: i32, %arg1: i32, %arg2: memref<1x16x16x128xbf16, #tpu.memory_space<vmem>>, %arg3: memref<128x32xbf16, #tpu.memory_space<vmem>>, %arg4: memref<1x32xf32, #tpu.memory_space<vmem>>, %arg5: memref<288x32xbf16, #tpu.memory_space<vmem>>, %arg6: memref<1x32xf32, #tpu.memory_space<vmem>>, %arg7: memref<32x128xbf16, #tpu.memory_space<vmem>>, %arg8: memref<1x128xf32, #tpu.memory_space<vmem>>, %arg9: memref<1x16x16x128xbf16, #tpu.memory_space<vmem>>) attributes {dimension_semantics = [#tpu.dimension_semantics<parallel>, #tpu.dimension_semantics<arbitrary>], iteration_bounds = array<i64: 2, 1>, scalar_prefetch = 0 : i64, scratch_operands = 0 : i64, tpu.core_type = #tpu.core_type<tc>, window_params = [{transform_indices = @transform_0, window_bounds = array<i64: 1, 16, 16, 128>}, {pipeline_mode = #tpu.pipeline_mode<synchronous>, transform_indices = @transform_1, window_bounds = array<i64: 128, 32>}, {pipeline_mode = #tpu.pipeline_mode<synchronous>, transform_indices = @transform_2, window_bounds = array<i64: 1, 32>}, {pipeline_mode = #tpu.pipeline_mode<synchronous>, transform_indices = @transform_3, window_bounds = array<i64: 288, 32>}, {pipeline_mode = #tpu.pipeline_mode<synchronous>, transform_indices = @transform_4, window_bounds = array<i64: 1, 32>}, {pipeline_mode = #tpu.pipeline_mode<synchronous>, transform_indices = @transform_5, window_bounds = array<i64: 32, 128>}, {pipeline_mode = #tpu.pipeline_mode<synchronous>, transform_indices = @transform_6, window_bounds = array<i64: 1, 128>}, {transform_indices = @transform_7, window_bounds = array<i64: 1, 16, 16, 128>}]} {
    %c16_i32 = arith.constant 16 : i32
    %0 = arith.muli %arg1, %c16_i32 : i32
    %1 = tpu.assume_multiple %0, 16 : i32
    %c0 = arith.constant 0 : index
    %2 = arith.index_cast %1 : i32 to index
    %c0_0 = arith.constant 0 : index
    %c0_1 = arith.constant 0 : index
    %3 = vector.load %arg2[%c0, %2, %c0_0, %c0_1] : memref<1x16x16x128xbf16, #tpu.memory_space<vmem>>, vector<1x16x16x128xbf16>
    %4 = vector.shape_cast %3 : vector<1x16x16x128xbf16> to vector<16x16x128xbf16>
    %5 = vector.shape_cast %4 : vector<16x16x128xbf16> to vector<256x128xbf16>
    %c0_2 = arith.constant 0 : index
    %c0_3 = arith.constant 0 : index
    %6 = vector.load %arg3[%c0_2, %c0_3] : memref<128x32xbf16, #tpu.memory_space<vmem>>, vector<128x32xbf16>
    %cst = arith.constant dense<0.000000e+00> : vector<256x32xf32>
    %7 = tpu.matmul %5, %6, %cst {dimension_numbers = #tpu.dot_dimension_numbers<[1], [0], [0], [1], [0, 0, 1, 1], [], []>} : vector<256x128xbf16>, vector<128x32xbf16>, vector<256x32xf32> -> vector<256x32xf32>
    %c0_4 = arith.constant 0 : index
    %c0_5 = arith.constant 0 : index
    %8 = vector.load %arg4[%c0_4, %c0_5] : memref<1x32xf32, #tpu.memory_space<vmem>>, vector<1x32xf32>
    %9 = vector.broadcast %8 : vector<1x32xf32> to vector<256x32xf32>
    %10 = arith.addf %7, %9 : vector<256x32xf32>
    %cst_6 = arith.constant 0.000000e+00 : f32
    %11 = vector.broadcast %cst_6 : f32 to vector<256x32xf32>
    %12 = arith.maximumf %10, %11 : vector<256x32xf32>
    %13 = vector.shape_cast %12 : vector<256x32xf32> to vector<16x16x32xf32>
    %c1_i32 = arith.constant 1 : i32
    %14 = arith.subi %1, %c1_i32 : i32
    %c0_i32 = arith.constant 0 : i32
    %15 = arith.maxsi %14, %c0_i32 : i32
    %c0_7 = arith.constant 0 : index
    %16 = arith.index_cast %15 : i32 to index
    %c0_8 = arith.constant 0 : index
    %c0_9 = arith.constant 0 : index
    %17 = vector.load %arg2[%c0_7, %16, %c0_8, %c0_9] : memref<1x16x16x128xbf16, #tpu.memory_space<vmem>>, vector<1x1x16x128xbf16>
    %18 = vector.shape_cast %17 : vector<1x1x16x128xbf16> to vector<1x16x128xbf16>
    %c16_i32_10 = arith.constant 16 : i32
    %19 = arith.addi %1, %c16_i32_10 : i32
    %c15_i32 = arith.constant 15 : i32
    %20 = arith.minsi %19, %c15_i32 : i32
    %c0_11 = arith.constant 0 : index
    %21 = arith.index_cast %20 : i32 to index
    %c0_12 = arith.constant 0 : index
    %c0_13 = arith.constant 0 : index
    %22 = vector.load %arg2[%c0_11, %21, %c0_12, %c0_13] : memref<1x16x16x128xbf16, #tpu.memory_space<vmem>>, vector<1x1x16x128xbf16>
    %23 = vector.shape_cast %22 : vector<1x1x16x128xbf16> to vector<1x16x128xbf16>
    %24 = tpu.concatenate %18, %23 in 0 : vector<1x16x128xbf16>, vector<1x16x128xbf16> -> vector<2x16x128xbf16>
    %25 = vector.shape_cast %24 : vector<2x16x128xbf16> to vector<32x128xbf16>
    %c0_14 = arith.constant 0 : index
    %c0_15 = arith.constant 0 : index
    %26 = vector.load %arg3[%c0_14, %c0_15] : memref<128x32xbf16, #tpu.memory_space<vmem>>, vector<128x32xbf16>
    %cst_16 = arith.constant dense<0.000000e+00> : vector<32x32xf32>
    %27 = tpu.matmul %25, %26, %cst_16 {dimension_numbers = #tpu.dot_dimension_numbers<[1], [0], [0], [1], [0, 0, 1, 1], [], []>} : vector<32x128xbf16>, vector<128x32xbf16>, vector<32x32xf32> -> vector<32x32xf32>
    %c0_17 = arith.constant 0 : index
    %c0_18 = arith.constant 0 : index
    %28 = vector.load %arg4[%c0_17, %c0_18] : memref<1x32xf32, #tpu.memory_space<vmem>>, vector<1x32xf32>
    %29 = vector.broadcast %28 : vector<1x32xf32> to vector<32x32xf32>
    %30 = arith.addf %27, %29 : vector<32x32xf32>
    %cst_19 = arith.constant 0.000000e+00 : f32
    %31 = vector.broadcast %cst_19 : f32 to vector<32x32xf32>
    %32 = arith.maximumf %30, %31 : vector<32x32xf32>
    %33 = vector.shape_cast %32 : vector<32x32xf32> to vector<2x16x32xf32>
    %c0_i32_20 = arith.constant 0 : i32
    %34 = arith.cmpi sgt, %arg1, %c0_i32_20 : i32
    %35 = vector.extract_strided_slice %33 {offsets = [0, 0, 0], sizes = [1, 16, 32], strides = [1, 1, 1]} : vector<2x16x32xf32> to vector<1x16x32xf32>
    %cst_21 = arith.constant 0.000000e+00 : f32
    %36 = vector.broadcast %cst_21 : f32 to vector<1x16x32xf32>
    %37 = arith.select %34, %35, %36 : vector<1x16x32xf32>
    %c0_i32_22 = arith.constant 0 : i32
    %38 = arith.cmpi slt, %arg1, %c0_i32_22 : i32
    %39 = vector.extract_strided_slice %33 {offsets = [1, 0, 0], sizes = [1, 16, 32], strides = [1, 1, 1]} : vector<2x16x32xf32> to vector<1x16x32xf32>
    %cst_23 = arith.constant 0.000000e+00 : f32
    %40 = vector.broadcast %cst_23 : f32 to vector<1x16x32xf32>
    %41 = arith.select %38, %39, %40 : vector<1x16x32xf32>
    %42 = tpu.concatenate %37, %13, %41 in 0 : vector<1x16x32xf32>, vector<16x16x32xf32>, vector<1x16x32xf32> -> vector<18x16x32xf32>
    %43 = tpu.iota {dimensions = array<i32: 1>} : vector<1x16x1xi32>
    %c1_i32_24 = arith.constant 1 : i32
    %44 = tpu.dynamic_rotate %42 by %c1_i32_24 dim 1 : vector<18x16x32xf32>, i32 -> vector<18x16x32xf32>
    %c1_i32_25 = arith.constant 1 : i32
    %45 = vector.broadcast %c1_i32_25 : i32 to vector<1x16x1xi32>
    %46 = arith.cmpi sge, %43, %45 : vector<1x16x1xi32>
    %cst_26 = arith.constant 0.000000e+00 : f32
    %47 = vector.shape_cast %46 : vector<1x16x1xi1> to vector<1x16x1xi1>
    %48 = vector.broadcast %47 : vector<1x16x1xi1> to vector<18x16x32xi1>
    %49 = vector.broadcast %cst_26 : f32 to vector<18x16x32xf32>
    %50 = arith.select %48, %44, %49 : vector<18x16x32xi1>, vector<18x16x32xf32>
    %51 = arith.truncf %50 : vector<18x16x32xf32> to vector<18x16x32xbf16>
    %52 = arith.truncf %42 : vector<18x16x32xf32> to vector<18x16x32xbf16>
    %c15_i32_27 = arith.constant 15 : i32
    %53 = tpu.dynamic_rotate %42 by %c15_i32_27 dim 1 : vector<18x16x32xf32>, i32 -> vector<18x16x32xf32>
    %c15_i32_28 = arith.constant 15 : i32
    %54 = vector.broadcast %c15_i32_28 : i32 to vector<1x16x1xi32>
    %55 = arith.cmpi slt, %43, %54 : vector<1x16x1xi32>
    %cst_29 = arith.constant 0.000000e+00 : f32
    %56 = vector.shape_cast %55 : vector<1x16x1xi1> to vector<1x16x1xi1>
    %57 = vector.broadcast %56 : vector<1x16x1xi1> to vector<18x16x32xi1>
    %58 = vector.broadcast %cst_29 : f32 to vector<18x16x32xf32>
    %59 = arith.select %57, %53, %58 : vector<18x16x32xi1>, vector<18x16x32xf32>
    %60 = arith.truncf %59 : vector<18x16x32xf32> to vector<18x16x32xbf16>
    %cst_30 = arith.constant 0.000000e+00 : f32
    %61 = vector.broadcast %cst_30 : f32 to vector<256x32xf32>
    %62 = vector.extract_strided_slice %51 {offsets = [0, 0, 0], sizes = [16, 16, 32], strides = [1, 1, 1]} : vector<18x16x32xbf16> to vector<16x16x32xbf16>
    %63 = vector.shape_cast %62 : vector<16x16x32xbf16> to vector<256x32xbf16>
    %c0_31 = arith.constant 0 : index
    %c0_32 = arith.constant 0 : index
    %64 = vector.load %arg5[%c0_31, %c0_32] : memref<288x32xbf16, #tpu.memory_space<vmem>>, vector<32x32xbf16>
    %cst_33 = arith.constant dense<0.000000e+00> : vector<256x32xf32>
    %65 = tpu.matmul %63, %64, %cst_33 {dimension_numbers = #tpu.dot_dimension_numbers<[1], [0], [0], [1], [0, 0, 1, 1], [], []>} : vector<256x32xbf16>, vector<32x32xbf16>, vector<256x32xf32> -> vector<256x32xf32>
    %66 = arith.addf %61, %65 : vector<256x32xf32>
    %67 = vector.extract_strided_slice %51 {offsets = [1, 0, 0], sizes = [16, 16, 32], strides = [1, 1, 1]} : vector<18x16x32xbf16> to vector<16x16x32xbf16>
    %68 = vector.shape_cast %67 : vector<16x16x32xbf16> to vector<256x32xbf16>
    %c32 = arith.constant 32 : index
    %c0_34 = arith.constant 0 : index
    %69 = vector.load %arg5[%c32, %c0_34] : memref<288x32xbf16, #tpu.memory_space<vmem>>, vector<32x32xbf16>
    %cst_35 = arith.constant dense<0.000000e+00> : vector<256x32xf32>
    %70 = tpu.matmul %68, %69, %cst_35 {dimension_numbers = #tpu.dot_dimension_numbers<[1], [0], [0], [1], [0, 0, 1, 1], [], []>} : vector<256x32xbf16>, vector<32x32xbf16>, vector<256x32xf32> -> vector<256x32xf32>
    %71 = arith.addf %66, %70 : vector<256x32xf32>
    %72 = vector.extract_strided_slice %51 {offsets = [2, 0, 0], sizes = [16, 16, 32], strides = [1, 1, 1]} : vector<18x16x32xbf16> to vector<16x16x32xbf16>
    %73 = vector.shape_cast %72 : vector<16x16x32xbf16> to vector<256x32xbf16>
    %c64 = arith.constant 64 : index
    %c0_36 = arith.constant 0 : index
    %74 = vector.load %arg5[%c64, %c0_36] : memref<288x32xbf16, #tpu.memory_space<vmem>>, vector<32x32xbf16>
    %cst_37 = arith.constant dense<0.000000e+00> : vector<256x32xf32>
    %75 = tpu.matmul %73, %74, %cst_37 {dimension_numbers = #tpu.dot_dimension_numbers<[1], [0], [0], [1], [0, 0, 1, 1], [], []>} : vector<256x32xbf16>, vector<32x32xbf16>, vector<256x32xf32> -> vector<256x32xf32>
    %76 = arith.addf %71, %75 : vector<256x32xf32>
    %77 = vector.extract_strided_slice %52 {offsets = [0, 0, 0], sizes = [16, 16, 32], strides = [1, 1, 1]} : vector<18x16x32xbf16> to vector<16x16x32xbf16>
    %78 = vector.shape_cast %77 : vector<16x16x32xbf16> to vector<256x32xbf16>
    %c96 = arith.constant 96 : index
    %c0_38 = arith.constant 0 : index
    %79 = vector.load %arg5[%c96, %c0_38] : memref<288x32xbf16, #tpu.memory_space<vmem>>, vector<32x32xbf16>
    %cst_39 = arith.constant dense<0.000000e+00> : vector<256x32xf32>
    %80 = tpu.matmul %78, %79, %cst_39 {dimension_numbers = #tpu.dot_dimension_numbers<[1], [0], [0], [1], [0, 0, 1, 1], [], []>} : vector<256x32xbf16>, vector<32x32xbf16>, vector<256x32xf32> -> vector<256x32xf32>
    %81 = arith.addf %76, %80 : vector<256x32xf32>
    %82 = vector.extract_strided_slice %52 {offsets = [1, 0, 0], sizes = [16, 16, 32], strides = [1, 1, 1]} : vector<18x16x32xbf16> to vector<16x16x32xbf16>
    %83 = vector.shape_cast %82 : vector<16x16x32xbf16> to vector<256x32xbf16>
    %c128 = arith.constant 128 : index
    %c0_40 = arith.constant 0 : index
    %84 = vector.load %arg5[%c128, %c0_40] : memref<288x32xbf16, #tpu.memory_space<vmem>>, vector<32x32xbf16>
    %cst_41 = arith.constant dense<0.000000e+00> : vector<256x32xf32>
    %85 = tpu.matmul %83, %84, %cst_41 {dimension_numbers = #tpu.dot_dimension_numbers<[1], [0], [0], [1], [0, 0, 1, 1], [], []>} : vector<256x32xbf16>, vector<32x32xbf16>, vector<256x32xf32> -> vector<256x32xf32>
    %86 = arith.addf %81, %85 : vector<256x32xf32>
    %87 = vector.extract_strided_slice %52 {offsets = [2, 0, 0], sizes = [16, 16, 32], strides = [1, 1, 1]} : vector<18x16x32xbf16> to vector<16x16x32xbf16>
    %88 = vector.shape_cast %87 : vector<16x16x32xbf16> to vector<256x32xbf16>
    %c160 = arith.constant 160 : index
    %c0_42 = arith.constant 0 : index
    %89 = vector.load %arg5[%c160, %c0_42] : memref<288x32xbf16, #tpu.memory_space<vmem>>, vector<32x32xbf16>
    %cst_43 = arith.constant dense<0.000000e+00> : vector<256x32xf32>
    %90 = tpu.matmul %88, %89, %cst_43 {dimension_numbers = #tpu.dot_dimension_numbers<[1], [0], [0], [1], [0, 0, 1, 1], [], []>} : vector<256x32xbf16>, vector<32x32xbf16>, vector<256x32xf32> -> vector<256x32xf32>
    %91 = arith.addf %86, %90 : vector<256x32xf32>
    %92 = vector.extract_strided_slice %60 {offsets = [0, 0, 0], sizes = [16, 16, 32], strides = [1, 1, 1]} : vector<18x16x32xbf16> to vector<16x16x32xbf16>
    %93 = vector.shape_cast %92 : vector<16x16x32xbf16> to vector<256x32xbf16>
    %c192 = arith.constant 192 : index
    %c0_44 = arith.constant 0 : index
    %94 = vector.load %arg5[%c192, %c0_44] : memref<288x32xbf16, #tpu.memory_space<vmem>>, vector<32x32xbf16>
    %cst_45 = arith.constant dense<0.000000e+00> : vector<256x32xf32>
    %95 = tpu.matmul %93, %94, %cst_45 {dimension_numbers = #tpu.dot_dimension_numbers<[1], [0], [0], [1], [0, 0, 1, 1], [], []>} : vector<256x32xbf16>, vector<32x32xbf16>, vector<256x32xf32> -> vector<256x32xf32>
    %96 = arith.addf %91, %95 : vector<256x32xf32>
    %97 = vector.extract_strided_slice %60 {offsets = [1, 0, 0], sizes = [16, 16, 32], strides = [1, 1, 1]} : vector<18x16x32xbf16> to vector<16x16x32xbf16>
    %98 = vector.shape_cast %97 : vector<16x16x32xbf16> to vector<256x32xbf16>
    %c224 = arith.constant 224 : index
    %c0_46 = arith.constant 0 : index
    %99 = vector.load %arg5[%c224, %c0_46] : memref<288x32xbf16, #tpu.memory_space<vmem>>, vector<32x32xbf16>
    %cst_47 = arith.constant dense<0.000000e+00> : vector<256x32xf32>
    %100 = tpu.matmul %98, %99, %cst_47 {dimension_numbers = #tpu.dot_dimension_numbers<[1], [0], [0], [1], [0, 0, 1, 1], [], []>} : vector<256x32xbf16>, vector<32x32xbf16>, vector<256x32xf32> -> vector<256x32xf32>
    %101 = arith.addf %96, %100 : vector<256x32xf32>
    %102 = vector.extract_strided_slice %60 {offsets = [2, 0, 0], sizes = [16, 16, 32], strides = [1, 1, 1]} : vector<18x16x32xbf16> to vector<16x16x32xbf16>
    %103 = vector.shape_cast %102 : vector<16x16x32xbf16> to vector<256x32xbf16>
    %c256 = arith.constant 256 : index
    %c0_48 = arith.constant 0 : index
    %104 = vector.load %arg5[%c256, %c0_48] : memref<288x32xbf16, #tpu.memory_space<vmem>>, vector<32x32xbf16>
    %cst_49 = arith.constant dense<0.000000e+00> : vector<256x32xf32>
    %105 = tpu.matmul %103, %104, %cst_49 {dimension_numbers = #tpu.dot_dimension_numbers<[1], [0], [0], [1], [0, 0, 1, 1], [], []>} : vector<256x32xbf16>, vector<32x32xbf16>, vector<256x32xf32> -> vector<256x32xf32>
    %106 = arith.addf %101, %105 : vector<256x32xf32>
    %c0_50 = arith.constant 0 : index
    %c0_51 = arith.constant 0 : index
    %107 = vector.load %arg6[%c0_50, %c0_51] : memref<1x32xf32, #tpu.memory_space<vmem>>, vector<1x32xf32>
    %108 = vector.broadcast %107 : vector<1x32xf32> to vector<256x32xf32>
    %109 = arith.addf %106, %108 : vector<256x32xf32>
    %cst_52 = arith.constant 0.000000e+00 : f32
    %110 = vector.broadcast %cst_52 : f32 to vector<256x32xf32>
    %111 = arith.maximumf %109, %110 : vector<256x32xf32>
    %112 = arith.truncf %111 : vector<256x32xf32> to vector<256x32xbf16>
    %c0_53 = arith.constant 0 : index
    %c0_54 = arith.constant 0 : index
    %113 = vector.load %arg7[%c0_53, %c0_54] : memref<32x128xbf16, #tpu.memory_space<vmem>>, vector<32x128xbf16>
    %cst_55 = arith.constant dense<0.000000e+00> : vector<256x128xf32>
    %114 = tpu.matmul %112, %113, %cst_55 {dimension_numbers = #tpu.dot_dimension_numbers<[1], [0], [0], [1], [0, 0, 1, 1], [], []>} : vector<256x32xbf16>, vector<32x128xbf16>, vector<256x128xf32> -> vector<256x128xf32>
    %c0_56 = arith.constant 0 : index
    %c0_57 = arith.constant 0 : index
    %115 = vector.load %arg8[%c0_56, %c0_57] : memref<1x128xf32, #tpu.memory_space<vmem>>, vector<1x128xf32>
    %116 = vector.broadcast %115 : vector<1x128xf32> to vector<256x128xf32>
    %117 = arith.addf %114, %116 : vector<256x128xf32>
    %c0_58 = arith.constant 0 : index
    %118 = arith.index_cast %1 : i32 to index
    %c0_59 = arith.constant 0 : index
    %c0_60 = arith.constant 0 : index
    %119 = vector.load %arg2[%c0_58, %118, %c0_59, %c0_60] : memref<1x16x16x128xbf16, #tpu.memory_space<vmem>>, vector<1x16x16x128xbf16>
    %120 = vector.shape_cast %119 : vector<1x16x16x128xbf16> to vector<16x16x128xbf16>
    %121 = vector.shape_cast %120 : vector<16x16x128xbf16> to vector<256x128xbf16>
    %122 = arith.extf %121 : vector<256x128xbf16> to vector<256x128xf32>
    %123 = arith.addf %117, %122 : vector<256x128xf32>
    %cst_61 = arith.constant 0.000000e+00 : f32
    %124 = vector.broadcast %cst_61 : f32 to vector<256x128xf32>
    %125 = arith.maximumf %123, %124 : vector<256x128xf32>
    %126 = vector.shape_cast %125 : vector<256x128xf32> to vector<16x16x128xf32>
    %127 = arith.truncf %126 : vector<16x16x128xf32> to vector<16x16x128xbf16>
    %c0_62 = arith.constant 0 : index
    %c0_63 = arith.constant 0 : index
    %c0_64 = arith.constant 0 : index
    %c0_65 = arith.constant 0 : index
    %128 = vector.load %arg9[%c0_62, %c0_63, %c0_64, %c0_65] : memref<1x16x16x128xbf16, #tpu.memory_space<vmem>>, vector<1x16x16x128xbf16>
    %129 = vector.shape_cast %128 : vector<1x16x16x128xbf16> to vector<16x16x128xbf16>
    %130 = vector.shape_cast %127 : vector<16x16x128xbf16> to vector<1x16x16x128xbf16>
    tpu.vector_store %arg9[%c0_62, %c0_63, %c0_64, %c0_65], %130 {strides = array<i32>} : memref<1x16x16x128xbf16, #tpu.memory_space<vmem>>, vector<1x16x16x128xbf16>,
    return
  }
  func.func @transform_0(%arg0: i32, %arg1: i32) -> (i32, i32, i32, i32) {
    %c0_i32 = arith.constant 0 : i32
    %c0_i32_0 = arith.constant 0 : i32
    %c0_i32_1 = arith.constant 0 : i32
    %c0_i32_2 = arith.constant 0 : i32
    return %arg0, %c0_i32, %c0_i32_0, %c0_i32_1 : i32, i32, i32, i32
  }
  func.func @transform_1(%arg0: i32, %arg1: i32) -> (i32, i32) {
    %c0_i32 = arith.constant 0 : i32
    %c0_i32_0 = arith.constant 0 : i32
    %c0_i32_1 = arith.constant 0 : i32
    return %c0_i32, %c0_i32_0 : i32, i32
  }
  func.func @transform_2(%arg0: i32, %arg1: i32) -> (i32, i32) {
    %c0_i32 = arith.constant 0 : i32
    %c0_i32_0 = arith.constant 0 : i32
    %c0_i32_1 = arith.constant 0 : i32
    return %c0_i32, %c0_i32_0 : i32, i32
  }
  func.func @transform_3(%arg0: i32, %arg1: i32) -> (i32, i32) {
    %c0_i32 = arith.constant 0 : i32
    %c0_i32_0 = arith.constant 0 : i32
    %c0_i32_1 = arith.constant 0 : i32
    return %c0_i32, %c0_i32_0 : i32, i32
  }
  func.func @transform_4(%arg0: i32, %arg1: i32) -> (i32, i32) {
    %c0_i32 = arith.constant 0 : i32
    %c0_i32_0 = arith.constant 0 : i32
    %c0_i32_1 = arith.constant 0 : i32
    return %c0_i32, %c0_i32_0 : i32, i32
  }
  func.func @transform_5(%arg0: i32, %arg1: i32) -> (i32, i32) {
    %c0_i32 = arith.constant 0 : i32
    %c0_i32_0 = arith.constant 0 : i32
    %c0_i32_1 = arith.constant 0 : i32
    return %c0_i32, %c0_i32_0 : i32, i32
  }
  func.func @transform_6(%arg0: i32, %arg1: i32) -> (i32, i32) {
    %c0_i32 = arith.constant 0 : i32
    %c0_i32_0 = arith.constant 0 : i32
    %c0_i32_1 = arith.constant 0 : i32
    return %c0_i32, %c0_i32_0 : i32, i32
  }
  func.func @transform_7(%arg0: i32, %arg1: i32) -> (i32, i32, i32, i32) {
    %c0_i32 = arith.constant 0 : i32
    %c0_i32_0 = arith.constant 0 : i32
    %c0_i32_1 = arith.constant 0 : i32
    return %arg0, %arg1, %c0_i32, %c0_i32_0 : i32, i32, i32, i32
  }
}

module attributes {stable_mosaic.version = 11 : i64} {
  func.func @_bottleneck_kernel(%arg0: i32, %arg1: i32, %arg2: memref<1x16x16x128xbf16, #tpu.memory_space<vmem>>, %arg3: memref<128x32xbf16, #tpu.memory_space<vmem>>, %arg4: memref<1x32xf32, #tpu.memory_space<vmem>>, %arg5: memref<288x32xbf16, #tpu.memory_space<vmem>>, %arg6: memref<1x32xf32, #tpu.memory_space<vmem>>, %arg7: memref<32x128xbf16, #tpu.memory_space<vmem>>, %arg8: memref<1x128xf32, #tpu.memory_space<vmem>>, %arg9: memref<1x16x16x128xbf16, #tpu.memory_space<vmem>>) attributes {dimension_semantics = [#tpu.dimension_semantics<parallel>, #tpu.dimension_semantics<arbitrary>], iteration_bounds = array<i64: 2, 1>, scalar_prefetch = 0 : i64, scratch_operands = 0 : i64, tpu.core_type = #tpu.core_type<tc>, window_params = [{transform_indices = @transform_0, window_bounds = array<i64: 1, 16, 16, 128>}, {pipeline_mode = #tpu.pipeline_mode<synchronous>, transform_indices = @transform_1, window_bounds = array<i64: 128, 32>}, {pipeline_mode = #tpu.pipeline_mode<synchronous>, transform_indices = @transform_2, window_bounds = array<i64: 1, 32>}, {pipeline_mode = #tpu.pipeline_mode<synchronous>, transform_indices = @transform_3, window_bounds = array<i64: 288, 32>}, {pipeline_mode = #tpu.pipeline_mode<synchronous>, transform_indices = @transform_4, window_bounds = array<i64: 1, 32>}, {pipeline_mode = #tpu.pipeline_mode<synchronous>, transform_indices = @transform_5, window_bounds = array<i64: 32, 128>}, {pipeline_mode = #tpu.pipeline_mode<synchronous>, transform_indices = @transform_6, window_bounds = array<i64: 1, 128>}, {transform_indices = @transform_7, window_bounds = array<i64: 1, 16, 16, 128>}]} {
    %c16_i32 = arith.constant 16 : i32
    %0 = arith.muli %arg1, %c16_i32 : i32
    %1 = tpu.assume_multiple %0, 16 : i32
    %c0 = arith.constant 0 : index
    %2 = arith.index_cast %1 : i32 to index
    %c0_0 = arith.constant 0 : index
    %c0_1 = arith.constant 0 : index
    %3 = vector.load %arg2[%c0, %2, %c0_0, %c0_1] : memref<1x16x16x128xbf16, #tpu.memory_space<vmem>>, vector<1x16x16x128xbf16>
    %4 = vector.shape_cast %3 : vector<1x16x16x128xbf16> to vector<16x16x128xbf16>
    %5 = vector.shape_cast %4 : vector<16x16x128xbf16> to vector<256x128xbf16>
    %c0_2 = arith.constant 0 : index
    %c0_3 = arith.constant 0 : index
    %6 = vector.load %arg3[%c0_2, %c0_3] : memref<128x32xbf16, #tpu.memory_space<vmem>>, vector<128x32xbf16>
    %cst = arith.constant dense<0.000000e+00> : vector<256x32xf32>
    %7 = tpu.matmul %5, %6, %cst {dimension_numbers = #tpu.dot_dimension_numbers<[1], [0], [0], [1], [0, 0, 1, 1], [], []>} : vector<256x128xbf16>, vector<128x32xbf16>, vector<256x32xf32> -> vector<256x32xf32>
    %c0_4 = arith.constant 0 : index
    %c0_5 = arith.constant 0 : index
    %8 = vector.load %arg4[%c0_4, %c0_5] : memref<1x32xf32, #tpu.memory_space<vmem>>, vector<1x32xf32>
    %9 = vector.broadcast %8 : vector<1x32xf32> to vector<256x32xf32>
    %10 = arith.addf %7, %9 : vector<256x32xf32>
    %cst_6 = arith.constant 0.000000e+00 : f32
    %11 = vector.broadcast %cst_6 : f32 to vector<256x32xf32>
    %12 = arith.maximumf %10, %11 : vector<256x32xf32>
    %13 = vector.shape_cast %12 : vector<256x32xf32> to vector<16x16x32xf32>
    %c1_i32 = arith.constant 1 : i32
    %14 = arith.subi %1, %c1_i32 : i32
    %c0_i32 = arith.constant 0 : i32
    %15 = arith.maxsi %14, %c0_i32 : i32
    %c0_7 = arith.constant 0 : index
    %16 = arith.index_cast %15 : i32 to index
    %c0_8 = arith.constant 0 : index
    %c0_9 = arith.constant 0 : index
    %17 = vector.load %arg2[%c0_7, %16, %c0_8, %c0_9] : memref<1x16x16x128xbf16, #tpu.memory_space<vmem>>, vector<1x1x16x128xbf16>
    %18 = vector.shape_cast %17 : vector<1x1x16x128xbf16> to vector<1x16x128xbf16>
    %c16_i32_10 = arith.constant 16 : i32
    %19 = arith.addi %1, %c16_i32_10 : i32
    %c15_i32 = arith.constant 15 : i32
    %20 = arith.minsi %19, %c15_i32 : i32
    %c0_11 = arith.constant 0 : index
    %21 = arith.index_cast %20 : i32 to index
    %c0_12 = arith.constant 0 : index
    %c0_13 = arith.constant 0 : index
    %22 = vector.load %arg2[%c0_11, %21, %c0_12, %c0_13] : memref<1x16x16x128xbf16, #tpu.memory_space<vmem>>, vector<1x1x16x128xbf16>
    %23 = vector.shape_cast %22 : vector<1x1x16x128xbf16> to vector<1x16x128xbf16>
    %24 = tpu.concatenate %18, %23 in 0 : vector<1x16x128xbf16>, vector<1x16x128xbf16> -> vector<2x16x128xbf16>
    %25 = vector.shape_cast %24 : vector<2x16x128xbf16> to vector<32x128xbf16>
    %c0_14 = arith.constant 0 : index
    %c0_15 = arith.constant 0 : index
    %26 = vector.load %arg3[%c0_14, %c0_15] : memref<128x32xbf16, #tpu.memory_space<vmem>>, vector<128x32xbf16>
    %cst_16 = arith.constant dense<0.000000e+00> : vector<32x32xf32>
    %27 = tpu.matmul %25, %26, %cst_16 {dimension_numbers = #tpu.dot_dimension_numbers<[1], [0], [0], [1], [0, 0, 1, 1], [], []>} : vector<32x128xbf16>, vector<128x32xbf16>, vector<32x32xf32> -> vector<32x32xf32>
    %c0_17 = arith.constant 0 : index
    %c0_18 = arith.constant 0 : index
    %28 = vector.load %arg4[%c0_17, %c0_18] : memref<1x32xf32, #tpu.memory_space<vmem>>, vector<1x32xf32>
    %29 = vector.broadcast %28 : vector<1x32xf32> to vector<32x32xf32>
    %30 = arith.addf %27, %29 : vector<32x32xf32>
    %cst_19 = arith.constant 0.000000e+00 : f32
    %31 = vector.broadcast %cst_19 : f32 to vector<32x32xf32>
    %32 = arith.maximumf %30, %31 : vector<32x32xf32>
    %33 = vector.shape_cast %32 : vector<32x32xf32> to vector<2x16x32xf32>
    %c0_i32_20 = arith.constant 0 : i32
    %34 = arith.cmpi sgt, %arg1, %c0_i32_20 : i32
    %35 = vector.extract_strided_slice %33 {offsets = [0, 0, 0], sizes = [1, 16, 32], strides = [1, 1, 1]} : vector<2x16x32xf32> to vector<1x16x32xf32>
    %cst_21 = arith.constant 0.000000e+00 : f32
    %36 = vector.broadcast %cst_21 : f32 to vector<1x16x32xf32>
    %37 = arith.select %34, %35, %36 : vector<1x16x32xf32>
    %c0_i32_22 = arith.constant 0 : i32
    %38 = arith.cmpi slt, %arg1, %c0_i32_22 : i32
    %39 = vector.extract_strided_slice %33 {offsets = [1, 0, 0], sizes = [1, 16, 32], strides = [1, 1, 1]} : vector<2x16x32xf32> to vector<1x16x32xf32>
    %cst_23 = arith.constant 0.000000e+00 : f32
    %40 = vector.broadcast %cst_23 : f32 to vector<1x16x32xf32>
    %41 = arith.select %38, %39, %40 : vector<1x16x32xf32>
    %42 = tpu.concatenate %37, %13, %41 in 0 : vector<1x16x32xf32>, vector<16x16x32xf32>, vector<1x16x32xf32> -> vector<18x16x32xf32>
    %43 = tpu.iota {dimensions = array<i32: 1>} : vector<1x16x1xi32>
    %c1_i32_24 = arith.constant 1 : i32
    %44 = tpu.dynamic_rotate %42 by %c1_i32_24 dim 1 : vector<18x16x32xf32>, i32 -> vector<18x16x32xf32>
    %c1_i32_25 = arith.constant 1 : i32
    %45 = vector.broadcast %c1_i32_25 : i32 to vector<1x16x1xi32>
    %46 = arith.cmpi sge, %43, %45 : vector<1x16x1xi32>
    %cst_26 = arith.constant 0.000000e+00 : f32
    %47 = vector.shape_cast %46 : vector<1x16x1xi1> to vector<1x16x1xi1>
    %48 = vector.broadcast %47 : vector<1x16x1xi1> to vector<18x16x32xi1>
    %49 = vector.broadcast %cst_26 : f32 to vector<18x16x32xf32>
    %50 = arith.select %48, %44, %49 : vector<18x16x32xi1>, vector<18x16x32xf32>
    %51 = arith.truncf %50 : vector<18x16x32xf32> to vector<18x16x32xbf16>
    %52 = arith.truncf %42 : vector<18x16x32xf32> to vector<18x16x32xbf16>
    %c15_i32_27 = arith.constant 15 : i32
    %53 = tpu.dynamic_rotate %42 by %c15_i32_27 dim 1 : vector<18x16x32xf32>, i32 -> vector<18x16x32xf32>
    %c15_i32_28 = arith.constant 15 : i32
    %54 = vector.broadcast %c15_i32_28 : i32 to vector<1x16x1xi32>
    %55 = arith.cmpi slt, %43, %54 : vector<1x16x1xi32>
    %cst_29 = arith.constant 0.000000e+00 : f32
    %56 = vector.shape_cast %55 : vector<1x16x1xi1> to vector<1x16x1xi1>
    %57 = vector.broadcast %56 : vector<1x16x1xi1> to vector<18x16x32xi1>
    %58 = vector.broadcast %cst_29 : f32 to vector<18x16x32xf32>
    %59 = arith.select %57, %53, %58 : vector<18x16x32xi1>, vector<18x16x32xf32>
    %60 = arith.truncf %59 : vector<18x16x32xf32> to vector<18x16x32xbf16>
    %cst_30 = arith.constant 0.000000e+00 : f32
    %61 = vector.broadcast %cst_30 : f32 to vector<256x32xf32>
    %62 = vector.extract_strided_slice %51 {offsets = [0, 0, 0], sizes = [16, 16, 32], strides = [1, 1, 1]} : vector<18x16x32xbf16> to vector<16x16x32xbf16>
    %63 = vector.shape_cast %62 : vector<16x16x32xbf16> to vector<256x32xbf16>
    %c0_31 = arith.constant 0 : index
    %c0_32 = arith.constant 0 : index
    %64 = vector.load %arg5[%c0_31, %c0_32] : memref<288x32xbf16, #tpu.memory_space<vmem>>, vector<32x32xbf16>
    %cst_33 = arith.constant dense<0.000000e+00> : vector<256x32xf32>
    %65 = tpu.matmul %63, %64, %cst_33 {dimension_numbers = #tpu.dot_dimension_numbers<[1], [0], [0], [1], [0, 0, 1, 1], [], []>} : vector<256x32xbf16>, vector<32x32xbf16>, vector<256x32xf32> -> vector<256x32xf32>
    %66 = arith.addf %61, %65 : vector<256x32xf32>
    %67 = vector.extract_strided_slice %51 {offsets = [1, 0, 0], sizes = [16, 16, 32], strides = [1, 1, 1]} : vector<18x16x32xbf16> to vector<16x16x32xbf16>
    %68 = vector.shape_cast %67 : vector<16x16x32xbf16> to vector<256x32xbf16>
    %c32 = arith.constant 32 : index
    %c0_34 = arith.constant 0 : index
    %69 = vector.load %arg5[%c32, %c0_34] : memref<288x32xbf16, #tpu.memory_space<vmem>>, vector<32x32xbf16>
    %cst_35 = arith.constant dense<0.000000e+00> : vector<256x32xf32>
    %70 = tpu.matmul %68, %69, %cst_35 {dimension_numbers = #tpu.dot_dimension_numbers<[1], [0], [0], [1], [0, 0, 1, 1], [], []>} : vector<256x32xbf16>, vector<32x32xbf16>, vector<256x32xf32> -> vector<256x32xf32>
    %71 = arith.addf %66, %70 : vector<256x32xf32>
    %72 = vector.extract_strided_slice %51 {offsets = [2, 0, 0], sizes = [16, 16, 32], strides = [1, 1, 1]} : vector<18x16x32xbf16> to vector<16x16x32xbf16>
    %73 = vector.shape_cast %72 : vector<16x16x32xbf16> to vector<256x32xbf16>
    %c64 = arith.constant 64 : index
    %c0_36 = arith.constant 0 : index
    %74 = vector.load %arg5[%c64, %c0_36] : memref<288x32xbf16, #tpu.memory_space<vmem>>, vector<32x32xbf16>
    %cst_37 = arith.constant dense<0.000000e+00> : vector<256x32xf32>
    %75 = tpu.matmul %73, %74, %cst_37 {dimension_numbers = #tpu.dot_dimension_numbers<[1], [0], [0], [1], [0, 0, 1, 1], [], []>} : vector<256x32xbf16>, vector<32x32xbf16>, vector<256x32xf32> -> vector<256x32xf32>
    %76 = arith.addf %71, %75 : vector<256x32xf32>
    %77 = vector.extract_strided_slice %52 {offsets = [0, 0, 0], sizes = [16, 16, 32], strides = [1, 1, 1]} : vector<18x16x32xbf16> to vector<16x16x32xbf16>
    %78 = vector.shape_cast %77 : vector<16x16x32xbf16> to vector<256x32xbf16>
    %c96 = arith.constant 96 : index
    %c0_38 = arith.constant 0 : index
    %79 = vector.load %arg5[%c96, %c0_38] : memref<288x32xbf16, #tpu.memory_space<vmem>>, vector<32x32xbf16>
    %cst_39 = arith.constant dense<0.000000e+00> : vector<256x32xf32>
    %80 = tpu.matmul %78, %79, %cst_39 {dimension_numbers = #tpu.dot_dimension_numbers<[1], [0], [0], [1], [0, 0, 1, 1], [], []>} : vector<256x32xbf16>, vector<32x32xbf16>, vector<256x32xf32> -> vector<256x32xf32>
    %81 = arith.addf %76, %80 : vector<256x32xf32>
    %82 = vector.extract_strided_slice %52 {offsets = [1, 0, 0], sizes = [16, 16, 32], strides = [1, 1, 1]} : vector<18x16x32xbf16> to vector<16x16x32xbf16>
    %83 = vector.shape_cast %82 : vector<16x16x32xbf16> to vector<256x32xbf16>
    %c128 = arith.constant 128 : index
    %c0_40 = arith.constant 0 : index
    %84 = vector.load %arg5[%c128, %c0_40] : memref<288x32xbf16, #tpu.memory_space<vmem>>, vector<32x32xbf16>
    %cst_41 = arith.constant dense<0.000000e+00> : vector<256x32xf32>
    %85 = tpu.matmul %83, %84, %cst_41 {dimension_numbers = #tpu.dot_dimension_numbers<[1], [0], [0], [1], [0, 0, 1, 1], [], []>} : vector<256x32xbf16>, vector<32x32xbf16>, vector<256x32xf32> -> vector<256x32xf32>
    %86 = arith.addf %81, %85 : vector<256x32xf32>
    %87 = vector.extract_strided_slice %52 {offsets = [2, 0, 0], sizes = [16, 16, 32], strides = [1, 1, 1]} : vector<18x16x32xbf16> to vector<16x16x32xbf16>
    %88 = vector.shape_cast %87 : vector<16x16x32xbf16> to vector<256x32xbf16>
    %c160 = arith.constant 160 : index
    %c0_42 = arith.constant 0 : index
    %89 = vector.load %arg5[%c160, %c0_42] : memref<288x32xbf16, #tpu.memory_space<vmem>>, vector<32x32xbf16>
    %cst_43 = arith.constant dense<0.000000e+00> : vector<256x32xf32>
    %90 = tpu.matmul %88, %89, %cst_43 {dimension_numbers = #tpu.dot_dimension_numbers<[1], [0], [0], [1], [0, 0, 1, 1], [], []>} : vector<256x32xbf16>, vector<32x32xbf16>, vector<256x32xf32> -> vector<256x32xf32>
    %91 = arith.addf %86, %90 : vector<256x32xf32>
    %92 = vector.extract_strided_slice %60 {offsets = [0, 0, 0], sizes = [16, 16, 32], strides = [1, 1, 1]} : vector<18x16x32xbf16> to vector<16x16x32xbf16>
    %93 = vector.shape_cast %92 : vector<16x16x32xbf16> to vector<256x32xbf16>
    %c192 = arith.constant 192 : index
    %c0_44 = arith.constant 0 : index
    %94 = vector.load %arg5[%c192, %c0_44] : memref<288x32xbf16, #tpu.memory_space<vmem>>, vector<32x32xbf16>
    %cst_45 = arith.constant dense<0.000000e+00> : vector<256x32xf32>
    %95 = tpu.matmul %93, %94, %cst_45 {dimension_numbers = #tpu.dot_dimension_numbers<[1], [0], [0], [1], [0, 0, 1, 1], [], []>} : vector<256x32xbf16>, vector<32x32xbf16>, vector<256x32xf32> -> vector<256x32xf32>
    %96 = arith.addf %91, %95 : vector<256x32xf32>
    %97 = vector.extract_strided_slice %60 {offsets = [1, 0, 0], sizes = [16, 16, 32], strides = [1, 1, 1]} : vector<18x16x32xbf16> to vector<16x16x32xbf16>
    %98 = vector.shape_cast %97 : vector<16x16x32xbf16> to vector<256x32xbf16>
    %c224 = arith.constant 224 : index
    %c0_46 = arith.constant 0 : index
    %99 = vector.load %arg5[%c224, %c0_46] : memref<288x32xbf16, #tpu.memory_space<vmem>>, vector<32x32xbf16>
    %cst_47 = arith.constant dense<0.000000e+00> : vector<256x32xf32>
    %100 = tpu.matmul %98, %99, %cst_47 {dimension_numbers = #tpu.dot_dimension_numbers<[1], [0], [0], [1], [0, 0, 1, 1], [], []>} : vector<256x32xbf16>, vector<32x32xbf16>, vector<256x32xf32> -> vector<256x32xf32>
    %101 = arith.addf %96, %100 : vector<256x32xf32>
    %102 = vector.extract_strided_slice %60 {offsets = [2, 0, 0], sizes = [16, 16, 32], strides = [1, 1, 1]} : vector<18x16x32xbf16> to vector<16x16x32xbf16>
    %103 = vector.shape_cast %102 : vector<16x16x32xbf16> to vector<256x32xbf16>
    %c256 = arith.constant 256 : index
    %c0_48 = arith.constant 0 : index
    %104 = vector.load %arg5[%c256, %c0_48] : memref<288x32xbf16, #tpu.memory_space<vmem>>, vector<32x32xbf16>
    %cst_49 = arith.constant dense<0.000000e+00> : vector<256x32xf32>
    %105 = tpu.matmul %103, %104, %cst_49 {dimension_numbers = #tpu.dot_dimension_numbers<[1], [0], [0], [1], [0, 0, 1, 1], [], []>} : vector<256x32xbf16>, vector<32x32xbf16>, vector<256x32xf32> -> vector<256x32xf32>
    %106 = arith.addf %101, %105 : vector<256x32xf32>
    %c0_50 = arith.constant 0 : index
    %c0_51 = arith.constant 0 : index
    %107 = vector.load %arg6[%c0_50, %c0_51] : memref<1x32xf32, #tpu.memory_space<vmem>>, vector<1x32xf32>
    %108 = vector.broadcast %107 : vector<1x32xf32> to vector<256x32xf32>
    %109 = arith.addf %106, %108 : vector<256x32xf32>
    %cst_52 = arith.constant 0.000000e+00 : f32
    %110 = vector.broadcast %cst_52 : f32 to vector<256x32xf32>
    %111 = arith.maximumf %109, %110 : vector<256x32xf32>
    %112 = arith.truncf %111 : vector<256x32xf32> to vector<256x32xbf16>
    %c0_53 = arith.constant 0 : index
    %c0_54 = arith.constant 0 : index
    %113 = vector.load %arg7[%c0_53, %c0_54] : memref<32x128xbf16, #tpu.memory_space<vmem>>, vector<32x128xbf16>
    %cst_55 = arith.constant dense<0.000000e+00> : vector<256x128xf32>
    %114 = tpu.matmul %112, %113, %cst_55 {dimension_numbers = #tpu.dot_dimension_numbers<[1], [0], [0], [1], [0, 0, 1, 1], [], []>} : vector<256x32xbf16>, vector<32x128xbf16>, vector<256x128xf32> -> vector<256x128xf32>
    %c0_56 = arith.constant 0 : index
    %c0_57 = arith.constant 0 : index
    %115 = vector.load %arg8[%c0_56, %c0_57] : memref<1x128xf32, #tpu.memory_space<vmem>>, vector<1x128xf32>
    %116 = vector.broadcast %115 : vector<1x128xf32> to vector<256x128xf32>
    %117 = arith.addf %114, %116 : vector<256x128xf32>
    %c0_58 = arith.constant 0 : index
    %118 = arith.index_cast %1 : i32 to index
    %c0_59 = arith.constant 0 : index
    %c0_60 = arith.constant 0 : index
    %119 = vector.load %arg2[%c0_58, %118, %c0_59, %c0_60] : memref<1x16x16x128xbf16, #tpu.memory_space<vmem>>, vector<1x16x16x128xbf16>
    %120 = vector.shape_cast %119 : vector<1x16x16x128xbf16> to vector<16x16x128xbf16>
    %121 = vector.shape_cast %120 : vector<16x16x128xbf16> to vector<256x128xbf16>
    %122 = arith.extf %121 : vector<256x128xbf16> to vector<256x128xf32>
    %123 = arith.addf %117, %122 : vector<256x128xf32>
    %cst_61 = arith.constant 0.000000e+00 : f32
    %124 = vector.broadcast %cst_61 : f32 to vector<256x128xf32>
    %125 = arith.maximumf %123, %124 : vector<256x128xf32>
    %126 = vector.shape_cast %125 : vector<256x128xf32> to vector<16x16x128xf32>
    %127 = arith.truncf %126 : vector<16x16x128xf32> to vector<16x16x128xbf16>
    %c0_62 = arith.constant 0 : index
    %c0_63 = arith.constant 0 : index
    %c0_64 = arith.constant 0 : index
    %c0_65 = arith.constant 0 : index
    %128 = vector.load %arg9[%c0_62, %c0_63, %c0_64, %c0_65] : memref<1x16x16x128xbf16, #tpu.memory_space<vmem>>, vector<1x16x16x128xbf16>
    %129 = vector.shape_cast %128 : vector<1x16x16x128xbf16> to vector<16x16x128xbf16>
    %130 = vector.shape_cast %127 : vector<16x16x128xbf16> to vector<1x16x16x128xbf16>
    tpu.vector_store %arg9[%c0_62, %c0_63, %c0_64, %c0_65], %130 {strides = array<i32>} : memref<1x16x16x128xbf16, #tpu.memory_space<vmem>>, vector<1x16x16x128xbf16>,
    return
  }
  func.func @transform_0(%arg0: i32, %arg1: i32) -> (i32, i32, i32, i32) {
    %c0_i32 = arith.constant 0 : i32
    %c0_i32_0 = arith.constant 0 : i32
    %c0_i32_1 = arith.constant 0 : i32
    %c0_i32_2 = arith.constant 0 : i32
    return %arg0, %c0_i32, %c0_i32_0, %c0_i32_1 : i32, i32, i32, i32
  }
  func.func @transform_1(%arg0: i32, %arg1: i32) -> (i32, i32) {
    %c0_i32 = arith.constant 0 : i32
    %c0_i32_0 = arith.constant 0 : i32
    %c0_i32_1 = arith.constant 0 : i32
    return %c0_i32, %c0_i32_0 : i32, i32
  }
  func.func @transform_2(%arg0: i32, %arg1: i32) -> (i32, i32) {
    %c0_i32 = arith.constant 0 : i32
    %c0_i32_0 = arith.constant 0 : i32
    %c0_i32_1 = arith.constant 0 : i32
    return %c0_i32, %c0_i32_0 : i32, i32
  }
  func.func @transform_3(%arg0: i32, %arg1: i32) -> (i32, i32) {
    %c0_i32 = arith.constant 0 : i32
    %c0_i32_0 = arith.constant 0 : i32
    %c0_i32_1 = arith.constant 0 : i32
    return %c0_i32, %c0_i32_0 : i32, i32
  }
  func.func @transform_4(%arg0: i32, %arg1: i32) -> (i32, i32) {
    %c0_i32 = arith.constant 0 : i32
    %c0_i32_0 = arith.constant 0 : i32
    %c0_i32_1 = arith.constant 0 : i32
    return %c0_i32, %c0_i32_0 : i32, i32
  }
  func.func @transform_5(%arg0: i32, %arg1: i32) -> (i32, i32) {
    %c0_i32 = arith.constant 0 : i32
    %c0_i32_0 = arith.constant 0 : i32
    %c0_i32_1 = arith.constant 0 : i32
    return %c0_i32, %c0_i32_0 : i32, i32
  }
  func.func @transform_6(%arg0: i32, %arg1: i32) -> (i32, i32) {
    %c0_i32 = arith.constant 0 : i32
    %c0_i32_0 = arith.constant 0 : i32
    %c0_i32_1 = arith.constant 0 : i32
    return %c0_i32, %c0_i32_0 : i32, i32
  }
  func.func @transform_7(%arg0: i32, %arg1: i32) -> (i32, i32, i32, i32) {
    %c0_i32 = arith.constant 0 : i32
    %c0_i32_0 = arith.constant 0 : i32
    %c0_i32_1 = arith.constant 0 : i32
    return %arg0, %arg1, %c0_i32, %c0_i32_0 : i32, i32, i32, i32
  }
}

</mosaic_0001>

<llo_original>
// kernel: tpu_custom_call.1
$region0: #{tpu_custom_call.1}
  #allocation0 [shape = 'u32[]', space=smem, size = 0x4, offset = 0x4, fixed_abs, tag = 'smem constant byte address 0x4 - core index']
  #allocation1 [shape = 'u32[144,128]{1,0:T(1,128)}', space=vmem, size = 0x12000, scoped, tag = 'internal scratch']
  %s0 = inlined_call_operand.vmem [shape: bf16[2,16,16,128], index: 0, kind: input, shape index: {}]
  %s1 = inlined_call_operand.vmem [shape: bf16[128,32], index: 1, kind: input, shape index: {}]
  %s2 = inlined_call_operand.vmem [shape: f32[1,32], index: 2, kind: input, shape index: {}]
  %s3 = inlined_call_operand.vmem [shape: bf16[288,32], index: 3, kind: input, shape index: {}]
  %s4 = inlined_call_operand.vmem [shape: f32[1,32], index: 4, kind: input, shape index: {}]
  %s5 = inlined_call_operand.vmem [shape: bf16[32,128], index: 5, kind: input, shape index: {}]
  %s6 = inlined_call_operand.vmem [shape: f32[1,128], index: 6, kind: input, shape index: {}]
  %s7 = inlined_call_operand.hbm [shape: bf16[2,16,16,128], index: 7, kind: output, shape index: {}]
  %s8 = sld [smem:[#allocation0]]
  $region61: #{tpu_custom_call.1} parent=0
    _
  %s10 = ssub.s32 1, %s8
  %s11 = scalar_select 0, %s10, %s8
  $region1: #{tpu_custom_call.1} parent=0
    #allocation2 [shape = 'u8[131072]{0}', space=vmem, size = 0x20000, scoped, tag = 'output window, operand 0']
    #allocation3 [shape = 's32[2]{0}', space=sflag, size = 0x8, scoped, tag = 'scoped memory for tpu_custom_call.1']
    %12 = vsyncpa [#allocation3], 0
    %s13 = scalar_lea.sflag [#allocation3], 1
    %14 = vsyncpa %s13, 0
    loop: start=0, step=1, limit=4
    $region2: #{tpu_custom_call.1} parent=1 // loop_pre_header
      _
    $region3: #{tpu_custom_call.1} parent=1 // loop_header
      %s16 = sphi 0, %s20
      %p17 = scmp.ge.s32.totalorder %s16, 4
      %s23 = sphi 0, %s35
      %s24 = sphi 0, %s31
      %s25 = sphi 0, %s23
      %s26 = sphi 0, %s24
      %s27 = sphi 0, %s25
      %s28 = sphi 0, %s26
      %s38 = sphi 0, %s40
      %s41 = sphi 0, %s38
      %s42 = sphi 0, %s41
      %s58 = sphi 0, %s42
      %s62 = sphi 0, %s62
      %s64 = sphi 0, %s62
      %s65 = sphi 0, %s64
      %s79 = sphi 0, %s65
      %s83 = sphi 0, %s83
      %s85 = sphi 0, %s83
      %s86 = sphi 0, %s85
      %s100 = sphi 0, %s86
      %s104 = sphi 0, %s104
      %s106 = sphi 0, %s104
      %s107 = sphi 0, %s106
      %s121 = sphi 0, %s107
      %s125 = sphi 0, %s125
      %s127 = sphi 0, %s125
      %s128 = sphi 0, %s127
      %s142 = sphi 0, %s128
      %s146 = sphi 0, %s146
      %s148 = sphi 0, %s146
      %s149 = sphi 0, %s148
      %s163 = sphi 0, %s149
      %s167 = sphi 0, %s167
      %s169 = sphi 0, %s167
      %s170 = sphi 0, %s169
      %s184 = sphi 0, %s170
      %s192 = sphi 0, %s194
      %s195 = sphi 0, %s192
      %s196 = sphi 0, %s195
      %s212 = sphi 0, %s196
    $region4: #{tpu_custom_call.1} parent=1 // loop_header_branch
      %19 = sbr.rel (%p17) target = $region8
    $region5: #{tpu_custom_call.1} parent=1 // loop_body
      %s21 = ssub.s32 %s16, 1
      %s22 = ssub.s32 %s16, 2
      %s29 = sadd.s32 1, %s24
      %p30 = scmp.ge.s32.totalorder %s29, 1
      %s31 = scalar_select %p30, 0, %s29
      %s32 = sadd.s32 1, %s23
      %s33 = scalar_select %p30, %s32, %s23
      %p34 = scmp.ge.s32.totalorder %s33, 2
      %s35 = scalar_select %p34, 0, %s33
      %s36 = ssub.s32 %s23, %s35
      %p37 = scmp.eq.s32.totalorder %s36, 0
      %s39 = sadd.s32 %s38, 1
      %s40 = scalar_select %p37, %s38, %s39
      %p43 = pneg %p37
      %p44 = scmp.eq.s32.totalorder %s16, 1
      %p45 = por %p43, %p44
      %p46 = scmp.ne.s32.totalorder %s38, %s41
      %p47 = scmp.eq.s32.totalorder %s16, 0
      %p48 = por %p46, %p47
      %p49 = scmp.ne.s32.totalorder %s38, %s41
      %p50 = scmp.eq.s32.totalorder %s21, 1
      %p51 = por %p49, %p50
      %p52 = scmp.ne.s32.totalorder %s41, %s42
      %p53 = scmp.eq.s32.totalorder %s21, 0
      %p54 = por %p52, %p53
      %p55 = scmp.ne.s32.totalorder %s41, %s42
      %p56 = scmp.eq.s32.totalorder %s22, 1
      %p57 = por %p55, %p56
      %p59 = scmp.ne.s32.totalorder %s42, %s58
      %p60 = scmp.eq.s32.totalorder %s22, 0
      %p61 = por %p59, %p60
      %s63 = sadd.s32 %s62, 1
      %p66 = scmp.eq.s32.totalorder %s16, 1
      %p67 = scmp.ne.s32.totalorder %s62, %s64
      %p68 = scmp.eq.s32.totalorder %s16, 0
      %p69 = por %p67, %p68
      %p70 = scmp.ne.s32.totalorder %s62, %s64
      %p71 = scmp.eq.s32.totalorder %s21, 1
      %p72 = por %p70, %p71
      %p73 = scmp.ne.s32.totalorder %s64, %s65
      %p74 = scmp.eq.s32.totalorder %s21, 0
      %p75 = por %p73, %p74
      %p76 = scmp.ne.s32.totalorder %s64, %s65
      %p77 = scmp.eq.s32.totalorder %s22, 1
      %p78 = por %p76, %p77
      %p80 = scmp.ne.s32.totalorder %s65, %s79
      %p81 = scmp.eq.s32.totalorder %s22, 0
      %p82 = por %p80, %p81
      %s84 = sadd.s32 %s83, 1
      %p87 = scmp.eq.s32.totalorder %s16, 1
      %p88 = scmp.ne.s32.totalorder %s83, %s85
      %p89 = scmp.eq.s32.totalorder %s16, 0
      %p90 = por %p88, %p89
      %p91 = scmp.ne.s32.totalorder %s83, %s85
      %p92 = scmp.eq.s32.totalorder %s21, 1
      %p93 = por %p91, %p92
      %p94 = scmp.ne.s32.totalorder %s85, %s86
      %p95 = scmp.eq.s32.totalorder %s21, 0
      %p96 = por %p94, %p95
      %p97 = scmp.ne.s32.totalorder %s85, %s86
      %p98 = scmp.eq.s32.totalorder %s22, 1
      %p99 = por %p97, %p98
      %p101 = scmp.ne.s32.totalorder %s86, %s100
      %p102 = scmp.eq.s32.totalorder %s22, 0
      %p103 = por %p101, %p102
      %s105 = sadd.s32 %s104, 1
      %p108 = scmp.eq.s32.totalorder %s16, 1
      %p109 = scmp.ne.s32.totalorder %s104, %s106
      %p110 = scmp.eq.s32.totalorder %s16, 0
      %p111 = por %p109, %p110
      %p112 = scmp.ne.s32.totalorder %s104, %s106
      %p113 = scmp.eq.s32.totalorder %s21, 1
      %p114 = por %p112, %p113
      %p115 = scmp.ne.s32.totalorder %s106, %s107
      %p116 = scmp.eq.s32.totalorder %s21, 0
      %p117 = por %p115, %p116
      %p118 = scmp.ne.s32.totalorder %s106, %s107
      %p119 = scmp.eq.s32.totalorder %s22, 1
      %p120 = por %p118, %p119
      %p122 = scmp.ne.s32.totalorder %s107, %s121
      %p123 = scmp.eq.s32.totalorder %s22, 0
      %p124 = por %p122, %p123
      %s126 = sadd.s32 %s125, 1
      %p129 = scmp.eq.s32.totalorder %s16, 1
      %p130 = scmp.ne.s32.totalorder %s125, %s127
      %p131 = scmp.eq.s32.totalorder %s16, 0
      %p132 = por %p130, %p131
      %p133 = scmp.ne.s32.totalorder %s125, %s127
      %p134 = scmp.eq.s32.totalorder %s21, 1
      %p135 = por %p133, %p134
      %p136 = scmp.ne.s32.totalorder %s127, %s128
      %p137 = scmp.eq.s32.totalorder %s21, 0
      %p138 = por %p136, %p137
      %p139 = scmp.ne.s32.totalorder %s127, %s128
      %p140 = scmp.eq.s32.totalorder %s22, 1
      %p141 = por %p139, %p140
      %p143 = scmp.ne.s32.totalorder %s128, %s142
      %p144 = scmp.eq.s32.totalorder %s22, 0
      %p145 = por %p143, %p144
      %s147 = sadd.s32 %s146, 1
      %p150 = scmp.eq.s32.totalorder %s16, 1
      %p151 = scmp.ne.s32.totalorder %s146, %s148
      %p152 = scmp.eq.s32.totalorder %s16, 0
      %p153 = por %p151, %p152
      %p154 = scmp.ne.s32.totalorder %s146, %s148
      %p155 = scmp.eq.s32.totalorder %s21, 1
      %p156 = por %p154, %p155
      %p157 = scmp.ne.s32.totalorder %s148, %s149
      %p158 = scmp.eq.s32.totalorder %s21, 0
      %p159 = por %p157, %p158
      %p160 = scmp.ne.s32.totalorder %s148, %s149
      %p161 = scmp.eq.s32.totalorder %s22, 1
      %p162 = por %p160, %p161
      %p164 = scmp.ne.s32.totalorder %s149, %s163
      %p165 = scmp.eq.s32.totalorder %s22, 0
      %p166 = por %p164, %p165
      %s168 = sadd.s32 %s167, 1
      %p171 = scmp.eq.s32.totalorder %s16, 1
      %p172 = scmp.ne.s32.totalorder %s167, %s169
      %p173 = scmp.eq.s32.totalorder %s16, 0
      %p174 = por %p172, %p173
      %p175 = scmp.ne.s32.totalorder %s167, %s169
      %p176 = scmp.eq.s32.totalorder %s21, 1
      %p177 = por %p175, %p176
      %p178 = scmp.ne.s32.totalorder %s169, %s170
      %p179 = scmp.eq.s32.totalorder %s21, 0
      %p180 = por %p178, %p179
      %p181 = scmp.ne.s32.totalorder %s169, %s170
      %p182 = scmp.eq.s32.totalorder %s22, 1
      %p183 = por %p181, %p182
      %p185 = scmp.ne.s32.totalorder %s170, %s184
      %p186 = scmp.eq.s32.totalorder %s22, 0
      %p187 = por %p185, %p186
      %s188 = ssub.s32 %s23, %s35
      %s189 = ssub.s32 %s24, %s31
      %s190 = sor.u32 %s188, %s189
      %p191 = scmp.eq.s32.totalorder %s190, 0
      %s193 = sadd.s32 %s192, 1
      %s194 = scalar_select %p191, %s192, %s193
      %p197 = pneg %p191
      %p198 = scmp.eq.s32.totalorder %s16, 1
      %p199 = por %p197, %p198
      %p200 = scmp.ne.s32.totalorder %s192, %s195
      %p201 = scmp.eq.s32.totalorder %s16, 0
      %p202 = por %p200, %p201
      %p203 = scmp.ne.s32.totalorder %s192, %s195
      %p204 = scmp.eq.s32.totalorder %s21, 1
      %p205 = por %p203, %p204
      %p206 = scmp.ne.s32.totalorder %s195, %s196
      %p207 = scmp.eq.s32.totalorder %s21, 0
      %p208 = por %p206, %p207
      %p209 = scmp.ne.s32.totalorder %s195, %s196
      %p210 = scmp.eq.s32.totalorder %s22, 1
      %p211 = por %p209, %p210
      %p213 = scmp.ne.s32.totalorder %s196, %s212
      %p214 = scmp.eq.s32.totalorder %s22, 0
      %p215 = por %p213, %p214
      %p216 = scmp.le.s32.totalorder 1, %s16
      %p217 = scmp.lt.s32.totalorder %s16, 3
      %p218 = pnand %p216, %p217
      %p219 = pneg %p218
      // Predicated region
      $region9: #{tpu_custom_call.1} parent=5 // pred_check
        _
      $region10: #{tpu_custom_call.1} parent=5 // pred_check_branch
        %221 = sbr.rel (%p218) target = $region12
      $region11: #{tpu_custom_call.1} parent=5 // pred_region
        %s222 = ssub.s32 %s16, 1
        // Predicated region
        $region13: #{tpu_custom_call.1} parent=11 // pred_check
          %p223 = pneg %p75
        $region14: #{tpu_custom_call.1} parent=11 // pred_check_branch
          %225 = sbr.rel (%p223) target = $region16
        $region15: #{tpu_custom_call.1} parent=11 // pred_region
          _
        $region16: #{tpu_custom_call.1} parent=11 // pred_fallthru
          _
        // Predicated region
        $region17: #{tpu_custom_call.1} parent=11 // pred_check
          %p226 = pneg %p96
        $region18: #{tpu_custom_call.1} parent=11 // pred_check_branch
          %228 = sbr.rel (%p226) target = $region20
        $region19: #{tpu_custom_call.1} parent=11 // pred_region
          _
        $region20: #{tpu_custom_call.1} parent=11 // pred_fallthru
          _
        // Predicated region
        $region21: #{tpu_custom_call.1} parent=11 // pred_check
          %p229 = pneg %p117
        $region22: #{tpu_custom_call.1} parent=11 // pred_check_branch
          %231 = sbr.rel (%p229) target = $region24
        $region23: #{tpu_custom_call.1} parent=11 // pred_region
          _
        $region24: #{tpu_custom_call.1} parent=11 // pred_fallthru
          _
        // Predicated region
        $region25: #{tpu_custom_call.1} parent=11 // pred_check
          %p232 = pneg %p138
        $region26: #{tpu_custom_call.1} parent=11 // pred_check_branch
          %234 = sbr.rel (%p232) target = $region28
        $region27: #{tpu_custom_call.1} parent=11 // pred_region
          _
        $region28: #{tpu_custom_call.1} parent=11 // pred_fallthru
          _
        // Predicated region
        $region29: #{tpu_custom_call.1} parent=11 // pred_check
          %p235 = pneg %p159
        $region30: #{tpu_custom_call.1} parent=11 // pred_check_branch
          %237 = sbr.rel (%p235) target = $region32
        $region31: #{tpu_custom_call.1} parent=11 // pred_region
          _
        $region32: #{tpu_custom_call.1} parent=11 // pred_fallthru
          _
        // Predicated region
        $region33: #{tpu_custom_call.1} parent=11 // pred_check
          %p238 = pneg %p180
        $region34: #{tpu_custom_call.1} parent=11 // pred_check_branch
          %240 = sbr.rel (%p238) target = $region36
        $region35: #{tpu_custom_call.1} parent=11 // pred_region
          _
        $region36: #{tpu_custom_call.1} parent=11 // pred_fallthru
          _
      $region12: #{tpu_custom_call.1} parent=5 // pred_fallthru
        _
      %p241 = scmp.lt.s32.totalorder %s16, 2
      // Predicated region
      $region37: #{tpu_custom_call.1} parent=5 // pred_check
        %p242 = pneg %p241
      $region38: #{tpu_custom_call.1} parent=5 // pred_check_branch
        %244 = sbr.rel (%p242) target = $region40
      $region39: #{tpu_custom_call.1} parent=5 // pred_region
        // Predicated region
        $region41: #{tpu_custom_call.1} parent=39 // pred_check
          %p245 = pneg %p48
        $region42: #{tpu_custom_call.1} parent=39 // pred_check_branch
          %247 = sbr.rel (%p245) target = $region44
        $region43: #{tpu_custom_call.1} parent=39 // pred_region
          %p248 = scmp.lt.s32.totalorder %s23, 1
          %s249 = scalar_select %p248, %s23, 1
          %s250 = smul.addr %s249, 32
          %s251 = smul.addr %s250, 4
          %s252 = scalar_lea.vmem %s0, %s251
        $region44: #{tpu_custom_call.1} parent=39 // pred_fallthru
          _
      $region40: #{tpu_custom_call.1} parent=5 // pred_fallthru
        _
      %p253 = scmp.le.s32.totalorder 1, %s16
      %p254 = scmp.lt.s32.totalorder %s16, 3
      %p255 = pnand %p253, %p254
      %p256 = pneg %p255
      // Predicated region
      $region45: #{tpu_custom_call.1} parent=5 // pred_check
        _
      $region46: #{tpu_custom_call.1} parent=5 // pred_check_branch
        %258 = sbr.rel (%p255) target = $region48
      $region47: #{tpu_custom_call.1} parent=5 // pred_region
        %s259 = ssub.s32 %s16, 1
        %p260 = scmp.lt.s32.totalorder %s25, 1
        %s261 = scalar_select %p260, %s25, 1
        %s262 = smul.addr %s261, 32
        %s263 = smul.addr %s262, 4
        %s264 = scalar_lea.vmem %s0, %s263
        %p265 = pneg %p54
        %p266 = pneg %p51
        %p267 = pneg %p75
        %p268 = pneg %p72
        %p269 = pneg %p96
        %p270 = pneg %p93
        %p271 = pneg %p117
        %p272 = pneg %p114
        %p273 = pneg %p138
        %p274 = pneg %p135
        %p275 = pneg %p159
        %p276 = pneg %p156
        %p277 = pneg %p180
        %p278 = pneg %p177
        %p279 = pneg %p208
        %p280 = pneg %p205
        %s281 = sand.u32 %s195, 1
        %s282 = scalar_lea.sflag [#allocation3], %s281
        %s283 = sand.u32 %s195, 1
        %s284 = smul.addr %s283, 128
        %s285 = scalar_lea.vmem [#allocation2], %s284
        %p286 = scmp.lt.s32.totalorder %s25, 1
        %s287 = scalar_select %p286, %s25, 1
        %s288 = smul.addr %s287, 32
        %s289 = smul.addr %s288, 4
        %s290 = scalar_lea.vmem %s0, %s289
        %s291 = smul.u32 16, %s26
        %s293 = smul.u32 %s26, 16
        %s294 = smul.u32 %s293, 2
        %s295 = smul.addr %s294, 4
        %s296 = scalar_lea.vmem %s290, %s295
        %v297 = vld [vmem:[%s296] sm:$0xf]
        %v298 = vld [vmem:[%s296 + $0x4] sm:$0xf]
        %v299 = vld [vmem:[%s296 + $0x8] sm:$0xf]
        %v300 = vld [vmem:[%s296 + $0xc] sm:$0xf]
        %v301 = vld [vmem:[%s296 + $0x10] sm:$0xf]
        %v302 = vld [vmem:[%s296 + $0x14] sm:$0xf]
        %v303 = vld [vmem:[%s296 + $0x18] sm:$0xf]
        %v304 = vld [vmem:[%s296 + $0x1c] sm:$0xf]
        %v305 = vld [vmem:[%s296 + $0x20] sm:$0xf]
        %v306 = vld [vmem:[%s296 + $0x24] sm:$0xf]
        %v307 = vld [vmem:[%s296 + $0x28] sm:$0xf]
        %v308 = vld [vmem:[%s296 + $0x2c] sm:$0xf]
        %v309 = vld [vmem:[%s296 + $0x30] sm:$0xf]
        %v310 = vld [vmem:[%s296 + $0x34] sm:$0xf]
        %v311 = vld [vmem:[%s296 + $0x38] sm:$0xf]
        %v312 = vld [vmem:[%s296 + $0x3c] sm:$0xf]
        %v313 = vld [vmem:[%s296 + $0x40] sm:$0xf]
        %v314 = vld [vmem:[%s296 + $0x44] sm:$0xf]
        %v315 = vld [vmem:[%s296 + $0x48] sm:$0xf]
        %v316 = vld [vmem:[%s296 + $0x4c] sm:$0xf]
        %v317 = vld [vmem:[%s296 + $0x50] sm:$0xf]
        %v318 = vld [vmem:[%s296 + $0x54] sm:$0xf]
        %v319 = vld [vmem:[%s296 + $0x58] sm:$0xf]
        %v320 = vld [vmem:[%s296 + $0x5c] sm:$0xf]
        %v321 = vld [vmem:[%s296 + $0x60] sm:$0xf]
        %v322 = vld [vmem:[%s296 + $0x64] sm:$0xf]
        %v323 = vld [vmem:[%s296 + $0x68] sm:$0xf]
        %v324 = vld [vmem:[%s296 + $0x6c] sm:$0xf]
        %v325 = vld [vmem:[%s296 + $0x70] sm:$0xf]
        %v326 = vld [vmem:[%s296 + $0x74] sm:$0xf]
        %v327 = vld [vmem:[%s296 + $0x78] sm:$0xf]
        %v328 = vld [vmem:[%s296 + $0x7c] sm:$0xf]
        %v329 = vld [vmem:[%s1] sm:$0xf]
        %v330 = vld [vmem:[%s1 + $0x4] sm:$0xf]
        %v331 = vld [vmem:[%s1 + $0x8] sm:$0xf]
        %v332 = vld [vmem:[%s1 + $0xc] sm:$0xf]
        %v333 = vld [vmem:[%s1 + $0x10] sm:$0xf]
        %v334 = vld [vmem:[%s1 + $0x14] sm:$0xf]
        %v335 = vld [vmem:[%s1 + $0x18] sm:$0xf]
        %v336 = vld [vmem:[%s1 + $0x1c] sm:$0xf]
        %v337 = vld [vmem:[%s1 + $0x20] sm:$0xf]
        %v338 = vld [vmem:[%s1 + $0x24] sm:$0xf]
        %v339 = vld [vmem:[%s1 + $0x28] sm:$0xf]
        %v340 = vld [vmem:[%s1 + $0x2c] sm:$0xf]
        %v341 = vld [vmem:[%s1 + $0x30] sm:$0xf]
        %v342 = vld [vmem:[%s1 + $0x34] sm:$0xf]
        %v343 = vld [vmem:[%s1 + $0x38] sm:$0xf]
        %v344 = vld [vmem:[%s1 + $0x3c] sm:$0xf]
        %v345 = vld [vmem:[%s2] sm:$0x1]
        %v347 = vlaneseq
        %v348 = vshrl.u32 %v347, 7
        %v349 = vsub.s32 0, %v348
        %v350 = vrot.slane %v345, %v349
        %v384 = vunpack.c.l.b16 %v297
        %v385 = vunpack.c.l.b16 %v298
        %v386 = vunpack.c.l.b16 %v299
        %v387 = vunpack.c.l.b16 %v300
        %v388 = vunpack.c.l.b16 %v301
        %v389 = vunpack.c.l.b16 %v302
        %v390 = vunpack.c.l.b16 %v303
        %v391 = vunpack.c.l.b16 %v304
        %v392 = vunpack.c.l.b16 %v305
        %v393 = vunpack.c.l.b16 %v306
        %v394 = vunpack.c.l.b16 %v307
        %v395 = vunpack.c.l.b16 %v308
        %v396 = vunpack.c.l.b16 %v309
        %v397 = vunpack.c.l.b16 %v310
        %v398 = vunpack.c.l.b16 %v311
        %v399 = vunpack.c.l.b16 %v312
        %v400 = vunpack.c.l.b16 %v313
        %v401 = vunpack.c.l.b16 %v314
        %v402 = vunpack.c.l.b16 %v315
        %v403 = vunpack.c.l.b16 %v316
        %v404 = vunpack.c.l.b16 %v317
        %v405 = vunpack.c.l.b16 %v318
        %v406 = vunpack.c.l.b16 %v319
        %v407 = vunpack.c.l.b16 %v320
        %v408 = vunpack.c.l.b16 %v321
        %v409 = vunpack.c.l.b16 %v322
        %v410 = vunpack.c.l.b16 %v323
        %v411 = vunpack.c.l.b16 %v324
        %v412 = vunpack.c.l.b16 %v325
        %v413 = vunpack.c.l.b16 %v326
        %v414 = vunpack.c.l.b16 %v327
        %v415 = vunpack.c.l.b16 %v328
        %v416 = vpack.c.b16 %v385, %v384
        %v417 = vpack.c.b16 %v387, %v386
        %v418 = vpack.c.b16 %v389, %v388
        %v419 = vpack.c.b16 %v391, %v390
        %v420 = vpack.c.b16 %v393, %v392
        %v421 = vpack.c.b16 %v395, %v394
        %v422 = vpack.c.b16 %v397, %v396
        %v423 = vpack.c.b16 %v399, %v398
        %v424 = vpack.c.b16 %v401, %v400
        %v425 = vpack.c.b16 %v403, %v402
        %v426 = vpack.c.b16 %v405, %v404
        %v427 = vpack.c.b16 %v407, %v406
        %v428 = vpack.c.b16 %v409, %v408
        %v429 = vpack.c.b16 %v411, %v410
        %v430 = vpack.c.b16 %v413, %v412
        %v431 = vpack.c.b16 %v415, %v414
        %v464 = vunpack.c.l.b16 %v329
        %v465 = vunpack.c.l.b16 %v330
        %v466 = vunpack.c.l.b16 %v331
        %v467 = vunpack.c.l.b16 %v332
        %v468 = vunpack.c.l.b16 %v333
        %v469 = vunpack.c.l.b16 %v334
        %v470 = vunpack.c.l.b16 %v335
        %v471 = vunpack.c.l.b16 %v336
        %v472 = vunpack.c.l.b16 %v337
        %v473 = vunpack.c.l.b16 %v338
        %v474 = vunpack.c.l.b16 %v339
        %v475 = vunpack.c.l.b16 %v340
        %v476 = vunpack.c.l.b16 %v341
        %v477 = vunpack.c.l.b16 %v342
        %v478 = vunpack.c.l.b16 %v343
        %v479 = vunpack.c.l.b16 %v344
        %v480 = vpack.c.b16 %v465, %v464
        %v481 = vpack.c.b16 %v467, %v466
        %v482 = vpack.c.b16 %v469, %v468
        %v483 = vpack.c.b16 %v471, %v470
        %v484 = vpack.c.b16 %v473, %v472
        %v485 = vpack.c.b16 %v475, %v474
        %v486 = vpack.c.b16 %v477, %v476
        %v487 = vpack.c.b16 %v479, %v478
        %496 = vmatprep.subr.bf16.mxu0 0
        %497 = vmatpush1.bf16.msra.mxu0 %v480
        %498 = vmatprep.subr.bf16.mxu0 0
        %499 = vmatpush1.bf16.msra.mxu0 %v481
        %500 = vmatprep.subr.bf16.mxu0 0
        %501 = vmatpush1.bf16.msra.mxu0 %v482
        %502 = vmatprep.subr.bf16.mxu0 0
        %503 = vmatpush1.bf16.msra.mxu0 %v483
        %504 = vmatprep.subr.bf16.mxu0 0
        %505 = vmatpush1.bf16.msra.mxu0 %v484
        %506 = vmatprep.subr.bf16.mxu0 0
        %507 = vmatpush1.bf16.msra.mxu0 %v485
        %508 = vmatprep.subr.bf16.mxu0 0
        %509 = vmatpush1.bf16.msra.mxu0 %v486
        %510 = vmatprep.subr.bf16.mxu0 0
        %511 = vmatpush1.bf16.msra.mxu0 %v487
        %512 = vmatprep.subr.bf16.mxu0 0
        %513 = vmatpush1.bf16.msra.mxu0 0
        %514 = vmatprep.subr.bf16.mxu0 0
        %515 = vmatpush1.bf16.msra.mxu0 0
        %516 = vmatprep.subr.bf16.mxu0 0
        %517 = vmatpush1.bf16.msra.mxu0 0
        %518 = vmatprep.subr.bf16.mxu0 0
        %519 = vmatpush1.bf16.msra.mxu0 0
        %520 = vmatprep.subr.bf16.mxu0 0
        %521 = vmatpush1.bf16.msra.mxu0 0
        %522 = vmatprep.subr.bf16.mxu0 0
        %523 = vmatpush1.bf16.msra.mxu0 0
        %524 = vmatprep.subr.bf16.mxu0 0
        %525 = vmatpush1.bf16.msra.mxu0 0
        %526 = vmatprep.subr.bf16.mxu0 0
        %527 = vmatpush1.bf16.msra.mxu0 0
        %528 = vmatprep.mubr.bf16.mxu0 0
        %529 = vmatmul.mubr.bf16.gmra.mrb[0].mxu0 %v416
        %v530 = vpop.f32.mrb[0].mxu0
        %v531 = vadd.f32 %v350, %v530
        %v532 = vpop.f32.mrb[0].mxu0
        %v533 = vpop.f32.mrb[0].mxu0
        %v534 = vadd.f32 %v350, %v533
        %v535 = vpop.f32.mrb[0].mxu0
        %536 = vmatprep.mubr.bf16.mxu0 0
        %537 = vmatmul.mubr.bf16.gmra.mrb[0].mxu0 %v417
        %v538 = vpop.f32.mrb[0].mxu0
        %v539 = vadd.f32 %v350, %v538
        %v540 = vpop.f32.mrb[0].mxu0
        %v541 = vpop.f32.mrb[0].mxu0
        %v542 = vadd.f32 %v350, %v541
        %v543 = vpop.f32.mrb[0].mxu0
        %544 = vmatprep.mubr.bf16.mxu0 0
        %545 = vmatmul.mubr.bf16.gmra.mrb[0].mxu0 %v418
        %v546 = vpop.f32.mrb[0].mxu0
        %v547 = vadd.f32 %v350, %v546
        %v548 = vpop.f32.mrb[0].mxu0
        %v549 = vpop.f32.mrb[0].mxu0
        %v550 = vadd.f32 %v350, %v549
        %v551 = vpop.f32.mrb[0].mxu0
        %552 = vmatprep.mubr.bf16.mxu0 0
        %553 = vmatmul.mubr.bf16.gmra.mrb[0].mxu0 %v419
        %v554 = vpop.f32.mrb[0].mxu0
        %v555 = vadd.f32 %v350, %v554
        %v556 = vpop.f32.mrb[0].mxu0
        %v557 = vpop.f32.mrb[0].mxu0
        %v558 = vadd.f32 %v350, %v557
        %v559 = vpop.f32.mrb[0].mxu0
        %560 = vmatprep.mubr.bf16.mxu0 0
        %561 = vmatmul.mubr.bf16.gmra.mrb[0].mxu0 %v420
        %v562 = vpop.f32.mrb[0].mxu0
        %v563 = vadd.f32 %v350, %v562
        %v564 = vpop.f32.mrb[0].mxu0
        %v565 = vpop.f32.mrb[0].mxu0
        %v566 = vadd.f32 %v350, %v565
        %v567 = vpop.f32.mrb[0].mxu0
        %568 = vmatprep.mubr.bf16.mxu0 0
        %569 = vmatmul.mubr.bf16.gmra.mrb[0].mxu0 %v421
        %v570 = vpop.f32.mrb[0].mxu0
        %v571 = vadd.f32 %v350, %v570
        %v572 = vpop.f32.mrb[0].mxu0
        %v573 = vpop.f32.mrb[0].mxu0
        %v574 = vadd.f32 %v350, %v573
        %v575 = vpop.f32.mrb[0].mxu0
        %576 = vmatprep.mubr.bf16.mxu0 0
        %577 = vmatmul.mubr.bf16.gmra.mrb[0].mxu0 %v422
        %v578 = vpop.f32.mrb[0].mxu0
        %v579 = vadd.f32 %v350, %v578
        %v580 = vpop.f32.mrb[0].mxu0
        %v581 = vpop.f32.mrb[0].mxu0
        %v582 = vadd.f32 %v350, %v581
        %v583 = vpop.f32.mrb[0].mxu0
        %584 = vmatprep.mubr.bf16.mxu0 0
        %585 = vmatmul.mubr.bf16.gmra.mrb[0].mxu0 %v423
        %v586 = vpop.f32.mrb[0].mxu0
        %v587 = vadd.f32 %v350, %v586
        %v588 = vpop.f32.mrb[0].mxu0
        %v589 = vpop.f32.mrb[0].mxu0
        %v590 = vadd.f32 %v350, %v589
        %v591 = vpop.f32.mrb[0].mxu0
        %592 = vmatprep.mubr.bf16.mxu0 0
        %593 = vmatmul.mubr.bf16.gmra.mrb[0].mxu0 %v424
        %v594 = vpop.f32.mrb[0].mxu0
        %v595 = vadd.f32 %v350, %v594
        %v596 = vpop.f32.mrb[0].mxu0
        %v597 = vpop.f32.mrb[0].mxu0
        %v598 = vadd.f32 %v350, %v597
        %v599 = vpop.f32.mrb[0].mxu0
        %600 = vmatprep.mubr.bf16.mxu0 0
        %601 = vmatmul.mubr.bf16.gmra.mrb[0].mxu0 %v425
        %v602 = vpop.f32.mrb[0].mxu0
        %v603 = vadd.f32 %v350, %v602
        %v604 = vpop.f32.mrb[0].mxu0
        %v605 = vpop.f32.mrb[0].mxu0
        %v606 = vadd.f32 %v350, %v605
        %v607 = vpop.f32.mrb[0].mxu0
        %608 = vmatprep.mubr.bf16.mxu0 0
        %609 = vmatmul.mubr.bf16.gmra.mrb[0].mxu0 %v426
        %v610 = vpop.f32.mrb[0].mxu0
        %v611 = vadd.f32 %v350, %v610
        %v612 = vpop.f32.mrb[0].mxu0
        %v613 = vpop.f32.mrb[0].mxu0
        %v614 = vadd.f32 %v350, %v613
        %v615 = vpop.f32.mrb[0].mxu0
        %616 = vmatprep.mubr.bf16.mxu0 0
        %617 = vmatmul.mubr.bf16.gmra.mrb[0].mxu0 %v427
        %v618 = vpop.f32.mrb[0].mxu0
        %v619 = vadd.f32 %v350, %v618
        %v620 = vpop.f32.mrb[0].mxu0
        %v621 = vpop.f32.mrb[0].mxu0
        %v622 = vadd.f32 %v350, %v621
        %v623 = vpop.f32.mrb[0].mxu0
        %624 = vmatprep.mubr.bf16.mxu0 0
        %625 = vmatmul.mubr.bf16.gmra.mrb[0].mxu0 %v428
        %v626 = vpop.f32.mrb[0].mxu0
        %v627 = vadd.f32 %v350, %v626
        %v628 = vpop.f32.mrb[0].mxu0
        %v629 = vpop.f32.mrb[0].mxu0
        %v630 = vadd.f32 %v350, %v629
        %v631 = vpop.f32.mrb[0].mxu0
        %632 = vmatprep.mubr.bf16.mxu0 0
        %633 = vmatmul.mubr.bf16.gmra.mrb[0].mxu0 %v429
        %v634 = vpop.f32.mrb[0].mxu0
        %v635 = vadd.f32 %v350, %v634
        %v636 = vpop.f32.mrb[0].mxu0
        %v637 = vpop.f32.mrb[0].mxu0
        %v638 = vadd.f32 %v350, %v637
        %v639 = vpop.f32.mrb[0].mxu0
        %640 = vmatprep.mubr.bf16.mxu0 0
        %641 = vmatmul.mubr.bf16.gmra.mrb[0].mxu0 %v430
        %v642 = vpop.f32.mrb[0].mxu0
        %v643 = vadd.f32 %v350, %v642
        %v644 = vpop.f32.mrb[0].mxu0
        %v645 = vpop.f32.mrb[0].mxu0
        %v646 = vadd.f32 %v350, %v645
        %v647 = vpop.f32.mrb[0].mxu0
        %648 = vmatprep.mubr.bf16.mxu0 0
        %649 = vmatmul.mubr.bf16.gmra.mrb[0].mxu0 %v431
        %v650 = vpop.f32.mrb[0].mxu0
        %v651 = vadd.f32 %v350, %v650
        %v652 = vpop.f32.mrb[0].mxu0
        %v653 = vpop.f32.mrb[0].mxu0
        %v654 = vadd.f32 %v350, %v653
        %v655 = vpop.f32.mrb[0].mxu0
        %656 = vdwg.mxu0
        %v657 = vmax.f32 %v531, 0.0
        %v658 = vmax.f32 %v534, 0.0
        %v659 = vmax.f32 %v539, 0.0
        %v660 = vmax.f32 %v542, 0.0
        %v661 = vmax.f32 %v547, 0.0
        %v662 = vmax.f32 %v550, 0.0
        %v663 = vmax.f32 %v555, 0.0
        %v664 = vmax.f32 %v558, 0.0
        %v665 = vmax.f32 %v563, 0.0
        %v666 = vmax.f32 %v566, 0.0
        %v667 = vmax.f32 %v571, 0.0
        %v668 = vmax.f32 %v574, 0.0
        %v669 = vmax.f32 %v579, 0.0
        %v670 = vmax.f32 %v582, 0.0
        %v671 = vmax.f32 %v587, 0.0
        %v672 = vmax.f32 %v590, 0.0
        %v673 = vmax.f32 %v595, 0.0
        %v674 = vmax.f32 %v598, 0.0
        %v675 = vmax.f32 %v603, 0.0
        %v676 = vmax.f32 %v606, 0.0
        %v677 = vmax.f32 %v611, 0.0
        %v678 = vmax.f32 %v614, 0.0
        %v679 = vmax.f32 %v619, 0.0
        %v680 = vmax.f32 %v622, 0.0
        %v681 = vmax.f32 %v627, 0.0
        %v682 = vmax.f32 %v630, 0.0
        %v683 = vmax.f32 %v635, 0.0
        %v684 = vmax.f32 %v638, 0.0
        %v685 = vmax.f32 %v643, 0.0
        %v686 = vmax.f32 %v646, 0.0
        %v687 = vmax.f32 %v651, 0.0
        %v688 = vmax.f32 %v654, 0.0
        %s689 = ssub.s32 %s293, 1
        %p690 = scmp.gt.s32.totalorder %s689, 0
        %s691 = scalar_select %p690, %s689, 0
        %s692 = smul.u32 %s691, 2
        %s693 = smul.addr %s692, 4
        %s694 = scalar_lea.vmem %s290, %s693
        %v695 = vld [vmem:[%s694] sm:$0xf]
        %v696 = vld [vmem:[%s694 + $0x4] sm:$0xf]
        %s697 = sadd.s32 %s293, 16
        %p698 = scmp.lt.s32.totalorder %s697, 15
        %s699 = scalar_select %p698, %s697, 15
        %s700 = smul.u32 %s699, 2
        %s701 = smul.addr %s700, 4
        %s702 = scalar_lea.vmem %s290, %s701
        %v703 = vld [vmem:[%s702] sm:$0xf]
        %v704 = vld [vmem:[%s702 + $0x4] sm:$0xf]
        %v709 = vunpack.c.l.b16 %v695
        %v710 = vunpack.c.l.b16 %v696
        %v711 = vunpack.c.l.b16 %v703
        %v712 = vunpack.c.l.b16 %v704
        %v713 = vpack.c.b16 %v710, %v709
        %v714 = vpack.c.b16 %v712, %v711
        %717 = vmatprep.subr.bf16.mxu0 0
        %718 = vmatpush1.bf16.msra.mxu0 %v480
        %719 = vmatprep.subr.bf16.mxu0 0
        %720 = vmatpush1.bf16.msra.mxu0 %v481
        %721 = vmatprep.subr.bf16.mxu0 0
        %722 = vmatpush1.bf16.msra.mxu0 %v482
        %723 = vmatprep.subr.bf16.mxu0 0
        %724 = vmatpush1.bf16.msra.mxu0 %v483
        %725 = vmatprep.subr.bf16.mxu0 0
        %726 = vmatpush1.bf16.msra.mxu0 %v484
        %727 = vmatprep.subr.bf16.mxu0 0
        %728 = vmatpush1.bf16.msra.mxu0 %v485
        %729 = vmatprep.subr.bf16.mxu0 0
        %730 = vmatpush1.bf16.msra.mxu0 %v486
        %731 = vmatprep.subr.bf16.mxu0 0
        %732 = vmatpush1.bf16.msra.mxu0 %v487
        %733 = vmatprep.subr.bf16.mxu0 0
        %734 = vmatpush1.bf16.msra.mxu0 0
        %735 = vmatprep.subr.bf16.mxu0 0
        %736 = vmatpush1.bf16.msra.mxu0 0
        %737 = vmatprep.subr.bf16.mxu0 0
        %738 = vmatpush1.bf16.msra.mxu0 0
        %739 = vmatprep.subr.bf16.mxu0 0
        %740 = vmatpush1.bf16.msra.mxu0 0
        %741 = vmatprep.subr.bf16.mxu0 0
        %742 = vmatpush1.bf16.msra.mxu0 0
        %743 = vmatprep.subr.bf16.mxu0 0
        %744 = vmatpush1.bf16.msra.mxu0 0
        %745 = vmatprep.subr.bf16.mxu0 0
        %746 = vmatpush1.bf16.msra.mxu0 0
        %747 = vmatprep.subr.bf16.mxu0 0
        %748 = vmatpush1.bf16.msra.mxu0 0
        %749 = vmatprep.mubr.bf16.mxu0 0
        %750 = vmatmul.mubr.bf16.gmra.mrb[0].mxu0 %v713
        %v751 = vpop.f32.mrb[0].mxu0
        %v752 = vadd.f32 %v350, %v751
        %v753 = vpop.f32.mrb[0].mxu0
        %v754 = vpop.f32.mrb[0].mxu0
        %v755 = vadd.f32 %v350, %v754
        %v756 = vpop.f32.mrb[0].mxu0
        %757 = vmatprep.mubr.bf16.mxu0 0
        %758 = vmatmul.mubr.bf16.gmra.mrb[0].mxu0 %v714
        %v759 = vpop.f32.mrb[0].mxu0
        %v760 = vadd.f32 %v350, %v759
        %v761 = vpop.f32.mrb[0].mxu0
        %v762 = vpop.f32.mrb[0].mxu0
        %v763 = vadd.f32 %v350, %v762
        %v764 = vpop.f32.mrb[0].mxu0
        %765 = vdwg.mxu0
        %v766 = vmax.f32 %v752, 0.0
        %v767 = vmax.f32 %v755, 0.0
        %v768 = vmax.f32 %v760, 0.0
        %v769 = vmax.f32 %v763, 0.0
        %p770 = scmp.gt.s32.totalorder %s26, 0
        %s771 = scalar_select %p770, 1, 0
        %v772 = vstv %s771
        %vm773 = vcmp.eq.s32.totalorder %v772, 1
        %v774 = vsel %vm773, %v766, 0.0
        %v775 = vsel %vm773, %v767, 0.0
        %p776 = scmp.lt.s32.totalorder %s26, 0
        %s777 = scalar_select %p776, 1, 0
        %v778 = vstv %s777
        %vm779 = vcmp.eq.s32.totalorder %v778, 1
        %v780 = vsel %vm779, %v768, 0.0
        %v781 = vsel %vm779, %v769, 0.0
        %v782 = vlaneseq
        %v783 = vshrl.u32 %v782, 7
        %v784 = vadd.s32 %v783, 8
        %v785 = vrot.slane %v774, 7
        %v786 = vrot.slane %v657, 7
        %v787 = vrot.slane %v659, 7
        %v788 = vrot.slane %v661, 7
        %v789 = vrot.slane %v663, 7
        %v790 = vrot.slane %v665, 7
        %v791 = vrot.slane %v667, 7
        %v792 = vrot.slane %v669, 7
        %v793 = vrot.slane %v671, 7
        %v794 = vrot.slane %v673, 7
        %v795 = vrot.slane %v675, 7
        %v796 = vrot.slane %v677, 7
        %v797 = vrot.slane %v679, 7
        %v798 = vrot.slane %v681, 7
        %v799 = vrot.slane %v683, 7
        %v800 = vrot.slane %v685, 7
        %v801 = vrot.slane %v687, 7
        %v802 = vrot.slane %v780, 7
        %v803 = vrot.slane %v775, 7
        %v804 = vrot.slane %v658, 7
        %v805 = vrot.slane %v660, 7
        %v806 = vrot.slane %v662, 7
        %v807 = vrot.slane %v664, 7
        %v808 = vrot.slane %v666, 7
        %v809 = vrot.slane %v668, 7
        %v810 = vrot.slane %v670, 7
        %v811 = vrot.slane %v672, 7
        %v812 = vrot.slane %v674, 7
        %v813 = vrot.slane %v676, 7
        %v814 = vrot.slane %v678, 7
        %v815 = vrot.slane %v680, 7
        %v816 = vrot.slane %v682, 7
        %v817 = vrot.slane %v684, 7
        %v818 = vrot.slane %v686, 7
        %v819 = vrot.slane %v688, 7
        %v820 = vrot.slane %v781, 7
        %vm821 = vcmp.lt.s32.totalorder %v783, 1
        %v822 = vsel %vm821, %v785, %v803
        %v823 = vsel %vm821, %v786, %v804
        %v824 = vsel %vm821, %v787, %v805
        %v825 = vsel %vm821, %v788, %v806
        %v826 = vsel %vm821, %v789, %v807
        %v827 = vsel %vm821, %v790, %v808
        %v828 = vsel %vm821, %v791, %v809
        %v829 = vsel %vm821, %v792, %v810
        %v830 = vsel %vm821, %v793, %v811
        %v831 = vsel %vm821, %v794, %v812
        %v832 = vsel %vm821, %v795, %v813
        %v833 = vsel %vm821, %v796, %v814
        %v834 = vsel %vm821, %v797, %v815
        %v835 = vsel %vm821, %v798, %v816
        %v836 = vsel %vm821, %v799, %v817
        %v837 = vsel %vm821, %v800, %v818
        %v838 = vsel %vm821, %v801, %v819
        %v839 = vsel %vm821, %v802, %v820
        %v840 = vsel %vm821, %v803, %v785
        %v841 = vsel %vm821, %v804, %v786
        %v842 = vsel %vm821, %v805, %v787
        %v843 = vsel %vm821, %v806, %v788
        %v844 = vsel %vm821, %v807, %v789
        %v845 = vsel %vm821, %v808, %v790
        %v846 = vsel %vm821, %v809, %v791
        %v847 = vsel %vm821, %v810, %v792
        %v848 = vsel %vm821, %v811, %v793
        %v849 = vsel %vm821, %v812, %v794
        %v850 = vsel %vm821, %v813, %v795
        %v851 = vsel %vm821, %v814, %v796
        %v852 = vsel %vm821, %v815, %v797
        %v853 = vsel %vm821, %v816, %v798
        %v854 = vsel %vm821, %v817, %v799
        %v855 = vsel %vm821, %v818, %v800
        %v856 = vsel %vm821, %v819, %v801
        %v857 = vsel %vm821, %v820, %v802
        %vm858 = vcmp.ge.s32.totalorder %v783, 1
        %vm859 = vcmp.ge.s32.totalorder %v784, 1
        %v860 = vsel %vm858, 1, 0
        %v861 = vsel %vm859, 1, 0
        %vm862 = vcmp.eq.s32.totalorder %v860, 1
        %vm863 = vcmp.eq.s32.totalorder %v861, 1
        %v864 = vsel %vm862, %v840, 0.0
        %v865 = vsel %vm863, %v822, 0.0
        %v866 = vsel %vm862, %v841, 0.0
        %v867 = vsel %vm863, %v823, 0.0
        %v868 = vsel %vm862, %v842, 0.0
        %v869 = vsel %vm863, %v824, 0.0
        %v870 = vsel %vm862, %v843, 0.0
        %v871 = vsel %vm863, %v825, 0.0
        %v872 = vsel %vm862, %v844, 0.0
        %v873 = vsel %vm863, %v826, 0.0
        %v874 = vsel %vm862, %v845, 0.0
        %v875 = vsel %vm863, %v827, 0.0
        %v876 = vsel %vm862, %v846, 0.0
        %v877 = vsel %vm863, %v828, 0.0
        %v878 = vsel %vm862, %v847, 0.0
        %v879 = vsel %vm863, %v829, 0.0
        %v880 = vsel %vm862, %v848, 0.0
        %v881 = vsel %vm863, %v830, 0.0
        %v882 = vsel %vm862, %v849, 0.0
        %v883 = vsel %vm863, %v831, 0.0
        %v884 = vsel %vm862, %v850, 0.0
        %v885 = vsel %vm863, %v832, 0.0
        %v886 = vsel %vm862, %v851, 0.0
        %v887 = vsel %vm863, %v833, 0.0
        %v888 = vsel %vm862, %v852, 0.0
        %v889 = vsel %vm863, %v834, 0.0
        %v890 = vsel %vm862, %v853, 0.0
        %v891 = vsel %vm863, %v835, 0.0
        %v892 = vsel %vm862, %v854, 0.0
        %v893 = vsel %vm863, %v836, 0.0
        %v894 = vsel %vm862, %v855, 0.0
        %v895 = vsel %vm863, %v837, 0.0
        %v896 = vsel %vm862, %v856, 0.0
        %v897 = vsel %vm863, %v838, 0.0
        %v898 = vsel %vm862, %v857, 0.0
        %v899 = vsel %vm863, %v839, 0.0
        %v900 = vpack.c.bf16 %v865, %v864
        %v901 = vpack.c.bf16 %v867, %v866
        %v902 = vpack.c.bf16 %v869, %v868
        %v903 = vpack.c.bf16 %v871, %v870
        %v904 = vpack.c.bf16 %v873, %v872
        %v905 = vpack.c.bf16 %v875, %v874
        %v906 = vpack.c.bf16 %v877, %v876
        %v907 = vpack.c.bf16 %v879, %v878
        %v908 = vpack.c.bf16 %v881, %v880
        %v909 = vpack.c.bf16 %v883, %v882
        %v910 = vpack.c.bf16 %v885, %v884
        %v911 = vpack.c.bf16 %v887, %v886
        %v912 = vpack.c.bf16 %v889, %v888
        %v913 = vpack.c.bf16 %v891, %v890
        %v914 = vpack.c.bf16 %v893, %v892
        %v915 = vpack.c.bf16 %v895, %v894
        %v916 = vpack.c.bf16 %v897, %v896
        %v917 = vpack.c.bf16 %v899, %v898
        %v918 = vpack.c.bf16 %v775, %v774
        %v919 = vpack.c.bf16 %v658, %v657
        %v920 = vpack.c.bf16 %v660, %v659
        %v921 = vpack.c.bf16 %v662, %v661
        %v922 = vpack.c.bf16 %v664, %v663
        %v923 = vpack.c.bf16 %v666, %v665
        %v924 = vpack.c.bf16 %v668, %v667
        %v925 = vpack.c.bf16 %v670, %v669
        %v926 = vpack.c.bf16 %v672, %v671
        %v927 = vpack.c.bf16 %v674, %v673
        %v928 = vpack.c.bf16 %v676, %v675
        %v929 = vpack.c.bf16 %v678, %v677
        %v930 = vpack.c.bf16 %v680, %v679
        %v931 = vpack.c.bf16 %v682, %v681
        %v932 = vpack.c.bf16 %v684, %v683
        %v933 = vpack.c.bf16 %v686, %v685
        %v934 = vpack.c.bf16 %v688, %v687
        %v935 = vpack.c.bf16 %v781, %v780
        %v936 = vrot.slane %v774, 1
        %v937 = vrot.slane %v657, 1
        %v938 = vrot.slane %v659, 1
        %v939 = vrot.slane %v661, 1
        %v940 = vrot.slane %v663, 1
        %v941 = vrot.slane %v665, 1
        %v942 = vrot.slane %v667, 1
        %v943 = vrot.slane %v669, 1
        %v944 = vrot.slane %v671, 1
        %v945 = vrot.slane %v673, 1
        %v946 = vrot.slane %v675, 1
        %v947 = vrot.slane %v677, 1
        %v948 = vrot.slane %v679, 1
        %v949 = vrot.slane %v681, 1
        %v950 = vrot.slane %v683, 1
        %v951 = vrot.slane %v685, 1
        %v952 = vrot.slane %v687, 1
        %v953 = vrot.slane %v780, 1
        %v954 = vrot.slane %v775, 1
        %v955 = vrot.slane %v658, 1
        %v956 = vrot.slane %v660, 1
        %v957 = vrot.slane %v662, 1
        %v958 = vrot.slane %v664, 1
        %v959 = vrot.slane %v666, 1
        %v960 = vrot.slane %v668, 1
        %v961 = vrot.slane %v670, 1
        %v962 = vrot.slane %v672, 1
        %v963 = vrot.slane %v674, 1
        %v964 = vrot.slane %v676, 1
        %v965 = vrot.slane %v678, 1
        %v966 = vrot.slane %v680, 1
        %v967 = vrot.slane %v682, 1
        %v968 = vrot.slane %v684, 1
        %v969 = vrot.slane %v686, 1
        %v970 = vrot.slane %v688, 1
        %v971 = vrot.slane %v781, 1
        %vm972 = vcmp.lt.s32.totalorder %v783, 7
        %v973 = vsel %vm972, %v936, %v954
        %v974 = vsel %vm972, %v937, %v955
        %v975 = vsel %vm972, %v938, %v956
        %v976 = vsel %vm972, %v939, %v957
        %v977 = vsel %vm972, %v940, %v958
        %v978 = vsel %vm972, %v941, %v959
        %v979 = vsel %vm972, %v942, %v960
        %v980 = vsel %vm972, %v943, %v961
        %v981 = vsel %vm972, %v944, %v962
        %v982 = vsel %vm972, %v945, %v963
        %v983 = vsel %vm972, %v946, %v964
        %v984 = vsel %vm972, %v947, %v965
        %v985 = vsel %vm972, %v948, %v966
        %v986 = vsel %vm972, %v949, %v967
        %v987 = vsel %vm972, %v950, %v968
        %v988 = vsel %vm972, %v951, %v969
        %v989 = vsel %vm972, %v952, %v970
        %v990 = vsel %vm972, %v953, %v971
        %v991 = vsel %vm972, %v954, %v936
        %v992 = vsel %vm972, %v955, %v937
        %v993 = vsel %vm972, %v956, %v938
        %v994 = vsel %vm972, %v957, %v939
        %v995 = vsel %vm972, %v958, %v940
        %v996 = vsel %vm972, %v959, %v941
        %v997 = vsel %vm972, %v960, %v942
        %v998 = vsel %vm972, %v961, %v943
        %v999 = vsel %vm972, %v962, %v944
        %v1000 = vsel %vm972, %v963, %v945
        %v1001 = vsel %vm972, %v964, %v946
        %v1002 = vsel %vm972, %v965, %v947
        %v1003 = vsel %vm972, %v966, %v948
        %v1004 = vsel %vm972, %v967, %v949
        %v1005 = vsel %vm972, %v968, %v950
        %v1006 = vsel %vm972, %v969, %v951
        %v1007 = vsel %vm972, %v970, %v952
        %v1008 = vsel %vm972, %v971, %v953
        %vm1009 = vcmp.lt.s32.totalorder %v783, 15
        %vm1010 = vcmp.lt.s32.totalorder %v784, 15
        %v1011 = vsel %vm1009, 1, 0
        %v1012 = vsel %vm1010, 1, 0
        %vm1013 = vcmp.eq.s32.totalorder %v1011, 1
        %vm1014 = vcmp.eq.s32.totalorder %v1012, 1
        %v1015 = vsel %vm1013, %v973, 0.0
        %v1016 = vsel %vm1014, %v991, 0.0
        %v1017 = vsel %vm1013, %v974, 0.0
        %v1018 = vsel %vm1014, %v992, 0.0
        %v1019 = vsel %vm1013, %v975, 0.0
        %v1020 = vsel %vm1014, %v993, 0.0
        %v1021 = vsel %vm1013, %v976, 0.0
        %v1022 = vsel %vm1014, %v994, 0.0
        %v1023 = vsel %vm1013, %v977, 0.0
        %v1024 = vsel %vm1014, %v995, 0.0
        %v1025 = vsel %vm1013, %v978, 0.0
        %v1026 = vsel %vm1014, %v996, 0.0
        %v1027 = vsel %vm1013, %v979, 0.0
        %v1028 = vsel %vm1014, %v997, 0.0
        %v1029 = vsel %vm1013, %v980, 0.0
        %v1030 = vsel %vm1014, %v998, 0.0
        %v1031 = vsel %vm1013, %v981, 0.0
        %v1032 = vsel %vm1014, %v999, 0.0
        %v1033 = vsel %vm1013, %v982, 0.0
        %v1034 = vsel %vm1014, %v1000, 0.0
        %v1035 = vsel %vm1013, %v983, 0.0
        %v1036 = vsel %vm1014, %v1001, 0.0
        %v1037 = vsel %vm1013, %v984, 0.0
        %v1038 = vsel %vm1014, %v1002, 0.0
        %v1039 = vsel %vm1013, %v985, 0.0
        %v1040 = vsel %vm1014, %v1003, 0.0
        %v1041 = vsel %vm1013, %v986, 0.0
        %v1042 = vsel %vm1014, %v1004, 0.0
        %v1043 = vsel %vm1013, %v987, 0.0
        %v1044 = vsel %vm1014, %v1005, 0.0
        %v1045 = vsel %vm1013, %v988, 0.0
        %v1046 = vsel %vm1014, %v1006, 0.0
        %v1047 = vsel %vm1013, %v989, 0.0
        %v1048 = vsel %vm1014, %v1007, 0.0
        %v1049 = vsel %vm1013, %v990, 0.0
        %v1050 = vsel %vm1014, %v1008, 0.0
        %v1051 = vpack.c.bf16 %v1016, %v1015
        %v1052 = vpack.c.bf16 %v1018, %v1017
        %v1053 = vpack.c.bf16 %v1020, %v1019
        %v1054 = vpack.c.bf16 %v1022, %v1021
        %v1055 = vpack.c.bf16 %v1024, %v1023
        %v1056 = vpack.c.bf16 %v1026, %v1025
        %v1057 = vpack.c.bf16 %v1028, %v1027
        %v1058 = vpack.c.bf16 %v1030, %v1029
        %v1059 = vpack.c.bf16 %v1032, %v1031
        %v1060 = vpack.c.bf16 %v1034, %v1033
        %v1061 = vpack.c.bf16 %v1036, %v1035
        %v1062 = vpack.c.bf16 %v1038, %v1037
        %v1063 = vpack.c.bf16 %v1040, %v1039
        %v1064 = vpack.c.bf16 %v1042, %v1041
        %v1065 = vpack.c.bf16 %v1044, %v1043
        %v1066 = vpack.c.bf16 %v1046, %v1045
        %v1067 = vpack.c.bf16 %v1048, %v1047
        %v1068 = vpack.c.bf16 %v1050, %v1049
        %v1069 = vld [vmem:[%s3] sm:$0xf]
        %v1070 = vld [vmem:[%s3 + $0x4] sm:$0xf]
        %v1071 = vld [vmem:[%s3 + $0x8] sm:$0xf]
        %v1072 = vld [vmem:[%s3 + $0xc] sm:$0xf]
        %v1073 = vld [vmem:[%s3 + $0x10] sm:$0xf]
        %v1074 = vld [vmem:[%s3 + $0x14] sm:$0xf]
        %v1075 = vld [vmem:[%s3 + $0x18] sm:$0xf]
        %v1076 = vld [vmem:[%s3 + $0x1c] sm:$0xf]
        %v1081 = vunpack.c.l.b16 %v1073
        %v1082 = vunpack.c.l.b16 %v1074
        %v1083 = vunpack.c.l.b16 %v1075
        %v1084 = vunpack.c.l.b16 %v1076
        %v1085 = vpack.c.b16 %v1082, %v1081
        %v1086 = vpack.c.b16 %v1084, %v1083
        %vm1089 = vcmask 261120
        %v1091 = vsel %vm1089, %v901, 0
        %v1094 = vsel %vm1089, %v902, 0
        %v1097 = vsel %vm1089, %v903, 0
        %v1100 = vsel %vm1089, %v904, 0
        %v1103 = vsel %vm1089, %v905, 0
        %v1106 = vsel %vm1089, %v906, 0
        %v1109 = vsel %vm1089, %v907, 0
        %v1112 = vsel %vm1089, %v908, 0
        %v1115 = vsel %vm1089, %v909, 0
        %v1118 = vsel %vm1089, %v910, 0
        %v1121 = vsel %vm1089, %v911, 0
        %v1124 = vsel %vm1089, %v912, 0
        %v1127 = vsel %vm1089, %v913, 0
        %v1130 = vsel %vm1089, %v914, 0
        %v1133 = vsel %vm1089, %v915, 0
        %v1136 = vsel %vm1089, %v916, 0
        %1138 = vmatprep.subr.bf16.mxu0 0
        %1139 = vmatpush1.bf16.msra.mxu0 %v1085
        %1140 = vmatprep.subr.bf16.mxu0 0
        %1141 = vmatpush1.bf16.msra.mxu0 %v1086
        %1142 = vmatprep.subr.bf16.mxu0 0
        %1143 = vmatpush1.bf16.msra.mxu0 0
        %1144 = vmatprep.subr.bf16.mxu0 0
        %1145 = vmatpush1.bf16.msra.mxu0 0
        %1146 = vmatprep.subr.bf16.mxu0 0
        %1147 = vmatpush1.bf16.msra.mxu0 0
        %1148 = vmatprep.subr.bf16.mxu0 0
        %1149 = vmatpush1.bf16.msra.mxu0 0
        %1150 = vmatprep.subr.bf16.mxu0 0
        %1151 = vmatpush1.bf16.msra.mxu0 0
        %1152 = vmatprep.subr.bf16.mxu0 0
        %1153 = vmatpush1.bf16.msra.mxu0 0
        %1154 = vmatprep.subr.bf16.mxu0 0
        %1155 = vmatpush1.bf16.msra.mxu0 0
        %1156 = vmatprep.subr.bf16.mxu0 0
        %1157 = vmatpush1.bf16.msra.mxu0 0
        %1158 = vmatprep.subr.bf16.mxu0 0
        %1159 = vmatpush1.bf16.msra.mxu0 0
        %1160 = vmatprep.subr.bf16.mxu0 0
        %1161 = vmatpush1.bf16.msra.mxu0 0
        %1162 = vmatprep.subr.bf16.mxu0 0
        %1163 = vmatpush1.bf16.msra.mxu0 0
        %1164 = vmatprep.subr.bf16.mxu0 0
        %1165 = vmatpush1.bf16.msra.mxu0 0
        %1166 = vmatprep.subr.bf16.mxu0 0
        %1167 = vmatpush1.bf16.msra.mxu0 0
        %1168 = vmatprep.subr.bf16.mxu0 0
        %1169 = vmatpush1.bf16.msra.mxu0 0
        %1170 = vmatprep.mubr.bf16.mxu0 0
        %1171 = vmatmul.mubr.bf16.gmra.mrb[0].mxu0 %v1091
        %v1172 = vpop.f32.mrb[0].mxu0
        %v1173 = vadd.f32 0.0, %v1172
        %v1174 = vpop.f32.mrb[0].mxu0
        %v1175 = vpop.f32.mrb[0].mxu0
        %v1176 = vadd.f32 0.0, %v1175
        %v1177 = vpop.f32.mrb[0].mxu0
        %1178 = vmatprep.mubr.bf16.mxu0 0
        %1179 = vmatmul.mubr.bf16.gmra.mrb[0].mxu0 %v1094
        %v1180 = vpop.f32.mrb[0].mxu0
        %v1181 = vadd.f32 0.0, %v1180
        %v1182 = vpop.f32.mrb[0].mxu0
        %v1183 = vpop.f32.mrb[0].mxu0
        %v1184 = vadd.f32 0.0, %v1183
        %v1185 = vpop.f32.mrb[0].mxu0
        %1186 = vmatprep.mubr.bf16.mxu0 0
        %1187 = vmatmul.mubr.bf16.gmra.mrb[0].mxu0 %v1097
        %v1188 = vpop.f32.mrb[0].mxu0
        %v1189 = vadd.f32 0.0, %v1188
        %v1190 = vpop.f32.mrb[0].mxu0
        %v1191 = vpop.f32.mrb[0].mxu0
        %v1192 = vadd.f32 0.0, %v1191
        %v1193 = vpop.f32.mrb[0].mxu0
        %1194 = vmatprep.mubr.bf16.mxu0 0
        %1195 = vmatmul.mubr.bf16.gmra.mrb[0].mxu0 %v1100
        %v1196 = vpop.f32.mrb[0].mxu0
        %v1197 = vadd.f32 0.0, %v1196
        %v1198 = vpop.f32.mrb[0].mxu0
        %v1199 = vpop.f32.mrb[0].mxu0
        %v1200 = vadd.f32 0.0, %v1199
        %v1201 = vpop.f32.mrb[0].mxu0
        %1202 = vmatprep.mubr.bf16.mxu0 0
        %1203 = vmatmul.mubr.bf16.gmra.mrb[0].mxu0 %v1103
        %v1204 = vpop.f32.mrb[0].mxu0
        %v1205 = vadd.f32 0.0, %v1204
        %v1206 = vpop.f32.mrb[0].mxu0
        %v1207 = vpop.f32.mrb[0].mxu0
        %v1208 = vadd.f32 0.0, %v1207
        %v1209 = vpop.f32.mrb[0].mxu0
        %1210 = vmatprep.mubr.bf16.mxu0 0
        %1211 = vmatmul.mubr.bf16.gmra.mrb[0].mxu0 %v1106
        %v1212 = vpop.f32.mrb[0].mxu0
        %v1213 = vadd.f32 0.0, %v1212
        %v1214 = vpop.f32.mrb[0].mxu0
        %v1215 = vpop.f32.mrb[0].mxu0
        %v1216 = vadd.f32 0.0, %v1215
        %v1217 = vpop.f32.mrb[0].mxu0
        %1218 = vmatprep.mubr.bf16.mxu0 0
        %1219 = vmatmul.mubr.bf16.gmra.mrb[0].mxu0 %v1109
        %v1220 = vpop.f32.mrb[0].mxu0
        %v1221 = vadd.f32 0.0, %v1220
        %v1222 = vpop.f32.mrb[0].mxu0
        %v1223 = vpop.f32.mrb[0].mxu0
        %v1224 = vadd.f32 0.0, %v1223
        %v1225 = vpop.f32.mrb[0].mxu0
        %1226 = vmatprep.mubr.bf16.mxu0 0
        %1227 = vmatmul.mubr.bf16.gmra.mrb[0].mxu0 %v1112
        %v1228 = vpop.f32.mrb[0].mxu0
        %v1229 = vadd.f32 0.0, %v1228
        %v1230 = vpop.f32.mrb[0].mxu0
        %v1231 = vpop.f32.mrb[0].mxu0
        %v1232 = vadd.f32 0.0, %v1231
        %v1233 = vpop.f32.mrb[0].mxu0
        %1234 = vmatprep.mubr.bf16.mxu0 0
        %1235 = vmatmul.mubr.bf16.gmra.mrb[0].mxu0 %v1115
        %v1236 = vpop.f32.mrb[0].mxu0
        %v1237 = vadd.f32 0.0, %v1236
        %v1238 = vpop.f32.mrb[0].mxu0
        %v1239 = vpop.f32.mrb[0].mxu0
        %v1240 = vadd.f32 0.0, %v1239
        %v1241 = vpop.f32.mrb[0].mxu0
        %1242 = vmatprep.mubr.bf16.mxu0 0
        %1243 = vmatmul.mubr.bf16.gmra.mrb[0].mxu0 %v1118
        %v1244 = vpop.f32.mrb[0].mxu0
        %v1245 = vadd.f32 0.0, %v1244
        %v1246 = vpop.f32.mrb[0].mxu0
        %v1247 = vpop.f32.mrb[0].mxu0
        %v1248 = vadd.f32 0.0, %v1247
        %v1249 = vpop.f32.mrb[0].mxu0
        %1250 = vmatprep.mubr.bf16.mxu0 0
        %1251 = vmatmul.mubr.bf16.gmra.mrb[0].mxu0 %v1121
        %v1252 = vpop.f32.mrb[0].mxu0
        %v1253 = vadd.f32 0.0, %v1252
        %v1254 = vpop.f32.mrb[0].mxu0
        %v1255 = vpop.f32.mrb[0].mxu0
        %v1256 = vadd.f32 0.0, %v1255
        %v1257 = vpop.f32.mrb[0].mxu0
        %1258 = vmatprep.mubr.bf16.mxu0 0
        %1259 = vmatmul.mubr.bf16.gmra.mrb[0].mxu0 %v1124
        %v1260 = vpop.f32.mrb[0].mxu0
        %v1261 = vadd.f32 0.0, %v1260
        %v1262 = vpop.f32.mrb[0].mxu0
        %v1263 = vpop.f32.mrb[0].mxu0
        %v1264 = vadd.f32 0.0, %v1263
        %v1265 = vpop.f32.mrb[0].mxu0
        %1266 = vmatprep.mubr.bf16.mxu0 0
        %1267 = vmatmul.mubr.bf16.gmra.mrb[0].mxu0 %v1127
        %v1268 = vpop.f32.mrb[0].mxu0
        %v1269 = vadd.f32 0.0, %v1268
        %v1270 = vpop.f32.mrb[0].mxu0
        %v1271 = vpop.f32.mrb[0].mxu0
        %v1272 = vadd.f32 0.0, %v1271
        %v1273 = vpop.f32.mrb[0].mxu0
        %1274 = vmatprep.mubr.bf16.mxu0 0
        %1275 = vmatmul.mubr.bf16.gmra.mrb[0].mxu0 %v1130
        %v1276 = vpop.f32.mrb[0].mxu0
        %v1277 = vadd.f32 0.0, %v1276
        %v1278 = vpop.f32.mrb[0].mxu0
        %v1279 = vpop.f32.mrb[0].mxu0
        %v1280 = vadd.f32 0.0, %v1279
        %v1281 = vpop.f32.mrb[0].mxu0
        %1282 = vmatprep.mubr.bf16.mxu0 0
        %1283 = vmatmul.mubr.bf16.gmra.mrb[0].mxu0 %v1133
        %v1284 = vpop.f32.mrb[0].mxu0
        %v1285 = vadd.f32 0.0, %v1284
        %v1286 = vpop.f32.mrb[0].mxu0
        %v1287 = vpop.f32.mrb[0].mxu0
        %v1288 = vadd.f32 0.0, %v1287
        %v1289 = vpop.f32.mrb[0].mxu0
        %1290 = vmatprep.mubr.bf16.mxu0 0
        %1291 = vmatmul.mubr.bf16.gmra.mrb[0].mxu0 %v1136
        %v1292 = vpop.f32.mrb[0].mxu0
        %v1293 = vadd.f32 0.0, %v1292
        %v1294 = vpop.f32.mrb[0].mxu0
        %v1295 = vpop.f32.mrb[0].mxu0
        %v1296 = vadd.f32 0.0, %v1295
        %v1297 = vpop.f32.mrb[0].mxu0
        %1298 = vdwg.mxu0
        %v1303 = vunpack.c.l.b16 %v1069
        %v1304 = vunpack.c.l.b16 %v1070
        %v1305 = vunpack.c.l.b16 %v1071
        %v1306 = vunpack.c.l.b16 %v1072
        %v1307 = vpack.c.b16 %v1304, %v1303
        %v1308 = vpack.c.b16 %v1306, %v1305
        %v1312 = vsel %vm1089, %v900, 0
        %1314 = vmatprep.subr.bf16.mxu0 0
        %1315 = vmatpush1.bf16.msra.mxu0 %v1307
        %1316 = vmatprep.subr.bf16.mxu0 0
        %1317 = vmatpush1.bf16.msra.mxu0 %v1308
        %1318 = vmatprep.subr.bf16.mxu0 0
        %1319 = vmatpush1.bf16.msra.mxu0 0
        %1320 = vmatprep.subr.bf16.mxu0 0
        %1321 = vmatpush1.bf16.msra.mxu0 0
        %1322 = vmatprep.subr.bf16.mxu0 0
        %1323 = vmatpush1.bf16.msra.mxu0 0
        %1324 = vmatprep.subr.bf16.mxu0 0
        %1325 = vmatpush1.bf16.msra.mxu0 0
        %1326 = vmatprep.subr.bf16.mxu0 0
        %1327 = vmatpush1.bf16.msra.mxu0 0
        %1328 = vmatprep.subr.bf16.mxu0 0
        %1329 = vmatpush1.bf16.msra.mxu0 0
        %1330 = vmatprep.subr.bf16.mxu0 0
        %1331 = vmatpush1.bf16.msra.mxu0 0
        %1332 = vmatprep.subr.bf16.mxu0 0
        %1333 = vmatpush1.bf16.msra.mxu0 0
        %1334 = vmatprep.subr.bf16.mxu0 0
        %1335 = vmatpush1.bf16.msra.mxu0 0
        %1336 = vmatprep.subr.bf16.mxu0 0
        %1337 = vmatpush1.bf16.msra.mxu0 0
        %1338 = vmatprep.subr.bf16.mxu0 0
        %1339 = vmatpush1.bf16.msra.mxu0 0
        %1340 = vmatprep.subr.bf16.mxu0 0
        %1341 = vmatpush1.bf16.msra.mxu0 0
        %1342 = vmatprep.subr.bf16.mxu0 0
        %1343 = vmatpush1.bf16.msra.mxu0 0
        %1344 = vmatprep.subr.bf16.mxu0 0
        %1345 = vmatpush1.bf16.msra.mxu0 0
        %1346 = vmatprep.mubr.bf16.mxu0 0
        %1347 = vmatmul.mubr.bf16.gmra.mrb[0].mxu0 %v1312
        %v1348 = vpop.f32.mrb[0].mxu0
        %v1349 = vadd.f32 %v1173, %v1348
        %v1350 = vpop.f32.mrb[0].mxu0
        %v1351 = vpop.f32.mrb[0].mxu0
        %v1352 = vadd.f32 %v1176, %v1351
        %v1353 = vpop.f32.mrb[0].mxu0
        %1354 = vmatprep.mubr.bf16.mxu0 0
        %1355 = vmatmul.mubr.bf16.gmra.mrb[0].mxu0 %v1091
        %v1356 = vpop.f32.mrb[0].mxu0
        %v1357 = vadd.f32 %v1181, %v1356
        %v1358 = vpop.f32.mrb[0].mxu0
        %v1359 = vpop.f32.mrb[0].mxu0
        %v1360 = vadd.f32 %v1184, %v1359
        %v1361 = vpop.f32.mrb[0].mxu0
        %1362 = vmatprep.mubr.bf16.mxu0 0
        %1363 = vmatmul.mubr.bf16.gmra.mrb[0].mxu0 %v1094
        %v1364 = vpop.f32.mrb[0].mxu0
        %v1365 = vadd.f32 %v1189, %v1364
        %v1366 = vpop.f32.mrb[0].mxu0
        %v1367 = vpop.f32.mrb[0].mxu0
        %v1368 = vadd.f32 %v1192, %v1367
        %v1369 = vpop.f32.mrb[0].mxu0
        %1370 = vmatprep.mubr.bf16.mxu0 0
        %1371 = vmatmul.mubr.bf16.gmra.mrb[0].mxu0 %v1097
        %v1372 = vpop.f32.mrb[0].mxu0
        %v1373 = vadd.f32 %v1197, %v1372
        %v1374 = vpop.f32.mrb[0].mxu0
        %v1375 = vpop.f32.mrb[0].mxu0
        %v1376 = vadd.f32 %v1200, %v1375
        %v1377 = vpop.f32.mrb[0].mxu0
        %1378 = vmatprep.mubr.bf16.mxu0 0
        %1379 = vmatmul.mubr.bf16.gmra.mrb[0].mxu0 %v1100
        %v1380 = vpop.f32.mrb[0].mxu0
        %v1381 = vadd.f32 %v1205, %v1380
        %v1382 = vpop.f32.mrb[0].mxu0
        %v1383 = vpop.f32.mrb[0].mxu0
        %v1384 = vadd.f32 %v1208, %v1383
        %v1385 = vpop.f32.mrb[0].mxu0
        %1386 = vmatprep.mubr.bf16.mxu0 0
        %1387 = vmatmul.mubr.bf16.gmra.mrb[0].mxu0 %v1103
        %v1388 = vpop.f32.mrb[0].mxu0
        %v1389 = vadd.f32 %v1213, %v1388
        %v1390 = vpop.f32.mrb[0].mxu0
        %v1391 = vpop.f32.mrb[0].mxu0
        %v1392 = vadd.f32 %v1216, %v1391
        %v1393 = vpop.f32.mrb[0].mxu0
        %1394 = vmatprep.mubr.bf16.mxu0 0
        %1395 = vmatmul.mubr.bf16.gmra.mrb[0].mxu0 %v1106
        %v1396 = vpop.f32.mrb[0].mxu0
        %v1397 = vadd.f32 %v1221, %v1396
        %v1398 = vpop.f32.mrb[0].mxu0
        %v1399 = vpop.f32.mrb[0].mxu0
        %v1400 = vadd.f32 %v1224, %v1399
        %v1401 = vpop.f32.mrb[0].mxu0
        %1402 = vmatprep.mubr.bf16.mxu0 0
        %1403 = vmatmul.mubr.bf16.gmra.mrb[0].mxu0 %v1109
        %v1404 = vpop.f32.mrb[0].mxu0
        %v1405 = vadd.f32 %v1229, %v1404
        %v1406 = vpop.f32.mrb[0].mxu0
        %v1407 = vpop.f32.mrb[0].mxu0
        %v1408 = vadd.f32 %v1232, %v1407
        %v1409 = vpop.f32.mrb[0].mxu0
        %1410 = vmatprep.mubr.bf16.mxu0 0
        %1411 = vmatmul.mubr.bf16.gmra.mrb[0].mxu0 %v1112
        %v1412 = vpop.f32.mrb[0].mxu0
        %v1413 = vadd.f32 %v1237, %v1412
        %v1414 = vpop.f32.mrb[0].mxu0
        %v1415 = vpop.f32.mrb[0].mxu0
        %v1416 = vadd.f32 %v1240, %v1415
        %v1417 = vpop.f32.mrb[0].mxu0
        %1418 = vmatprep.mubr.bf16.mxu0 0
        %1419 = vmatmul.mubr.bf16.gmra.mrb[0].mxu0 %v1115
        %v1420 = vpop.f32.mrb[0].mxu0
        %v1421 = vadd.f32 %v1245, %v1420
        %v1422 = vpop.f32.mrb[0].mxu0
        %v1423 = vpop.f32.mrb[0].mxu0
        %v1424 = vadd.f32 %v1248, %v1423
        %v1425 = vpop.f32.mrb[0].mxu0
        %1426 = vmatprep.mubr.bf16.mxu0 0
        %1427 = vmatmul.mubr.bf16.gmra.mrb[0].mxu0 %v1118
        %v1428 = vpop.f32.mrb[0].mxu0
        %v1429 = vadd.f32 %v1253, %v1428
        %v1430 = vpop.f32.mrb[0].mxu0
        %v1431 = vpop.f32.mrb[0].mxu0
        %v1432 = vadd.f32 %v1256, %v1431
        %v1433 = vpop.f32.mrb[0].mxu0
        %1434 = vmatprep.mubr.bf16.mxu0 0
        %1435 = vmatmul.mubr.bf16.gmra.mrb[0].mxu0 %v1121
        %v1436 = vpop.f32.mrb[0].mxu0
        %v1437 = vadd.f32 %v1261, %v1436
        %v1438 = vpop.f32.mrb[0].mxu0
        %v1439 = vpop.f32.mrb[0].mxu0
        %v1440 = vadd.f32 %v1264, %v1439
        %v1441 = vpop.f32.mrb[0].mxu0
        %1442 = vmatprep.mubr.bf16.mxu0 0
        %1443 = vmatmul.mubr.bf16.gmra.mrb[0].mxu0 %v1124
        %v1444 = vpop.f32.mrb[0].mxu0
        %v1445 = vadd.f32 %v1269, %v1444
        %v1446 = vpop.f32.mrb[0].mxu0
        %v1447 = vpop.f32.mrb[0].mxu0
        %v1448 = vadd.f32 %v1272, %v1447
        %v1449 = vpop.f32.mrb[0].mxu0
        %1450 = vmatprep.mubr.bf16.mxu0 0
        %1451 = vmatmul.mubr.bf16.gmra.mrb[0].mxu0 %v1127
        %v1452 = vpop.f32.mrb[0].mxu0
        %v1453 = vadd.f32 %v1277, %v1452
        %v1454 = vpop.f32.mrb[0].mxu0
        %v1455 = vpop.f32.mrb[0].mxu0
        %v1456 = vadd.f32 %v1280, %v1455
        %v1457 = vpop.f32.mrb[0].mxu0
        %1458 = vmatprep.mubr.bf16.mxu0 0
        %1459 = vmatmul.mubr.bf16.gmra.mrb[0].mxu0 %v1130
        %v1460 = vpop.f32.mrb[0].mxu0
        %v1461 = vadd.f32 %v1285, %v1460
        %v1462 = vpop.f32.mrb[0].mxu0
        %v1463 = vpop.f32.mrb[0].mxu0
        %v1464 = vadd.f32 %v1288, %v1463
        %v1465 = vpop.f32.mrb[0].mxu0
        %1466 = vmatprep.mubr.bf16.mxu0 0
        %1467 = vmatmul.mubr.bf16.gmra.mrb[0].mxu0 %v1133
        %v1468 = vpop.f32.mrb[0].mxu0
        %v1469 = vadd.f32 %v1293, %v1468
        %v1470 = vpop.f32.mrb[0].mxu0
        %v1471 = vpop.f32.mrb[0].mxu0
        %v1472 = vadd.f32 %v1296, %v1471
        %v1473 = vpop.f32.mrb[0].mxu0
        %1474 = vdwg.mxu0
        %v1475 = vld [vmem:[%s3 + $0x20] sm:$0xf]
        %v1476 = vld [vmem:[%s3 + $0x24] sm:$0xf]
        %v1477 = vld [vmem:[%s3 + $0x28] sm:$0xf]
        %v1478 = vld [vmem:[%s3 + $0x2c] sm:$0xf]
        %v1483 = vunpack.c.l.b16 %v1475
        %v1484 = vunpack.c.l.b16 %v1476
        %v1485 = vunpack.c.l.b16 %v1477
        %v1486 = vunpack.c.l.b16 %v1478
        %v1487 = vpack.c.b16 %v1484, %v1483
        %v1488 = vpack.c.b16 %v1486, %v1485
        %v1492 = vsel %vm1089, %v917, 0
        %1494 = vmatprep.subr.bf16.mxu0 0
        %1495 = vmatpush1.bf16.msra.mxu0 %v1487
        %1496 = vmatprep.subr.bf16.mxu0 0
        %1497 = vmatpush1.bf16.msra.mxu0 %v1488
        %1498 = vmatprep.subr.bf16.mxu0 0
        %1499 = vmatpush1.bf16.msra.mxu0 0
        %1500 = vmatprep.subr.bf16.mxu0 0
        %1501 = vmatpush1.bf16.msra.mxu0 0
        %1502 = vmatprep.subr.bf16.mxu0 0
        %1503 = vmatpush1.bf16.msra.mxu0 0
        %1504 = vmatprep.subr.bf16.mxu0 0
        %1505 = vmatpush1.bf16.msra.mxu0 0
        %1506 = vmatprep.subr.bf16.mxu0 0
        %1507 = vmatpush1.bf16.msra.mxu0 0
        %1508 = vmatprep.subr.bf16.mxu0 0
        %1509 = vmatpush1.bf16.msra.mxu0 0
        %1510 = vmatprep.subr.bf16.mxu0 0
        %1511 = vmatpush1.bf16.msra.mxu0 0
        %1512 = vmatprep.subr.bf16.mxu0 0
        %1513 = vmatpush1.bf16.msra.mxu0 0
        %1514 = vmatprep.subr.bf16.mxu0 0
        %1515 = vmatpush1.bf16.msra.mxu0 0
        %1516 = vmatprep.subr.bf16.mxu0 0
        %1517 = vmatpush1.bf16.msra.mxu0 0
        %1518 = vmatprep.subr.bf16.mxu0 0
        %1519 = vmatpush1.bf16.msra.mxu0 0
        %1520 = vmatprep.subr.bf16.mxu0 0
        %1521 = vmatpush1.bf16.msra.mxu0 0
        %1522 = vmatprep.subr.bf16.mxu0 0
        %1523 = vmatpush1.bf16.msra.mxu0 0
        %1524 = vmatprep.subr.bf16.mxu0 0
        %1525 = vmatpush1.bf16.msra.mxu0 0
        %1526 = vmatprep.mubr.bf16.mxu0 0
        %1527 = vmatmul.mubr.bf16.gmra.mrb[0].mxu0 %v1094
        %v1528 = vpop.f32.mrb[0].mxu0
        %v1529 = vadd.f32 0.0, %v1528
        %v1530 = vpop.f32.mrb[0].mxu0
        %v1531 = vpop.f32.mrb[0].mxu0
        %v1532 = vadd.f32 0.0, %v1531
        %v1533 = vpop.f32.mrb[0].mxu0
        %1534 = vmatprep.mubr.bf16.mxu0 0
        %1535 = vmatmul.mubr.bf16.gmra.mrb[0].mxu0 %v1097
        %v1536 = vpop.f32.mrb[0].mxu0
        %v1537 = vadd.f32 0.0, %v1536
        %v1538 = vpop.f32.mrb[0].mxu0
        %v1539 = vpop.f32.mrb[0].mxu0
        %v1540 = vadd.f32 0.0, %v1539
        %v1541 = vpop.f32.mrb[0].mxu0
        %1542 = vmatprep.mubr.bf16.mxu0 0
        %1543 = vmatmul.mubr.bf16.gmra.mrb[0].mxu0 %v1100
        %v1544 = vpop.f32.mrb[0].mxu0
        %v1545 = vadd.f32 0.0, %v1544
        %v1546 = vpop.f32.mrb[0].mxu0
        %v1547 = vpop.f32.mrb[0].mxu0
        %v1548 = vadd.f32 0.0, %v1547
        %v1549 = vpop.f32.mrb[0].mxu0
        %1550 = vmatprep.mubr.bf16.mxu0 0
        %1551 = vmatmul.mubr.bf16.gmra.mrb[0].mxu0 %v1103
        %v1552 = vpop.f32.mrb[0].mxu0
        %v1553 = vadd.f32 0.0, %v1552
        %v1554 = vpop.f32.mrb[0].mxu0
        %v1555 = vpop.f32.mrb[0].mxu0
        %v1556 = vadd.f32 0.0, %v1555
        %v1557 = vpop.f32.mrb[0].mxu0
        %1558 = vmatprep.mubr.bf16.mxu0 0
        %1559 = vmatmul.mubr.bf16.gmra.mrb[0].mxu0 %v1106
        %v1560 = vpop.f32.mrb[0].mxu0
        %v1561 = vadd.f32 0.0, %v1560
        %v1562 = vpop.f32.mrb[0].mxu0
        %v1563 = vpop.f32.mrb[0].mxu0
        %v1564 = vadd.f32 0.0, %v1563
        %v1565 = vpop.f32.mrb[0].mxu0
        %1566 = vmatprep.mubr.bf16.mxu0 0
        %1567 = vmatmul.mubr.bf16.gmra.mrb[0].mxu0 %v1109
        %v1568 = vpop.f32.mrb[0].mxu0
        %v1569 = vadd.f32 0.0, %v1568
        %v1570 = vpop.f32.mrb[0].mxu0
        %v1571 = vpop.f32.mrb[0].mxu0
        %v1572 = vadd.f32 0.0, %v1571
        %v1573 = vpop.f32.mrb[0].mxu0
        %1574 = vmatprep.mubr.bf16.mxu0 0
        %1575 = vmatmul.mubr.bf16.gmra.mrb[0].mxu0 %v1112
        %v1576 = vpop.f32.mrb[0].mxu0
        %v1577 = vadd.f32 0.0, %v1576
        %v1578 = vpop.f32.mrb[0].mxu0
        %v1579 = vpop.f32.mrb[0].mxu0
        %v1580 = vadd.f32 0.0, %v1579
        %v1581 = vpop.f32.mrb[0].mxu0
        %1582 = vmatprep.mubr.bf16.mxu0 0
        %1583 = vmatmul.mubr.bf16.gmra.mrb[0].mxu0 %v1115
        %v1584 = vpop.f32.mrb[0].mxu0
        %v1585 = vadd.f32 0.0, %v1584
        %v1586 = vpop.f32.mrb[0].mxu0
        %v1587 = vpop.f32.mrb[0].mxu0
        %v1588 = vadd.f32 0.0, %v1587
        %v1589 = vpop.f32.mrb[0].mxu0
        %1590 = vmatprep.mubr.bf16.mxu0 0
        %1591 = vmatmul.mubr.bf16.gmra.mrb[0].mxu0 %v1118
        %v1592 = vpop.f32.mrb[0].mxu0
        %v1593 = vadd.f32 0.0, %v1592
        %v1594 = vpop.f32.mrb[0].mxu0
        %v1595 = vpop.f32.mrb[0].mxu0
        %v1596 = vadd.f32 0.0, %v1595
        %v1597 = vpop.f32.mrb[0].mxu0
        %1598 = vmatprep.mubr.bf16.mxu0 0
        %1599 = vmatmul.mubr.bf16.gmra.mrb[0].mxu0 %v1121
        %v1600 = vpop.f32.mrb[0].mxu0
        %v1601 = vadd.f32 0.0, %v1600
        %v1602 = vpop.f32.mrb[0].mxu0
        %v1603 = vpop.f32.mrb[0].mxu0
        %v1604 = vadd.f32 0.0, %v1603
        %v1605 = vpop.f32.mrb[0].mxu0
        %1606 = vmatprep.mubr.bf16.mxu0 0
        %1607 = vmatmul.mubr.bf16.gmra.mrb[0].mxu0 %v1124
        %v1608 = vpop.f32.mrb[0].mxu0
        %v1609 = vadd.f32 0.0, %v1608
        %v1610 = vpop.f32.mrb[0].mxu0
        %v1611 = vpop.f32.mrb[0].mxu0
        %v1612 = vadd.f32 0.0, %v1611
        %v1613 = vpop.f32.mrb[0].mxu0
        %1614 = vmatprep.mubr.bf16.mxu0 0
        %1615 = vmatmul.mubr.bf16.gmra.mrb[0].mxu0 %v1127
        %v1616 = vpop.f32.mrb[0].mxu0
        %v1617 = vadd.f32 0.0, %v1616
        %v1618 = vpop.f32.mrb[0].mxu0
        %v1619 = vpop.f32.mrb[0].mxu0
        %v1620 = vadd.f32 0.0, %v1619
        %v1621 = vpop.f32.mrb[0].mxu0
        %1622 = vmatprep.mubr.bf16.mxu0 0
        %1623 = vmatmul.mubr.bf16.gmra.mrb[0].mxu0 %v1130
        %v1624 = vpop.f32.mrb[0].mxu0
        %v1625 = vadd.f32 0.0, %v1624
        %v1626 = vpop.f32.mrb[0].mxu0
        %v1627 = vpop.f32.mrb[0].mxu0
        %v1628 = vadd.f32 0.0, %v1627
        %v1629 = vpop.f32.mrb[0].mxu0
        %1630 = vmatprep.mubr.bf16.mxu0 0
        %1631 = vmatmul.mubr.bf16.gmra.mrb[0].mxu0 %v1133
        %v1632 = vpop.f32.mrb[0].mxu0
        %v1633 = vadd.f32 0.0, %v1632
        %v1634 = vpop.f32.mrb[0].mxu0
        %v1635 = vpop.f32.mrb[0].mxu0
        %v1636 = vadd.f32 0.0, %v1635
        %v1637 = vpop.f32.mrb[0].mxu0
        %1638 = vmatprep.mubr.bf16.mxu0 0
        %1639 = vmatmul.mubr.bf16.gmra.mrb[0].mxu0 %v1136
        %v1640 = vpop.f32.mrb[0].mxu0
        %v1641 = vadd.f32 0.0, %v1640
        %v1642 = vpop.f32.mrb[0].mxu0
        %v1643 = vpop.f32.mrb[0].mxu0
        %v1644 = vadd.f32 0.0, %v1643
        %v1645 = vpop.f32.mrb[0].mxu0
        %1646 = vmatprep.mubr.bf16.mxu0 0
        %1647 = vmatmul.mubr.bf16.gmra.mrb[0].mxu0 %v1492
        %v1648 = vpop.f32.mrb[0].mxu0
        %v1649 = vadd.f32 0.0, %v1648
        %v1650 = vpop.f32.mrb[0].mxu0
        %v1651 = vpop.f32.mrb[0].mxu0
        %v1652 = vadd.f32 0.0, %v1651
        %v1653 = vpop.f32.mrb[0].mxu0
        %1654 = vdwg.mxu0
        %v1655 = vadd.f32 %v1349, %v1529
        %v1656 = vadd.f32 %v1352, %v1532
        %v1657 = vadd.f32 %v1357, %v1537
        %v1658 = vadd.f32 %v1360, %v1540
        %v1659 = vadd.f32 %v1365, %v1545
        %v1660 = vadd.f32 %v1368, %v1548
        %v1661 = vadd.f32 %v1373, %v1553
        %v1662 = vadd.f32 %v1376, %v1556
        %v1663 = vadd.f32 %v1381, %v1561
        %v1664 = vadd.f32 %v1384, %v1564
        %v1665 = vadd.f32 %v1389, %v1569
        %v1666 = vadd.f32 %v1392, %v1572
        %v1667 = vadd.f32 %v1397, %v1577
        %v1668 = vadd.f32 %v1400, %v1580
        %v1669 = vadd.f32 %v1405, %v1585
        %v1670 = vadd.f32 %v1408, %v1588
        %v1671 = vadd.f32 %v1413, %v1593
        %v1672 = vadd.f32 %v1416, %v1596
        %v1673 = vadd.f32 %v1421, %v1601
        %v1674 = vadd.f32 %v1424, %v1604
        %v1675 = vadd.f32 %v1429, %v1609
        %v1676 = vadd.f32 %v1432, %v1612
        %v1677 = vadd.f32 %v1437, %v1617
        %v1678 = vadd.f32 %v1440, %v1620
        %v1679 = vadd.f32 %v1445, %v1625
        %v1680 = vadd.f32 %v1448, %v1628
        %v1681 = vadd.f32 %v1453, %v1633
        %v1682 = vadd.f32 %v1456, %v1636
        %v1683 = vadd.f32 %v1461, %v1641
        %v1684 = vadd.f32 %v1464, %v1644
        %v1685 = vadd.f32 %v1469, %v1649
        %v1686 = vadd.f32 %v1472, %v1652
        %v1687 = vld [vmem:[%s3 + $0x30] sm:$0xf]
        %v1688 = vld [vmem:[%s3 + $0x34] sm:$0xf]
        %v1689 = vld [vmem:[%s3 + $0x38] sm:$0xf]
        %v1690 = vld [vmem:[%s3 + $0x3c] sm:$0xf]
        %v1695 = vunpack.c.l.b16 %v1687
        %v1696 = vunpack.c.l.b16 %v1688
        %v1697 = vunpack.c.l.b16 %v1689
        %v1698 = vunpack.c.l.b16 %v1690
        %v1699 = vpack.c.b16 %v1696, %v1695
        %v1700 = vpack.c.b16 %v1698, %v1697
        %v1704 = vsel %vm1089, %v918, 0
        %v1707 = vsel %vm1089, %v919, 0
        %v1710 = vsel %vm1089, %v920, 0
        %v1713 = vsel %vm1089, %v921, 0
        %v1716 = vsel %vm1089, %v922, 0
        %v1719 = vsel %vm1089, %v923, 0
        %v1722 = vsel %vm1089, %v924, 0
        %v1725 = vsel %vm1089, %v925, 0
        %v1728 = vsel %vm1089, %v926, 0
        %v1731 = vsel %vm1089, %v927, 0
        %v1734 = vsel %vm1089, %v928, 0
        %v1737 = vsel %vm1089, %v929, 0
        %v1740 = vsel %vm1089, %v930, 0
        %v1743 = vsel %vm1089, %v931, 0
        %v1746 = vsel %vm1089, %v932, 0
        %v1749 = vsel %vm1089, %v933, 0
        %1751 = vmatprep.subr.bf16.mxu0 0
        %1752 = vmatpush1.bf16.msra.mxu0 %v1699
        %1753 = vmatprep.subr.bf16.mxu0 0
        %1754 = vmatpush1.bf16.msra.mxu0 %v1700
        %1755 = vmatprep.subr.bf16.mxu0 0
        %1756 = vmatpush1.bf16.msra.mxu0 0
        %1757 = vmatprep.subr.bf16.mxu0 0
        %1758 = vmatpush1.bf16.msra.mxu0 0
        %1759 = vmatprep.subr.bf16.mxu0 0
        %1760 = vmatpush1.bf16.msra.mxu0 0
        %1761 = vmatprep.subr.bf16.mxu0 0
        %1762 = vmatpush1.bf16.msra.mxu0 0
        %1763 = vmatprep.subr.bf16.mxu0 0
        %1764 = vmatpush1.bf16.msra.mxu0 0
        %1765 = vmatprep.subr.bf16.mxu0 0
        %1766 = vmatpush1.bf16.msra.mxu0 0
        %1767 = vmatprep.subr.bf16.mxu0 0
        %1768 = vmatpush1.bf16.msra.mxu0 0
        %1769 = vmatprep.subr.bf16.mxu0 0
        %1770 = vmatpush1.bf16.msra.mxu0 0
        %1771 = vmatprep.subr.bf16.mxu0 0
        %1772 = vmatpush1.bf16.msra.mxu0 0
        %1773 = vmatprep.subr.bf16.mxu0 0
        %1774 = vmatpush1.bf16.msra.mxu0 0
        %1775 = vmatprep.subr.bf16.mxu0 0
        %1776 = vmatpush1.bf16.msra.mxu0 0
        %1777 = vmatprep.subr.bf16.mxu0 0
        %1778 = vmatpush1.bf16.msra.mxu0 0
        %1779 = vmatprep.subr.bf16.mxu0 0
        %1780 = vmatpush1.bf16.msra.mxu0 0
        %1781 = vmatprep.subr.bf16.mxu0 0
        %1782 = vmatpush1.bf16.msra.mxu0 0
        %1783 = vmatprep.mubr.bf16.mxu0 0
        %1784 = vmatmul.mubr.bf16.gmra.mrb[0].mxu0 %v1704
        %v1785 = vpop.f32.mrb[0].mxu0
        %v1786 = vadd.f32 0.0, %v1785
        %v1787 = vpop.f32.mrb[0].mxu0
        %v1788 = vpop.f32.mrb[0].mxu0
        %v1789 = vadd.f32 0.0, %v1788
        %v1790 = vpop.f32.mrb[0].mxu0
        %1791 = vmatprep.mubr.bf16.mxu0 0
        %1792 = vmatmul.mubr.bf16.gmra.mrb[0].mxu0 %v1707
        %v1793 = vpop.f32.mrb[0].mxu0
        %v1794 = vadd.f32 0.0, %v1793
        %v1795 = vpop.f32.mrb[0].mxu0
        %v1796 = vpop.f32.mrb[0].mxu0
        %v1797 = vadd.f32 0.0, %v1796
        %v1798 = vpop.f32.mrb[0].mxu0
        %1799 = vmatprep.mubr.bf16.mxu0 0
        %1800 = vmatmul.mubr.bf16.gmra.mrb[0].mxu0 %v1710
        %v1801 = vpop.f32.mrb[0].mxu0
        %v1802 = vadd.f32 0.0, %v1801
        %v1803 = vpop.f32.mrb[0].mxu0
        %v1804 = vpop.f32.mrb[0].mxu0
        %v1805 = vadd.f32 0.0, %v1804
        %v1806 = vpop.f32.mrb[0].mxu0
        %1807 = vmatprep.mubr.bf16.mxu0 0
        %1808 = vmatmul.mubr.bf16.gmra.mrb[0].mxu0 %v1713
        %v1809 = vpop.f32.mrb[0].mxu0
        %v1810 = vadd.f32 0.0, %v1809
        %v1811 = vpop.f32.mrb[0].mxu0
        %v1812 = vpop.f32.mrb[0].mxu0
        %v1813 = vadd.f32 0.0, %v1812
        %v1814 = vpop.f32.mrb[0].mxu0
        %1815 = vmatprep.mubr.bf16.mxu0 0
        %1816 = vmatmul.mubr.bf16.gmra.mrb[0].mxu0 %v1716
        %v1817 = vpop.f32.mrb[0].mxu0
        %v1818 = vadd.f32 0.0, %v1817
        %v1819 = vpop.f32.mrb[0].mxu0
        %v1820 = vpop.f32.mrb[0].mxu0
        %v1821 = vadd.f32 0.0, %v1820
        %v1822 = vpop.f32.mrb[0].mxu0
        %1823 = vmatprep.mubr.bf16.mxu0 0
        %1824 = vmatmul.mubr.bf16.gmra.mrb[0].mxu0 %v1719
        %v1825 = vpop.f32.mrb[0].mxu0
        %v1826 = vadd.f32 0.0, %v1825
        %v1827 = vpop.f32.mrb[0].mxu0
        %v1828 = vpop.f32.mrb[0].mxu0
        %v1829 = vadd.f32 0.0, %v1828
        %v1830 = vpop.f32.mrb[0].mxu0
        %1831 = vmatprep.mubr.bf16.mxu0 0
        %1832 = vmatmul.mubr.bf16.gmra.mrb[0].mxu0 %v1722
        %v1833 = vpop.f32.mrb[0].mxu0
        %v1834 = vadd.f32 0.0, %v1833
        %v1835 = vpop.f32.mrb[0].mxu0
        %v1836 = vpop.f32.mrb[0].mxu0
        %v1837 = vadd.f32 0.0, %v1836
        %v1838 = vpop.f32.mrb[0].mxu0
        %1839 = vmatprep.mubr.bf16.mxu0 0
        %1840 = vmatmul.mubr.bf16.gmra.mrb[0].mxu0 %v1725
        %v1841 = vpop.f32.mrb[0].mxu0
        %v1842 = vadd.f32 0.0, %v1841
        %v1843 = vpop.f32.mrb[0].mxu0
        %v1844 = vpop.f32.mrb[0].mxu0
        %v1845 = vadd.f32 0.0, %v1844
        %v1846 = vpop.f32.mrb[0].mxu0
        %1847 = vmatprep.mubr.bf16.mxu0 0
        %1848 = vmatmul.mubr.bf16.gmra.mrb[0].mxu0 %v1728
        %v1849 = vpop.f32.mrb[0].mxu0
        %v1850 = vadd.f32 0.0, %v1849
        %v1851 = vpop.f32.mrb[0].mxu0
        %v1852 = vpop.f32.mrb[0].mxu0
        %v1853 = vadd.f32 0.0, %v1852
        %v1854 = vpop.f32.mrb[0].mxu0
        %1855 = vmatprep.mubr.bf16.mxu0 0
        %1856 = vmatmul.mubr.bf16.gmra.mrb[0].mxu0 %v1731
        %v1857 = vpop.f32.mrb[0].mxu0
        %v1858 = vadd.f32 0.0, %v1857
        %v1859 = vpop.f32.mrb[0].mxu0
        %v1860 = vpop.f32.mrb[0].mxu0
        %v1861 = vadd.f32 0.0, %v1860
        %v1862 = vpop.f32.mrb[0].mxu0
        %1863 = vmatprep.mubr.bf16.mxu0 0
        %1864 = vmatmul.mubr.bf16.gmra.mrb[0].mxu0 %v1734
        %v1865 = vpop.f32.mrb[0].mxu0
        %v1866 = vadd.f32 0.0, %v1865
        %v1867 = vpop.f32.mrb[0].mxu0
        %v1868 = vpop.f32.mrb[0].mxu0
        %v1869 = vadd.f32 0.0, %v1868
        %v1870 = vpop.f32.mrb[0].mxu0
        %1871 = vmatprep.mubr.bf16.mxu0 0
        %1872 = vmatmul.mubr.bf16.gmra.mrb[0].mxu0 %v1737
        %v1873 = vpop.f32.mrb[0].mxu0
        %v1874 = vadd.f32 0.0, %v1873
        %v1875 = vpop.f32.mrb[0].mxu0
        %v1876 = vpop.f32.mrb[0].mxu0
        %v1877 = vadd.f32 0.0, %v1876
        %v1878 = vpop.f32.mrb[0].mxu0
        %1879 = vmatprep.mubr.bf16.mxu0 0
        %1880 = vmatmul.mubr.bf16.gmra.mrb[0].mxu0 %v1740
        %v1881 = vpop.f32.mrb[0].mxu0
        %v1882 = vadd.f32 0.0, %v1881
        %v1883 = vpop.f32.mrb[0].mxu0
        %v1884 = vpop.f32.mrb[0].mxu0
        %v1885 = vadd.f32 0.0, %v1884
        %v1886 = vpop.f32.mrb[0].mxu0
        %1887 = vmatprep.mubr.bf16.mxu0 0
        %1888 = vmatmul.mubr.bf16.gmra.mrb[0].mxu0 %v1743
        %v1889 = vpop.f32.mrb[0].mxu0
        %v1890 = vadd.f32 0.0, %v1889
        %v1891 = vpop.f32.mrb[0].mxu0
        %v1892 = vpop.f32.mrb[0].mxu0
        %v1893 = vadd.f32 0.0, %v1892
        %v1894 = vpop.f32.mrb[0].mxu0
        %1895 = vmatprep.mubr.bf16.mxu0 0
        %1896 = vmatmul.mubr.bf16.gmra.mrb[0].mxu0 %v1746
        %v1897 = vpop.f32.mrb[0].mxu0
        %v1898 = vadd.f32 0.0, %v1897
        %v1899 = vpop.f32.mrb[0].mxu0
        %v1900 = vpop.f32.mrb[0].mxu0
        %v1901 = vadd.f32 0.0, %v1900
        %v1902 = vpop.f32.mrb[0].mxu0
        %1903 = vmatprep.mubr.bf16.mxu0 0
        %1904 = vmatmul.mubr.bf16.gmra.mrb[0].mxu0 %v1749
        %v1905 = vpop.f32.mrb[0].mxu0
        %v1906 = vadd.f32 0.0, %v1905
        %v1907 = vpop.f32.mrb[0].mxu0
        %v1908 = vpop.f32.mrb[0].mxu0
        %v1909 = vadd.f32 0.0, %v1908
        %v1910 = vpop.f32.mrb[0].mxu0
        %1911 = vdwg.mxu0
        %v1912 = vadd.f32 %v1655, %v1786
        %v1913 = vadd.f32 %v1656, %v1789
        %v1914 = vadd.f32 %v1657, %v1794
        %v1915 = vadd.f32 %v1658, %v1797
        %v1916 = vadd.f32 %v1659, %v1802
        %v1917 = vadd.f32 %v1660, %v1805
        %v1918 = vadd.f32 %v1661, %v1810
        %v1919 = vadd.f32 %v1662, %v1813
        %v1920 = vadd.f32 %v1663, %v1818
        %v1921 = vadd.f32 %v1664, %v1821
        %v1922 = vadd.f32 %v1665, %v1826
        %v1923 = vadd.f32 %v1666, %v1829
        %v1924 = vadd.f32 %v1667, %v1834
        %v1925 = vadd.f32 %v1668, %v1837
        %v1926 = vadd.f32 %v1669, %v1842
        %v1927 = vadd.f32 %v1670, %v1845
        %v1928 = vadd.f32 %v1671, %v1850
        %v1929 = vadd.f32 %v1672, %v1853
        %v1930 = vadd.f32 %v1673, %v1858
        %v1931 = vadd.f32 %v1674, %v1861
        %v1932 = vadd.f32 %v1675, %v1866
        %v1933 = vadd.f32 %v1676, %v1869
        %v1934 = vadd.f32 %v1677, %v1874
        %v1935 = vadd.f32 %v1678, %v1877
        %v1936 = vadd.f32 %v1679, %v1882
        %v1937 = vadd.f32 %v1680, %v1885
        %v1938 = vadd.f32 %v1681, %v1890
        %v1939 = vadd.f32 %v1682, %v1893
        %v1940 = vadd.f32 %v1683, %v1898
        %v1941 = vadd.f32 %v1684, %v1901
        %v1942 = vadd.f32 %v1685, %v1906
        %v1943 = vadd.f32 %v1686, %v1909
        %v1944 = vld [vmem:[%s3 + $0x40] sm:$0xf]
        %v1945 = vld [vmem:[%s3 + $0x44] sm:$0xf]
        %v1946 = vld [vmem:[%s3 + $0x48] sm:$0xf]
        %v1947 = vld [vmem:[%s3 + $0x4c] sm:$0xf]
        %v1952 = vunpack.c.l.b16 %v1944
        %v1953 = vunpack.c.l.b16 %v1945
        %v1954 = vunpack.c.l.b16 %v1946
        %v1955 = vunpack.c.l.b16 %v1947
        %v1956 = vpack.c.b16 %v1953, %v1952
        %v1957 = vpack.c.b16 %v1955, %v1954
        %v1961 = vsel %vm1089, %v934, 0
        %1963 = vmatprep.subr.bf16.mxu0 0
        %1964 = vmatpush1.bf16.msra.mxu0 %v1956
        %1965 = vmatprep.subr.bf16.mxu0 0
        %1966 = vmatpush1.bf16.msra.mxu0 %v1957
        %1967 = vmatprep.subr.bf16.mxu0 0
        %1968 = vmatpush1.bf16.msra.mxu0 0
        %1969 = vmatprep.subr.bf16.mxu0 0
        %1970 = vmatpush1.bf16.msra.mxu0 0
        %1971 = vmatprep.subr.bf16.mxu0 0
        %1972 = vmatpush1.bf16.msra.mxu0 0
        %1973 = vmatprep.subr.bf16.mxu0 0
        %1974 = vmatpush1.bf16.msra.mxu0 0
        %1975 = vmatprep.subr.bf16.mxu0 0
        %1976 = vmatpush1.bf16.msra.mxu0 0
        %1977 = vmatprep.subr.bf16.mxu0 0
        %1978 = vmatpush1.bf16.msra.mxu0 0
        %1979 = vmatprep.subr.bf16.mxu0 0
        %1980 = vmatpush1.bf16.msra.mxu0 0
        %1981 = vmatprep.subr.bf16.mxu0 0
        %1982 = vmatpush1.bf16.msra.mxu0 0
        %1983 = vmatprep.subr.bf16.mxu0 0
        %1984 = vmatpush1.bf16.msra.mxu0 0
        %1985 = vmatprep.subr.bf16.mxu0 0
        %1986 = vmatpush1.bf16.msra.mxu0 0
        %1987 = vmatprep.subr.bf16.mxu0 0
        %1988 = vmatpush1.bf16.msra.mxu0 0
        %1989 = vmatprep.subr.bf16.mxu0 0
        %1990 = vmatpush1.bf16.msra.mxu0 0
        %1991 = vmatprep.subr.bf16.mxu0 0
        %1992 = vmatpush1.bf16.msra.mxu0 0
        %1993 = vmatprep.subr.bf16.mxu0 0
        %1994 = vmatpush1.bf16.msra.mxu0 0
        %1995 = vmatprep.mubr.bf16.mxu0 0
        %1996 = vmatmul.mubr.bf16.gmra.mrb[0].mxu0 %v1707
        %v1997 = vpop.f32.mrb[0].mxu0
        %v1998 = vadd.f32 0.0, %v1997
        %v1999 = vpop.f32.mrb[0].mxu0
        %v2000 = vpop.f32.mrb[0].mxu0
        %v2001 = vadd.f32 0.0, %v2000
        %v2002 = vpop.f32.mrb[0].mxu0
        %2003 = vmatprep.mubr.bf16.mxu0 0
        %2004 = vmatmul.mubr.bf16.gmra.mrb[0].mxu0 %v1710
        %v2005 = vpop.f32.mrb[0].mxu0
        %v2006 = vadd.f32 0.0, %v2005
        %v2007 = vpop.f32.mrb[0].mxu0
        %v2008 = vpop.f32.mrb[0].mxu0
        %v2009 = vadd.f32 0.0, %v2008
        %v2010 = vpop.f32.mrb[0].mxu0
        %2011 = vmatprep.mubr.bf16.mxu0 0
        %2012 = vmatmul.mubr.bf16.gmra.mrb[0].mxu0 %v1713
        %v2013 = vpop.f32.mrb[0].mxu0
        %v2014 = vadd.f32 0.0, %v2013
        %v2015 = vpop.f32.mrb[0].mxu0
        %v2016 = vpop.f32.mrb[0].mxu0
        %v2017 = vadd.f32 0.0, %v2016
        %v2018 = vpop.f32.mrb[0].mxu0
        %2019 = vmatprep.mubr.bf16.mxu0 0
        %2020 = vmatmul.mubr.bf16.gmra.mrb[0].mxu0 %v1716
        %v2021 = vpop.f32.mrb[0].mxu0
        %v2022 = vadd.f32 0.0, %v2021
        %v2023 = vpop.f32.mrb[0].mxu0
        %v2024 = vpop.f32.mrb[0].mxu0
        %v2025 = vadd.f32 0.0, %v2024
        %v2026 = vpop.f32.mrb[0].mxu0
        %2027 = vmatprep.mubr.bf16.mxu0 0
        %2028 = vmatmul.mubr.bf16.gmra.mrb[0].mxu0 %v1719
        %v2029 = vpop.f32.mrb[0].mxu0
        %v2030 = vadd.f32 0.0, %v2029
        %v2031 = vpop.f32.mrb[0].mxu0
        %v2032 = vpop.f32.mrb[0].mxu0
        %v2033 = vadd.f32 0.0, %v2032
        %v2034 = vpop.f32.mrb[0].mxu0
        %2035 = vmatprep.mubr.bf16.mxu0 0
        %2036 = vmatmul.mubr.bf16.gmra.mrb[0].mxu0 %v1722
        %v2037 = vpop.f32.mrb[0].mxu0
        %v2038 = vadd.f32 0.0, %v2037
        %v2039 = vpop.f32.mrb[0].mxu0
        %v2040 = vpop.f32.mrb[0].mxu0
        %v2041 = vadd.f32 0.0, %v2040
        %v2042 = vpop.f32.mrb[0].mxu0
        %2043 = vmatprep.mubr.bf16.mxu0 0
        %2044 = vmatmul.mubr.bf16.gmra.mrb[0].mxu0 %v1725
        %v2045 = vpop.f32.mrb[0].mxu0
        %v2046 = vadd.f32 0.0, %v2045
        %v2047 = vpop.f32.mrb[0].mxu0
        %v2048 = vpop.f32.mrb[0].mxu0
        %v2049 = vadd.f32 0.0, %v2048
        %v2050 = vpop.f32.mrb[0].mxu0
        %2051 = vmatprep.mubr.bf16.mxu0 0
        %2052 = vmatmul.mubr.bf16.gmra.mrb[0].mxu0 %v1728
        %v2053 = vpop.f32.mrb[0].mxu0
        %v2054 = vadd.f32 0.0, %v2053
        %v2055 = vpop.f32.mrb[0].mxu0
        %v2056 = vpop.f32.mrb[0].mxu0
        %v2057 = vadd.f32 0.0, %v2056
        %v2058 = vpop.f32.mrb[0].mxu0
        %2059 = vmatprep.mubr.bf16.mxu0 0
        %2060 = vmatmul.mubr.bf16.gmra.mrb[0].mxu0 %v1731
        %v2061 = vpop.f32.mrb[0].mxu0
        %v2062 = vadd.f32 0.0, %v2061
        %v2063 = vpop.f32.mrb[0].mxu0
        %v2064 = vpop.f32.mrb[0].mxu0
        %v2065 = vadd.f32 0.0, %v2064
        %v2066 = vpop.f32.mrb[0].mxu0
        %2067 = vmatprep.mubr.bf16.mxu0 0
        %2068 = vmatmul.mubr.bf16.gmra.mrb[0].mxu0 %v1734
        %v2069 = vpop.f32.mrb[0].mxu0
        %v2070 = vadd.f32 0.0, %v2069
        %v2071 = vpop.f32.mrb[0].mxu0
        %v2072 = vpop.f32.mrb[0].mxu0
        %v2073 = vadd.f32 0.0, %v2072
        %v2074 = vpop.f32.mrb[0].mxu0
        %2075 = vmatprep.mubr.bf16.mxu0 0
        %2076 = vmatmul.mubr.bf16.gmra.mrb[0].mxu0 %v1737
        %v2077 = vpop.f32.mrb[0].mxu0
        %v2078 = vadd.f32 0.0, %v2077
        %v2079 = vpop.f32.mrb[0].mxu0
        %v2080 = vpop.f32.mrb[0].mxu0
        %v2081 = vadd.f32 0.0, %v2080
        %v2082 = vpop.f32.mrb[0].mxu0
        %2083 = vmatprep.mubr.bf16.mxu0 0
        %2084 = vmatmul.mubr.bf16.gmra.mrb[0].mxu0 %v1740
        %v2085 = vpop.f32.mrb[0].mxu0
        %v2086 = vadd.f32 0.0, %v2085
        %v2087 = vpop.f32.mrb[0].mxu0
        %v2088 = vpop.f32.mrb[0].mxu0
        %v2089 = vadd.f32 0.0, %v2088
        %v2090 = vpop.f32.mrb[0].mxu0
        %2091 = vmatprep.mubr.bf16.mxu0 0
        %2092 = vmatmul.mubr.bf16.gmra.mrb[0].mxu0 %v1743
        %v2093 = vpop.f32.mrb[0].mxu0
        %v2094 = vadd.f32 0.0, %v2093
        %v2095 = vpop.f32.mrb[0].mxu0
        %v2096 = vpop.f32.mrb[0].mxu0
        %v2097 = vadd.f32 0.0, %v2096
        %v2098 = vpop.f32.mrb[0].mxu0
        %2099 = vmatprep.mubr.bf16.mxu0 0
        %2100 = vmatmul.mubr.bf16.gmra.mrb[0].mxu0 %v1746
        %v2101 = vpop.f32.mrb[0].mxu0
        %v2102 = vadd.f32 0.0, %v2101
        %v2103 = vpop.f32.mrb[0].mxu0
        %v2104 = vpop.f32.mrb[0].mxu0
        %v2105 = vadd.f32 0.0, %v2104
        %v2106 = vpop.f32.mrb[0].mxu0
        %2107 = vmatprep.mubr.bf16.mxu0 0
        %2108 = vmatmul.mubr.bf16.gmra.mrb[0].mxu0 %v1749
        %v2109 = vpop.f32.mrb[0].mxu0
        %v2110 = vadd.f32 0.0, %v2109
        %v2111 = vpop.f32.mrb[0].mxu0
        %v2112 = vpop.f32.mrb[0].mxu0
        %v2113 = vadd.f32 0.0, %v2112
        %v2114 = vpop.f32.mrb[0].mxu0
        %2115 = vmatprep.mubr.bf16.mxu0 0
        %2116 = vmatmul.mubr.bf16.gmra.mrb[0].mxu0 %v1961
        %v2117 = vpop.f32.mrb[0].mxu0
        %v2118 = vadd.f32 0.0, %v2117
        %v2119 = vpop.f32.mrb[0].mxu0
        %v2120 = vpop.f32.mrb[0].mxu0
        %v2121 = vadd.f32 0.0, %v2120
        %v2122 = vpop.f32.mrb[0].mxu0
        %2123 = vdwg.mxu0
        %v2124 = vadd.f32 %v1912, %v1998
        %v2125 = vadd.f32 %v1913, %v2001
        %v2126 = vadd.f32 %v1914, %v2006
        %v2127 = vadd.f32 %v1915, %v2009
        %v2128 = vadd.f32 %v1916, %v2014
        %v2129 = vadd.f32 %v1917, %v2017
        %v2130 = vadd.f32 %v1918, %v2022
        %v2131 = vadd.f32 %v1919, %v2025
        %v2132 = vadd.f32 %v1920, %v2030
        %v2133 = vadd.f32 %v1921, %v2033
        %v2134 = vadd.f32 %v1922, %v2038
        %v2135 = vadd.f32 %v1923, %v2041
        %v2136 = vadd.f32 %v1924, %v2046
        %v2137 = vadd.f32 %v1925, %v2049
        %v2138 = vadd.f32 %v1926, %v2054
        %v2139 = vadd.f32 %v1927, %v2057
        %v2140 = vadd.f32 %v1928, %v2062
        %v2141 = vadd.f32 %v1929, %v2065
        %v2142 = vadd.f32 %v1930, %v2070
        %v2143 = vadd.f32 %v1931, %v2073
        %v2144 = vadd.f32 %v1932, %v2078
        %v2145 = vadd.f32 %v1933, %v2081
        %v2146 = vadd.f32 %v1934, %v2086
        %v2147 = vadd.f32 %v1935, %v2089
        %v2148 = vadd.f32 %v1936, %v2094
        %v2149 = vadd.f32 %v1937, %v2097
        %v2150 = vadd.f32 %v1938, %v2102
        %v2151 = vadd.f32 %v1939, %v2105
        %v2152 = vadd.f32 %v1940, %v2110
        %v2153 = vadd.f32 %v1941, %v2113
        %v2154 = vadd.f32 %v1942, %v2118
        %v2155 = vadd.f32 %v1943, %v2121
        %v2156 = vld [vmem:[%s3 + $0x50] sm:$0xf]
        %v2157 = vld [vmem:[%s3 + $0x54] sm:$0xf]
        %v2158 = vld [vmem:[%s3 + $0x58] sm:$0xf]
        %v2159 = vld [vmem:[%s3 + $0x5c] sm:$0xf]
        %v2164 = vunpack.c.l.b16 %v2156
        %v2165 = vunpack.c.l.b16 %v2157
        %v2166 = vunpack.c.l.b16 %v2158
        %v2167 = vunpack.c.l.b16 %v2159
        %v2168 = vpack.c.b16 %v2165, %v2164
        %v2169 = vpack.c.b16 %v2167, %v2166
        %v2173 = vsel %vm1089, %v935, 0
        %2175 = vmatprep.subr.bf16.mxu0 0
        %2176 = vmatpush1.bf16.msra.mxu0 %v2168
        %2177 = vmatprep.subr.bf16.mxu0 0
        %2178 = vmatpush1.bf16.msra.mxu0 %v2169
        %2179 = vmatprep.subr.bf16.mxu0 0
        %2180 = vmatpush1.bf16.msra.mxu0 0
        %2181 = vmatprep.subr.bf16.mxu0 0
        %2182 = vmatpush1.bf16.msra.mxu0 0
        %2183 = vmatprep.subr.bf16.mxu0 0
        %2184 = vmatpush1.bf16.msra.mxu0 0
        %2185 = vmatprep.subr.bf16.mxu0 0
        %2186 = vmatpush1.bf16.msra.mxu0 0
        %2187 = vmatprep.subr.bf16.mxu0 0
        %2188 = vmatpush1.bf16.msra.mxu0 0
        %2189 = vmatprep.subr.bf16.mxu0 0
        %2190 = vmatpush1.bf16.msra.mxu0 0
        %2191 = vmatprep.subr.bf16.mxu0 0
        %2192 = vmatpush1.bf16.msra.mxu0 0
        %2193 = vmatprep.subr.bf16.mxu0 0
        %2194 = vmatpush1.bf16.msra.mxu0 0
        %2195 = vmatprep.subr.bf16.mxu0 0
        %2196 = vmatpush1.bf16.msra.mxu0 0
        %2197 = vmatprep.subr.bf16.mxu0 0
        %2198 = vmatpush1.bf16.msra.mxu0 0
        %2199 = vmatprep.subr.bf16.mxu0 0
        %2200 = vmatpush1.bf16.msra.mxu0 0
        %2201 = vmatprep.subr.bf16.mxu0 0
        %2202 = vmatpush1.bf16.msra.mxu0 0
        %2203 = vmatprep.subr.bf16.mxu0 0
        %2204 = vmatpush1.bf16.msra.mxu0 0
        %2205 = vmatprep.subr.bf16.mxu0 0
        %2206 = vmatpush1.bf16.msra.mxu0 0
        %2207 = vmatprep.mubr.bf16.mxu0 0
        %2208 = vmatmul.mubr.bf16.gmra.mrb[0].mxu0 %v1710
        %v2209 = vpop.f32.mrb[0].mxu0
        %v2210 = vadd.f32 0.0, %v2209
        %v2211 = vpop.f32.mrb[0].mxu0
        %v2212 = vpop.f32.mrb[0].mxu0
        %v2213 = vadd.f32 0.0, %v2212
        %v2214 = vpop.f32.mrb[0].mxu0
        %2215 = vmatprep.mubr.bf16.mxu0 0
        %2216 = vmatmul.mubr.bf16.gmra.mrb[0].mxu0 %v1713
        %v2217 = vpop.f32.mrb[0].mxu0
        %v2218 = vadd.f32 0.0, %v2217
        %v2219 = vpop.f32.mrb[0].mxu0
        %v2220 = vpop.f32.mrb[0].mxu0
        %v2221 = vadd.f32 0.0, %v2220
        %v2222 = vpop.f32.mrb[0].mxu0
        %2223 = vmatprep.mubr.bf16.mxu0 0
        %2224 = vmatmul.mubr.bf16.gmra.mrb[0].mxu0 %v1716
        %v2225 = vpop.f32.mrb[0].mxu0
        %v2226 = vadd.f32 0.0, %v2225
        %v2227 = vpop.f32.mrb[0].mxu0
        %v2228 = vpop.f32.mrb[0].mxu0
        %v2229 = vadd.f32 0.0, %v2228
        %v2230 = vpop.f32.mrb[0].mxu0
        %2231 = vmatprep.mubr.bf16.mxu0 0
        %2232 = vmatmul.mubr.bf16.gmra.mrb[0].mxu0 %v1719
        %v2233 = vpop.f32.mrb[0].mxu0
        %v2234 = vadd.f32 0.0, %v2233
        %v2235 = vpop.f32.mrb[0].mxu0
        %v2236 = vpop.f32.mrb[0].mxu0
        %v2237 = vadd.f32 0.0, %v2236
        %v2238 = vpop.f32.mrb[0].mxu0
        %2239 = vmatprep.mubr.bf16.mxu0 0
        %2240 = vmatmul.mubr.bf16.gmra.mrb[0].mxu0 %v1722
        %v2241 = vpop.f32.mrb[0].mxu0
        %v2242 = vadd.f32 0.0, %v2241
        %v2243 = vpop.f32.mrb[0].mxu0
        %v2244 = vpop.f32.mrb[0].mxu0
        %v2245 = vadd.f32 0.0, %v2244
        %v2246 = vpop.f32.mrb[0].mxu0
        %2247 = vmatprep.mubr.bf16.mxu0 0
        %2248 = vmatmul.mubr.bf16.gmra.mrb[0].mxu0 %v1725
        %v2249 = vpop.f32.mrb[0].mxu0
        %v2250 = vadd.f32 0.0, %v2249
        %v2251 = vpop.f32.mrb[0].mxu0
        %v2252 = vpop.f32.mrb[0].mxu0
        %v2253 = vadd.f32 0.0, %v2252
        %v2254 = vpop.f32.mrb[0].mxu0
        %2255 = vmatprep.mubr.bf16.mxu0 0
        %2256 = vmatmul.mubr.bf16.gmra.mrb[0].mxu0 %v1728
        %v2257 = vpop.f32.mrb[0].mxu0
        %v2258 = vadd.f32 0.0, %v2257
        %v2259 = vpop.f32.mrb[0].mxu0
        %v2260 = vpop.f32.mrb[0].mxu0
        %v2261 = vadd.f32 0.0, %v2260
        %v2262 = vpop.f32.mrb[0].mxu0
        %2263 = vmatprep.mubr.bf16.mxu0 0
        %2264 = vmatmul.mubr.bf16.gmra.mrb[0].mxu0 %v1731
        %v2265 = vpop.f32.mrb[0].mxu0
        %v2266 = vadd.f32 0.0, %v2265
        %v2267 = vpop.f32.mrb[0].mxu0
        %v2268 = vpop.f32.mrb[0].mxu0
        %v2269 = vadd.f32 0.0, %v2268
        %v2270 = vpop.f32.mrb[0].mxu0
        %2271 = vmatprep.mubr.bf16.mxu0 0
        %2272 = vmatmul.mubr.bf16.gmra.mrb[0].mxu0 %v1734
        %v2273 = vpop.f32.mrb[0].mxu0
        %v2274 = vadd.f32 0.0, %v2273
        %v2275 = vpop.f32.mrb[0].mxu0
        %v2276 = vpop.f32.mrb[0].mxu0
        %v2277 = vadd.f32 0.0, %v2276
        %v2278 = vpop.f32.mrb[0].mxu0
        %2279 = vmatprep.mubr.bf16.mxu0 0
        %2280 = vmatmul.mubr.bf16.gmra.mrb[0].mxu0 %v1737
        %v2281 = vpop.f32.mrb[0].mxu0
        %v2282 = vadd.f32 0.0, %v2281
        %v2283 = vpop.f32.mrb[0].mxu0
        %v2284 = vpop.f32.mrb[0].mxu0
        %v2285 = vadd.f32 0.0, %v2284
        %v2286 = vpop.f32.mrb[0].mxu0
        %2287 = vmatprep.mubr.bf16.mxu0 0
        %2288 = vmatmul.mubr.bf16.gmra.mrb[0].mxu0 %v1740
        %v2289 = vpop.f32.mrb[0].mxu0
        %v2290 = vadd.f32 0.0, %v2289
        %v2291 = vpop.f32.mrb[0].mxu0
        %v2292 = vpop.f32.mrb[0].mxu0
        %v2293 = vadd.f32 0.0, %v2292
        %v2294 = vpop.f32.mrb[0].mxu0
        %2295 = vmatprep.mubr.bf16.mxu0 0
        %2296 = vmatmul.mubr.bf16.gmra.mrb[0].mxu0 %v1743
        %v2297 = vpop.f32.mrb[0].mxu0
        %v2298 = vadd.f32 0.0, %v2297
        %v2299 = vpop.f32.mrb[0].mxu0
        %v2300 = vpop.f32.mrb[0].mxu0
        %v2301 = vadd.f32 0.0, %v2300
        %v2302 = vpop.f32.mrb[0].mxu0
        %2303 = vmatprep.mubr.bf16.mxu0 0
        %2304 = vmatmul.mubr.bf16.gmra.mrb[0].mxu0 %v1746
        %v2305 = vpop.f32.mrb[0].mxu0
        %v2306 = vadd.f32 0.0, %v2305
        %v2307 = vpop.f32.mrb[0].mxu0
        %v2308 = vpop.f32.mrb[0].mxu0
        %v2309 = vadd.f32 0.0, %v2308
        %v2310 = vpop.f32.mrb[0].mxu0
        %2311 = vmatprep.mubr.bf16.mxu0 0
        %2312 = vmatmul.mubr.bf16.gmra.mrb[0].mxu0 %v1749
        %v2313 = vpop.f32.mrb[0].mxu0
        %v2314 = vadd.f32 0.0, %v2313
        %v2315 = vpop.f32.mrb[0].mxu0
        %v2316 = vpop.f32.mrb[0].mxu0
        %v2317 = vadd.f32 0.0, %v2316
        %v2318 = vpop.f32.mrb[0].mxu0
        %2319 = vmatprep.mubr.bf16.mxu0 0
        %2320 = vmatmul.mubr.bf16.gmra.mrb[0].mxu0 %v1961
        %v2321 = vpop.f32.mrb[0].mxu0
        %v2322 = vadd.f32 0.0, %v2321
        %v2323 = vpop.f32.mrb[0].mxu0
        %v2324 = vpop.f32.mrb[0].mxu0
        %v2325 = vadd.f32 0.0, %v2324
        %v2326 = vpop.f32.mrb[0].mxu0
        %2327 = vmatprep.mubr.bf16.mxu0 0
        %2328 = vmatmul.mubr.bf16.gmra.mrb[0].mxu0 %v2173
        %v2329 = vpop.f32.mrb[0].mxu0
        %v2330 = vadd.f32 0.0, %v2329
        %v2331 = vpop.f32.mrb[0].mxu0
        %v2332 = vpop.f32.mrb[0].mxu0
        %v2333 = vadd.f32 0.0, %v2332
        %v2334 = vpop.f32.mrb[0].mxu0
        %2335 = vdwg.mxu0
        %v2336 = vadd.f32 %v2124, %v2210
        %v2337 = vadd.f32 %v2125, %v2213
        %v2338 = vadd.f32 %v2126, %v2218
        %v2339 = vadd.f32 %v2127, %v2221
        %v2340 = vadd.f32 %v2128, %v2226
        %v2341 = vadd.f32 %v2129, %v2229
        %v2342 = vadd.f32 %v2130, %v2234
        %v2343 = vadd.f32 %v2131, %v2237
        %v2344 = vadd.f32 %v2132, %v2242
        %v2345 = vadd.f32 %v2133, %v2245
        %v2346 = vadd.f32 %v2134, %v2250
        %v2347 = vadd.f32 %v2135, %v2253
        %v2348 = vadd.f32 %v2136, %v2258
        %v2349 = vadd.f32 %v2137, %v2261
        %v2350 = vadd.f32 %v2138, %v2266
        %v2351 = vadd.f32 %v2139, %v2269
        %v2352 = vadd.f32 %v2140, %v2274
        %v2353 = vadd.f32 %v2141, %v2277
        %v2354 = vadd.f32 %v2142, %v2282
        %v2355 = vadd.f32 %v2143, %v2285
        %v2356 = vadd.f32 %v2144, %v2290
        %v2357 = vadd.f32 %v2145, %v2293
        %v2358 = vadd.f32 %v2146, %v2298
        %v2359 = vadd.f32 %v2147, %v2301
        %v2360 = vadd.f32 %v2148, %v2306
        %v2361 = vadd.f32 %v2149, %v2309
        %v2362 = vadd.f32 %v2150, %v2314
        %v2363 = vadd.f32 %v2151, %v2317
        %v2364 = vadd.f32 %v2152, %v2322
        %v2365 = vadd.f32 %v2153, %v2325
        %v2366 = vadd.f32 %v2154, %v2330
        %v2367 = vadd.f32 %v2155, %v2333
        %v2368 = vld [vmem:[%s3 + $0x60] sm:$0xf]
        %v2369 = vld [vmem:[%s3 + $0x64] sm:$0xf]
        %v2370 = vld [vmem:[%s3 + $0x68] sm:$0xf]
        %v2371 = vld [vmem:[%s3 + $0x6c] sm:$0xf]
        %v2376 = vunpack.c.l.b16 %v2368
        %v2377 = vunpack.c.l.b16 %v2369
        %v2378 = vunpack.c.l.b16 %v2370
        %v2379 = vunpack.c.l.b16 %v2371
        %v2380 = vpack.c.b16 %v2377, %v2376
        %v2381 = vpack.c.b16 %v2379, %v2378
        %v2385 = vsel %vm1089, %v1051, 0
        %v2388 = vsel %vm1089, %v1052, 0
        %v2391 = vsel %vm1089, %v1053, 0
        %v2394 = vsel %vm1089, %v1054, 0
        %v2397 = vsel %vm1089, %v1055, 0
        %v2400 = vsel %vm1089, %v1056, 0
        %v2403 = vsel %vm1089, %v1057, 0
        %v2406 = vsel %vm1089, %v1058, 0
        %v2409 = vsel %vm1089, %v1059, 0
        %v2412 = vsel %vm1089, %v1060, 0
        %v2415 = vsel %vm1089, %v1061, 0
        %v2418 = vsel %vm1089, %v1062, 0
        %v2421 = vsel %vm1089, %v1063, 0
        %v2424 = vsel %vm1089, %v1064, 0
        %v2427 = vsel %vm1089, %v1065, 0
        %v2430 = vsel %vm1089, %v1066, 0
        %2432 = vmatprep.subr.bf16.mxu0 0
        %2433 = vmatpush1.bf16.msra.mxu0 %v2380
        %2434 = vmatprep.subr.bf16.mxu0 0
        %2435 = vmatpush1.bf16.msra.mxu0 %v2381
        %2436 = vmatprep.subr.bf16.mxu0 0
        %2437 = vmatpush1.bf16.msra.mxu0 0
        %2438 = vmatprep.subr.bf16.mxu0 0
        %2439 = vmatpush1.bf16.msra.mxu0 0
        %2440 = vmatprep.subr.bf16.mxu0 0
        %2441 = vmatpush1.bf16.msra.mxu0 0
        %2442 = vmatprep.subr.bf16.mxu0 0
        %2443 = vmatpush1.bf16.msra.mxu0 0
        %2444 = vmatprep.subr.bf16.mxu0 0
        %2445 = vmatpush1.bf16.msra.mxu0 0
        %2446 = vmatprep.subr.bf16.mxu0 0
        %2447 = vmatpush1.bf16.msra.mxu0 0
        %2448 = vmatprep.subr.bf16.mxu0 0
        %2449 = vmatpush1.bf16.msra.mxu0 0
        %2450 = vmatprep.subr.bf16.mxu0 0
        %2451 = vmatpush1.bf16.msra.mxu0 0
        %2452 = vmatprep.subr.bf16.mxu0 0
        %2453 = vmatpush1.bf16.msra.mxu0 0
        %2454 = vmatprep.subr.bf16.mxu0 0
        %2455 = vmatpush1.bf16.msra.mxu0 0
        %2456 = vmatprep.subr.bf16.mxu0 0
        %2457 = vmatpush1.bf16.msra.mxu0 0
        %2458 = vmatprep.subr.bf16.mxu0 0
        %2459 = vmatpush1.bf16.msra.mxu0 0
        %2460 = vmatprep.subr.bf16.mxu0 0
        %2461 = vmatpush1.bf16.msra.mxu0 0
        %2462 = vmatprep.subr.bf16.mxu0 0
        %2463 = vmatpush1.bf16.msra.mxu0 0
        %2464 = vmatprep.mubr.bf16.mxu0 0
        %2465 = vmatmul.mubr.bf16.gmra.mrb[0].mxu0 %v2385
        %v2466 = vpop.f32.mrb[0].mxu0
        %v2467 = vadd.f32 0.0, %v2466
        %v2468 = vpop.f32.mrb[0].mxu0
        %v2469 = vpop.f32.mrb[0].mxu0
        %v2470 = vadd.f32 0.0, %v2469
        %v2471 = vpop.f32.mrb[0].mxu0
        %2472 = vmatprep.mubr.bf16.mxu0 0
        %2473 = vmatmul.mubr.bf16.gmra.mrb[0].mxu0 %v2388
        %v2474 = vpop.f32.mrb[0].mxu0
        %v2475 = vadd.f32 0.0, %v2474
        %v2476 = vpop.f32.mrb[0].mxu0
        %v2477 = vpop.f32.mrb[0].mxu0
        %v2478 = vadd.f32 0.0, %v2477
        %v2479 = vpop.f32.mrb[0].mxu0
        %2480 = vmatprep.mubr.bf16.mxu0 0
        %2481 = vmatmul.mubr.bf16.gmra.mrb[0].mxu0 %v2391
        %v2482 = vpop.f32.mrb[0].mxu0
        %v2483 = vadd.f32 0.0, %v2482
        %v2484 = vpop.f32.mrb[0].mxu0
        %v2485 = vpop.f32.mrb[0].mxu0
        %v2486 = vadd.f32 0.0, %v2485
        %v2487 = vpop.f32.mrb[0].mxu0
        %2488 = vmatprep.mubr.bf16.mxu0 0
        %2489 = vmatmul.mubr.bf16.gmra.mrb[0].mxu0 %v2394
        %v2490 = vpop.f32.mrb[0].mxu0
        %v2491 = vadd.f32 0.0, %v2490
        %v2492 = vpop.f32.mrb[0].mxu0
        %v2493 = vpop.f32.mrb[0].mxu0
        %v2494 = vadd.f32 0.0, %v2493
        %v2495 = vpop.f32.mrb[0].mxu0
        %2496 = vmatprep.mubr.bf16.mxu0 0
        %2497 = vmatmul.mubr.bf16.gmra.mrb[0].mxu0 %v2397
        %v2498 = vpop.f32.mrb[0].mxu0
        %v2499 = vadd.f32 0.0, %v2498
        %v2500 = vpop.f32.mrb[0].mxu0
        %v2501 = vpop.f32.mrb[0].mxu0
        %v2502 = vadd.f32 0.0, %v2501
        %v2503 = vpop.f32.mrb[0].mxu0
        %2504 = vmatprep.mubr.bf16.mxu0 0
        %2505 = vmatmul.mubr.bf16.gmra.mrb[0].mxu0 %v2400
        %v2506 = vpop.f32.mrb[0].mxu0
        %v2507 = vadd.f32 0.0, %v2506
        %v2508 = vpop.f32.mrb[0].mxu0
        %v2509 = vpop.f32.mrb[0].mxu0
        %v2510 = vadd.f32 0.0, %v2509
        %v2511 = vpop.f32.mrb[0].mxu0
        %2512 = vmatprep.mubr.bf16.mxu0 0
        %2513 = vmatmul.mubr.bf16.gmra.mrb[0].mxu0 %v2403
        %v2514 = vpop.f32.mrb[0].mxu0
        %v2515 = vadd.f32 0.0, %v2514
        %v2516 = vpop.f32.mrb[0].mxu0
        %v2517 = vpop.f32.mrb[0].mxu0
        %v2518 = vadd.f32 0.0, %v2517
        %v2519 = vpop.f32.mrb[0].mxu0
        %2520 = vmatprep.mubr.bf16.mxu0 0
        %2521 = vmatmul.mubr.bf16.gmra.mrb[0].mxu0 %v2406
        %v2522 = vpop.f32.mrb[0].mxu0
        %v2523 = vadd.f32 0.0, %v2522
        %v2524 = vpop.f32.mrb[0].mxu0
        %v2525 = vpop.f32.mrb[0].mxu0
        %v2526 = vadd.f32 0.0, %v2525
        %v2527 = vpop.f32.mrb[0].mxu0
        %2528 = vmatprep.mubr.bf16.mxu0 0
        %2529 = vmatmul.mubr.bf16.gmra.mrb[0].mxu0 %v2409
        %v2530 = vpop.f32.mrb[0].mxu0
        %v2531 = vadd.f32 0.0, %v2530
        %v2532 = vpop.f32.mrb[0].mxu0
        %v2533 = vpop.f32.mrb[0].mxu0
        %v2534 = vadd.f32 0.0, %v2533
        %v2535 = vpop.f32.mrb[0].mxu0
        %2536 = vmatprep.mubr.bf16.mxu0 0
        %2537 = vmatmul.mubr.bf16.gmra.mrb[0].mxu0 %v2412
        %v2538 = vpop.f32.mrb[0].mxu0
        %v2539 = vadd.f32 0.0, %v2538
        %v2540 = vpop.f32.mrb[0].mxu0
        %v2541 = vpop.f32.mrb[0].mxu0
        %v2542 = vadd.f32 0.0, %v2541
        %v2543 = vpop.f32.mrb[0].mxu0
        %2544 = vmatprep.mubr.bf16.mxu0 0
        %2545 = vmatmul.mubr.bf16.gmra.mrb[0].mxu0 %v2415
        %v2546 = vpop.f32.mrb[0].mxu0
        %v2547 = vadd.f32 0.0, %v2546
        %v2548 = vpop.f32.mrb[0].mxu0
        %v2549 = vpop.f32.mrb[0].mxu0
        %v2550 = vadd.f32 0.0, %v2549
        %v2551 = vpop.f32.mrb[0].mxu0
        %2552 = vmatprep.mubr.bf16.mxu0 0
        %2553 = vmatmul.mubr.bf16.gmra.mrb[0].mxu0 %v2418
        %v2554 = vpop.f32.mrb[0].mxu0
        %v2555 = vadd.f32 0.0, %v2554
        %v2556 = vpop.f32.mrb[0].mxu0
        %v2557 = vpop.f32.mrb[0].mxu0
        %v2558 = vadd.f32 0.0, %v2557
        %v2559 = vpop.f32.mrb[0].mxu0
        %2560 = vmatprep.mubr.bf16.mxu0 0
        %2561 = vmatmul.mubr.bf16.gmra.mrb[0].mxu0 %v2421
        %v2562 = vpop.f32.mrb[0].mxu0
        %v2563 = vadd.f32 0.0, %v2562
        %v2564 = vpop.f32.mrb[0].mxu0
        %v2565 = vpop.f32.mrb[0].mxu0
        %v2566 = vadd.f32 0.0, %v2565
        %v2567 = vpop.f32.mrb[0].mxu0
        %2568 = vmatprep.mubr.bf16.mxu0 0
        %2569 = vmatmul.mubr.bf16.gmra.mrb[0].mxu0 %v2424
        %v2570 = vpop.f32.mrb[0].mxu0
        %v2571 = vadd.f32 0.0, %v2570
        %v2572 = vpop.f32.mrb[0].mxu0
        %v2573 = vpop.f32.mrb[0].mxu0
        %v2574 = vadd.f32 0.0, %v2573
        %v2575 = vpop.f32.mrb[0].mxu0
        %2576 = vmatprep.mubr.bf16.mxu0 0
        %2577 = vmatmul.mubr.bf16.gmra.mrb[0].mxu0 %v2427
        %v2578 = vpop.f32.mrb[0].mxu0
        %v2579 = vadd.f32 0.0, %v2578
        %v2580 = vpop.f32.mrb[0].mxu0
        %v2581 = vpop.f32.mrb[0].mxu0
        %v2582 = vadd.f32 0.0, %v2581
        %v2583 = vpop.f32.mrb[0].mxu0
        %2584 = vmatprep.mubr.bf16.mxu0 0
        %2585 = vmatmul.mubr.bf16.gmra.mrb[0].mxu0 %v2430
        %v2586 = vpop.f32.mrb[0].mxu0
        %v2587 = vadd.f32 0.0, %v2586
        %v2588 = vpop.f32.mrb[0].mxu0
        %v2589 = vpop.f32.mrb[0].mxu0
        %v2590 = vadd.f32 0.0, %v2589
        %v2591 = vpop.f32.mrb[0].mxu0
        %2592 = vdwg.mxu0
        %v2593 = vadd.f32 %v2336, %v2467
        %v2594 = vadd.f32 %v2337, %v2470
        %v2595 = vadd.f32 %v2338, %v2475
        %v2596 = vadd.f32 %v2339, %v2478
        %v2597 = vadd.f32 %v2340, %v2483
        %v2598 = vadd.f32 %v2341, %v2486
        %v2599 = vadd.f32 %v2342, %v2491
        %v2600 = vadd.f32 %v2343, %v2494
        %v2601 = vadd.f32 %v2344, %v2499
        %v2602 = vadd.f32 %v2345, %v2502
        %v2603 = vadd.f32 %v2346, %v2507
        %v2604 = vadd.f32 %v2347, %v2510
        %v2605 = vadd.f32 %v2348, %v2515
        %v2606 = vadd.f32 %v2349, %v2518
        %v2607 = vadd.f32 %v2350, %v2523
        %v2608 = vadd.f32 %v2351, %v2526
        %v2609 = vadd.f32 %v2352, %v2531
        %v2610 = vadd.f32 %v2353, %v2534
        %v2611 = vadd.f32 %v2354, %v2539
        %v2612 = vadd.f32 %v2355, %v2542
        %v2613 = vadd.f32 %v2356, %v2547
        %v2614 = vadd.f32 %v2357, %v2550
        %v2615 = vadd.f32 %v2358, %v2555
        %v2616 = vadd.f32 %v2359, %v2558
        %v2617 = vadd.f32 %v2360, %v2563
        %v2618 = vadd.f32 %v2361, %v2566
        %v2619 = vadd.f32 %v2362, %v2571
        %v2620 = vadd.f32 %v2363, %v2574
        %v2621 = vadd.f32 %v2364, %v2579
        %v2622 = vadd.f32 %v2365, %v2582
        %v2623 = vadd.f32 %v2366, %v2587
        %v2624 = vadd.f32 %v2367, %v2590
        %v2625 = vld [vmem:[%s3 + $0x70] sm:$0xf]
        %v2626 = vld [vmem:[%s3 + $0x74] sm:$0xf]
        %v2627 = vld [vmem:[%s3 + $0x78] sm:$0xf]
        %v2628 = vld [vmem:[%s3 + $0x7c] sm:$0xf]
        %v2633 = vunpack.c.l.b16 %v2625
        %v2634 = vunpack.c.l.b16 %v2626
        %v2635 = vunpack.c.l.b16 %v2627
        %v2636 = vunpack.c.l.b16 %v2628
        %v2637 = vpack.c.b16 %v2634, %v2633
        %v2638 = vpack.c.b16 %v2636, %v2635
        %v2642 = vsel %vm1089, %v1067, 0
        %2644 = vmatprep.subr.bf16.mxu0 0
        %2645 = vmatpush1.bf16.msra.mxu0 %v2637
        %2646 = vmatprep.subr.bf16.mxu0 0
        %2647 = vmatpush1.bf16.msra.mxu0 %v2638
        %2648 = vmatprep.subr.bf16.mxu0 0
        %2649 = vmatpush1.bf16.msra.mxu0 0
        %2650 = vmatprep.subr.bf16.mxu0 0
        %2651 = vmatpush1.bf16.msra.mxu0 0
        %2652 = vmatprep.subr.bf16.mxu0 0
        %2653 = vmatpush1.bf16.msra.mxu0 0
        %2654 = vmatprep.subr.bf16.mxu0 0
        %2655 = vmatpush1.bf16.msra.mxu0 0
        %2656 = vmatprep.subr.bf16.mxu0 0
        %2657 = vmatpush1.bf16.msra.mxu0 0
        %2658 = vmatprep.subr.bf16.mxu0 0
        %2659 = vmatpush1.bf16.msra.mxu0 0
        %2660 = vmatprep.subr.bf16.mxu0 0
        %2661 = vmatpush1.bf16.msra.mxu0 0
        %2662 = vmatprep.subr.bf16.mxu0 0
        %2663 = vmatpush1.bf16.msra.mxu0 0
        %2664 = vmatprep.subr.bf16.mxu0 0
        %2665 = vmatpush1.bf16.msra.mxu0 0
        %2666 = vmatprep.subr.bf16.mxu0 0
        %2667 = vmatpush1.bf16.msra.mxu0 0
        %2668 = vmatprep.subr.bf16.mxu0 0
        %2669 = vmatpush1.bf16.msra.mxu0 0
        %2670 = vmatprep.subr.bf16.mxu0 0
        %2671 = vmatpush1.bf16.msra.mxu0 0
        %2672 = vmatprep.subr.bf16.mxu0 0
        %2673 = vmatpush1.bf16.msra.mxu0 0
        %2674 = vmatprep.subr.bf16.mxu0 0
        %2675 = vmatpush1.bf16.msra.mxu0 0
        %2676 = vmatprep.mubr.bf16.mxu0 0
        %2677 = vmatmul.mubr.bf16.gmra.mrb[0].mxu0 %v2388
        %v2678 = vpop.f32.mrb[0].mxu0
        %v2679 = vadd.f32 0.0, %v2678
        %v2680 = vpop.f32.mrb[0].mxu0
        %v2681 = vpop.f32.mrb[0].mxu0
        %v2682 = vadd.f32 0.0, %v2681
        %v2683 = vpop.f32.mrb[0].mxu0
        %2684 = vmatprep.mubr.bf16.mxu0 0
        %2685 = vmatmul.mubr.bf16.gmra.mrb[0].mxu0 %v2391
        %v2686 = vpop.f32.mrb[0].mxu0
        %v2687 = vadd.f32 0.0, %v2686
        %v2688 = vpop.f32.mrb[0].mxu0
        %v2689 = vpop.f32.mrb[0].mxu0
        %v2690 = vadd.f32 0.0, %v2689
        %v2691 = vpop.f32.mrb[0].mxu0
        %2692 = vmatprep.mubr.bf16.mxu0 0
        %2693 = vmatmul.mubr.bf16.gmra.mrb[0].mxu0 %v2394
        %v2694 = vpop.f32.mrb[0].mxu0
        %v2695 = vadd.f32 0.0, %v2694
        %v2696 = vpop.f32.mrb[0].mxu0
        %v2697 = vpop.f32.mrb[0].mxu0
        %v2698 = vadd.f32 0.0, %v2697
        %v2699 = vpop.f32.mrb[0].mxu0
        %2700 = vmatprep.mubr.bf16.mxu0 0
        %2701 = vmatmul.mubr.bf16.gmra.mrb[0].mxu0 %v2397
        %v2702 = vpop.f32.mrb[0].mxu0
        %v2703 = vadd.f32 0.0, %v2702
        %v2704 = vpop.f32.mrb[0].mxu0
        %v2705 = vpop.f32.mrb[0].mxu0
        %v2706 = vadd.f32 0.0, %v2705
        %v2707 = vpop.f32.mrb[0].mxu0
        %2708 = vmatprep.mubr.bf16.mxu0 0
        %2709 = vmatmul.mubr.bf16.gmra.mrb[0].mxu0 %v2400
        %v2710 = vpop.f32.mrb[0].mxu0
        %v2711 = vadd.f32 0.0, %v2710
        %v2712 = vpop.f32.mrb[0].mxu0
        %v2713 = vpop.f32.mrb[0].mxu0
        %v2714 = vadd.f32 0.0, %v2713
        %v2715 = vpop.f32.mrb[0].mxu0
        %2716 = vmatprep.mubr.bf16.mxu0 0
        %2717 = vmatmul.mubr.bf16.gmra.mrb[0].mxu0 %v2403
        %v2718 = vpop.f32.mrb[0].mxu0
        %v2719 = vadd.f32 0.0, %v2718
        %v2720 = vpop.f32.mrb[0].mxu0
        %v2721 = vpop.f32.mrb[0].mxu0
        %v2722 = vadd.f32 0.0, %v2721
        %v2723 = vpop.f32.mrb[0].mxu0
        %2724 = vmatprep.mubr.bf16.mxu0 0
        %2725 = vmatmul.mubr.bf16.gmra.mrb[0].mxu0 %v2406
        %v2726 = vpop.f32.mrb[0].mxu0
        %v2727 = vadd.f32 0.0, %v2726
        %v2728 = vpop.f32.mrb[0].mxu0
        %v2729 = vpop.f32.mrb[0].mxu0
        %v2730 = vadd.f32 0.0, %v2729
        %v2731 = vpop.f32.mrb[0].mxu0
        %2732 = vmatprep.mubr.bf16.mxu0 0
        %2733 = vmatmul.mubr.bf16.gmra.mrb[0].mxu0 %v2409
        %v2734 = vpop.f32.mrb[0].mxu0
        %v2735 = vadd.f32 0.0, %v2734
        %v2736 = vpop.f32.mrb[0].mxu0
        %v2737 = vpop.f32.mrb[0].mxu0
        %v2738 = vadd.f32 0.0, %v2737
        %v2739 = vpop.f32.mrb[0].mxu0
        %2740 = vmatprep.mubr.bf16.mxu0 0
        %2741 = vmatmul.mubr.bf16.gmra.mrb[0].mxu0 %v2412
        %v2742 = vpop.f32.mrb[0].mxu0
        %v2743 = vadd.f32 0.0, %v2742
        %v2744 = vpop.f32.mrb[0].mxu0
        %v2745 = vpop.f32.mrb[0].mxu0
        %v2746 = vadd.f32 0.0, %v2745
        %v2747 = vpop.f32.mrb[0].mxu0
        %2748 = vmatprep.mubr.bf16.mxu0 0
        %2749 = vmatmul.mubr.bf16.gmra.mrb[0].mxu0 %v2415
        %v2750 = vpop.f32.mrb[0].mxu0
        %v2751 = vadd.f32 0.0, %v2750
        %v2752 = vpop.f32.mrb[0].mxu0
        %v2753 = vpop.f32.mrb[0].mxu0
        %v2754 = vadd.f32 0.0, %v2753
        %v2755 = vpop.f32.mrb[0].mxu0
        %2756 = vmatprep.mubr.bf16.mxu0 0
        %2757 = vmatmul.mubr.bf16.gmra.mrb[0].mxu0 %v2418
        %v2758 = vpop.f32.mrb[0].mxu0
        %v2759 = vadd.f32 0.0, %v2758
        %v2760 = vpop.f32.mrb[0].mxu0
        %v2761 = vpop.f32.mrb[0].mxu0
        %v2762 = vadd.f32 0.0, %v2761
        %v2763 = vpop.f32.mrb[0].mxu0
        %2764 = vmatprep.mubr.bf16.mxu0 0
        %2765 = vmatmul.mubr.bf16.gmra.mrb[0].mxu0 %v2421
        %v2766 = vpop.f32.mrb[0].mxu0
        %v2767 = vadd.f32 0.0, %v2766
        %v2768 = vpop.f32.mrb[0].mxu0
        %v2769 = vpop.f32.mrb[0].mxu0
        %v2770 = vadd.f32 0.0, %v2769
        %v2771 = vpop.f32.mrb[0].mxu0
        %2772 = vmatprep.mubr.bf16.mxu0 0
        %2773 = vmatmul.mubr.bf16.gmra.mrb[0].mxu0 %v2424
        %v2774 = vpop.f32.mrb[0].mxu0
        %v2775 = vadd.f32 0.0, %v2774
        %v2776 = vpop.f32.mrb[0].mxu0
        %v2777 = vpop.f32.mrb[0].mxu0
        %v2778 = vadd.f32 0.0, %v2777
        %v2779 = vpop.f32.mrb[0].mxu0
        %2780 = vmatprep.mubr.bf16.mxu0 0
        %2781 = vmatmul.mubr.bf16.gmra.mrb[0].mxu0 %v2427
        %v2782 = vpop.f32.mrb[0].mxu0
        %v2783 = vadd.f32 0.0, %v2782
        %v2784 = vpop.f32.mrb[0].mxu0
        %v2785 = vpop.f32.mrb[0].mxu0
        %v2786 = vadd.f32 0.0, %v2785
        %v2787 = vpop.f32.mrb[0].mxu0
        %2788 = vmatprep.mubr.bf16.mxu0 0
        %2789 = vmatmul.mubr.bf16.gmra.mrb[0].mxu0 %v2430
        %v2790 = vpop.f32.mrb[0].mxu0
        %v2791 = vadd.f32 0.0, %v2790
        %v2792 = vpop.f32.mrb[0].mxu0
        %v2793 = vpop.f32.mrb[0].mxu0
        %v2794 = vadd.f32 0.0, %v2793
        %v2795 = vpop.f32.mrb[0].mxu0
        %2796 = vmatprep.mubr.bf16.mxu0 0
        %2797 = vmatmul.mubr.bf16.gmra.mrb[0].mxu0 %v2642
        %v2798 = vpop.f32.mrb[0].mxu0
        %v2799 = vadd.f32 0.0, %v2798
        %v2800 = vpop.f32.mrb[0].mxu0
        %v2801 = vpop.f32.mrb[0].mxu0
        %v2802 = vadd.f32 0.0, %v2801
        %v2803 = vpop.f32.mrb[0].mxu0
        %2804 = vdwg.mxu0
        %v2805 = vadd.f32 %v2593, %v2679
        %v2806 = vadd.f32 %v2594, %v2682
        %v2807 = vadd.f32 %v2595, %v2687
        %v2808 = vadd.f32 %v2596, %v2690
        %v2809 = vadd.f32 %v2597, %v2695
        %v2810 = vadd.f32 %v2598, %v2698
        %v2811 = vadd.f32 %v2599, %v2703
        %v2812 = vadd.f32 %v2600, %v2706
        %v2813 = vadd.f32 %v2601, %v2711
        %v2814 = vadd.f32 %v2602, %v2714
        %v2815 = vadd.f32 %v2603, %v2719
        %v2816 = vadd.f32 %v2604, %v2722
        %v2817 = vadd.f32 %v2605, %v2727
        %v2818 = vadd.f32 %v2606, %v2730
        %v2819 = vadd.f32 %v2607, %v2735
        %v2820 = vadd.f32 %v2608, %v2738
        %v2821 = vadd.f32 %v2609, %v2743
        %v2822 = vadd.f32 %v2610, %v2746
        %v2823 = vadd.f32 %v2611, %v2751
        %v2824 = vadd.f32 %v2612, %v2754
        %v2825 = vadd.f32 %v2613, %v2759
        %v2826 = vadd.f32 %v2614, %v2762
        %v2827 = vadd.f32 %v2615, %v2767
        %v2828 = vadd.f32 %v2616, %v2770
        %v2829 = vadd.f32 %v2617, %v2775
        %v2830 = vadd.f32 %v2618, %v2778
        %v2831 = vadd.f32 %v2619, %v2783
        %v2832 = vadd.f32 %v2620, %v2786
        %v2833 = vadd.f32 %v2621, %v2791
        %v2834 = vadd.f32 %v2622, %v2794
        %v2835 = vadd.f32 %v2623, %v2799
        %v2836 = vadd.f32 %v2624, %v2802
        %v2837 = vld [vmem:[%s3 + $0x80] sm:$0xf]
        %v2838 = vld [vmem:[%s3 + $0x84] sm:$0xf]
        %v2839 = vld [vmem:[%s3 + $0x88] sm:$0xf]
        %v2840 = vld [vmem:[%s3 + $0x8c] sm:$0xf]
        %v2845 = vunpack.c.l.b16 %v2837
        %v2846 = vunpack.c.l.b16 %v2838
        %v2847 = vunpack.c.l.b16 %v2839
        %v2848 = vunpack.c.l.b16 %v2840
        %v2849 = vpack.c.b16 %v2846, %v2845
        %v2850 = vpack.c.b16 %v2848, %v2847
        %v2854 = vsel %vm1089, %v1068, 0
        %2856 = vmatprep.subr.bf16.mxu0 0
        %2857 = vmatpush1.bf16.msra.mxu0 %v2849
        %2858 = vmatprep.subr.bf16.mxu0 0
        %2859 = vmatpush1.bf16.msra.mxu0 %v2850
        %2860 = vmatprep.subr.bf16.mxu0 0
        %2861 = vmatpush1.bf16.msra.mxu0 0
        %2862 = vmatprep.subr.bf16.mxu0 0
        %2863 = vmatpush1.bf16.msra.mxu0 0
        %2864 = vmatprep.subr.bf16.mxu0 0
        %2865 = vmatpush1.bf16.msra.mxu0 0
        %2866 = vmatprep.subr.bf16.mxu0 0
        %2867 = vmatpush1.bf16.msra.mxu0 0
        %2868 = vmatprep.subr.bf16.mxu0 0
        %2869 = vmatpush1.bf16.msra.mxu0 0
        %2870 = vmatprep.subr.bf16.mxu0 0
        %2871 = vmatpush1.bf16.msra.mxu0 0
        %2872 = vmatprep.subr.bf16.mxu0 0
        %2873 = vmatpush1.bf16.msra.mxu0 0
        %2874 = vmatprep.subr.bf16.mxu0 0
        %2875 = vmatpush1.bf16.msra.mxu0 0
        %2876 = vmatprep.subr.bf16.mxu0 0
        %2877 = vmatpush1.bf16.msra.mxu0 0
        %2878 = vmatprep.subr.bf16.mxu0 0
        %2879 = vmatpush1.bf16.msra.mxu0 0
        %2880 = vmatprep.subr.bf16.mxu0 0
        %2881 = vmatpush1.bf16.msra.mxu0 0
        %2882 = vmatprep.subr.bf16.mxu0 0
        %2883 = vmatpush1.bf16.msra.mxu0 0
        %2884 = vmatprep.subr.bf16.mxu0 0
        %2885 = vmatpush1.bf16.msra.mxu0 0
        %2886 = vmatprep.subr.bf16.mxu0 0
        %2887 = vmatpush1.bf16.msra.mxu0 0
        %2888 = vmatprep.mubr.bf16.mxu0 0
        %2889 = vmatmul.mubr.bf16.gmra.mrb[0].mxu0 %v2391
        %v2890 = vpop.f32.mrb[0].mxu0
        %v2891 = vadd.f32 0.0, %v2890
        %v2892 = vpop.f32.mrb[0].mxu0
        %v2893 = vpop.f32.mrb[0].mxu0
        %v2894 = vadd.f32 0.0, %v2893
        %v2895 = vpop.f32.mrb[0].mxu0
        %2896 = vmatprep.mubr.bf16.mxu0 0
        %2897 = vmatmul.mubr.bf16.gmra.mrb[0].mxu0 %v2394
        %v2898 = vpop.f32.mrb[0].mxu0
        %v2899 = vadd.f32 0.0, %v2898
        %v2900 = vpop.f32.mrb[0].mxu0
        %v2901 = vpop.f32.mrb[0].mxu0
        %v2902 = vadd.f32 0.0, %v2901
        %v2903 = vpop.f32.mrb[0].mxu0
        %2904 = vmatprep.mubr.bf16.mxu0 0
        %2905 = vmatmul.mubr.bf16.gmra.mrb[0].mxu0 %v2397
        %v2906 = vpop.f32.mrb[0].mxu0
        %v2907 = vadd.f32 0.0, %v2906
        %v2908 = vpop.f32.mrb[0].mxu0
        %v2909 = vpop.f32.mrb[0].mxu0
        %v2910 = vadd.f32 0.0, %v2909
        %v2911 = vpop.f32.mrb[0].mxu0
        %2912 = vmatprep.mubr.bf16.mxu0 0
        %2913 = vmatmul.mubr.bf16.gmra.mrb[0].mxu0 %v2400
        %v2914 = vpop.f32.mrb[0].mxu0
        %v2915 = vadd.f32 0.0, %v2914
        %v2916 = vpop.f32.mrb[0].mxu0
        %v2917 = vpop.f32.mrb[0].mxu0
        %v2918 = vadd.f32 0.0, %v2917
        %v2919 = vpop.f32.mrb[0].mxu0
        %2920 = vmatprep.mubr.bf16.mxu0 0
        %2921 = vmatmul.mubr.bf16.gmra.mrb[0].mxu0 %v2403
        %v2922 = vpop.f32.mrb[0].mxu0
        %v2923 = vadd.f32 0.0, %v2922
        %v2924 = vpop.f32.mrb[0].mxu0
        %v2925 = vpop.f32.mrb[0].mxu0
        %v2926 = vadd.f32 0.0, %v2925
        %v2927 = vpop.f32.mrb[0].mxu0
        %2928 = vmatprep.mubr.bf16.mxu0 0
        %2929 = vmatmul.mubr.bf16.gmra.mrb[0].mxu0 %v2406
        %v2930 = vpop.f32.mrb[0].mxu0
        %v2931 = vadd.f32 0.0, %v2930
        %v2932 = vpop.f32.mrb[0].mxu0
        %v2933 = vpop.f32.mrb[0].mxu0
        %v2934 = vadd.f32 0.0, %v2933
        %v2935 = vpop.f32.mrb[0].mxu0
        %2936 = vmatprep.mubr.bf16.mxu0 0
        %2937 = vmatmul.mubr.bf16.gmra.mrb[0].mxu0 %v2409
        %v2938 = vpop.f32.mrb[0].mxu0
        %v2939 = vadd.f32 0.0, %v2938
        %v2940 = vpop.f32.mrb[0].mxu0
        %v2941 = vpop.f32.mrb[0].mxu0
        %v2942 = vadd.f32 0.0, %v2941
        %v2943 = vpop.f32.mrb[0].mxu0
        %2944 = vmatprep.mubr.bf16.mxu0 0
        %2945 = vmatmul.mubr.bf16.gmra.mrb[0].mxu0 %v2412
        %v2946 = vpop.f32.mrb[0].mxu0
        %v2947 = vadd.f32 0.0, %v2946
        %v2948 = vpop.f32.mrb[0].mxu0
        %v2949 = vpop.f32.mrb[0].mxu0
        %v2950 = vadd.f32 0.0, %v2949
        %v2951 = vpop.f32.mrb[0].mxu0
        %2952 = vmatprep.mubr.bf16.mxu0 0
        %2953 = vmatmul.mubr.bf16.gmra.mrb[0].mxu0 %v2415
        %v2954 = vpop.f32.mrb[0].mxu0
        %v2955 = vadd.f32 0.0, %v2954
        %v2956 = vpop.f32.mrb[0].mxu0
        %v2957 = vpop.f32.mrb[0].mxu0
        %v2958 = vadd.f32 0.0, %v2957
        %v2959 = vpop.f32.mrb[0].mxu0
        %2960 = vmatprep.mubr.bf16.mxu0 0
        %2961 = vmatmul.mubr.bf16.gmra.mrb[0].mxu0 %v2418
        %v2962 = vpop.f32.mrb[0].mxu0
        %v2963 = vadd.f32 0.0, %v2962
        %v2964 = vpop.f32.mrb[0].mxu0
        %v2965 = vpop.f32.mrb[0].mxu0
        %v2966 = vadd.f32 0.0, %v2965
        %v2967 = vpop.f32.mrb[0].mxu0
        %2968 = vmatprep.mubr.bf16.mxu0 0
        %2969 = vmatmul.mubr.bf16.gmra.mrb[0].mxu0 %v2421
        %v2970 = vpop.f32.mrb[0].mxu0
        %v2971 = vadd.f32 0.0, %v2970
        %v2972 = vpop.f32.mrb[0].mxu0
        %v2973 = vpop.f32.mrb[0].mxu0
        %v2974 = vadd.f32 0.0, %v2973
        %v2975 = vpop.f32.mrb[0].mxu0
        %2976 = vmatprep.mubr.bf16.mxu0 0
        %2977 = vmatmul.mubr.bf16.gmra.mrb[0].mxu0 %v2424
        %v2978 = vpop.f32.mrb[0].mxu0
        %v2979 = vadd.f32 0.0, %v2978
        %v2980 = vpop.f32.mrb[0].mxu0
        %v2981 = vpop.f32.mrb[0].mxu0
        %v2982 = vadd.f32 0.0, %v2981
        %v2983 = vpop.f32.mrb[0].mxu0
        %2984 = vmatprep.mubr.bf16.mxu0 0
        %2985 = vmatmul.mubr.bf16.gmra.mrb[0].mxu0 %v2427
        %v2986 = vpop.f32.mrb[0].mxu0
        %v2987 = vadd.f32 0.0, %v2986
        %v2988 = vpop.f32.mrb[0].mxu0
        %v2989 = vpop.f32.mrb[0].mxu0
        %v2990 = vadd.f32 0.0, %v2989
        %v2991 = vpop.f32.mrb[0].mxu0
        %2992 = vmatprep.mubr.bf16.mxu0 0
        %2993 = vmatmul.mubr.bf16.gmra.mrb[0].mxu0 %v2430
        %v2994 = vpop.f32.mrb[0].mxu0
        %v2995 = vadd.f32 0.0, %v2994
        %v2996 = vpop.f32.mrb[0].mxu0
        %v2997 = vpop.f32.mrb[0].mxu0
        %v2998 = vadd.f32 0.0, %v2997
        %v2999 = vpop.f32.mrb[0].mxu0
        %3000 = vmatprep.mubr.bf16.mxu0 0
        %3001 = vmatmul.mubr.bf16.gmra.mrb[0].mxu0 %v2642
        %v3002 = vpop.f32.mrb[0].mxu0
        %v3003 = vadd.f32 0.0, %v3002
        %v3004 = vpop.f32.mrb[0].mxu0
        %v3005 = vpop.f32.mrb[0].mxu0
        %v3006 = vadd.f32 0.0, %v3005
        %v3007 = vpop.f32.mrb[0].mxu0
        %3008 = vmatprep.mubr.bf16.mxu0 0
        %3009 = vmatmul.mubr.bf16.gmra.mrb[0].mxu0 %v2854
        %v3010 = vpop.f32.mrb[0].mxu0
        %v3011 = vadd.f32 0.0, %v3010
        %v3012 = vpop.f32.mrb[0].mxu0
        %v3013 = vpop.f32.mrb[0].mxu0
        %v3014 = vadd.f32 0.0, %v3013
        %v3015 = vpop.f32.mrb[0].mxu0
        %3016 = vdwg.mxu0
        %v3017 = vadd.f32 %v2805, %v2891
        %v3018 = vadd.f32 %v2806, %v2894
        %v3019 = vadd.f32 %v2807, %v2899
        %v3020 = vadd.f32 %v2808, %v2902
        %v3021 = vadd.f32 %v2809, %v2907
        %v3022 = vadd.f32 %v2810, %v2910
        %v3023 = vadd.f32 %v2811, %v2915
        %v3024 = vadd.f32 %v2812, %v2918
        %v3025 = vadd.f32 %v2813, %v2923
        %v3026 = vadd.f32 %v2814, %v2926
        %v3027 = vadd.f32 %v2815, %v2931
        %v3028 = vadd.f32 %v2816, %v2934
        %v3029 = vadd.f32 %v2817, %v2939
        %v3030 = vadd.f32 %v2818, %v2942
        %v3031 = vadd.f32 %v2819, %v2947
        %v3032 = vadd.f32 %v2820, %v2950
        %v3033 = vadd.f32 %v2821, %v2955
        %v3034 = vadd.f32 %v2822, %v2958
        %v3035 = vadd.f32 %v2823, %v2963
        %v3036 = vadd.f32 %v2824, %v2966
        %v3037 = vadd.f32 %v2825, %v2971
        %v3038 = vadd.f32 %v2826, %v2974
        %v3039 = vadd.f32 %v2827, %v2979
        %v3040 = vadd.f32 %v2828, %v2982
        %v3041 = vadd.f32 %v2829, %v2987
        %v3042 = vadd.f32 %v2830, %v2990
        %v3043 = vadd.f32 %v2831, %v2995
        %v3044 = vadd.f32 %v2832, %v2998
        %v3045 = vadd.f32 %v2833, %v3003
        %v3046 = vadd.f32 %v2834, %v3006
        %v3047 = vadd.f32 %v2835, %v3011
        %v3048 = vadd.f32 %v2836, %v3014
        %v3049 = vld [vmem:[%s4] sm:$0x1]
        %v3051 = vlaneseq
        %v3052 = vshrl.u32 %v3051, 7
        %v3053 = vsub.s32 0, %v3052
        %v3054 = vrot.slane %v3049, %v3053
        %v3056 = vadd.f32 %v3017, %v3054
        %v3057 = vadd.f32 %v3018, %v3054
        %v3058 = vadd.f32 %v3019, %v3054
        %v3059 = vadd.f32 %v3020, %v3054
        %v3060 = vadd.f32 %v3021, %v3054
        %v3061 = vadd.f32 %v3022, %v3054
        %v3062 = vadd.f32 %v3023, %v3054
        %v3063 = vadd.f32 %v3024, %v3054
        %v3064 = vadd.f32 %v3025, %v3054
        %v3065 = vadd.f32 %v3026, %v3054
        %v3066 = vadd.f32 %v3027, %v3054
        %v3067 = vadd.f32 %v3028, %v3054
        %v3068 = vadd.f32 %v3029, %v3054
        %v3069 = vadd.f32 %v3030, %v3054
        %v3070 = vadd.f32 %v3031, %v3054
        %v3071 = vadd.f32 %v3032, %v3054
        %v3072 = vadd.f32 %v3033, %v3054
        %v3073 = vadd.f32 %v3034, %v3054
        %v3074 = vadd.f32 %v3035, %v3054
        %v3075 = vadd.f32 %v3036, %v3054
        %v3076 = vadd.f32 %v3037, %v3054
        %v3077 = vadd.f32 %v3038, %v3054
        %v3078 = vadd.f32 %v3039, %v3054
        %v3079 = vadd.f32 %v3040, %v3054
        %v3080 = vadd.f32 %v3041, %v3054
        %v3081 = vadd.f32 %v3042, %v3054
        %v3082 = vadd.f32 %v3043, %v3054
        %v3083 = vadd.f32 %v3044, %v3054
        %v3084 = vadd.f32 %v3045, %v3054
        %v3085 = vadd.f32 %v3046, %v3054
        %v3086 = vadd.f32 %v3047, %v3054
        %v3087 = vadd.f32 %v3048, %v3054
        %v3088 = vmax.f32 %v3056, 0.0
        %v3089 = vmax.f32 %v3057, 0.0
        %v3090 = vmax.f32 %v3058, 0.0
        %v3091 = vmax.f32 %v3059, 0.0
        %v3092 = vmax.f32 %v3060, 0.0
        %v3093 = vmax.f32 %v3061, 0.0
        %v3094 = vmax.f32 %v3062, 0.0
        %v3095 = vmax.f32 %v3063, 0.0
        %v3096 = vmax.f32 %v3064, 0.0
        %v3097 = vmax.f32 %v3065, 0.0
        %v3098 = vmax.f32 %v3066, 0.0
        %v3099 = vmax.f32 %v3067, 0.0
        %v3100 = vmax.f32 %v3068, 0.0
        %v3101 = vmax.f32 %v3069, 0.0
        %v3102 = vmax.f32 %v3070, 0.0
        %v3103 = vmax.f32 %v3071, 0.0
        %v3104 = vmax.f32 %v3072, 0.0
        %v3105 = vmax.f32 %v3073, 0.0
        %v3106 = vmax.f32 %v3074, 0.0
        %v3107 = vmax.f32 %v3075, 0.0
        %v3108 = vmax.f32 %v3076, 0.0
        %v3109 = vmax.f32 %v3077, 0.0
        %v3110 = vmax.f32 %v3078, 0.0
        %v3111 = vmax.f32 %v3079, 0.0
        %v3112 = vmax.f32 %v3080, 0.0
        %v3113 = vmax.f32 %v3081, 0.0
        %v3114 = vmax.f32 %v3082, 0.0
        %v3115 = vmax.f32 %v3083, 0.0
        %v3116 = vmax.f32 %v3084, 0.0
        %v3117 = vmax.f32 %v3085, 0.0
        %v3118 = vmax.f32 %v3086, 0.0
        %v3119 = vmax.f32 %v3087, 0.0
        %v3120 = vpack.c.bf16 %v3089, %v3088
        %v3121 = vpack.c.bf16 %v3091, %v3090
        %v3122 = vpack.c.bf16 %v3093, %v3092
        %v3123 = vpack.c.bf16 %v3095, %v3094
        %v3124 = vpack.c.bf16 %v3097, %v3096
        %v3125 = vpack.c.bf16 %v3099, %v3098
        %v3126 = vpack.c.bf16 %v3101, %v3100
        %v3127 = vpack.c.bf16 %v3103, %v3102
        %v3128 = vpack.c.bf16 %v3105, %v3104
        %v3129 = vpack.c.bf16 %v3107, %v3106
        %v3130 = vpack.c.bf16 %v3109, %v3108
        %v3131 = vpack.c.bf16 %v3111, %v3110
        %v3132 = vpack.c.bf16 %v3113, %v3112
        %v3133 = vpack.c.bf16 %v3115, %v3114
        %v3134 = vpack.c.bf16 %v3117, %v3116
        %v3135 = vpack.c.bf16 %v3119, %v3118
        %v3136 = vld [vmem:[%s5] sm:$0xf]
        %v3137 = vld [vmem:[%s5 + $0x4] sm:$0xf]
        %v3138 = vld [vmem:[%s5 + $0x8] sm:$0xf]
        %v3139 = vld [vmem:[%s5 + $0xc] sm:$0xf]
        %v3140 = vld [vmem:[%s6] sm:$0x1]
        %v3142 = vlaneseq
        %v3143 = vshrl.u32 %v3142, 7
        %v3144 = vsub.s32 0, %v3143
        %v3145 = vrot.slane %v3140, %v3144
        %v3151 = vunpack.c.l.b16 %v3136
        %v3152 = vunpack.c.l.b16 %v3137
        %v3153 = vunpack.c.l.b16 %v3138
        %v3154 = vunpack.c.l.b16 %v3139
        %v3155 = vpack.c.b16 %v3152, %v3151
        %v3156 = vpack.c.b16 %v3154, %v3153
        %v3160 = vsel %vm1089, %v3120, 0
        %v3163 = vsel %vm1089, %v3121, 0
        %v3166 = vsel %vm1089, %v3122, 0
        %v3169 = vsel %vm1089, %v3123, 0
        %v3172 = vsel %vm1089, %v3124, 0
        %v3175 = vsel %vm1089, %v3125, 0
        %v3178 = vsel %vm1089, %v3126, 0
        %v3181 = vsel %vm1089, %v3127, 0
        %v3184 = vsel %vm1089, %v3128, 0
        %v3187 = vsel %vm1089, %v3129, 0
        %v3190 = vsel %vm1089, %v3130, 0
        %v3193 = vsel %vm1089, %v3131, 0
        %v3196 = vsel %vm1089, %v3132, 0
        %v3199 = vsel %vm1089, %v3133, 0
        %v3202 = vsel %vm1089, %v3134, 0
        %v3205 = vsel %vm1089, %v3135, 0
        %3207 = vmatprep.subr.bf16.mxu0 0
        %3208 = vmatpush1.bf16.msra.mxu0 %v3155
        %3209 = vmatprep.subr.bf16.mxu0 0
        %3210 = vmatpush1.bf16.msra.mxu0 %v3156
        %3211 = vmatprep.subr.bf16.mxu0 0
        %3212 = vmatpush1.bf16.msra.mxu0 0
        %3213 = vmatprep.subr.bf16.mxu0 0
        %3214 = vmatpush1.bf16.msra.mxu0 0
        %3215 = vmatprep.subr.bf16.mxu0 0
        %3216 = vmatpush1.bf16.msra.mxu0 0
        %3217 = vmatprep.subr.bf16.mxu0 0
        %3218 = vmatpush1.bf16.msra.mxu0 0
        %3219 = vmatprep.subr.bf16.mxu0 0
        %3220 = vmatpush1.bf16.msra.mxu0 0
        %3221 = vmatprep.subr.bf16.mxu0 0
        %3222 = vmatpush1.bf16.msra.mxu0 0
        %3223 = vmatprep.subr.bf16.mxu0 0
        %3224 = vmatpush1.bf16.msra.mxu0 0
        %3225 = vmatprep.subr.bf16.mxu0 0
        %3226 = vmatpush1.bf16.msra.mxu0 0
        %3227 = vmatprep.subr.bf16.mxu0 0
        %3228 = vmatpush1.bf16.msra.mxu0 0
        %3229 = vmatprep.subr.bf16.mxu0 0
        %3230 = vmatpush1.bf16.msra.mxu0 0
        %3231 = vmatprep.subr.bf16.mxu0 0
        %3232 = vmatpush1.bf16.msra.mxu0 0
        %3233 = vmatprep.subr.bf16.mxu0 0
        %3234 = vmatpush1.bf16.msra.mxu0 0
        %3235 = vmatprep.subr.bf16.mxu0 0
        %3236 = vmatpush1.bf16.msra.mxu0 0
        %3237 = vmatprep.subr.bf16.mxu0 0
        %3238 = vmatpush1.bf16.msra.mxu0 0
        %3239 = vmatprep.mubr.bf16.mxu0 0
        %3240 = vmatmul.mubr.bf16.gmra.mrb[0].mxu0 %v3160
        %v3241 = vpop.f32.mrb[0].mxu0
        %v3242 = vadd.f32 %v3145, %v3241
        %v3243 = vpop.f32.mrb[0].mxu0
        %v3244 = vpop.f32.mrb[0].mxu0
        %v3245 = vadd.f32 %v3145, %v3244
        %v3246 = vpop.f32.mrb[0].mxu0
        %3247 = vmatprep.mubr.bf16.mxu0 0
        %3248 = vmatmul.mubr.bf16.gmra.mrb[0].mxu0 %v3163
        %v3249 = vpop.f32.mrb[0].mxu0
        %v3250 = vadd.f32 %v3145, %v3249
        %v3251 = vpop.f32.mrb[0].mxu0
        %v3252 = vpop.f32.mrb[0].mxu0
        %v3253 = vadd.f32 %v3145, %v3252
        %v3254 = vpop.f32.mrb[0].mxu0
        %3255 = vmatprep.mubr.bf16.mxu0 0
        %3256 = vmatmul.mubr.bf16.gmra.mrb[0].mxu0 %v3166
        %v3257 = vpop.f32.mrb[0].mxu0
        %v3258 = vadd.f32 %v3145, %v3257
        %v3259 = vpop.f32.mrb[0].mxu0
        %v3260 = vpop.f32.mrb[0].mxu0
        %v3261 = vadd.f32 %v3145, %v3260
        %v3262 = vpop.f32.mrb[0].mxu0
        %3263 = vmatprep.mubr.bf16.mxu0 0
        %3264 = vmatmul.mubr.bf16.gmra.mrb[0].mxu0 %v3169
        %v3265 = vpop.f32.mrb[0].mxu0
        %v3266 = vadd.f32 %v3145, %v3265
        %v3267 = vpop.f32.mrb[0].mxu0
        %v3268 = vpop.f32.mrb[0].mxu0
        %v3269 = vadd.f32 %v3145, %v3268
        %v3270 = vpop.f32.mrb[0].mxu0
        %3271 = vmatprep.mubr.bf16.mxu0 0
        %3272 = vmatmul.mubr.bf16.gmra.mrb[0].mxu0 %v3172
        %v3273 = vpop.f32.mrb[0].mxu0
        %v3274 = vadd.f32 %v3145, %v3273
        %v3275 = vpop.f32.mrb[0].mxu0
        %v3276 = vpop.f32.mrb[0].mxu0
        %v3277 = vadd.f32 %v3145, %v3276
        %v3278 = vpop.f32.mrb[0].mxu0
        %3279 = vmatprep.mubr.bf16.mxu0 0
        %3280 = vmatmul.mubr.bf16.gmra.mrb[0].mxu0 %v3175
        %v3281 = vpop.f32.mrb[0].mxu0
        %v3282 = vadd.f32 %v3145, %v3281
        %v3283 = vpop.f32.mrb[0].mxu0
        %v3284 = vpop.f32.mrb[0].mxu0
        %v3285 = vadd.f32 %v3145, %v3284
        %v3286 = vpop.f32.mrb[0].mxu0
        %3287 = vmatprep.mubr.bf16.mxu0 0
        %3288 = vmatmul.mubr.bf16.gmra.mrb[0].mxu0 %v3178
        %v3289 = vpop.f32.mrb[0].mxu0
        %v3290 = vadd.f32 %v3145, %v3289
        %v3291 = vpop.f32.mrb[0].mxu0
        %v3292 = vpop.f32.mrb[0].mxu0
        %v3293 = vadd.f32 %v3145, %v3292
        %v3294 = vpop.f32.mrb[0].mxu0
        %3295 = vmatprep.mubr.bf16.mxu0 0
        %3296 = vmatmul.mubr.bf16.gmra.mrb[0].mxu0 %v3181
        %v3297 = vpop.f32.mrb[0].mxu0
        %v3298 = vadd.f32 %v3145, %v3297
        %v3299 = vpop.f32.mrb[0].mxu0
        %v3300 = vpop.f32.mrb[0].mxu0
        %v3301 = vadd.f32 %v3145, %v3300
        %v3302 = vpop.f32.mrb[0].mxu0
        %3303 = vmatprep.mubr.bf16.mxu0 0
        %3304 = vmatmul.mubr.bf16.gmra.mrb[0].mxu0 %v3184
        %v3305 = vpop.f32.mrb[0].mxu0
        %v3306 = vadd.f32 %v3145, %v3305
        %v3307 = vpop.f32.mrb[0].mxu0
        %v3308 = vpop.f32.mrb[0].mxu0
        %v3309 = vadd.f32 %v3145, %v3308
        %v3310 = vpop.f32.mrb[0].mxu0
        %3311 = vmatprep.mubr.bf16.mxu0 0
        %3312 = vmatmul.mubr.bf16.gmra.mrb[0].mxu0 %v3187
        %v3313 = vpop.f32.mrb[0].mxu0
        %v3314 = vadd.f32 %v3145, %v3313
        %v3315 = vpop.f32.mrb[0].mxu0
        %v3316 = vpop.f32.mrb[0].mxu0
        %v3317 = vadd.f32 %v3145, %v3316
        %v3318 = vpop.f32.mrb[0].mxu0
        %3319 = vmatprep.mubr.bf16.mxu0 0
        %3320 = vmatmul.mubr.bf16.gmra.mrb[0].mxu0 %v3190
        %v3321 = vpop.f32.mrb[0].mxu0
        %v3322 = vadd.f32 %v3145, %v3321
        %v3323 = vpop.f32.mrb[0].mxu0
        %v3324 = vpop.f32.mrb[0].mxu0
        %v3325 = vadd.f32 %v3145, %v3324
        %v3326 = vpop.f32.mrb[0].mxu0
        %3327 = vmatprep.mubr.bf16.mxu0 0
        %3328 = vmatmul.mubr.bf16.gmra.mrb[0].mxu0 %v3193
        %v3329 = vpop.f32.mrb[0].mxu0
        %v3330 = vadd.f32 %v3145, %v3329
        %v3331 = vpop.f32.mrb[0].mxu0
        %v3332 = vpop.f32.mrb[0].mxu0
        %v3333 = vadd.f32 %v3145, %v3332
        %v3334 = vpop.f32.mrb[0].mxu0
        %3335 = vmatprep.mubr.bf16.mxu0 0
        %3336 = vmatmul.mubr.bf16.gmra.mrb[0].mxu0 %v3196
        %v3337 = vpop.f32.mrb[0].mxu0
        %v3338 = vadd.f32 %v3145, %v3337
        %v3339 = vpop.f32.mrb[0].mxu0
        %v3340 = vpop.f32.mrb[0].mxu0
        %v3341 = vadd.f32 %v3145, %v3340
        %v3342 = vpop.f32.mrb[0].mxu0
        %3343 = vmatprep.mubr.bf16.mxu0 0
        %3344 = vmatmul.mubr.bf16.gmra.mrb[0].mxu0 %v3199
        %v3345 = vpop.f32.mrb[0].mxu0
        %v3346 = vadd.f32 %v3145, %v3345
        %v3347 = vpop.f32.mrb[0].mxu0
        %v3348 = vpop.f32.mrb[0].mxu0
        %v3349 = vadd.f32 %v3145, %v3348
        %v3350 = vpop.f32.mrb[0].mxu0
        %3351 = vmatprep.mubr.bf16.mxu0 0
        %3352 = vmatmul.mubr.bf16.gmra.mrb[0].mxu0 %v3202
        %v3353 = vpop.f32.mrb[0].mxu0
        %v3354 = vadd.f32 %v3145, %v3353
        %v3355 = vpop.f32.mrb[0].mxu0
        %v3356 = vpop.f32.mrb[0].mxu0
        %v3357 = vadd.f32 %v3145, %v3356
        %v3358 = vpop.f32.mrb[0].mxu0
        %3359 = vmatprep.mubr.bf16.mxu0 0
        %3360 = vmatmul.mubr.bf16.gmra.mrb[0].mxu0 %v3205
        %v3361 = vpop.f32.mrb[0].mxu0
        %v3362 = vadd.f32 %v3145, %v3361
        %v3363 = vpop.f32.mrb[0].mxu0
        %v3364 = vpop.f32.mrb[0].mxu0
        %v3365 = vadd.f32 %v3145, %v3364
        %v3366 = vpop.f32.mrb[0].mxu0
        %3367 = vdwg.mxu0
        %v3368 = vunpack.c.l.bf16 %v297
        %v3369 = vunpack.c.l.bf16 %v298
        %v3370 = vunpack.c.l.bf16 %v299
        %v3371 = vunpack.c.l.bf16 %v300
        %v3372 = vunpack.c.l.bf16 %v301
        %v3373 = vunpack.c.l.bf16 %v302
        %v3374 = vunpack.c.l.bf16 %v303
        %v3375 = vunpack.c.l.bf16 %v304
        %v3376 = vunpack.c.l.bf16 %v305
        %v3377 = vunpack.c.l.bf16 %v306
        %v3378 = vunpack.c.l.bf16 %v307
        %v3379 = vunpack.c.l.bf16 %v308
        %v3380 = vunpack.c.l.bf16 %v309
        %v3381 = vunpack.c.l.bf16 %v310
        %v3382 = vunpack.c.l.bf16 %v311
        %v3383 = vunpack.c.l.bf16 %v312
        %v3384 = vunpack.c.l.bf16 %v313
        %v3385 = vunpack.c.l.bf16 %v314
        %v3386 = vunpack.c.l.bf16 %v315
        %v3387 = vunpack.c.l.bf16 %v316
        %v3388 = vunpack.c.l.bf16 %v317
        %v3389 = vunpack.c.l.bf16 %v318
        %v3390 = vunpack.c.l.bf16 %v319
        %v3391 = vunpack.c.l.bf16 %v320
        %v3392 = vunpack.c.l.bf16 %v321
        %v3393 = vunpack.c.l.bf16 %v322
        %v3394 = vunpack.c.l.bf16 %v323
        %v3395 = vunpack.c.l.bf16 %v324
        %v3396 = vunpack.c.l.bf16 %v325
        %v3397 = vunpack.c.l.bf16 %v326
        %v3398 = vunpack.c.l.bf16 %v327
        %v3399 = vunpack.c.l.bf16 %v328
        %v3400 = vadd.f32 %v3242, %v3368
        %v3401 = vadd.f32 %v3245, %v3369
        %v3402 = vadd.f32 %v3250, %v3370
        %v3403 = vadd.f32 %v3253, %v3371
        %v3404 = vadd.f32 %v3258, %v3372
        %v3405 = vadd.f32 %v3261, %v3373
        %v3406 = vadd.f32 %v3266, %v3374
        %v3407 = vadd.f32 %v3269, %v3375
        %v3408 = vadd.f32 %v3274, %v3376
        %v3409 = vadd.f32 %v3277, %v3377
        %v3410 = vadd.f32 %v3282, %v3378
        %v3411 = vadd.f32 %v3285, %v3379
        %v3412 = vadd.f32 %v3290, %v3380
        %v3413 = vadd.f32 %v3293, %v3381
        %v3414 = vadd.f32 %v3298, %v3382
        %v3415 = vadd.f32 %v3301, %v3383
        %v3416 = vadd.f32 %v3306, %v3384
        %v3417 = vadd.f32 %v3309, %v3385
        %v3418 = vadd.f32 %v3314, %v3386
        %v3419 = vadd.f32 %v3317, %v3387
        %v3420 = vadd.f32 %v3322, %v3388
        %v3421 = vadd.f32 %v3325, %v3389
        %v3422 = vadd.f32 %v3330, %v3390
        %v3423 = vadd.f32 %v3333, %v3391
        %v3424 = vadd.f32 %v3338, %v3392
        %v3425 = vadd.f32 %v3341, %v3393
        %v3426 = vadd.f32 %v3346, %v3394
        %v3427 = vadd.f32 %v3349, %v3395
        %v3428 = vadd.f32 %v3354, %v3396
        %v3429 = vadd.f32 %v3357, %v3397
        %v3430 = vadd.f32 %v3362, %v3398
        %v3431 = vadd.f32 %v3365, %v3399
        %v3432 = vmax.f32 %v3400, 0.0
        %v3433 = vmax.f32 %v3401, 0.0
        %v3434 = vmax.f32 %v3402, 0.0
        %v3435 = vmax.f32 %v3403, 0.0
        %v3436 = vmax.f32 %v3404, 0.0
        %v3437 = vmax.f32 %v3405, 0.0
        %v3438 = vmax.f32 %v3406, 0.0
        %v3439 = vmax.f32 %v3407, 0.0
        %v3440 = vmax.f32 %v3408, 0.0
        %v3441 = vmax.f32 %v3409, 0.0
        %v3442 = vmax.f32 %v3410, 0.0
        %v3443 = vmax.f32 %v3411, 0.0
        %v3444 = vmax.f32 %v3412, 0.0
        %v3445 = vmax.f32 %v3413, 0.0
        %v3446 = vmax.f32 %v3414, 0.0
        %v3447 = vmax.f32 %v3415, 0.0
        %v3448 = vmax.f32 %v3416, 0.0
        %v3449 = vmax.f32 %v3417, 0.0
        %v3450 = vmax.f32 %v3418, 0.0
        %v3451 = vmax.f32 %v3419, 0.0
        %v3452 = vmax.f32 %v3420, 0.0
        %v3453 = vmax.f32 %v3421, 0.0
        %v3454 = vmax.f32 %v3422, 0.0
        %v3455 = vmax.f32 %v3423, 0.0
        %v3456 = vmax.f32 %v3424, 0.0
        %v3457 = vmax.f32 %v3425, 0.0
        %v3458 = vmax.f32 %v3426, 0.0
        %v3459 = vmax.f32 %v3427, 0.0
        %v3460 = vmax.f32 %v3428, 0.0
        %v3461 = vmax.f32 %v3429, 0.0
        %v3462 = vmax.f32 %v3430, 0.0
        %v3463 = vmax.f32 %v3431, 0.0
        %v3464 = vpack.c.bf16 %v3433, %v3432
        %v3465 = vpack.c.bf16 %v3435, %v3434
        %v3466 = vpack.c.bf16 %v3437, %v3436
        %v3467 = vpack.c.bf16 %v3439, %v3438
        %v3468 = vpack.c.bf16 %v3441, %v3440
        %v3469 = vpack.c.bf16 %v3443, %v3442
        %v3470 = vpack.c.bf16 %v3445, %v3444
        %v3471 = vpack.c.bf16 %v3447, %v3446
        %v3472 = vpack.c.bf16 %v3449, %v3448
        %v3473 = vpack.c.bf16 %v3451, %v3450
        %v3474 = vpack.c.bf16 %v3453, %v3452
        %v3475 = vpack.c.bf16 %v3455, %v3454
        %v3476 = vpack.c.bf16 %v3457, %v3456
        %v3477 = vpack.c.bf16 %v3459, %v3458
        %v3478 = vpack.c.bf16 %v3461, %v3460
        %v3479 = vpack.c.bf16 %v3463, %v3462
        %v3496 = vunpack.c.l.b16 %v3464
        %v3497 = vunpack.c.h.b16 %v3464
        %v3498 = vunpack.c.l.b16 %v3465
        %v3499 = vunpack.c.h.b16 %v3465
        %v3500 = vunpack.c.l.b16 %v3466
        %v3501 = vunpack.c.h.b16 %v3466
        %v3502 = vunpack.c.l.b16 %v3467
        %v3503 = vunpack.c.h.b16 %v3467
        %v3504 = vunpack.c.l.b16 %v3468
        %v3505 = vunpack.c.h.b16 %v3468
        %v3506 = vunpack.c.l.b16 %v3469
        %v3507 = vunpack.c.h.b16 %v3469
        %v3508 = vunpack.c.l.b16 %v3470
        %v3509 = vunpack.c.h.b16 %v3470
        %v3510 = vunpack.c.l.b16 %v3471
        %v3511 = vunpack.c.h.b16 %v3471
        %v3512 = vunpack.c.l.b16 %v3472
        %v3513 = vunpack.c.h.b16 %v3472
        %v3514 = vunpack.c.l.b16 %v3473
        %v3515 = vunpack.c.h.b16 %v3473
        %v3516 = vunpack.c.l.b16 %v3474
        %v3517 = vunpack.c.h.b16 %v3474
        %v3518 = vunpack.c.l.b16 %v3475
        %v3519 = vunpack.c.h.b16 %v3475
        %v3520 = vunpack.c.l.b16 %v3476
        %v3521 = vunpack.c.h.b16 %v3476
        %v3522 = vunpack.c.l.b16 %v3477
        %v3523 = vunpack.c.h.b16 %v3477
        %v3524 = vunpack.c.l.b16 %v3478
        %v3525 = vunpack.c.h.b16 %v3478
        %v3526 = vunpack.c.l.b16 %v3479
        %v3527 = vunpack.c.h.b16 %v3479
        %v3528 = vpack.c.b16 %v3496, %v3496
        %v3529 = vpack.c.b16 %v3497, %v3497
        %v3530 = vpack.c.b16 %v3498, %v3498
        %v3531 = vpack.c.b16 %v3499, %v3499
        %v3532 = vpack.c.b16 %v3500, %v3500
        %v3533 = vpack.c.b16 %v3501, %v3501
        %v3534 = vpack.c.b16 %v3502, %v3502
        %v3535 = vpack.c.b16 %v3503, %v3503
        %v3536 = vpack.c.b16 %v3504, %v3504
        %v3537 = vpack.c.b16 %v3505, %v3505
        %v3538 = vpack.c.b16 %v3506, %v3506
        %v3539 = vpack.c.b16 %v3507, %v3507
        %v3540 = vpack.c.b16 %v3508, %v3508
        %v3541 = vpack.c.b16 %v3509, %v3509
        %v3542 = vpack.c.b16 %v3510, %v3510
        %v3543 = vpack.c.b16 %v3511, %v3511
        %v3544 = vpack.c.b16 %v3512, %v3512
        %v3545 = vpack.c.b16 %v3513, %v3513
        %v3546 = vpack.c.b16 %v3514, %v3514
        %v3547 = vpack.c.b16 %v3515, %v3515
        %v3548 = vpack.c.b16 %v3516, %v3516
        %v3549 = vpack.c.b16 %v3517, %v3517
        %v3550 = vpack.c.b16 %v3518, %v3518
        %v3551 = vpack.c.b16 %v3519, %v3519
        %v3552 = vpack.c.b16 %v3520, %v3520
        %v3553 = vpack.c.b16 %v3521, %v3521
        %v3554 = vpack.c.b16 %v3522, %v3522
        %v3555 = vpack.c.b16 %v3523, %v3523
        %v3556 = vpack.c.b16 %v3524, %v3524
        %v3557 = vpack.c.b16 %v3525, %v3525
        %v3558 = vpack.c.b16 %v3526, %v3526
        %v3559 = vpack.c.b16 %v3527, %v3527
        %3592 = vst [vmem:[%s285] sm:$0xf] %v3528
        %3593 = vst [vmem:[%s285 + $0x4] sm:$0xf] %v3529
        %3594 = vst [vmem:[%s285 + $0x8] sm:$0xf] %v3530
        %3595 = vst [vmem:[%s285 + $0xc] sm:$0xf] %v3531
        %3596 = vst [vmem:[%s285 + $0x10] sm:$0xf] %v3532
        %3597 = vst [vmem:[%s285 + $0x14] sm:$0xf] %v3533
        %3598 = vst [vmem:[%s285 + $0x18] sm:$0xf] %v3534
        %3599 = vst [vmem:[%s285 + $0x1c] sm:$0xf] %v3535
        %3600 = vst [vmem:[%s285 + $0x20] sm:$0xf] %v3536
        %3601 = vst [vmem:[%s285 + $0x24] sm:$0xf] %v3537
        %3602 = vst [vmem:[%s285 + $0x28] sm:$0xf] %v3538
        %3603 = vst [vmem:[%s285 + $0x2c] sm:$0xf] %v3539
        %3604 = vst [vmem:[%s285 + $0x30] sm:$0xf] %v3540
        %3605 = vst [vmem:[%s285 + $0x34] sm:$0xf] %v3541
        %3606 = vst [vmem:[%s285 + $0x38] sm:$0xf] %v3542
        %3607 = vst [vmem:[%s285 + $0x3c] sm:$0xf] %v3543
        %3608 = vst [vmem:[%s285 + $0x40] sm:$0xf] %v3544
        %3609 = vst [vmem:[%s285 + $0x44] sm:$0xf] %v3545
        %3610 = vst [vmem:[%s285 + $0x48] sm:$0xf] %v3546
        %3611 = vst [vmem:[%s285 + $0x4c] sm:$0xf] %v3547
        %3612 = vst [vmem:[%s285 + $0x50] sm:$0xf] %v3548
        %3613 = vst [vmem:[%s285 + $0x54] sm:$0xf] %v3549
        %3614 = vst [vmem:[%s285 + $0x58] sm:$0xf] %v3550
        %3615 = vst [vmem:[%s285 + $0x5c] sm:$0xf] %v3551
        %3616 = vst [vmem:[%s285 + $0x60] sm:$0xf] %v3552
        %3617 = vst [vmem:[%s285 + $0x64] sm:$0xf] %v3553
        %3618 = vst [vmem:[%s285 + $0x68] sm:$0xf] %v3554
        %3619 = vst [vmem:[%s285 + $0x6c] sm:$0xf] %v3555
        %3620 = vst [vmem:[%s285 + $0x70] sm:$0xf] %v3556
        %3621 = vst [vmem:[%s285 + $0x74] sm:$0xf] %v3557
        %3622 = vst [vmem:[%s285 + $0x78] sm:$0xf] %v3558
        %3623 = vst [vmem:[%s285 + $0x7c] sm:$0xf] %v3559
        %s3624 = sand.u32 %s195, 1
        %s3625 = scalar_lea.sflag [#allocation3], %s3624
        %s3626 = sand.u32 %s195, 1
        %s3627 = smul.addr %s3626, 128
        %s3628 = scalar_lea.vmem [#allocation2], %s3627
        // Predicated region
        $region49: #{tpu_custom_call.1} parent=47 // pred_check
          %p3629 = pneg %p205
        $region50: #{tpu_custom_call.1} parent=47 // pred_check_branch
          %3631 = sbr.rel (%p3629) target = $region52
        $region51: #{tpu_custom_call.1} parent=47 // pred_region
          %s3632 = smul.u32 16, %s26
          %s3634 = ssub.s32 2048, 2048
          %3635 = vsyncadd %s3625, %s3634
          %s3636 = smul.addr %s3632, 2
          %s3637 = smul.addr %s25, 32
          %s3638 = sadd.s32 %s3636, %s3637
          %s3639 = smul.addr %s3638, 64
          %s3640 = scalar_lea.hbm %s7, %s3639
          %s3641 = sshll.u32 %s3628, 4
          %s3642 = int_to_ptr.vmem [resolvable:$true] %s3641
          %3647 = dma.vmem_to_hbm [thread:$0]  %s3642, 2048, %s3640, %s3625, 64, 64, 4
        $region52: #{tpu_custom_call.1} parent=47 // pred_fallthru
          _
      $region48: #{tpu_custom_call.1} parent=5 // pred_fallthru
        _
      %p3648 = scmp.le.s32.totalorder 2, %s16
      // Predicated region
      $region53: #{tpu_custom_call.1} parent=5 // pred_check
        %p3649 = pneg %p3648
      $region54: #{tpu_custom_call.1} parent=5 // pred_check_branch
        %3651 = sbr.rel (%p3649) target = $region56
      $region55: #{tpu_custom_call.1} parent=5 // pred_region
        %s3652 = ssub.s32 %s16, 2
        // Predicated region
        $region57: #{tpu_custom_call.1} parent=55 // pred_check
          %p3653 = pneg %p211
        $region58: #{tpu_custom_call.1} parent=55 // pred_check_branch
          %3655 = sbr.rel (%p3653) target = $region60
        $region59: #{tpu_custom_call.1} parent=55 // pred_region
          %s3656 = sand.u32 %s196, 1
          %s3657 = scalar_lea.sflag [#allocation3], %s3656
          %s3658 = sand.u32 %s196, 1
          %s3659 = smul.addr %s3658, 128
          %s3660 = scalar_lea.vmem [#allocation2], %s3659
          %3661 = dma.done %s3657, 2048
        $region60: #{tpu_custom_call.1} parent=55 // pred_fallthru
          _
      $region56: #{tpu_custom_call.1} parent=5 // pred_fallthru
        _
    $region6: #{tpu_custom_call.1} parent=1 // loop_footer
      %s20 = sadd.s32 1, %s16
    $region7: #{tpu_custom_call.1} parent=1 // loop_footer_branch
      %15 = sbr.rel target = $region3
    $region8: #{tpu_custom_call.1} parent=1 // loop_exit
      _
    %3662 = vsyncpa [#allocation3], 1
    %s3663 = scalar_lea.sflag [#allocation3], 1
    %3664 = vsyncpa %s3663, 1

// kernel: tpu_custom_call.1
$region0: #{tpu_custom_call.1}
  #allocation0 [shape = 'u32[]', space=smem, size = 0x4, offset = 0x4, fixed_abs, tag = 'smem constant byte address 0x4 - core index']
  #allocation1 [shape = 'u32[144,128]{1,0:T(1,128)}', space=vmem, size = 0x12000, scoped, tag = 'internal scratch']
  %s0 = inlined_call_operand.vmem [shape: bf16[2,16,16,128], index: 0, kind: input, shape index: {}]
  %s1 = inlined_call_operand.vmem [shape: bf16[128,32], index: 1, kind: input, shape index: {}]
  %s2 = inlined_call_operand.vmem [shape: f32[1,32], index: 2, kind: input, shape index: {}]
  %s3 = inlined_call_operand.vmem [shape: bf16[288,32], index: 3, kind: input, shape index: {}]
  %s4 = inlined_call_operand.vmem [shape: f32[1,32], index: 4, kind: input, shape index: {}]
  %s5 = inlined_call_operand.vmem [shape: bf16[32,128], index: 5, kind: input, shape index: {}]
  %s6 = inlined_call_operand.vmem [shape: f32[1,128], index: 6, kind: input, shape index: {}]
  %s7 = inlined_call_operand.hbm [shape: bf16[2,16,16,128], index: 7, kind: output, shape index: {}]
  %s8 = sld [smem:[#allocation0]]
  $region61: #{tpu_custom_call.1} parent=0
    _
  %s10 = ssub.s32 1, %s8
  %s11 = scalar_select 0, %s10, %s8
  $region1: #{tpu_custom_call.1} parent=0
    #allocation2 [shape = 'u8[131072]{0}', space=vmem, size = 0x20000, scoped, tag = 'output window, operand 0']
    #allocation3 [shape = 's32[2]{0}', space=sflag, size = 0x8, scoped, tag = 'scoped memory for tpu_custom_call.1']
    %12 = vsyncpa [#allocation3], 0
    %s13 = scalar_lea.sflag [#allocation3], 1
    %14 = vsyncpa %s13, 0
    loop: start=0, step=1, limit=4
    $region2: #{tpu_custom_call.1} parent=1 // loop_pre_header
      _
    $region3: #{tpu_custom_call.1} parent=1 // loop_header
      %s16 = sphi 0, %s20
      %p17 = scmp.ge.s32.totalorder %s16, 4
      %s23 = sphi 0, %s35
      %s24 = sphi 0, %s31
      %s25 = sphi 0, %s23
      %s26 = sphi 0, %s24
      %s27 = sphi 0, %s25
      %s28 = sphi 0, %s26
      %s38 = sphi 0, %s40
      %s41 = sphi 0, %s38
      %s42 = sphi 0, %s41
      %s58 = sphi 0, %s42
      %s62 = sphi 0, %s62
      %s64 = sphi 0, %s62
      %s65 = sphi 0, %s64
      %s79 = sphi 0, %s65
      %s83 = sphi 0, %s83
      %s85 = sphi 0, %s83
      %s86 = sphi 0, %s85
      %s100 = sphi 0, %s86
      %s104 = sphi 0, %s104
      %s106 = sphi 0, %s104
      %s107 = sphi 0, %s106
      %s121 = sphi 0, %s107
      %s125 = sphi 0, %s125
      %s127 = sphi 0, %s125
      %s128 = sphi 0, %s127
      %s142 = sphi 0, %s128
      %s146 = sphi 0, %s146
      %s148 = sphi 0, %s146
      %s149 = sphi 0, %s148
      %s163 = sphi 0, %s149
      %s167 = sphi 0, %s167
      %s169 = sphi 0, %s167
      %s170 = sphi 0, %s169
      %s184 = sphi 0, %s170
      %s192 = sphi 0, %s194
      %s195 = sphi 0, %s192
      %s196 = sphi 0, %s195
      %s212 = sphi 0, %s196
    $region4: #{tpu_custom_call.1} parent=1 // loop_header_branch
      %19 = sbr.rel (%p17) target = $region8
    $region5: #{tpu_custom_call.1} parent=1 // loop_body
      %s21 = ssub.s32 %s16, 1
      %s22 = ssub.s32 %s16, 2
      %s29 = sadd.s32 1, %s24
      %p30 = scmp.ge.s32.totalorder %s29, 1
      %s31 = scalar_select %p30, 0, %s29
      %s32 = sadd.s32 1, %s23
      %s33 = scalar_select %p30, %s32, %s23
      %p34 = scmp.ge.s32.totalorder %s33, 2
      %s35 = scalar_select %p34, 0, %s33
      %s36 = ssub.s32 %s23, %s35
      %p37 = scmp.eq.s32.totalorder %s36, 0
      %s39 = sadd.s32 %s38, 1
      %s40 = scalar_select %p37, %s38, %s39
      %p43 = pneg %p37
      %p44 = scmp.eq.s32.totalorder %s16, 1
      %p45 = por %p43, %p44
      %p46 = scmp.ne.s32.totalorder %s38, %s41
      %p47 = scmp.eq.s32.totalorder %s16, 0
      %p48 = por %p46, %p47
      %p49 = scmp.ne.s32.totalorder %s38, %s41
      %p50 = scmp.eq.s32.totalorder %s21, 1
      %p51 = por %p49, %p50
      %p52 = scmp.ne.s32.totalorder %s41, %s42
      %p53 = scmp.eq.s32.totalorder %s21, 0
      %p54 = por %p52, %p53
      %p55 = scmp.ne.s32.totalorder %s41, %s42
      %p56 = scmp.eq.s32.totalorder %s22, 1
      %p57 = por %p55, %p56
      %p59 = scmp.ne.s32.totalorder %s42, %s58
      %p60 = scmp.eq.s32.totalorder %s22, 0
      %p61 = por %p59, %p60
      %s63 = sadd.s32 %s62, 1
      %p66 = scmp.eq.s32.totalorder %s16, 1
      %p67 = scmp.ne.s32.totalorder %s62, %s64
      %p68 = scmp.eq.s32.totalorder %s16, 0
      %p69 = por %p67, %p68
      %p70 = scmp.ne.s32.totalorder %s62, %s64
      %p71 = scmp.eq.s32.totalorder %s21, 1
      %p72 = por %p70, %p71
      %p73 = scmp.ne.s32.totalorder %s64, %s65
      %p74 = scmp.eq.s32.totalorder %s21, 0
      %p75 = por %p73, %p74
      %p76 = scmp.ne.s32.totalorder %s64, %s65
      %p77 = scmp.eq.s32.totalorder %s22, 1
      %p78 = por %p76, %p77
      %p80 = scmp.ne.s32.totalorder %s65, %s79
      %p81 = scmp.eq.s32.totalorder %s22, 0
      %p82 = por %p80, %p81
      %s84 = sadd.s32 %s83, 1
      %p87 = scmp.eq.s32.totalorder %s16, 1
      %p88 = scmp.ne.s32.totalorder %s83, %s85
      %p89 = scmp.eq.s32.totalorder %s16, 0
      %p90 = por %p88, %p89
      %p91 = scmp.ne.s32.totalorder %s83, %s85
      %p92 = scmp.eq.s32.totalorder %s21, 1
      %p93 = por %p91, %p92
      %p94 = scmp.ne.s32.totalorder %s85, %s86
      %p95 = scmp.eq.s32.totalorder %s21, 0
      %p96 = por %p94, %p95
      %p97 = scmp.ne.s32.totalorder %s85, %s86
      %p98 = scmp.eq.s32.totalorder %s22, 1
      %p99 = por %p97, %p98
      %p101 = scmp.ne.s32.totalorder %s86, %s100
      %p102 = scmp.eq.s32.totalorder %s22, 0
      %p103 = por %p101, %p102
      %s105 = sadd.s32 %s104, 1
      %p108 = scmp.eq.s32.totalorder %s16, 1
      %p109 = scmp.ne.s32.totalorder %s104, %s106
      %p110 = scmp.eq.s32.totalorder %s16, 0
      %p111 = por %p109, %p110
      %p112 = scmp.ne.s32.totalorder %s104, %s106
      %p113 = scmp.eq.s32.totalorder %s21, 1
      %p114 = por %p112, %p113
      %p115 = scmp.ne.s32.totalorder %s106, %s107
      %p116 = scmp.eq.s32.totalorder %s21, 0
      %p117 = por %p115, %p116
      %p118 = scmp.ne.s32.totalorder %s106, %s107
      %p119 = scmp.eq.s32.totalorder %s22, 1
      %p120 = por %p118, %p119
      %p122 = scmp.ne.s32.totalorder %s107, %s121
      %p123 = scmp.eq.s32.totalorder %s22, 0
      %p124 = por %p122, %p123
      %s126 = sadd.s32 %s125, 1
      %p129 = scmp.eq.s32.totalorder %s16, 1
      %p130 = scmp.ne.s32.totalorder %s125, %s127
      %p131 = scmp.eq.s32.totalorder %s16, 0
      %p132 = por %p130, %p131
      %p133 = scmp.ne.s32.totalorder %s125, %s127
      %p134 = scmp.eq.s32.totalorder %s21, 1
      %p135 = por %p133, %p134
      %p136 = scmp.ne.s32.totalorder %s127, %s128
      %p137 = scmp.eq.s32.totalorder %s21, 0
      %p138 = por %p136, %p137
      %p139 = scmp.ne.s32.totalorder %s127, %s128
      %p140 = scmp.eq.s32.totalorder %s22, 1
      %p141 = por %p139, %p140
      %p143 = scmp.ne.s32.totalorder %s128, %s142
      %p144 = scmp.eq.s32.totalorder %s22, 0
      %p145 = por %p143, %p144
      %s147 = sadd.s32 %s146, 1
      %p150 = scmp.eq.s32.totalorder %s16, 1
      %p151 = scmp.ne.s32.totalorder %s146, %s148
      %p152 = scmp.eq.s32.totalorder %s16, 0
      %p153 = por %p151, %p152
      %p154 = scmp.ne.s32.totalorder %s146, %s148
      %p155 = scmp.eq.s32.totalorder %s21, 1
      %p156 = por %p154, %p155
      %p157 = scmp.ne.s32.totalorder %s148, %s149
      %p158 = scmp.eq.s32.totalorder %s21, 0
      %p159 = por %p157, %p158
      %p160 = scmp.ne.s32.totalorder %s148, %s149
      %p161 = scmp.eq.s32.totalorder %s22, 1
      %p162 = por %p160, %p161
      %p164 = scmp.ne.s32.totalorder %s149, %s163
      %p165 = scmp.eq.s32.totalorder %s22, 0
      %p166 = por %p164, %p165
      %s168 = sadd.s32 %s167, 1
      %p171 = scmp.eq.s32.totalorder %s16, 1
      %p172 = scmp.ne.s32.totalorder %s167, %s169
      %p173 = scmp.eq.s32.totalorder %s16, 0
      %p174 = por %p172, %p173
      %p175 = scmp.ne.s32.totalorder %s167, %s169
      %p176 = scmp.eq.s32.totalorder %s21, 1
      %p177 = por %p175, %p176
      %p178 = scmp.ne.s32.totalorder %s169, %s170
      %p179 = scmp.eq.s32.totalorder %s21, 0
      %p180 = por %p178, %p179
      %p181 = scmp.ne.s32.totalorder %s169, %s170
      %p182 = scmp.eq.s32.totalorder %s22, 1
      %p183 = por %p181, %p182
      %p185 = scmp.ne.s32.totalorder %s170, %s184
      %p186 = scmp.eq.s32.totalorder %s22, 0
      %p187 = por %p185, %p186
      %s188 = ssub.s32 %s23, %s35
      %s189 = ssub.s32 %s24, %s31
      %s190 = sor.u32 %s188, %s189
      %p191 = scmp.eq.s32.totalorder %s190, 0
      %s193 = sadd.s32 %s192, 1
      %s194 = scalar_select %p191, %s192, %s193
      %p197 = pneg %p191
      %p198 = scmp.eq.s32.totalorder %s16, 1
      %p199 = por %p197, %p198
      %p200 = scmp.ne.s32.totalorder %s192, %s195
      %p201 = scmp.eq.s32.totalorder %s16, 0
      %p202 = por %p200, %p201
      %p203 = scmp.ne.s32.totalorder %s192, %s195
      %p204 = scmp.eq.s32.totalorder %s21, 1
      %p205 = por %p203, %p204
      %p206 = scmp.ne.s32.totalorder %s195, %s196
      %p207 = scmp.eq.s32.totalorder %s21, 0
      %p208 = por %p206, %p207
      %p209 = scmp.ne.s32.totalorder %s195, %s196
      %p210 = scmp.eq.s32.totalorder %s22, 1
      %p211 = por %p209, %p210
      %p213 = scmp.ne.s32.totalorder %s196, %s212
      %p214 = scmp.eq.s32.totalorder %s22, 0
      %p215 = por %p213, %p214
      %p216 = scmp.le.s32.totalorder 1, %s16
      %p217 = scmp.lt.s32.totalorder %s16, 3
      %p218 = pnand %p216, %p217
      %p219 = pneg %p218
      // Predicated region
      $region9: #{tpu_custom_call.1} parent=5 // pred_check
        _
      $region10: #{tpu_custom_call.1} parent=5 // pred_check_branch
        %221 = sbr.rel (%p218) target = $region12
      $region11: #{tpu_custom_call.1} parent=5 // pred_region
        %s222 = ssub.s32 %s16, 1
        // Predicated region
        $region13: #{tpu_custom_call.1} parent=11 // pred_check
          %p223 = pneg %p75
        $region14: #{tpu_custom_call.1} parent=11 // pred_check_branch
          %225 = sbr.rel (%p223) target = $region16
        $region15: #{tpu_custom_call.1} parent=11 // pred_region
          _
        $region16: #{tpu_custom_call.1} parent=11 // pred_fallthru
          _
        // Predicated region
        $region17: #{tpu_custom_call.1} parent=11 // pred_check
          %p226 = pneg %p96
        $region18: #{tpu_custom_call.1} parent=11 // pred_check_branch
          %228 = sbr.rel (%p226) target = $region20
        $region19: #{tpu_custom_call.1} parent=11 // pred_region
          _
        $region20: #{tpu_custom_call.1} parent=11 // pred_fallthru
          _
        // Predicated region
        $region21: #{tpu_custom_call.1} parent=11 // pred_check
          %p229 = pneg %p117
        $region22: #{tpu_custom_call.1} parent=11 // pred_check_branch
          %231 = sbr.rel (%p229) target = $region24
        $region23: #{tpu_custom_call.1} parent=11 // pred_region
          _
        $region24: #{tpu_custom_call.1} parent=11 // pred_fallthru
          _
        // Predicated region
        $region25: #{tpu_custom_call.1} parent=11 // pred_check
          %p232 = pneg %p138
        $region26: #{tpu_custom_call.1} parent=11 // pred_check_branch
          %234 = sbr.rel (%p232) target = $region28
        $region27: #{tpu_custom_call.1} parent=11 // pred_region
          _
        $region28: #{tpu_custom_call.1} parent=11 // pred_fallthru
          _
        // Predicated region
        $region29: #{tpu_custom_call.1} parent=11 // pred_check
          %p235 = pneg %p159
        $region30: #{tpu_custom_call.1} parent=11 // pred_check_branch
          %237 = sbr.rel (%p235) target = $region32
        $region31: #{tpu_custom_call.1} parent=11 // pred_region
          _
        $region32: #{tpu_custom_call.1} parent=11 // pred_fallthru
          _
        // Predicated region
        $region33: #{tpu_custom_call.1} parent=11 // pred_check
          %p238 = pneg %p180
        $region34: #{tpu_custom_call.1} parent=11 // pred_check_branch
          %240 = sbr.rel (%p238) target = $region36
        $region35: #{tpu_custom_call.1} parent=11 // pred_region
          _
        $region36: #{tpu_custom_call.1} parent=11 // pred_fallthru
          _
      $region12: #{tpu_custom_call.1} parent=5 // pred_fallthru
        _
      %p241 = scmp.lt.s32.totalorder %s16, 2
      // Predicated region
      $region37: #{tpu_custom_call.1} parent=5 // pred_check
        %p242 = pneg %p241
      $region38: #{tpu_custom_call.1} parent=5 // pred_check_branch
        %244 = sbr.rel (%p242) target = $region40
      $region39: #{tpu_custom_call.1} parent=5 // pred_region
        // Predicated region
        $region41: #{tpu_custom_call.1} parent=39 // pred_check
          %p245 = pneg %p48
        $region42: #{tpu_custom_call.1} parent=39 // pred_check_branch
          %247 = sbr.rel (%p245) target = $region44
        $region43: #{tpu_custom_call.1} parent=39 // pred_region
          %p248 = scmp.lt.s32.totalorder %s23, 1
          %s249 = scalar_select %p248, %s23, 1
          %s250 = smul.addr %s249, 32
          %s251 = smul.addr %s250, 4
          %s252 = scalar_lea.vmem %s0, %s251
        $region44: #{tpu_custom_call.1} parent=39 // pred_fallthru
          _
      $region40: #{tpu_custom_call.1} parent=5 // pred_fallthru
        _
      %p253 = scmp.le.s32.totalorder 1, %s16
      %p254 = scmp.lt.s32.totalorder %s16, 3
      %p255 = pnand %p253, %p254
      %p256 = pneg %p255
      // Predicated region
      $region45: #{tpu_custom_call.1} parent=5 // pred_check
        _
      $region46: #{tpu_custom_call.1} parent=5 // pred_check_branch
        %258 = sbr.rel (%p255) target = $region48
      $region47: #{tpu_custom_call.1} parent=5 // pred_region
        %s259 = ssub.s32 %s16, 1
        %p260 = scmp.lt.s32.totalorder %s25, 1
        %s261 = scalar_select %p260, %s25, 1
        %s262 = smul.addr %s261, 32
        %s263 = smul.addr %s262, 4
        %s264 = scalar_lea.vmem %s0, %s263
        %p265 = pneg %p54
        %p266 = pneg %p51
        %p267 = pneg %p75
        %p268 = pneg %p72
        %p269 = pneg %p96
        %p270 = pneg %p93
        %p271 = pneg %p117
        %p272 = pneg %p114
        %p273 = pneg %p138
        %p274 = pneg %p135
        %p275 = pneg %p159
        %p276 = pneg %p156
        %p277 = pneg %p180
        %p278 = pneg %p177
        %p279 = pneg %p208
        %p280 = pneg %p205
        %s281 = sand.u32 %s195, 1
        %s282 = scalar_lea.sflag [#allocation3], %s281
        %s283 = sand.u32 %s195, 1
        %s284 = smul.addr %s283, 128
        %s285 = scalar_lea.vmem [#allocation2], %s284
        %p286 = scmp.lt.s32.totalorder %s25, 1
        %s287 = scalar_select %p286, %s25, 1
        %s288 = smul.addr %s287, 32
        %s289 = smul.addr %s288, 4
        %s290 = scalar_lea.vmem %s0, %s289
        %s291 = smul.u32 16, %s26
        %s293 = smul.u32 %s26, 16
        %s294 = smul.u32 %s293, 2
        %s295 = smul.addr %s294, 4
        %s296 = scalar_lea.vmem %s290, %s295
        %v297 = vld [vmem:[%s296] sm:$0xf]
        %v298 = vld [vmem:[%s296 + $0x4] sm:$0xf]
        %v299 = vld [vmem:[%s296 + $0x8] sm:$0xf]
        %v300 = vld [vmem:[%s296 + $0xc] sm:$0xf]
        %v301 = vld [vmem:[%s296 + $0x10] sm:$0xf]
        %v302 = vld [vmem:[%s296 + $0x14] sm:$0xf]
        %v303 = vld [vmem:[%s296 + $0x18] sm:$0xf]
        %v304 = vld [vmem:[%s296 + $0x1c] sm:$0xf]
        %v305 = vld [vmem:[%s296 + $0x20] sm:$0xf]
        %v306 = vld [vmem:[%s296 + $0x24] sm:$0xf]
        %v307 = vld [vmem:[%s296 + $0x28] sm:$0xf]
        %v308 = vld [vmem:[%s296 + $0x2c] sm:$0xf]
        %v309 = vld [vmem:[%s296 + $0x30] sm:$0xf]
        %v310 = vld [vmem:[%s296 + $0x34] sm:$0xf]
        %v311 = vld [vmem:[%s296 + $0x38] sm:$0xf]
        %v312 = vld [vmem:[%s296 + $0x3c] sm:$0xf]
        %v313 = vld [vmem:[%s296 + $0x40] sm:$0xf]
        %v314 = vld [vmem:[%s296 + $0x44] sm:$0xf]
        %v315 = vld [vmem:[%s296 + $0x48] sm:$0xf]
        %v316 = vld [vmem:[%s296 + $0x4c] sm:$0xf]
        %v317 = vld [vmem:[%s296 + $0x50] sm:$0xf]
        %v318 = vld [vmem:[%s296 + $0x54] sm:$0xf]
        %v319 = vld [vmem:[%s296 + $0x58] sm:$0xf]
        %v320 = vld [vmem:[%s296 + $0x5c] sm:$0xf]
        %v321 = vld [vmem:[%s296 + $0x60] sm:$0xf]
        %v322 = vld [vmem:[%s296 + $0x64] sm:$0xf]
        %v323 = vld [vmem:[%s296 + $0x68] sm:$0xf]
        %v324 = vld [vmem:[%s296 + $0x6c] sm:$0xf]
        %v325 = vld [vmem:[%s296 + $0x70] sm:$0xf]
        %v326 = vld [vmem:[%s296 + $0x74] sm:$0xf]
        %v327 = vld [vmem:[%s296 + $0x78] sm:$0xf]
        %v328 = vld [vmem:[%s296 + $0x7c] sm:$0xf]
        %v329 = vld [vmem:[%s1] sm:$0xf]
        %v330 = vld [vmem:[%s1 + $0x4] sm:$0xf]
        %v331 = vld [vmem:[%s1 + $0x8] sm:$0xf]
        %v332 = vld [vmem:[%s1 + $0xc] sm:$0xf]
        %v333 = vld [vmem:[%s1 + $0x10] sm:$0xf]
        %v334 = vld [vmem:[%s1 + $0x14] sm:$0xf]
        %v335 = vld [vmem:[%s1 + $0x18] sm:$0xf]
        %v336 = vld [vmem:[%s1 + $0x1c] sm:$0xf]
        %v337 = vld [vmem:[%s1 + $0x20] sm:$0xf]
        %v338 = vld [vmem:[%s1 + $0x24] sm:$0xf]
        %v339 = vld [vmem:[%s1 + $0x28] sm:$0xf]
        %v340 = vld [vmem:[%s1 + $0x2c] sm:$0xf]
        %v341 = vld [vmem:[%s1 + $0x30] sm:$0xf]
        %v342 = vld [vmem:[%s1 + $0x34] sm:$0xf]
        %v343 = vld [vmem:[%s1 + $0x38] sm:$0xf]
        %v344 = vld [vmem:[%s1 + $0x3c] sm:$0xf]
        %v345 = vld [vmem:[%s2] sm:$0x1]
        %v347 = vlaneseq
        %v348 = vshrl.u32 %v347, 7
        %v349 = vsub.s32 0, %v348
        %v350 = vrot.slane %v345, %v349
        %v384 = vunpack.c.l.b16 %v297
        %v385 = vunpack.c.l.b16 %v298
        %v386 = vunpack.c.l.b16 %v299
        %v387 = vunpack.c.l.b16 %v300
        %v388 = vunpack.c.l.b16 %v301
        %v389 = vunpack.c.l.b16 %v302
        %v390 = vunpack.c.l.b16 %v303
        %v391 = vunpack.c.l.b16 %v304
        %v392 = vunpack.c.l.b16 %v305
        %v393 = vunpack.c.l.b16 %v306
        %v394 = vunpack.c.l.b16 %v307
        %v395 = vunpack.c.l.b16 %v308
        %v396 = vunpack.c.l.b16 %v309
        %v397 = vunpack.c.l.b16 %v310
        %v398 = vunpack.c.l.b16 %v311
        %v399 = vunpack.c.l.b16 %v312
        %v400 = vunpack.c.l.b16 %v313
        %v401 = vunpack.c.l.b16 %v314
        %v402 = vunpack.c.l.b16 %v315
        %v403 = vunpack.c.l.b16 %v316
        %v404 = vunpack.c.l.b16 %v317
        %v405 = vunpack.c.l.b16 %v318
        %v406 = vunpack.c.l.b16 %v319
        %v407 = vunpack.c.l.b16 %v320
        %v408 = vunpack.c.l.b16 %v321
        %v409 = vunpack.c.l.b16 %v322
        %v410 = vunpack.c.l.b16 %v323
        %v411 = vunpack.c.l.b16 %v324
        %v412 = vunpack.c.l.b16 %v325
        %v413 = vunpack.c.l.b16 %v326
        %v414 = vunpack.c.l.b16 %v327
        %v415 = vunpack.c.l.b16 %v328
        %v416 = vpack.c.b16 %v385, %v384
        %v417 = vpack.c.b16 %v387, %v386
        %v418 = vpack.c.b16 %v389, %v388
        %v419 = vpack.c.b16 %v391, %v390
        %v420 = vpack.c.b16 %v393, %v392
        %v421 = vpack.c.b16 %v395, %v394
        %v422 = vpack.c.b16 %v397, %v396
        %v423 = vpack.c.b16 %v399, %v398
        %v424 = vpack.c.b16 %v401, %v400
        %v425 = vpack.c.b16 %v403, %v402
        %v426 = vpack.c.b16 %v405, %v404
        %v427 = vpack.c.b16 %v407, %v406
        %v428 = vpack.c.b16 %v409, %v408
        %v429 = vpack.c.b16 %v411, %v410
        %v430 = vpack.c.b16 %v413, %v412
        %v431 = vpack.c.b16 %v415, %v414
        %v464 = vunpack.c.l.b16 %v329
        %v465 = vunpack.c.l.b16 %v330
        %v466 = vunpack.c.l.b16 %v331
        %v467 = vunpack.c.l.b16 %v332
        %v468 = vunpack.c.l.b16 %v333
        %v469 = vunpack.c.l.b16 %v334
        %v470 = vunpack.c.l.b16 %v335
        %v471 = vunpack.c.l.b16 %v336
        %v472 = vunpack.c.l.b16 %v337
        %v473 = vunpack.c.l.b16 %v338
        %v474 = vunpack.c.l.b16 %v339
        %v475 = vunpack.c.l.b16 %v340
        %v476 = vunpack.c.l.b16 %v341
        %v477 = vunpack.c.l.b16 %v342
        %v478 = vunpack.c.l.b16 %v343
        %v479 = vunpack.c.l.b16 %v344
        %v480 = vpack.c.b16 %v465, %v464
        %v481 = vpack.c.b16 %v467, %v466
        %v482 = vpack.c.b16 %v469, %v468
        %v483 = vpack.c.b16 %v471, %v470
        %v484 = vpack.c.b16 %v473, %v472
        %v485 = vpack.c.b16 %v475, %v474
        %v486 = vpack.c.b16 %v477, %v476
        %v487 = vpack.c.b16 %v479, %v478
        %496 = vmatprep.subr.bf16.mxu0 0
        %497 = vmatpush1.bf16.msra.mxu0 %v480
        %498 = vmatprep.subr.bf16.mxu0 0
        %499 = vmatpush1.bf16.msra.mxu0 %v481
        %500 = vmatprep.subr.bf16.mxu0 0
        %501 = vmatpush1.bf16.msra.mxu0 %v482
        %502 = vmatprep.subr.bf16.mxu0 0
        %503 = vmatpush1.bf16.msra.mxu0 %v483
        %504 = vmatprep.subr.bf16.mxu0 0
        %505 = vmatpush1.bf16.msra.mxu0 %v484
        %506 = vmatprep.subr.bf16.mxu0 0
        %507 = vmatpush1.bf16.msra.mxu0 %v485
        %508 = vmatprep.subr.bf16.mxu0 0
        %509 = vmatpush1.bf16.msra.mxu0 %v486
        %510 = vmatprep.subr.bf16.mxu0 0
        %511 = vmatpush1.bf16.msra.mxu0 %v487
        %512 = vmatprep.subr.bf16.mxu0 0
        %513 = vmatpush1.bf16.msra.mxu0 0
        %514 = vmatprep.subr.bf16.mxu0 0
        %515 = vmatpush1.bf16.msra.mxu0 0
        %516 = vmatprep.subr.bf16.mxu0 0
        %517 = vmatpush1.bf16.msra.mxu0 0
        %518 = vmatprep.subr.bf16.mxu0 0
        %519 = vmatpush1.bf16.msra.mxu0 0
        %520 = vmatprep.subr.bf16.mxu0 0
        %521 = vmatpush1.bf16.msra.mxu0 0
        %522 = vmatprep.subr.bf16.mxu0 0
        %523 = vmatpush1.bf16.msra.mxu0 0
        %524 = vmatprep.subr.bf16.mxu0 0
        %525 = vmatpush1.bf16.msra.mxu0 0
        %526 = vmatprep.subr.bf16.mxu0 0
        %527 = vmatpush1.bf16.msra.mxu0 0
        %528 = vmatprep.mubr.bf16.mxu0 0
        %529 = vmatmul.mubr.bf16.gmra.mrb[0].mxu0 %v416
        %v530 = vpop.f32.mrb[0].mxu0
        %v531 = vadd.f32 %v350, %v530
        %v532 = vpop.f32.mrb[0].mxu0
        %v533 = vpop.f32.mrb[0].mxu0
        %v534 = vadd.f32 %v350, %v533
        %v535 = vpop.f32.mrb[0].mxu0
        %536 = vmatprep.mubr.bf16.mxu0 0
        %537 = vmatmul.mubr.bf16.gmra.mrb[0].mxu0 %v417
        %v538 = vpop.f32.mrb[0].mxu0
        %v539 = vadd.f32 %v350, %v538
        %v540 = vpop.f32.mrb[0].mxu0
        %v541 = vpop.f32.mrb[0].mxu0
        %v542 = vadd.f32 %v350, %v541
        %v543 = vpop.f32.mrb[0].mxu0
        %544 = vmatprep.mubr.bf16.mxu0 0
        %545 = vmatmul.mubr.bf16.gmra.mrb[0].mxu0 %v418
        %v546 = vpop.f32.mrb[0].mxu0
        %v547 = vadd.f32 %v350, %v546
        %v548 = vpop.f32.mrb[0].mxu0
        %v549 = vpop.f32.mrb[0].mxu0
        %v550 = vadd.f32 %v350, %v549
        %v551 = vpop.f32.mrb[0].mxu0
        %552 = vmatprep.mubr.bf16.mxu0 0
        %553 = vmatmul.mubr.bf16.gmra.mrb[0].mxu0 %v419
        %v554 = vpop.f32.mrb[0].mxu0
        %v555 = vadd.f32 %v350, %v554
        %v556 = vpop.f32.mrb[0].mxu0
        %v557 = vpop.f32.mrb[0].mxu0
        %v558 = vadd.f32 %v350, %v557
        %v559 = vpop.f32.mrb[0].mxu0
        %560 = vmatprep.mubr.bf16.mxu0 0
        %561 = vmatmul.mubr.bf16.gmra.mrb[0].mxu0 %v420
        %v562 = vpop.f32.mrb[0].mxu0
        %v563 = vadd.f32 %v350, %v562
        %v564 = vpop.f32.mrb[0].mxu0
        %v565 = vpop.f32.mrb[0].mxu0
        %v566 = vadd.f32 %v350, %v565
        %v567 = vpop.f32.mrb[0].mxu0
        %568 = vmatprep.mubr.bf16.mxu0 0
        %569 = vmatmul.mubr.bf16.gmra.mrb[0].mxu0 %v421
        %v570 = vpop.f32.mrb[0].mxu0
        %v571 = vadd.f32 %v350, %v570
        %v572 = vpop.f32.mrb[0].mxu0
        %v573 = vpop.f32.mrb[0].mxu0
        %v574 = vadd.f32 %v350, %v573
        %v575 = vpop.f32.mrb[0].mxu0
        %576 = vmatprep.mubr.bf16.mxu0 0
        %577 = vmatmul.mubr.bf16.gmra.mrb[0].mxu0 %v422
        %v578 = vpop.f32.mrb[0].mxu0
        %v579 = vadd.f32 %v350, %v578
        %v580 = vpop.f32.mrb[0].mxu0
        %v581 = vpop.f32.mrb[0].mxu0
        %v582 = vadd.f32 %v350, %v581
        %v583 = vpop.f32.mrb[0].mxu0
        %584 = vmatprep.mubr.bf16.mxu0 0
        %585 = vmatmul.mubr.bf16.gmra.mrb[0].mxu0 %v423
        %v586 = vpop.f32.mrb[0].mxu0
        %v587 = vadd.f32 %v350, %v586
        %v588 = vpop.f32.mrb[0].mxu0
        %v589 = vpop.f32.mrb[0].mxu0
        %v590 = vadd.f32 %v350, %v589
        %v591 = vpop.f32.mrb[0].mxu0
        %592 = vmatprep.mubr.bf16.mxu0 0
        %593 = vmatmul.mubr.bf16.gmra.mrb[0].mxu0 %v424
        %v594 = vpop.f32.mrb[0].mxu0
        %v595 = vadd.f32 %v350, %v594
        %v596 = vpop.f32.mrb[0].mxu0
        %v597 = vpop.f32.mrb[0].mxu0
        %v598 = vadd.f32 %v350, %v597
        %v599 = vpop.f32.mrb[0].mxu0
        %600 = vmatprep.mubr.bf16.mxu0 0
        %601 = vmatmul.mubr.bf16.gmra.mrb[0].mxu0 %v425
        %v602 = vpop.f32.mrb[0].mxu0
        %v603 = vadd.f32 %v350, %v602
        %v604 = vpop.f32.mrb[0].mxu0
        %v605 = vpop.f32.mrb[0].mxu0
        %v606 = vadd.f32 %v350, %v605
        %v607 = vpop.f32.mrb[0].mxu0
        %608 = vmatprep.mubr.bf16.mxu0 0
        %609 = vmatmul.mubr.bf16.gmra.mrb[0].mxu0 %v426
        %v610 = vpop.f32.mrb[0].mxu0
        %v611 = vadd.f32 %v350, %v610
        %v612 = vpop.f32.mrb[0].mxu0
        %v613 = vpop.f32.mrb[0].mxu0
        %v614 = vadd.f32 %v350, %v613
        %v615 = vpop.f32.mrb[0].mxu0
        %616 = vmatprep.mubr.bf16.mxu0 0
        %617 = vmatmul.mubr.bf16.gmra.mrb[0].mxu0 %v427
        %v618 = vpop.f32.mrb[0].mxu0
        %v619 = vadd.f32 %v350, %v618
        %v620 = vpop.f32.mrb[0].mxu0
        %v621 = vpop.f32.mrb[0].mxu0
        %v622 = vadd.f32 %v350, %v621
        %v623 = vpop.f32.mrb[0].mxu0
        %624 = vmatprep.mubr.bf16.mxu0 0
        %625 = vmatmul.mubr.bf16.gmra.mrb[0].mxu0 %v428
        %v626 = vpop.f32.mrb[0].mxu0
        %v627 = vadd.f32 %v350, %v626
        %v628 = vpop.f32.mrb[0].mxu0
        %v629 = vpop.f32.mrb[0].mxu0
        %v630 = vadd.f32 %v350, %v629
        %v631 = vpop.f32.mrb[0].mxu0
        %632 = vmatprep.mubr.bf16.mxu0 0
        %633 = vmatmul.mubr.bf16.gmra.mrb[0].mxu0 %v429
        %v634 = vpop.f32.mrb[0].mxu0
        %v635 = vadd.f32 %v350, %v634
        %v636 = vpop.f32.mrb[0].mxu0
        %v637 = vpop.f32.mrb[0].mxu0
        %v638 = vadd.f32 %v350, %v637
        %v639 = vpop.f32.mrb[0].mxu0
        %640 = vmatprep.mubr.bf16.mxu0 0
        %641 = vmatmul.mubr.bf16.gmra.mrb[0].mxu0 %v430
        %v642 = vpop.f32.mrb[0].mxu0
        %v643 = vadd.f32 %v350, %v642
        %v644 = vpop.f32.mrb[0].mxu0
        %v645 = vpop.f32.mrb[0].mxu0
        %v646 = vadd.f32 %v350, %v645
        %v647 = vpop.f32.mrb[0].mxu0
        %648 = vmatprep.mubr.bf16.mxu0 0
        %649 = vmatmul.mubr.bf16.gmra.mrb[0].mxu0 %v431
        %v650 = vpop.f32.mrb[0].mxu0
        %v651 = vadd.f32 %v350, %v650
        %v652 = vpop.f32.mrb[0].mxu0
        %v653 = vpop.f32.mrb[0].mxu0
        %v654 = vadd.f32 %v350, %v653
        %v655 = vpop.f32.mrb[0].mxu0
        %656 = vdwg.mxu0
        %v657 = vmax.f32 %v531, 0.0
        %v658 = vmax.f32 %v534, 0.0
        %v659 = vmax.f32 %v539, 0.0
        %v660 = vmax.f32 %v542, 0.0
        %v661 = vmax.f32 %v547, 0.0
        %v662 = vmax.f32 %v550, 0.0
        %v663 = vmax.f32 %v555, 0.0
        %v664 = vmax.f32 %v558, 0.0
        %v665 = vmax.f32 %v563, 0.0
        %v666 = vmax.f32 %v566, 0.0
        %v667 = vmax.f32 %v571, 0.0
        %v668 = vmax.f32 %v574, 0.0
        %v669 = vmax.f32 %v579, 0.0
        %v670 = vmax.f32 %v582, 0.0
        %v671 = vmax.f32 %v587, 0.0
        %v672 = vmax.f32 %v590, 0.0
        %v673 = vmax.f32 %v595, 0.0
        %v674 = vmax.f32 %v598, 0.0
        %v675 = vmax.f32 %v603, 0.0
        %v676 = vmax.f32 %v606, 0.0
        %v677 = vmax.f32 %v611, 0.0
        %v678 = vmax.f32 %v614, 0.0
        %v679 = vmax.f32 %v619, 0.0
        %v680 = vmax.f32 %v622, 0.0
        %v681 = vmax.f32 %v627, 0.0
        %v682 = vmax.f32 %v630, 0.0
        %v683 = vmax.f32 %v635, 0.0
        %v684 = vmax.f32 %v638, 0.0
        %v685 = vmax.f32 %v643, 0.0
        %v686 = vmax.f32 %v646, 0.0
        %v687 = vmax.f32 %v651, 0.0
        %v688 = vmax.f32 %v654, 0.0
        %s689 = ssub.s32 %s293, 1
        %p690 = scmp.gt.s32.totalorder %s689, 0
        %s691 = scalar_select %p690, %s689, 0
        %s692 = smul.u32 %s691, 2
        %s693 = smul.addr %s692, 4
        %s694 = scalar_lea.vmem %s290, %s693
        %v695 = vld [vmem:[%s694] sm:$0xf]
        %v696 = vld [vmem:[%s694 + $0x4] sm:$0xf]
        %s697 = sadd.s32 %s293, 16
        %p698 = scmp.lt.s32.totalorder %s697, 15
        %s699 = scalar_select %p698, %s697, 15
        %s700 = smul.u32 %s699, 2
        %s701 = smul.addr %s700, 4
        %s702 = scalar_lea.vmem %s290, %s701
        %v703 = vld [vmem:[%s702] sm:$0xf]
        %v704 = vld [vmem:[%s702 + $0x4] sm:$0xf]
        %v709 = vunpack.c.l.b16 %v695
        %v710 = vunpack.c.l.b16 %v696
        %v711 = vunpack.c.l.b16 %v703
        %v712 = vunpack.c.l.b16 %v704
        %v713 = vpack.c.b16 %v710, %v709
        %v714 = vpack.c.b16 %v712, %v711
        %717 = vmatprep.subr.bf16.mxu0 0
        %718 = vmatpush1.bf16.msra.mxu0 %v480
        %719 = vmatprep.subr.bf16.mxu0 0
        %720 = vmatpush1.bf16.msra.mxu0 %v481
        %721 = vmatprep.subr.bf16.mxu0 0
        %722 = vmatpush1.bf16.msra.mxu0 %v482
        %723 = vmatprep.subr.bf16.mxu0 0
        %724 = vmatpush1.bf16.msra.mxu0 %v483
        %725 = vmatprep.subr.bf16.mxu0 0
        %726 = vmatpush1.bf16.msra.mxu0 %v484
        %727 = vmatprep.subr.bf16.mxu0 0
        %728 = vmatpush1.bf16.msra.mxu0 %v485
        %729 = vmatprep.subr.bf16.mxu0 0
        %730 = vmatpush1.bf16.msra.mxu0 %v486
        %731 = vmatprep.subr.bf16.mxu0 0
        %732 = vmatpush1.bf16.msra.mxu0 %v487
        %733 = vmatprep.subr.bf16.mxu0 0
        %734 = vmatpush1.bf16.msra.mxu0 0
        %735 = vmatprep.subr.bf16.mxu0 0
        %736 = vmatpush1.bf16.msra.mxu0 0
        %737 = vmatprep.subr.bf16.mxu0 0
        %738 = vmatpush1.bf16.msra.mxu0 0
        %739 = vmatprep.subr.bf16.mxu0 0
        %740 = vmatpush1.bf16.msra.mxu0 0
        %741 = vmatprep.subr.bf16.mxu0 0
        %742 = vmatpush1.bf16.msra.mxu0 0
        %743 = vmatprep.subr.bf16.mxu0 0
        %744 = vmatpush1.bf16.msra.mxu0 0
        %745 = vmatprep.subr.bf16.mxu0 0
        %746 = vmatpush1.bf16.msra.mxu0 0
        %747 = vmatprep.subr.bf16.mxu0 0
        %748 = vmatpush1.bf16.msra.mxu0 0
        %749 = vmatprep.mubr.bf16.mxu0 0
        %750 = vmatmul.mubr.bf16.gmra.mrb[0].mxu0 %v713
        %v751 = vpop.f32.mrb[0].mxu0
        %v752 = vadd.f32 %v350, %v751
        %v753 = vpop.f32.mrb[0].mxu0
        %v754 = vpop.f32.mrb[0].mxu0
        %v755 = vadd.f32 %v350, %v754
        %v756 = vpop.f32.mrb[0].mxu0
        %757 = vmatprep.mubr.bf16.mxu0 0
        %758 = vmatmul.mubr.bf16.gmra.mrb[0].mxu0 %v714
        %v759 = vpop.f32.mrb[0].mxu0
        %v760 = vadd.f32 %v350, %v759
        %v761 = vpop.f32.mrb[0].mxu0
        %v762 = vpop.f32.mrb[0].mxu0
        %v763 = vadd.f32 %v350, %v762
        %v764 = vpop.f32.mrb[0].mxu0
        %765 = vdwg.mxu0
        %v766 = vmax.f32 %v752, 0.0
        %v767 = vmax.f32 %v755, 0.0
        %v768 = vmax.f32 %v760, 0.0
        %v769 = vmax.f32 %v763, 0.0
        %p770 = scmp.gt.s32.totalorder %s26, 0
        %s771 = scalar_select %p770, 1, 0
        %v772 = vstv %s771
        %vm773 = vcmp.eq.s32.totalorder %v772, 1
        %v774 = vsel %vm773, %v766, 0.0
        %v775 = vsel %vm773, %v767, 0.0
        %p776 = scmp.lt.s32.totalorder %s26, 0
        %s777 = scalar_select %p776, 1, 0
        %v778 = vstv %s777
        %vm779 = vcmp.eq.s32.totalorder %v778, 1
        %v780 = vsel %vm779, %v768, 0.0
        %v781 = vsel %vm779, %v769, 0.0
        %v782 = vlaneseq
        %v783 = vshrl.u32 %v782, 7
        %v784 = vadd.s32 %v783, 8
        %v785 = vrot.slane %v774, 7
        %v786 = vrot.slane %v657, 7
        %v787 = vrot.slane %v659, 7
        %v788 = vrot.slane %v661, 7
        %v789 = vrot.slane %v663, 7
        %v790 = vrot.slane %v665, 7
        %v791 = vrot.slane %v667, 7
        %v792 = vrot.slane %v669, 7
        %v793 = vrot.slane %v671, 7
        %v794 = vrot.slane %v673, 7
        %v795 = vrot.slane %v675, 7
        %v796 = vrot.slane %v677, 7
        %v797 = vrot.slane %v679, 7
        %v798 = vrot.slane %v681, 7
        %v799 = vrot.slane %v683, 7
        %v800 = vrot.slane %v685, 7
        %v801 = vrot.slane %v687, 7
        %v802 = vrot.slane %v780, 7
        %v803 = vrot.slane %v775, 7
        %v804 = vrot.slane %v658, 7
        %v805 = vrot.slane %v660, 7
        %v806 = vrot.slane %v662, 7
        %v807 = vrot.slane %v664, 7
        %v808 = vrot.slane %v666, 7
        %v809 = vrot.slane %v668, 7
        %v810 = vrot.slane %v670, 7
        %v811 = vrot.slane %v672, 7
        %v812 = vrot.slane %v674, 7
        %v813 = vrot.slane %v676, 7
        %v814 = vrot.slane %v678, 7
        %v815 = vrot.slane %v680, 7
        %v816 = vrot.slane %v682, 7
        %v817 = vrot.slane %v684, 7
        %v818 = vrot.slane %v686, 7
        %v819 = vrot.slane %v688, 7
        %v820 = vrot.slane %v781, 7
        %vm821 = vcmp.lt.s32.totalorder %v783, 1
        %v822 = vsel %vm821, %v785, %v803
        %v823 = vsel %vm821, %v786, %v804
        %v824 = vsel %vm821, %v787, %v805
        %v825 = vsel %vm821, %v788, %v806
        %v826 = vsel %vm821, %v789, %v807
        %v827 = vsel %vm821, %v790, %v808
        %v828 = vsel %vm821, %v791, %v809
        %v829 = vsel %vm821, %v792, %v810
        %v830 = vsel %vm821, %v793, %v811
        %v831 = vsel %vm821, %v794, %v812
        %v832 = vsel %vm821, %v795, %v813
        %v833 = vsel %vm821, %v796, %v814
        %v834 = vsel %vm821, %v797, %v815
        %v835 = vsel %vm821, %v798, %v816
        %v836 = vsel %vm821, %v799, %v817
        %v837 = vsel %vm821, %v800, %v818
        %v838 = vsel %vm821, %v801, %v819
        %v839 = vsel %vm821, %v802, %v820
        %v840 = vsel %vm821, %v803, %v785
        %v841 = vsel %vm821, %v804, %v786
        %v842 = vsel %vm821, %v805, %v787
        %v843 = vsel %vm821, %v806, %v788
        %v844 = vsel %vm821, %v807, %v789
        %v845 = vsel %vm821, %v808, %v790
        %v846 = vsel %vm821, %v809, %v791
        %v847 = vsel %vm821, %v810, %v792
        %v848 = vsel %vm821, %v811, %v793
        %v849 = vsel %vm821, %v812, %v794
        %v850 = vsel %vm821, %v813, %v795
        %v851 = vsel %vm821, %v814, %v796
        %v852 = vsel %vm821, %v815, %v797
        %v853 = vsel %vm821, %v816, %v798
        %v854 = vsel %vm821, %v817, %v799
        %v855 = vsel %vm821, %v818, %v800
        %v856 = vsel %vm821, %v819, %v801
        %v857 = vsel %vm821, %v820, %v802
        %vm858 = vcmp.ge.s32.totalorder %v783, 1
        %vm859 = vcmp.ge.s32.totalorder %v784, 1
        %v860 = vsel %vm858, 1, 0
        %v861 = vsel %vm859, 1, 0
        %vm862 = vcmp.eq.s32.totalorder %v860, 1
        %vm863 = vcmp.eq.s32.totalorder %v861, 1
        %v864 = vsel %vm862, %v840, 0.0
        %v865 = vsel %vm863, %v822, 0.0
        %v866 = vsel %vm862, %v841, 0.0
        %v867 = vsel %vm863, %v823, 0.0
        %v868 = vsel %vm862, %v842, 0.0
        %v869 = vsel %vm863, %v824, 0.0
        %v870 = vsel %vm862, %v843, 0.0
        %v871 = vsel %vm863, %v825, 0.0
        %v872 = vsel %vm862, %v844, 0.0
        %v873 = vsel %vm863, %v826, 0.0
        %v874 = vsel %vm862, %v845, 0.0
        %v875 = vsel %vm863, %v827, 0.0
        %v876 = vsel %vm862, %v846, 0.0
        %v877 = vsel %vm863, %v828, 0.0
        %v878 = vsel %vm862, %v847, 0.0
        %v879 = vsel %vm863, %v829, 0.0
        %v880 = vsel %vm862, %v848, 0.0
        %v881 = vsel %vm863, %v830, 0.0
        %v882 = vsel %vm862, %v849, 0.0
        %v883 = vsel %vm863, %v831, 0.0
        %v884 = vsel %vm862, %v850, 0.0
        %v885 = vsel %vm863, %v832, 0.0
        %v886 = vsel %vm862, %v851, 0.0
        %v887 = vsel %vm863, %v833, 0.0
        %v888 = vsel %vm862, %v852, 0.0
        %v889 = vsel %vm863, %v834, 0.0
        %v890 = vsel %vm862, %v853, 0.0
        %v891 = vsel %vm863, %v835, 0.0
        %v892 = vsel %vm862, %v854, 0.0
        %v893 = vsel %vm863, %v836, 0.0
        %v894 = vsel %vm862, %v855, 0.0
        %v895 = vsel %vm863, %v837, 0.0
        %v896 = vsel %vm862, %v856, 0.0
        %v897 = vsel %vm863, %v838, 0.0
        %v898 = vsel %vm862, %v857, 0.0
        %v899 = vsel %vm863, %v839, 0.0
        %v900 = vpack.c.bf16 %v865, %v864
        %v901 = vpack.c.bf16 %v867, %v866
        %v902 = vpack.c.bf16 %v869, %v868
        %v903 = vpack.c.bf16 %v871, %v870
        %v904 = vpack.c.bf16 %v873, %v872
        %v905 = vpack.c.bf16 %v875, %v874
        %v906 = vpack.c.bf16 %v877, %v876
        %v907 = vpack.c.bf16 %v879, %v878
        %v908 = vpack.c.bf16 %v881, %v880
        %v909 = vpack.c.bf16 %v883, %v882
        %v910 = vpack.c.bf16 %v885, %v884
        %v911 = vpack.c.bf16 %v887, %v886
        %v912 = vpack.c.bf16 %v889, %v888
        %v913 = vpack.c.bf16 %v891, %v890
        %v914 = vpack.c.bf16 %v893, %v892
        %v915 = vpack.c.bf16 %v895, %v894
        %v916 = vpack.c.bf16 %v897, %v896
        %v917 = vpack.c.bf16 %v899, %v898
        %v918 = vpack.c.bf16 %v775, %v774
        %v919 = vpack.c.bf16 %v658, %v657
        %v920 = vpack.c.bf16 %v660, %v659
        %v921 = vpack.c.bf16 %v662, %v661
        %v922 = vpack.c.bf16 %v664, %v663
        %v923 = vpack.c.bf16 %v666, %v665
        %v924 = vpack.c.bf16 %v668, %v667
        %v925 = vpack.c.bf16 %v670, %v669
        %v926 = vpack.c.bf16 %v672, %v671
        %v927 = vpack.c.bf16 %v674, %v673
        %v928 = vpack.c.bf16 %v676, %v675
        %v929 = vpack.c.bf16 %v678, %v677
        %v930 = vpack.c.bf16 %v680, %v679
        %v931 = vpack.c.bf16 %v682, %v681
        %v932 = vpack.c.bf16 %v684, %v683
        %v933 = vpack.c.bf16 %v686, %v685
        %v934 = vpack.c.bf16 %v688, %v687
        %v935 = vpack.c.bf16 %v781, %v780
        %v936 = vrot.slane %v774, 1
        %v937 = vrot.slane %v657, 1
        %v938 = vrot.slane %v659, 1
        %v939 = vrot.slane %v661, 1
        %v940 = vrot.slane %v663, 1
        %v941 = vrot.slane %v665, 1
        %v942 = vrot.slane %v667, 1
        %v943 = vrot.slane %v669, 1
        %v944 = vrot.slane %v671, 1
        %v945 = vrot.slane %v673, 1
        %v946 = vrot.slane %v675, 1
        %v947 = vrot.slane %v677, 1
        %v948 = vrot.slane %v679, 1
        %v949 = vrot.slane %v681, 1
        %v950 = vrot.slane %v683, 1
        %v951 = vrot.slane %v685, 1
        %v952 = vrot.slane %v687, 1
        %v953 = vrot.slane %v780, 1
        %v954 = vrot.slane %v775, 1
        %v955 = vrot.slane %v658, 1
        %v956 = vrot.slane %v660, 1
        %v957 = vrot.slane %v662, 1
        %v958 = vrot.slane %v664, 1
        %v959 = vrot.slane %v666, 1
        %v960 = vrot.slane %v668, 1
        %v961 = vrot.slane %v670, 1
        %v962 = vrot.slane %v672, 1
        %v963 = vrot.slane %v674, 1
        %v964 = vrot.slane %v676, 1
        %v965 = vrot.slane %v678, 1
        %v966 = vrot.slane %v680, 1
        %v967 = vrot.slane %v682, 1
        %v968 = vrot.slane %v684, 1
        %v969 = vrot.slane %v686, 1
        %v970 = vrot.slane %v688, 1
        %v971 = vrot.slane %v781, 1
        %vm972 = vcmp.lt.s32.totalorder %v783, 7
        %v973 = vsel %vm972, %v936, %v954
        %v974 = vsel %vm972, %v937, %v955
        %v975 = vsel %vm972, %v938, %v956
        %v976 = vsel %vm972, %v939, %v957
        %v977 = vsel %vm972, %v940, %v958
        %v978 = vsel %vm972, %v941, %v959
        %v979 = vsel %vm972, %v942, %v960
        %v980 = vsel %vm972, %v943, %v961
        %v981 = vsel %vm972, %v944, %v962
        %v982 = vsel %vm972, %v945, %v963
        %v983 = vsel %vm972, %v946, %v964
        %v984 = vsel %vm972, %v947, %v965
        %v985 = vsel %vm972, %v948, %v966
        %v986 = vsel %vm972, %v949, %v967
        %v987 = vsel %vm972, %v950, %v968
        %v988 = vsel %vm972, %v951, %v969
        %v989 = vsel %vm972, %v952, %v970
        %v990 = vsel %vm972, %v953, %v971
        %v991 = vsel %vm972, %v954, %v936
        %v992 = vsel %vm972, %v955, %v937
        %v993 = vsel %vm972, %v956, %v938
        %v994 = vsel %vm972, %v957, %v939
        %v995 = vsel %vm972, %v958, %v940
        %v996 = vsel %vm972, %v959, %v941
        %v997 = vsel %vm972, %v960, %v942
        %v998 = vsel %vm972, %v961, %v943
        %v999 = vsel %vm972, %v962, %v944
        %v1000 = vsel %vm972, %v963, %v945
        %v1001 = vsel %vm972, %v964, %v946
        %v1002 = vsel %vm972, %v965, %v947
        %v1003 = vsel %vm972, %v966, %v948
        %v1004 = vsel %vm972, %v967, %v949
        %v1005 = vsel %vm972, %v968, %v950
        %v1006 = vsel %vm972, %v969, %v951
        %v1007 = vsel %vm972, %v970, %v952
        %v1008 = vsel %vm972, %v971, %v953
        %vm1009 = vcmp.lt.s32.totalorder %v783, 15
        %vm1010 = vcmp.lt.s32.totalorder %v784, 15
        %v1011 = vsel %vm1009, 1, 0
        %v1012 = vsel %vm1010, 1, 0
        %vm1013 = vcmp.eq.s32.totalorder %v1011, 1
        %vm1014 = vcmp.eq.s32.totalorder %v1012, 1
        %v1015 = vsel %vm1013, %v973, 0.0
        %v1016 = vsel %vm1014, %v991, 0.0
        %v1017 = vsel %vm1013, %v974, 0.0
        %v1018 = vsel %vm1014, %v992, 0.0
        %v1019 = vsel %vm1013, %v975, 0.0
        %v1020 = vsel %vm1014, %v993, 0.0
        %v1021 = vsel %vm1013, %v976, 0.0
        %v1022 = vsel %vm1014, %v994, 0.0
        %v1023 = vsel %vm1013, %v977, 0.0
        %v1024 = vsel %vm1014, %v995, 0.0
        %v1025 = vsel %vm1013, %v978, 0.0
        %v1026 = vsel %vm1014, %v996, 0.0
        %v1027 = vsel %vm1013, %v979, 0.0
        %v1028 = vsel %vm1014, %v997, 0.0
        %v1029 = vsel %vm1013, %v980, 0.0
        %v1030 = vsel %vm1014, %v998, 0.0
        %v1031 = vsel %vm1013, %v981, 0.0
        %v1032 = vsel %vm1014, %v999, 0.0
        %v1033 = vsel %vm1013, %v982, 0.0
        %v1034 = vsel %vm1014, %v1000, 0.0
        %v1035 = vsel %vm1013, %v983, 0.0
        %v1036 = vsel %vm1014, %v1001, 0.0
        %v1037 = vsel %vm1013, %v984, 0.0
        %v1038 = vsel %vm1014, %v1002, 0.0
        %v1039 = vsel %vm1013, %v985, 0.0
        %v1040 = vsel %vm1014, %v1003, 0.0
        %v1041 = vsel %vm1013, %v986, 0.0
        %v1042 = vsel %vm1014, %v1004, 0.0
        %v1043 = vsel %vm1013, %v987, 0.0
        %v1044 = vsel %vm1014, %v1005, 0.0
        %v1045 = vsel %vm1013, %v988, 0.0
        %v1046 = vsel %vm1014, %v1006, 0.0
        %v1047 = vsel %vm1013, %v989, 0.0
        %v1048 = vsel %vm1014, %v1007, 0.0
        %v1049 = vsel %vm1013, %v990, 0.0
        %v1050 = vsel %vm1014, %v1008, 0.0
        %v1051 = vpack.c.bf16 %v1016, %v1015
        %v1052 = vpack.c.bf16 %v1018, %v1017
        %v1053 = vpack.c.bf16 %v1020, %v1019
        %v1054 = vpack.c.bf16 %v1022, %v1021
        %v1055 = vpack.c.bf16 %v1024, %v1023
        %v1056 = vpack.c.bf16 %v1026, %v1025
        %v1057 = vpack.c.bf16 %v1028, %v1027
        %v1058 = vpack.c.bf16 %v1030, %v1029
        %v1059 = vpack.c.bf16 %v1032, %v1031
        %v1060 = vpack.c.bf16 %v1034, %v1033
        %v1061 = vpack.c.bf16 %v1036, %v1035
        %v1062 = vpack.c.bf16 %v1038, %v1037
        %v1063 = vpack.c.bf16 %v1040, %v1039
        %v1064 = vpack.c.bf16 %v1042, %v1041
        %v1065 = vpack.c.bf16 %v1044, %v1043
        %v1066 = vpack.c.bf16 %v1046, %v1045
        %v1067 = vpack.c.bf16 %v1048, %v1047
        %v1068 = vpack.c.bf16 %v1050, %v1049
        %v1069 = vld [vmem:[%s3] sm:$0xf]
        %v1070 = vld [vmem:[%s3 + $0x4] sm:$0xf]
        %v1071 = vld [vmem:[%s3 + $0x8] sm:$0xf]
        %v1072 = vld [vmem:[%s3 + $0xc] sm:$0xf]
        %v1073 = vld [vmem:[%s3 + $0x10] sm:$0xf]
        %v1074 = vld [vmem:[%s3 + $0x14] sm:$0xf]
        %v1075 = vld [vmem:[%s3 + $0x18] sm:$0xf]
        %v1076 = vld [vmem:[%s3 + $0x1c] sm:$0xf]
        %v1081 = vunpack.c.l.b16 %v1073
        %v1082 = vunpack.c.l.b16 %v1074
        %v1083 = vunpack.c.l.b16 %v1075
        %v1084 = vunpack.c.l.b16 %v1076
        %v1085 = vpack.c.b16 %v1082, %v1081
        %v1086 = vpack.c.b16 %v1084, %v1083
        %vm1089 = vcmask 261120
        %v1091 = vsel %vm1089, %v901, 0
        %v1094 = vsel %vm1089, %v902, 0
        %v1097 = vsel %vm1089, %v903, 0
        %v1100 = vsel %vm1089, %v904, 0
        %v1103 = vsel %vm1089, %v905, 0
        %v1106 = vsel %vm1089, %v906, 0
        %v1109 = vsel %vm1089, %v907, 0
        %v1112 = vsel %vm1089, %v908, 0
        %v1115 = vsel %vm1089, %v909, 0
        %v1118 = vsel %vm1089, %v910, 0
        %v1121 = vsel %vm1089, %v911, 0
        %v1124 = vsel %vm1089, %v912, 0
        %v1127 = vsel %vm1089, %v913, 0
        %v1130 = vsel %vm1089, %v914, 0
        %v1133 = vsel %vm1089, %v915, 0
        %v1136 = vsel %vm1089, %v916, 0
        %1138 = vmatprep.subr.bf16.mxu0 0
        %1139 = vmatpush1.bf16.msra.mxu0 %v1085
        %1140 = vmatprep.subr.bf16.mxu0 0
        %1141 = vmatpush1.bf16.msra.mxu0 %v1086
        %1142 = vmatprep.subr.bf16.mxu0 0
        %1143 = vmatpush1.bf16.msra.mxu0 0
        %1144 = vmatprep.subr.bf16.mxu0 0
        %1145 = vmatpush1.bf16.msra.mxu0 0
        %1146 = vmatprep.subr.bf16.mxu0 0
        %1147 = vmatpush1.bf16.msra.mxu0 0
        %1148 = vmatprep.subr.bf16.mxu0 0
        %1149 = vmatpush1.bf16.msra.mxu0 0
        %1150 = vmatprep.subr.bf16.mxu0 0
        %1151 = vmatpush1.bf16.msra.mxu0 0
        %1152 = vmatprep.subr.bf16.mxu0 0
        %1153 = vmatpush1.bf16.msra.mxu0 0
        %1154 = vmatprep.subr.bf16.mxu0 0
        %1155 = vmatpush1.bf16.msra.mxu0 0
        %1156 = vmatprep.subr.bf16.mxu0 0
        %1157 = vmatpush1.bf16.msra.mxu0 0
        %1158 = vmatprep.subr.bf16.mxu0 0
        %1159 = vmatpush1.bf16.msra.mxu0 0
        %1160 = vmatprep.subr.bf16.mxu0 0
        %1161 = vmatpush1.bf16.msra.mxu0 0
        %1162 = vmatprep.subr.bf16.mxu0 0
        %1163 = vmatpush1.bf16.msra.mxu0 0
        %1164 = vmatprep.subr.bf16.mxu0 0
        %1165 = vmatpush1.bf16.msra.mxu0 0
        %1166 = vmatprep.subr.bf16.mxu0 0
        %1167 = vmatpush1.bf16.msra.mxu0 0
        %1168 = vmatprep.subr.bf16.mxu0 0
        %1169 = vmatpush1.bf16.msra.mxu0 0
        %1170 = vmatprep.mubr.bf16.mxu0 0
        %1171 = vmatmul.mubr.bf16.gmra.mrb[0].mxu0 %v1091
        %v1172 = vpop.f32.mrb[0].mxu0
        %v1173 = vadd.f32 0.0, %v1172
        %v1174 = vpop.f32.mrb[0].mxu0
        %v1175 = vpop.f32.mrb[0].mxu0
        %v1176 = vadd.f32 0.0, %v1175
        %v1177 = vpop.f32.mrb[0].mxu0
        %1178 = vmatprep.mubr.bf16.mxu0 0
        %1179 = vmatmul.mubr.bf16.gmra.mrb[0].mxu0 %v1094
        %v1180 = vpop.f32.mrb[0].mxu0
        %v1181 = vadd.f32 0.0, %v1180
        %v1182 = vpop.f32.mrb[0].mxu0
        %v1183 = vpop.f32.mrb[0].mxu0
        %v1184 = vadd.f32 0.0, %v1183
        %v1185 = vpop.f32.mrb[0].mxu0
        %1186 = vmatprep.mubr.bf16.mxu0 0
        %1187 = vmatmul.mubr.bf16.gmra.mrb[0].mxu0 %v1097
        %v1188 = vpop.f32.mrb[0].mxu0
        %v1189 = vadd.f32 0.0, %v1188
        %v1190 = vpop.f32.mrb[0].mxu0
        %v1191 = vpop.f32.mrb[0].mxu0
        %v1192 = vadd.f32 0.0, %v1191
        %v1193 = vpop.f32.mrb[0].mxu0
        %1194 = vmatprep.mubr.bf16.mxu0 0
        %1195 = vmatmul.mubr.bf16.gmra.mrb[0].mxu0 %v1100
        %v1196 = vpop.f32.mrb[0].mxu0
        %v1197 = vadd.f32 0.0, %v1196
        %v1198 = vpop.f32.mrb[0].mxu0
        %v1199 = vpop.f32.mrb[0].mxu0
        %v1200 = vadd.f32 0.0, %v1199
        %v1201 = vpop.f32.mrb[0].mxu0
        %1202 = vmatprep.mubr.bf16.mxu0 0
        %1203 = vmatmul.mubr.bf16.gmra.mrb[0].mxu0 %v1103
        %v1204 = vpop.f32.mrb[0].mxu0
        %v1205 = vadd.f32 0.0, %v1204
        %v1206 = vpop.f32.mrb[0].mxu0
        %v1207 = vpop.f32.mrb[0].mxu0
        %v1208 = vadd.f32 0.0, %v1207
        %v1209 = vpop.f32.mrb[0].mxu0
        %1210 = vmatprep.mubr.bf16.mxu0 0
        %1211 = vmatmul.mubr.bf16.gmra.mrb[0].mxu0 %v1106
        %v1212 = vpop.f32.mrb[0].mxu0
        %v1213 = vadd.f32 0.0, %v1212
        %v1214 = vpop.f32.mrb[0].mxu0
        %v1215 = vpop.f32.mrb[0].mxu0
        %v1216 = vadd.f32 0.0, %v1215
        %v1217 = vpop.f32.mrb[0].mxu0
        %1218 = vmatprep.mubr.bf16.mxu0 0
        %1219 = vmatmul.mubr.bf16.gmra.mrb[0].mxu0 %v1109
        %v1220 = vpop.f32.mrb[0].mxu0
        %v1221 = vadd.f32 0.0, %v1220
        %v1222 = vpop.f32.mrb[0].mxu0
        %v1223 = vpop.f32.mrb[0].mxu0
        %v1224 = vadd.f32 0.0, %v1223
        %v1225 = vpop.f32.mrb[0].mxu0
        %1226 = vmatprep.mubr.bf16.mxu0 0
        %1227 = vmatmul.mubr.bf16.gmra.mrb[0].mxu0 %v1112
        %v1228 = vpop.f32.mrb[0].mxu0
        %v1229 = vadd.f32 0.0, %v1228
        %v1230 = vpop.f32.mrb[0].mxu0
        %v1231 = vpop.f32.mrb[0].mxu0
        %v1232 = vadd.f32 0.0, %v1231
        %v1233 = vpop.f32.mrb[0].mxu0
        %1234 = vmatprep.mubr.bf16.mxu0 0
        %1235 = vmatmul.mubr.bf16.gmra.mrb[0].mxu0 %v1115
        %v1236 = vpop.f32.mrb[0].mxu0
        %v1237 = vadd.f32 0.0, %v1236
        %v1238 = vpop.f32.mrb[0].mxu0
        %v1239 = vpop.f32.mrb[0].mxu0
        %v1240 = vadd.f32 0.0, %v1239
        %v1241 = vpop.f32.mrb[0].mxu0
        %1242 = vmatprep.mubr.bf16.mxu0 0
        %1243 = vmatmul.mubr.bf16.gmra.mrb[0].mxu0 %v1118
        %v1244 = vpop.f32.mrb[0].mxu0
        %v1245 = vadd.f32 0.0, %v1244
        %v1246 = vpop.f32.mrb[0].mxu0
        %v1247 = vpop.f32.mrb[0].mxu0
        %v1248 = vadd.f32 0.0, %v1247
        %v1249 = vpop.f32.mrb[0].mxu0
        %1250 = vmatprep.mubr.bf16.mxu0 0
        %1251 = vmatmul.mubr.bf16.gmra.mrb[0].mxu0 %v1121
        %v1252 = vpop.f32.mrb[0].mxu0
        %v1253 = vadd.f32 0.0, %v1252
        %v1254 = vpop.f32.mrb[0].mxu0
        %v1255 = vpop.f32.mrb[0].mxu0
        %v1256 = vadd.f32 0.0, %v1255
        %v1257 = vpop.f32.mrb[0].mxu0
        %1258 = vmatprep.mubr.bf16.mxu0 0
        %1259 = vmatmul.mubr.bf16.gmra.mrb[0].mxu0 %v1124
        %v1260 = vpop.f32.mrb[0].mxu0
        %v1261 = vadd.f32 0.0, %v1260
        %v1262 = vpop.f32.mrb[0].mxu0
        %v1263 = vpop.f32.mrb[0].mxu0
        %v1264 = vadd.f32 0.0, %v1263
        %v1265 = vpop.f32.mrb[0].mxu0
        %1266 = vmatprep.mubr.bf16.mxu0 0
        %1267 = vmatmul.mubr.bf16.gmra.mrb[0].mxu0 %v1127
        %v1268 = vpop.f32.mrb[0].mxu0
        %v1269 = vadd.f32 0.0, %v1268
        %v1270 = vpop.f32.mrb[0].mxu0
        %v1271 = vpop.f32.mrb[0].mxu0
        %v1272 = vadd.f32 0.0, %v1271
        %v1273 = vpop.f32.mrb[0].mxu0
        %1274 = vmatprep.mubr.bf16.mxu0 0
        %1275 = vmatmul.mubr.bf16.gmra.mrb[0].mxu0 %v1130
        %v1276 = vpop.f32.mrb[0].mxu0
        %v1277 = vadd.f32 0.0, %v1276
        %v1278 = vpop.f32.mrb[0].mxu0
        %v1279 = vpop.f32.mrb[0].mxu0
        %v1280 = vadd.f32 0.0, %v1279
        %v1281 = vpop.f32.mrb[0].mxu0
        %1282 = vmatprep.mubr.bf16.mxu0 0
        %1283 = vmatmul.mubr.bf16.gmra.mrb[0].mxu0 %v1133
        %v1284 = vpop.f32.mrb[0].mxu0
        %v1285 = vadd.f32 0.0, %v1284
        %v1286 = vpop.f32.mrb[0].mxu0
        %v1287 = vpop.f32.mrb[0].mxu0
        %v1288 = vadd.f32 0.0, %v1287
        %v1289 = vpop.f32.mrb[0].mxu0
        %1290 = vmatprep.mubr.bf16.mxu0 0
        %1291 = vmatmul.mubr.bf16.gmra.mrb[0].mxu0 %v1136
        %v1292 = vpop.f32.mrb[0].mxu0
        %v1293 = vadd.f32 0.0, %v1292
        %v1294 = vpop.f32.mrb[0].mxu0
        %v1295 = vpop.f32.mrb[0].mxu0
        %v1296 = vadd.f32 0.0, %v1295
        %v1297 = vpop.f32.mrb[0].mxu0
        %1298 = vdwg.mxu0
        %v1303 = vunpack.c.l.b16 %v1069
        %v1304 = vunpack.c.l.b16 %v1070
        %v1305 = vunpack.c.l.b16 %v1071
        %v1306 = vunpack.c.l.b16 %v1072
        %v1307 = vpack.c.b16 %v1304, %v1303
        %v1308 = vpack.c.b16 %v1306, %v1305
        %v1312 = vsel %vm1089, %v900, 0
        %1314 = vmatprep.subr.bf16.mxu0 0
        %1315 = vmatpush1.bf16.msra.mxu0 %v1307
        %1316 = vmatprep.subr.bf16.mxu0 0
        %1317 = vmatpush1.bf16.msra.mxu0 %v1308
        %1318 = vmatprep.subr.bf16.mxu0 0
        %1319 = vmatpush1.bf16.msra.mxu0 0
        %1320 = vmatprep.subr.bf16.mxu0 0
        %1321 = vmatpush1.bf16.msra.mxu0 0
        %1322 = vmatprep.subr.bf16.mxu0 0
        %1323 = vmatpush1.bf16.msra.mxu0 0
        %1324 = vmatprep.subr.bf16.mxu0 0
        %1325 = vmatpush1.bf16.msra.mxu0 0
        %1326 = vmatprep.subr.bf16.mxu0 0
        %1327 = vmatpush1.bf16.msra.mxu0 0
        %1328 = vmatprep.subr.bf16.mxu0 0
        %1329 = vmatpush1.bf16.msra.mxu0 0
        %1330 = vmatprep.subr.bf16.mxu0 0
        %1331 = vmatpush1.bf16.msra.mxu0 0
        %1332 = vmatprep.subr.bf16.mxu0 0
        %1333 = vmatpush1.bf16.msra.mxu0 0
        %1334 = vmatprep.subr.bf16.mxu0 0
        %1335 = vmatpush1.bf16.msra.mxu0 0
        %1336 = vmatprep.subr.bf16.mxu0 0
        %1337 = vmatpush1.bf16.msra.mxu0 0
        %1338 = vmatprep.subr.bf16.mxu0 0
        %1339 = vmatpush1.bf16.msra.mxu0 0
        %1340 = vmatprep.subr.bf16.mxu0 0
        %1341 = vmatpush1.bf16.msra.mxu0 0
        %1342 = vmatprep.subr.bf16.mxu0 0
        %1343 = vmatpush1.bf16.msra.mxu0 0
        %1344 = vmatprep.subr.bf16.mxu0 0
        %1345 = vmatpush1.bf16.msra.mxu0 0
        %1346 = vmatprep.mubr.bf16.mxu0 0
        %1347 = vmatmul.mubr.bf16.gmra.mrb[0].mxu0 %v1312
        %v1348 = vpop.f32.mrb[0].mxu0
        %v1349 = vadd.f32 %v1173, %v1348
        %v1350 = vpop.f32.mrb[0].mxu0
        %v1351 = vpop.f32.mrb[0].mxu0
        %v1352 = vadd.f32 %v1176, %v1351
        %v1353 = vpop.f32.mrb[0].mxu0
        %1354 = vmatprep.mubr.bf16.mxu0 0
        %1355 = vmatmul.mubr.bf16.gmra.mrb[0].mxu0 %v1091
        %v1356 = vpop.f32.mrb[0].mxu0
        %v1357 = vadd.f32 %v1181, %v1356
        %v1358 = vpop.f32.mrb[0].mxu0
        %v1359 = vpop.f32.mrb[0].mxu0
        %v1360 = vadd.f32 %v1184, %v1359
        %v1361 = vpop.f32.mrb[0].mxu0
        %1362 = vmatprep.mubr.bf16.mxu0 0
        %1363 = vmatmul.mubr.bf16.gmra.mrb[0].mxu0 %v1094
        %v1364 = vpop.f32.mrb[0].mxu0
        %v1365 = vadd.f32 %v1189, %v1364
        %v1366 = vpop.f32.mrb[0].mxu0
        %v1367 = vpop.f32.mrb[0].mxu0
        %v1368 = vadd.f32 %v1192, %v1367
        %v1369 = vpop.f32.mrb[0].mxu0
        %1370 = vmatprep.mubr.bf16.mxu0 0
        %1371 = vmatmul.mubr.bf16.gmra.mrb[0].mxu0 %v1097
        %v1372 = vpop.f32.mrb[0].mxu0
        %v1373 = vadd.f32 %v1197, %v1372
        %v1374 = vpop.f32.mrb[0].mxu0
        %v1375 = vpop.f32.mrb[0].mxu0
        %v1376 = vadd.f32 %v1200, %v1375
        %v1377 = vpop.f32.mrb[0].mxu0
        %1378 = vmatprep.mubr.bf16.mxu0 0
        %1379 = vmatmul.mubr.bf16.gmra.mrb[0].mxu0 %v1100
        %v1380 = vpop.f32.mrb[0].mxu0
        %v1381 = vadd.f32 %v1205, %v1380
        %v1382 = vpop.f32.mrb[0].mxu0
        %v1383 = vpop.f32.mrb[0].mxu0
        %v1384 = vadd.f32 %v1208, %v1383
        %v1385 = vpop.f32.mrb[0].mxu0
        %1386 = vmatprep.mubr.bf16.mxu0 0
        %1387 = vmatmul.mubr.bf16.gmra.mrb[0].mxu0 %v1103
        %v1388 = vpop.f32.mrb[0].mxu0
        %v1389 = vadd.f32 %v1213, %v1388
        %v1390 = vpop.f32.mrb[0].mxu0
        %v1391 = vpop.f32.mrb[0].mxu0
        %v1392 = vadd.f32 %v1216, %v1391
        %v1393 = vpop.f32.mrb[0].mxu0
        %1394 = vmatprep.mubr.bf16.mxu0 0
        %1395 = vmatmul.mubr.bf16.gmra.mrb[0].mxu0 %v1106
        %v1396 = vpop.f32.mrb[0].mxu0
        %v1397 = vadd.f32 %v1221, %v1396
        %v1398 = vpop.f32.mrb[0].mxu0
        %v1399 = vpop.f32.mrb[0].mxu0
        %v1400 = vadd.f32 %v1224, %v1399
        %v1401 = vpop.f32.mrb[0].mxu0
        %1402 = vmatprep.mubr.bf16.mxu0 0
        %1403 = vmatmul.mubr.bf16.gmra.mrb[0].mxu0 %v1109
        %v1404 = vpop.f32.mrb[0].mxu0
        %v1405 = vadd.f32 %v1229, %v1404
        %v1406 = vpop.f32.mrb[0].mxu0
        %v1407 = vpop.f32.mrb[0].mxu0
        %v1408 = vadd.f32 %v1232, %v1407
        %v1409 = vpop.f32.mrb[0].mxu0
        %1410 = vmatprep.mubr.bf16.mxu0 0
        %1411 = vmatmul.mubr.bf16.gmra.mrb[0].mxu0 %v1112
        %v1412 = vpop.f32.mrb[0].mxu0
        %v1413 = vadd.f32 %v1237, %v1412
        %v1414 = vpop.f32.mrb[0].mxu0
        %v1415 = vpop.f32.mrb[0].mxu0
        %v1416 = vadd.f32 %v1240, %v1415
        %v1417 = vpop.f32.mrb[0].mxu0
        %1418 = vmatprep.mubr.bf16.mxu0 0
        %1419 = vmatmul.mubr.bf16.gmra.mrb[0].mxu0 %v1115
        %v1420 = vpop.f32.mrb[0].mxu0
        %v1421 = vadd.f32 %v1245, %v1420
        %v1422 = vpop.f32.mrb[0].mxu0
        %v1423 = vpop.f32.mrb[0].mxu0
        %v1424 = vadd.f32 %v1248, %v1423
        %v1425 = vpop.f32.mrb[0].mxu0
        %1426 = vmatprep.mubr.bf16.mxu0 0
        %1427 = vmatmul.mubr.bf16.gmra.mrb[0].mxu0 %v1118
        %v1428 = vpop.f32.mrb[0].mxu0
        %v1429 = vadd.f32 %v1253, %v1428
        %v1430 = vpop.f32.mrb[0].mxu0
        %v1431 = vpop.f32.mrb[0].mxu0
        %v1432 = vadd.f32 %v1256, %v1431
        %v1433 = vpop.f32.mrb[0].mxu0
        %1434 = vmatprep.mubr.bf16.mxu0 0
        %1435 = vmatmul.mubr.bf16.gmra.mrb[0].mxu0 %v1121
        %v1436 = vpop.f32.mrb[0].mxu0
        %v1437 = vadd.f32 %v1261, %v1436
        %v1438 = vpop.f32.mrb[0].mxu0
        %v1439 = vpop.f32.mrb[0].mxu0
        %v1440 = vadd.f32 %v1264, %v1439
        %v1441 = vpop.f32.mrb[0].mxu0
        %1442 = vmatprep.mubr.bf16.mxu0 0
        %1443 = vmatmul.mubr.bf16.gmra.mrb[0].mxu0 %v1124
        %v1444 = vpop.f32.mrb[0].mxu0
        %v1445 = vadd.f32 %v1269, %v1444
        %v1446 = vpop.f32.mrb[0].mxu0
        %v1447 = vpop.f32.mrb[0].mxu0
        %v1448 = vadd.f32 %v1272, %v1447
        %v1449 = vpop.f32.mrb[0].mxu0
        %1450 = vmatprep.mubr.bf16.mxu0 0
        %1451 = vmatmul.mubr.bf16.gmra.mrb[0].mxu0 %v1127
        %v1452 = vpop.f32.mrb[0].mxu0
        %v1453 = vadd.f32 %v1277, %v1452
        %v1454 = vpop.f32.mrb[0].mxu0
        %v1455 = vpop.f32.mrb[0].mxu0
        %v1456 = vadd.f32 %v1280, %v1455
        %v1457 = vpop.f32.mrb[0].mxu0
        %1458 = vmatprep.mubr.bf16.mxu0 0
        %1459 = vmatmul.mubr.bf16.gmra.mrb[0].mxu0 %v1130
        %v1460 = vpop.f32.mrb[0].mxu0
        %v1461 = vadd.f32 %v1285, %v1460
        %v1462 = vpop.f32.mrb[0].mxu0
        %v1463 = vpop.f32.mrb[0].mxu0
        %v1464 = vadd.f32 %v1288, %v1463
        %v1465 = vpop.f32.mrb[0].mxu0
        %1466 = vmatprep.mubr.bf16.mxu0 0
        %1467 = vmatmul.mubr.bf16.gmra.mrb[0].mxu0 %v1133
        %v1468 = vpop.f32.mrb[0].mxu0
        %v1469 = vadd.f32 %v1293, %v1468
        %v1470 = vpop.f32.mrb[0].mxu0
        %v1471 = vpop.f32.mrb[0].mxu0
        %v1472 = vadd.f32 %v1296, %v1471
        %v1473 = vpop.f32.mrb[0].mxu0
        %1474 = vdwg.mxu0
        %v1475 = vld [vmem:[%s3 + $0x20] sm:$0xf]
        %v1476 = vld [vmem:[%s3 + $0x24] sm:$0xf]
        %v1477 = vld [vmem:[%s3 + $0x28] sm:$0xf]
        %v1478 = vld [vmem:[%s3 + $0x2c] sm:$0xf]
        %v1483 = vunpack.c.l.b16 %v1475
        %v1484 = vunpack.c.l.b16 %v1476
        %v1485 = vunpack.c.l.b16 %v1477
        %v1486 = vunpack.c.l.b16 %v1478
        %v1487 = vpack.c.b16 %v1484, %v1483
        %v1488 = vpack.c.b16 %v1486, %v1485
        %v1492 = vsel %vm1089, %v917, 0
        %1494 = vmatprep.subr.bf16.mxu0 0
        %1495 = vmatpush1.bf16.msra.mxu0 %v1487
        %1496 = vmatprep.subr.bf16.mxu0 0
        %1497 = vmatpush1.bf16.msra.mxu0 %v1488
        %1498 = vmatprep.subr.bf16.mxu0 0
        %1499 = vmatpush1.bf16.msra.mxu0 0
        %1500 = vmatprep.subr.bf16.mxu0 0
        %1501 = vmatpush1.bf16.msra.mxu0 0
        %1502 = vmatprep.subr.bf16.mxu0 0
        %1503 = vmatpush1.bf16.msra.mxu0 0
        %1504 = vmatprep.subr.bf16.mxu0 0
        %1505 = vmatpush1.bf16.msra.mxu0 0
        %1506 = vmatprep.subr.bf16.mxu0 0
        %1507 = vmatpush1.bf16.msra.mxu0 0
        %1508 = vmatprep.subr.bf16.mxu0 0
        %1509 = vmatpush1.bf16.msra.mxu0 0
        %1510 = vmatprep.subr.bf16.mxu0 0
        %1511 = vmatpush1.bf16.msra.mxu0 0
        %1512 = vmatprep.subr.bf16.mxu0 0
        %1513 = vmatpush1.bf16.msra.mxu0 0
        %1514 = vmatprep.subr.bf16.mxu0 0
        %1515 = vmatpush1.bf16.msra.mxu0 0
        %1516 = vmatprep.subr.bf16.mxu0 0
        %1517 = vmatpush1.bf16.msra.mxu0 0
        %1518 = vmatprep.subr.bf16.mxu0 0
        %1519 = vmatpush1.bf16.msra.mxu0 0
        %1520 = vmatprep.subr.bf16.mxu0 0
        %1521 = vmatpush1.bf16.msra.mxu0 0
        %1522 = vmatprep.subr.bf16.mxu0 0
        %1523 = vmatpush1.bf16.msra.mxu0 0
        %1524 = vmatprep.subr.bf16.mxu0 0
        %1525 = vmatpush1.bf16.msra.mxu0 0
        %1526 = vmatprep.mubr.bf16.mxu0 0
        %1527 = vmatmul.mubr.bf16.gmra.mrb[0].mxu0 %v1094
        %v1528 = vpop.f32.mrb[0].mxu0
        %v1529 = vadd.f32 0.0, %v1528
        %v1530 = vpop.f32.mrb[0].mxu0
        %v1531 = vpop.f32.mrb[0].mxu0
        %v1532 = vadd.f32 0.0, %v1531
        %v1533 = vpop.f32.mrb[0].mxu0
        %1534 = vmatprep.mubr.bf16.mxu0 0
        %1535 = vmatmul.mubr.bf16.gmra.mrb[0].mxu0 %v1097
        %v1536 = vpop.f32.mrb[0].mxu0
        %v1537 = vadd.f32 0.0, %v1536
        %v1538 = vpop.f32.mrb[0].mxu0
        %v1539 = vpop.f32.mrb[0].mxu0
        %v1540 = vadd.f32 0.0, %v1539
        %v1541 = vpop.f32.mrb[0].mxu0
        %1542 = vmatprep.mubr.bf16.mxu0 0
        %1543 = vmatmul.mubr.bf16.gmra.mrb[0].mxu0 %v1100
        %v1544 = vpop.f32.mrb[0].mxu0
        %v1545 = vadd.f32 0.0, %v1544
        %v1546 = vpop.f32.mrb[0].mxu0
        %v1547 = vpop.f32.mrb[0].mxu0
        %v1548 = vadd.f32 0.0, %v1547
        %v1549 = vpop.f32.mrb[0].mxu0
        %1550 = vmatprep.mubr.bf16.mxu0 0
        %1551 = vmatmul.mubr.bf16.gmra.mrb[0].mxu0 %v1103
        %v1552 = vpop.f32.mrb[0].mxu0
        %v1553 = vadd.f32 0.0, %v1552
        %v1554 = vpop.f32.mrb[0].mxu0
        %v1555 = vpop.f32.mrb[0].mxu0
        %v1556 = vadd.f32 0.0, %v1555
        %v1557 = vpop.f32.mrb[0].mxu0
        %1558 = vmatprep.mubr.bf16.mxu0 0
        %1559 = vmatmul.mubr.bf16.gmra.mrb[0].mxu0 %v1106
        %v1560 = vpop.f32.mrb[0].mxu0
        %v1561 = vadd.f32 0.0, %v1560
        %v1562 = vpop.f32.mrb[0].mxu0
        %v1563 = vpop.f32.mrb[0].mxu0
        %v1564 = vadd.f32 0.0, %v1563
        %v1565 = vpop.f32.mrb[0].mxu0
        %1566 = vmatprep.mubr.bf16.mxu0 0
        %1567 = vmatmul.mubr.bf16.gmra.mrb[0].mxu0 %v1109
        %v1568 = vpop.f32.mrb[0].mxu0
        %v1569 = vadd.f32 0.0, %v1568
        %v1570 = vpop.f32.mrb[0].mxu0
        %v1571 = vpop.f32.mrb[0].mxu0
        %v1572 = vadd.f32 0.0, %v1571
        %v1573 = vpop.f32.mrb[0].mxu0
        %1574 = vmatprep.mubr.bf16.mxu0 0
        %1575 = vmatmul.mubr.bf16.gmra.mrb[0].mxu0 %v1112
        %v1576 = vpop.f32.mrb[0].mxu0
        %v1577 = vadd.f32 0.0, %v1576
        %v1578 = vpop.f32.mrb[0].mxu0
        %v1579 = vpop.f32.mrb[0].mxu0
        %v1580 = vadd.f32 0.0, %v1579
        %v1581 = vpop.f32.mrb[0].mxu0
        %1582 = vmatprep.mubr.bf16.mxu0 0
        %1583 = vmatmul.mubr.bf16.gmra.mrb[0].mxu0 %v1115
        %v1584 = vpop.f32.mrb[0].mxu0
        %v1585 = vadd.f32 0.0, %v1584
        %v1586 = vpop.f32.mrb[0].mxu0
        %v1587 = vpop.f32.mrb[0].mxu0
        %v1588 = vadd.f32 0.0, %v1587
        %v1589 = vpop.f32.mrb[0].mxu0
        %1590 = vmatprep.mubr.bf16.mxu0 0
        %1591 = vmatmul.mubr.bf16.gmra.mrb[0].mxu0 %v1118
        %v1592 = vpop.f32.mrb[0].mxu0
        %v1593 = vadd.f32 0.0, %v1592
        %v1594 = vpop.f32.mrb[0].mxu0
        %v1595 = vpop.f32.mrb[0].mxu0
        %v1596 = vadd.f32 0.0, %v1595
        %v1597 = vpop.f32.mrb[0].mxu0
        %1598 = vmatprep.mubr.bf16.mxu0 0
        %1599 = vmatmul.mubr.bf16.gmra.mrb[0].mxu0 %v1121
        %v1600 = vpop.f32.mrb[0].mxu0
        %v1601 = vadd.f32 0.0, %v1600
        %v1602 = vpop.f32.mrb[0].mxu0
        %v1603 = vpop.f32.mrb[0].mxu0
        %v1604 = vadd.f32 0.0, %v1603
        %v1605 = vpop.f32.mrb[0].mxu0
        %1606 = vmatprep.mubr.bf16.mxu0 0
        %1607 = vmatmul.mubr.bf16.gmra.mrb[0].mxu0 %v1124
        %v1608 = vpop.f32.mrb[0].mxu0
        %v1609 = vadd.f32 0.0, %v1608
        %v1610 = vpop.f32.mrb[0].mxu0
        %v1611 = vpop.f32.mrb[0].mxu0
        %v1612 = vadd.f32 0.0, %v1611
        %v1613 = vpop.f32.mrb[0].mxu0
        %1614 = vmatprep.mubr.bf16.mxu0 0
        %1615 = vmatmul.mubr.bf16.gmra.mrb[0].mxu0 %v1127
        %v1616 = vpop.f32.mrb[0].mxu0
        %v1617 = vadd.f32 0.0, %v1616
        %v1618 = vpop.f32.mrb[0].mxu0
        %v1619 = vpop.f32.mrb[0].mxu0
        %v1620 = vadd.f32 0.0, %v1619
        %v1621 = vpop.f32.mrb[0].mxu0
        %1622 = vmatprep.mubr.bf16.mxu0 0
        %1623 = vmatmul.mubr.bf16.gmra.mrb[0].mxu0 %v1130
        %v1624 = vpop.f32.mrb[0].mxu0
        %v1625 = vadd.f32 0.0, %v1624
        %v1626 = vpop.f32.mrb[0].mxu0
        %v1627 = vpop.f32.mrb[0].mxu0
        %v1628 = vadd.f32 0.0, %v1627
        %v1629 = vpop.f32.mrb[0].mxu0
        %1630 = vmatprep.mubr.bf16.mxu0 0
        %1631 = vmatmul.mubr.bf16.gmra.mrb[0].mxu0 %v1133
        %v1632 = vpop.f32.mrb[0].mxu0
        %v1633 = vadd.f32 0.0, %v1632
        %v1634 = vpop.f32.mrb[0].mxu0
        %v1635 = vpop.f32.mrb[0].mxu0
        %v1636 = vadd.f32 0.0, %v1635
        %v1637 = vpop.f32.mrb[0].mxu0
        %1638 = vmatprep.mubr.bf16.mxu0 0
        %1639 = vmatmul.mubr.bf16.gmra.mrb[0].mxu0 %v1136
        %v1640 = vpop.f32.mrb[0].mxu0
        %v1641 = vadd.f32 0.0, %v1640
        %v1642 = vpop.f32.mrb[0].mxu0
        %v1643 = vpop.f32.mrb[0].mxu0
        %v1644 = vadd.f32 0.0, %v1643
        %v1645 = vpop.f32.mrb[0].mxu0
        %1646 = vmatprep.mubr.bf16.mxu0 0
        %1647 = vmatmul.mubr.bf16.gmra.mrb[0].mxu0 %v1492
        %v1648 = vpop.f32.mrb[0].mxu0
        %v1649 = vadd.f32 0.0, %v1648
        %v1650 = vpop.f32.mrb[0].mxu0
        %v1651 = vpop.f32.mrb[0].mxu0
        %v1652 = vadd.f32 0.0, %v1651
        %v1653 = vpop.f32.mrb[0].mxu0
        %1654 = vdwg.mxu0
        %v1655 = vadd.f32 %v1349, %v1529
        %v1656 = vadd.f32 %v1352, %v1532
        %v1657 = vadd.f32 %v1357, %v1537
        %v1658 = vadd.f32 %v1360, %v1540
        %v1659 = vadd.f32 %v1365, %v1545
        %v1660 = vadd.f32 %v1368, %v1548
        %v1661 = vadd.f32 %v1373, %v1553
        %v1662 = vadd.f32 %v1376, %v1556
        %v1663 = vadd.f32 %v1381, %v1561
        %v1664 = vadd.f32 %v1384, %v1564
        %v1665 = vadd.f32 %v1389, %v1569
        %v1666 = vadd.f32 %v1392, %v1572
        %v1667 = vadd.f32 %v1397, %v1577
        %v1668 = vadd.f32 %v1400, %v1580
        %v1669 = vadd.f32 %v1405, %v1585
        %v1670 = vadd.f32 %v1408, %v1588
        %v1671 = vadd.f32 %v1413, %v1593
        %v1672 = vadd.f32 %v1416, %v1596
        %v1673 = vadd.f32 %v1421, %v1601
        %v1674 = vadd.f32 %v1424, %v1604
        %v1675 = vadd.f32 %v1429, %v1609
        %v1676 = vadd.f32 %v1432, %v1612
        %v1677 = vadd.f32 %v1437, %v1617
        %v1678 = vadd.f32 %v1440, %v1620
        %v1679 = vadd.f32 %v1445, %v1625
        %v1680 = vadd.f32 %v1448, %v1628
        %v1681 = vadd.f32 %v1453, %v1633
        %v1682 = vadd.f32 %v1456, %v1636
        %v1683 = vadd.f32 %v1461, %v1641
        %v1684 = vadd.f32 %v1464, %v1644
        %v1685 = vadd.f32 %v1469, %v1649
        %v1686 = vadd.f32 %v1472, %v1652
        %v1687 = vld [vmem:[%s3 + $0x30] sm:$0xf]
        %v1688 = vld [vmem:[%s3 + $0x34] sm:$0xf]
        %v1689 = vld [vmem:[%s3 + $0x38] sm:$0xf]
        %v1690 = vld [vmem:[%s3 + $0x3c] sm:$0xf]
        %v1695 = vunpack.c.l.b16 %v1687
        %v1696 = vunpack.c.l.b16 %v1688
        %v1697 = vunpack.c.l.b16 %v1689
        %v1698 = vunpack.c.l.b16 %v1690
        %v1699 = vpack.c.b16 %v1696, %v1695
        %v1700 = vpack.c.b16 %v1698, %v1697
        %v1704 = vsel %vm1089, %v918, 0
        %v1707 = vsel %vm1089, %v919, 0
        %v1710 = vsel %vm1089, %v920, 0
        %v1713 = vsel %vm1089, %v921, 0
        %v1716 = vsel %vm1089, %v922, 0
        %v1719 = vsel %vm1089, %v923, 0
        %v1722 = vsel %vm1089, %v924, 0
        %v1725 = vsel %vm1089, %v925, 0
        %v1728 = vsel %vm1089, %v926, 0
        %v1731 = vsel %vm1089, %v927, 0
        %v1734 = vsel %vm1089, %v928, 0
        %v1737 = vsel %vm1089, %v929, 0
        %v1740 = vsel %vm1089, %v930, 0
        %v1743 = vsel %vm1089, %v931, 0
        %v1746 = vsel %vm1089, %v932, 0
        %v1749 = vsel %vm1089, %v933, 0
        %1751 = vmatprep.subr.bf16.mxu0 0
        %1752 = vmatpush1.bf16.msra.mxu0 %v1699
        %1753 = vmatprep.subr.bf16.mxu0 0
        %1754 = vmatpush1.bf16.msra.mxu0 %v1700
        %1755 = vmatprep.subr.bf16.mxu0 0
        %1756 = vmatpush1.bf16.msra.mxu0 0
        %1757 = vmatprep.subr.bf16.mxu0 0
        %1758 = vmatpush1.bf16.msra.mxu0 0
        %1759 = vmatprep.subr.bf16.mxu0 0
        %1760 = vmatpush1.bf16.msra.mxu0 0
        %1761 = vmatprep.subr.bf16.mxu0 0
        %1762 = vmatpush1.bf16.msra.mxu0 0
        %1763 = vmatprep.subr.bf16.mxu0 0
        %1764 = vmatpush1.bf16.msra.mxu0 0
        %1765 = vmatprep.subr.bf16.mxu0 0
        %1766 = vmatpush1.bf16.msra.mxu0 0
        %1767 = vmatprep.subr.bf16.mxu0 0
        %1768 = vmatpush1.bf16.msra.mxu0 0
        %1769 = vmatprep.subr.bf16.mxu0 0
        %1770 = vmatpush1.bf16.msra.mxu0 0
        %1771 = vmatprep.subr.bf16.mxu0 0
        %1772 = vmatpush1.bf16.msra.mxu0 0
        %1773 = vmatprep.subr.bf16.mxu0 0
        %1774 = vmatpush1.bf16.msra.mxu0 0
        %1775 = vmatprep.subr.bf16.mxu0 0
        %1776 = vmatpush1.bf16.msra.mxu0 0
        %1777 = vmatprep.subr.bf16.mxu0 0
        %1778 = vmatpush1.bf16.msra.mxu0 0
        %1779 = vmatprep.subr.bf16.mxu0 0
        %1780 = vmatpush1.bf16.msra.mxu0 0
        %1781 = vmatprep.subr.bf16.mxu0 0
        %1782 = vmatpush1.bf16.msra.mxu0 0
        %1783 = vmatprep.mubr.bf16.mxu0 0
        %1784 = vmatmul.mubr.bf16.gmra.mrb[0].mxu0 %v1704
        %v1785 = vpop.f32.mrb[0].mxu0
        %v1786 = vadd.f32 0.0, %v1785
        %v1787 = vpop.f32.mrb[0].mxu0
        %v1788 = vpop.f32.mrb[0].mxu0
        %v1789 = vadd.f32 0.0, %v1788
        %v1790 = vpop.f32.mrb[0].mxu0
        %1791 = vmatprep.mubr.bf16.mxu0 0
        %1792 = vmatmul.mubr.bf16.gmra.mrb[0].mxu0 %v1707
        %v1793 = vpop.f32.mrb[0].mxu0
        %v1794 = vadd.f32 0.0, %v1793
        %v1795 = vpop.f32.mrb[0].mxu0
        %v1796 = vpop.f32.mrb[0].mxu0
        %v1797 = vadd.f32 0.0, %v1796
        %v1798 = vpop.f32.mrb[0].mxu0
        %1799 = vmatprep.mubr.bf16.mxu0 0
        %1800 = vmatmul.mubr.bf16.gmra.mrb[0].mxu0 %v1710
        %v1801 = vpop.f32.mrb[0].mxu0
        %v1802 = vadd.f32 0.0, %v1801
        %v1803 = vpop.f32.mrb[0].mxu0
        %v1804 = vpop.f32.mrb[0].mxu0
        %v1805 = vadd.f32 0.0, %v1804
        %v1806 = vpop.f32.mrb[0].mxu0
        %1807 = vmatprep.mubr.bf16.mxu0 0
        %1808 = vmatmul.mubr.bf16.gmra.mrb[0].mxu0 %v1713
        %v1809 = vpop.f32.mrb[0].mxu0
        %v1810 = vadd.f32 0.0, %v1809
        %v1811 = vpop.f32.mrb[0].mxu0
        %v1812 = vpop.f32.mrb[0].mxu0
        %v1813 = vadd.f32 0.0, %v1812
        %v1814 = vpop.f32.mrb[0].mxu0
        %1815 = vmatprep.mubr.bf16.mxu0 0
        %1816 = vmatmul.mubr.bf16.gmra.mrb[0].mxu0 %v1716
        %v1817 = vpop.f32.mrb[0].mxu0
        %v1818 = vadd.f32 0.0, %v1817
        %v1819 = vpop.f32.mrb[0].mxu0
        %v1820 = vpop.f32.mrb[0].mxu0
        %v1821 = vadd.f32 0.0, %v1820
        %v1822 = vpop.f32.mrb[0].mxu0
        %1823 = vmatprep.mubr.bf16.mxu0 0
        %1824 = vmatmul.mubr.bf16.gmra.mrb[0].mxu0 %v1719
        %v1825 = vpop.f32.mrb[0].mxu0
        %v1826 = vadd.f32 0.0, %v1825
        %v1827 = vpop.f32.mrb[0].mxu0
        %v1828 = vpop.f32.mrb[0].mxu0
        %v1829 = vadd.f32 0.0, %v1828
        %v1830 = vpop.f32.mrb[0].mxu0
        %1831 = vmatprep.mubr.bf16.mxu0 0
        %1832 = vmatmul.mubr.bf16.gmra.mrb[0].mxu0 %v1722
        %v1833 = vpop.f32.mrb[0].mxu0
        %v1834 = vadd.f32 0.0, %v1833
        %v1835 = vpop.f32.mrb[0].mxu0
        %v1836 = vpop.f32.mrb[0].mxu0
        %v1837 = vadd.f32 0.0, %v1836
        %v1838 = vpop.f32.mrb[0].mxu0
        %1839 = vmatprep.mubr.bf16.mxu0 0
        %1840 = vmatmul.mubr.bf16.gmra.mrb[0].mxu0 %v1725
        %v1841 = vpop.f32.mrb[0].mxu0
        %v1842 = vadd.f32 0.0, %v1841
        %v1843 = vpop.f32.mrb[0].mxu0
        %v1844 = vpop.f32.mrb[0].mxu0
        %v1845 = vadd.f32 0.0, %v1844
        %v1846 = vpop.f32.mrb[0].mxu0
        %1847 = vmatprep.mubr.bf16.mxu0 0
        %1848 = vmatmul.mubr.bf16.gmra.mrb[0].mxu0 %v1728
        %v1849 = vpop.f32.mrb[0].mxu0
        %v1850 = vadd.f32 0.0, %v1849
        %v1851 = vpop.f32.mrb[0].mxu0
        %v1852 = vpop.f32.mrb[0].mxu0
        %v1853 = vadd.f32 0.0, %v1852
        %v1854 = vpop.f32.mrb[0].mxu0
        %1855 = vmatprep.mubr.bf16.mxu0 0
        %1856 = vmatmul.mubr.bf16.gmra.mrb[0].mxu0 %v1731
        %v1857 = vpop.f32.mrb[0].mxu0
        %v1858 = vadd.f32 0.0, %v1857
        %v1859 = vpop.f32.mrb[0].mxu0
        %v1860 = vpop.f32.mrb[0].mxu0
        %v1861 = vadd.f32 0.0, %v1860
        %v1862 = vpop.f32.mrb[0].mxu0
        %1863 = vmatprep.mubr.bf16.mxu0 0
        %1864 = vmatmul.mubr.bf16.gmra.mrb[0].mxu0 %v1734
        %v1865 = vpop.f32.mrb[0].mxu0
        %v1866 = vadd.f32 0.0, %v1865
        %v1867 = vpop.f32.mrb[0].mxu0
        %v1868 = vpop.f32.mrb[0].mxu0
        %v1869 = vadd.f32 0.0, %v1868
        %v1870 = vpop.f32.mrb[0].mxu0
        %1871 = vmatprep.mubr.bf16.mxu0 0
        %1872 = vmatmul.mubr.bf16.gmra.mrb[0].mxu0 %v1737
        %v1873 = vpop.f32.mrb[0].mxu0
        %v1874 = vadd.f32 0.0, %v1873
        %v1875 = vpop.f32.mrb[0].mxu0
        %v1876 = vpop.f32.mrb[0].mxu0
        %v1877 = vadd.f32 0.0, %v1876
        %v1878 = vpop.f32.mrb[0].mxu0
        %1879 = vmatprep.mubr.bf16.mxu0 0
        %1880 = vmatmul.mubr.bf16.gmra.mrb[0].mxu0 %v1740
        %v1881 = vpop.f32.mrb[0].mxu0
        %v1882 = vadd.f32 0.0, %v1881
        %v1883 = vpop.f32.mrb[0].mxu0
        %v1884 = vpop.f32.mrb[0].mxu0
        %v1885 = vadd.f32 0.0, %v1884
        %v1886 = vpop.f32.mrb[0].mxu0
        %1887 = vmatprep.mubr.bf16.mxu0 0
        %1888 = vmatmul.mubr.bf16.gmra.mrb[0].mxu0 %v1743
        %v1889 = vpop.f32.mrb[0].mxu0
        %v1890 = vadd.f32 0.0, %v1889
        %v1891 = vpop.f32.mrb[0].mxu0
        %v1892 = vpop.f32.mrb[0].mxu0
        %v1893 = vadd.f32 0.0, %v1892
        %v1894 = vpop.f32.mrb[0].mxu0
        %1895 = vmatprep.mubr.bf16.mxu0 0
        %1896 = vmatmul.mubr.bf16.gmra.mrb[0].mxu0 %v1746
        %v1897 = vpop.f32.mrb[0].mxu0
        %v1898 = vadd.f32 0.0, %v1897
        %v1899 = vpop.f32.mrb[0].mxu0
        %v1900 = vpop.f32.mrb[0].mxu0
        %v1901 = vadd.f32 0.0, %v1900
        %v1902 = vpop.f32.mrb[0].mxu0
        %1903 = vmatprep.mubr.bf16.mxu0 0
        %1904 = vmatmul.mubr.bf16.gmra.mrb[0].mxu0 %v1749
        %v1905 = vpop.f32.mrb[0].mxu0
        %v1906 = vadd.f32 0.0, %v1905
        %v1907 = vpop.f32.mrb[0].mxu0
        %v1908 = vpop.f32.mrb[0].mxu0
        %v1909 = vadd.f32 0.0, %v1908
        %v1910 = vpop.f32.mrb[0].mxu0
        %1911 = vdwg.mxu0
        %v1912 = vadd.f32 %v1655, %v1786
        %v1913 = vadd.f32 %v1656, %v1789
        %v1914 = vadd.f32 %v1657, %v1794
        %v1915 = vadd.f32 %v1658, %v1797
        %v1916 = vadd.f32 %v1659, %v1802
        %v1917 = vadd.f32 %v1660, %v1805
        %v1918 = vadd.f32 %v1661, %v1810
        %v1919 = vadd.f32 %v1662, %v1813
        %v1920 = vadd.f32 %v1663, %v1818
        %v1921 = vadd.f32 %v1664, %v1821
        %v1922 = vadd.f32 %v1665, %v1826
        %v1923 = vadd.f32 %v1666, %v1829
        %v1924 = vadd.f32 %v1667, %v1834
        %v1925 = vadd.f32 %v1668, %v1837
        %v1926 = vadd.f32 %v1669, %v1842
        %v1927 = vadd.f32 %v1670, %v1845
        %v1928 = vadd.f32 %v1671, %v1850
        %v1929 = vadd.f32 %v1672, %v1853
        %v1930 = vadd.f32 %v1673, %v1858
        %v1931 = vadd.f32 %v1674, %v1861
        %v1932 = vadd.f32 %v1675, %v1866
        %v1933 = vadd.f32 %v1676, %v1869
        %v1934 = vadd.f32 %v1677, %v1874
        %v1935 = vadd.f32 %v1678, %v1877
        %v1936 = vadd.f32 %v1679, %v1882
        %v1937 = vadd.f32 %v1680, %v1885
        %v1938 = vadd.f32 %v1681, %v1890
        %v1939 = vadd.f32 %v1682, %v1893
        %v1940 = vadd.f32 %v1683, %v1898
        %v1941 = vadd.f32 %v1684, %v1901
        %v1942 = vadd.f32 %v1685, %v1906
        %v1943 = vadd.f32 %v1686, %v1909
        %v1944 = vld [vmem:[%s3 + $0x40] sm:$0xf]
        %v1945 = vld [vmem:[%s3 + $0x44] sm:$0xf]
        %v1946 = vld [vmem:[%s3 + $0x48] sm:$0xf]
        %v1947 = vld [vmem:[%s3 + $0x4c] sm:$0xf]
        %v1952 = vunpack.c.l.b16 %v1944
        %v1953 = vunpack.c.l.b16 %v1945
        %v1954 = vunpack.c.l.b16 %v1946
        %v1955 = vunpack.c.l.b16 %v1947
        %v1956 = vpack.c.b16 %v1953, %v1952
        %v1957 = vpack.c.b16 %v1955, %v1954
        %v1961 = vsel %vm1089, %v934, 0
        %1963 = vmatprep.subr.bf16.mxu0 0
        %1964 = vmatpush1.bf16.msra.mxu0 %v1956
        %1965 = vmatprep.subr.bf16.mxu0 0
        %1966 = vmatpush1.bf16.msra.mxu0 %v1957
        %1967 = vmatprep.subr.bf16.mxu0 0
        %1968 = vmatpush1.bf16.msra.mxu0 0
        %1969 = vmatprep.subr.bf16.mxu0 0
        %1970 = vmatpush1.bf16.msra.mxu0 0
        %1971 = vmatprep.subr.bf16.mxu0 0
        %1972 = vmatpush1.bf16.msra.mxu0 0
        %1973 = vmatprep.subr.bf16.mxu0 0
        %1974 = vmatpush1.bf16.msra.mxu0 0
        %1975 = vmatprep.subr.bf16.mxu0 0
        %1976 = vmatpush1.bf16.msra.mxu0 0
        %1977 = vmatprep.subr.bf16.mxu0 0
        %1978 = vmatpush1.bf16.msra.mxu0 0
        %1979 = vmatprep.subr.bf16.mxu0 0
        %1980 = vmatpush1.bf16.msra.mxu0 0
        %1981 = vmatprep.subr.bf16.mxu0 0
        %1982 = vmatpush1.bf16.msra.mxu0 0
        %1983 = vmatprep.subr.bf16.mxu0 0
        %1984 = vmatpush1.bf16.msra.mxu0 0
        %1985 = vmatprep.subr.bf16.mxu0 0
        %1986 = vmatpush1.bf16.msra.mxu0 0
        %1987 = vmatprep.subr.bf16.mxu0 0
        %1988 = vmatpush1.bf16.msra.mxu0 0
        %1989 = vmatprep.subr.bf16.mxu0 0
        %1990 = vmatpush1.bf16.msra.mxu0 0
        %1991 = vmatprep.subr.bf16.mxu0 0
        %1992 = vmatpush1.bf16.msra.mxu0 0
        %1993 = vmatprep.subr.bf16.mxu0 0
        %1994 = vmatpush1.bf16.msra.mxu0 0
        %1995 = vmatprep.mubr.bf16.mxu0 0
        %1996 = vmatmul.mubr.bf16.gmra.mrb[0].mxu0 %v1707
        %v1997 = vpop.f32.mrb[0].mxu0
        %v1998 = vadd.f32 0.0, %v1997
        %v1999 = vpop.f32.mrb[0].mxu0
        %v2000 = vpop.f32.mrb[0].mxu0
        %v2001 = vadd.f32 0.0, %v2000
        %v2002 = vpop.f32.mrb[0].mxu0
        %2003 = vmatprep.mubr.bf16.mxu0 0
        %2004 = vmatmul.mubr.bf16.gmra.mrb[0].mxu0 %v1710
        %v2005 = vpop.f32.mrb[0].mxu0
        %v2006 = vadd.f32 0.0, %v2005
        %v2007 = vpop.f32.mrb[0].mxu0
        %v2008 = vpop.f32.mrb[0].mxu0
        %v2009 = vadd.f32 0.0, %v2008
        %v2010 = vpop.f32.mrb[0].mxu0
        %2011 = vmatprep.mubr.bf16.mxu0 0
        %2012 = vmatmul.mubr.bf16.gmra.mrb[0].mxu0 %v1713
        %v2013 = vpop.f32.mrb[0].mxu0
        %v2014 = vadd.f32 0.0, %v2013
        %v2015 = vpop.f32.mrb[0].mxu0
        %v2016 = vpop.f32.mrb[0].mxu0
        %v2017 = vadd.f32 0.0, %v2016
        %v2018 = vpop.f32.mrb[0].mxu0
        %2019 = vmatprep.mubr.bf16.mxu0 0
        %2020 = vmatmul.mubr.bf16.gmra.mrb[0].mxu0 %v1716
        %v2021 = vpop.f32.mrb[0].mxu0
        %v2022 = vadd.f32 0.0, %v2021
        %v2023 = vpop.f32.mrb[0].mxu0
        %v2024 = vpop.f32.mrb[0].mxu0
        %v2025 = vadd.f32 0.0, %v2024
        %v2026 = vpop.f32.mrb[0].mxu0
        %2027 = vmatprep.mubr.bf16.mxu0 0
        %2028 = vmatmul.mubr.bf16.gmra.mrb[0].mxu0 %v1719
        %v2029 = vpop.f32.mrb[0].mxu0
        %v2030 = vadd.f32 0.0, %v2029
        %v2031 = vpop.f32.mrb[0].mxu0
        %v2032 = vpop.f32.mrb[0].mxu0
        %v2033 = vadd.f32 0.0, %v2032
        %v2034 = vpop.f32.mrb[0].mxu0
        %2035 = vmatprep.mubr.bf16.mxu0 0
        %2036 = vmatmul.mubr.bf16.gmra.mrb[0].mxu0 %v1722
        %v2037 = vpop.f32.mrb[0].mxu0
        %v2038 = vadd.f32 0.0, %v2037
        %v2039 = vpop.f32.mrb[0].mxu0
        %v2040 = vpop.f32.mrb[0].mxu0
        %v2041 = vadd.f32 0.0, %v2040
        %v2042 = vpop.f32.mrb[0].mxu0
        %2043 = vmatprep.mubr.bf16.mxu0 0
        %2044 = vmatmul.mubr.bf16.gmra.mrb[0].mxu0 %v1725
        %v2045 = vpop.f32.mrb[0].mxu0
        %v2046 = vadd.f32 0.0, %v2045
        %v2047 = vpop.f32.mrb[0].mxu0
        %v2048 = vpop.f32.mrb[0].mxu0
        %v2049 = vadd.f32 0.0, %v2048
        %v2050 = vpop.f32.mrb[0].mxu0
        %2051 = vmatprep.mubr.bf16.mxu0 0
        %2052 = vmatmul.mubr.bf16.gmra.mrb[0].mxu0 %v1728
        %v2053 = vpop.f32.mrb[0].mxu0
        %v2054 = vadd.f32 0.0, %v2053
        %v2055 = vpop.f32.mrb[0].mxu0
        %v2056 = vpop.f32.mrb[0].mxu0
        %v2057 = vadd.f32 0.0, %v2056
        %v2058 = vpop.f32.mrb[0].mxu0
        %2059 = vmatprep.mubr.bf16.mxu0 0
        %2060 = vmatmul.mubr.bf16.gmra.mrb[0].mxu0 %v1731
        %v2061 = vpop.f32.mrb[0].mxu0
        %v2062 = vadd.f32 0.0, %v2061
        %v2063 = vpop.f32.mrb[0].mxu0
        %v2064 = vpop.f32.mrb[0].mxu0
        %v2065 = vadd.f32 0.0, %v2064
        %v2066 = vpop.f32.mrb[0].mxu0
        %2067 = vmatprep.mubr.bf16.mxu0 0
        %2068 = vmatmul.mubr.bf16.gmra.mrb[0].mxu0 %v1734
        %v2069 = vpop.f32.mrb[0].mxu0
        %v2070 = vadd.f32 0.0, %v2069
        %v2071 = vpop.f32.mrb[0].mxu0
        %v2072 = vpop.f32.mrb[0].mxu0
        %v2073 = vadd.f32 0.0, %v2072
        %v2074 = vpop.f32.mrb[0].mxu0
        %2075 = vmatprep.mubr.bf16.mxu0 0
        %2076 = vmatmul.mubr.bf16.gmra.mrb[0].mxu0 %v1737
        %v2077 = vpop.f32.mrb[0].mxu0
        %v2078 = vadd.f32 0.0, %v2077
        %v2079 = vpop.f32.mrb[0].mxu0
        %v2080 = vpop.f32.mrb[0].mxu0
        %v2081 = vadd.f32 0.0, %v2080
        %v2082 = vpop.f32.mrb[0].mxu0
        %2083 = vmatprep.mubr.bf16.mxu0 0
        %2084 = vmatmul.mubr.bf16.gmra.mrb[0].mxu0 %v1740
        %v2085 = vpop.f32.mrb[0].mxu0
        %v2086 = vadd.f32 0.0, %v2085
        %v2087 = vpop.f32.mrb[0].mxu0
        %v2088 = vpop.f32.mrb[0].mxu0
        %v2089 = vadd.f32 0.0, %v2088
        %v2090 = vpop.f32.mrb[0].mxu0
        %2091 = vmatprep.mubr.bf16.mxu0 0
        %2092 = vmatmul.mubr.bf16.gmra.mrb[0].mxu0 %v1743
        %v2093 = vpop.f32.mrb[0].mxu0
        %v2094 = vadd.f32 0.0, %v2093
        %v2095 = vpop.f32.mrb[0].mxu0
        %v2096 = vpop.f32.mrb[0].mxu0
        %v2097 = vadd.f32 0.0, %v2096
        %v2098 = vpop.f32.mrb[0].mxu0
        %2099 = vmatprep.mubr.bf16.mxu0 0
        %2100 = vmatmul.mubr.bf16.gmra.mrb[0].mxu0 %v1746
        %v2101 = vpop.f32.mrb[0].mxu0
        %v2102 = vadd.f32 0.0, %v2101
        %v2103 = vpop.f32.mrb[0].mxu0
        %v2104 = vpop.f32.mrb[0].mxu0
        %v2105 = vadd.f32 0.0, %v2104
        %v2106 = vpop.f32.mrb[0].mxu0
        %2107 = vmatprep.mubr.bf16.mxu0 0
        %2108 = vmatmul.mubr.bf16.gmra.mrb[0].mxu0 %v1749
        %v2109 = vpop.f32.mrb[0].mxu0
        %v2110 = vadd.f32 0.0, %v2109
        %v2111 = vpop.f32.mrb[0].mxu0
        %v2112 = vpop.f32.mrb[0].mxu0
        %v2113 = vadd.f32 0.0, %v2112
        %v2114 = vpop.f32.mrb[0].mxu0
        %2115 = vmatprep.mubr.bf16.mxu0 0
        %2116 = vmatmul.mubr.bf16.gmra.mrb[0].mxu0 %v1961
        %v2117 = vpop.f32.mrb[0].mxu0
        %v2118 = vadd.f32 0.0, %v2117
        %v2119 = vpop.f32.mrb[0].mxu0
        %v2120 = vpop.f32.mrb[0].mxu0
        %v2121 = vadd.f32 0.0, %v2120
        %v2122 = vpop.f32.mrb[0].mxu0
        %2123 = vdwg.mxu0
        %v2124 = vadd.f32 %v1912, %v1998
        %v2125 = vadd.f32 %v1913, %v2001
        %v2126 = vadd.f32 %v1914, %v2006
        %v2127 = vadd.f32 %v1915, %v2009
        %v2128 = vadd.f32 %v1916, %v2014
        %v2129 = vadd.f32 %v1917, %v2017
        %v2130 = vadd.f32 %v1918, %v2022
        %v2131 = vadd.f32 %v1919, %v2025
        %v2132 = vadd.f32 %v1920, %v2030
        %v2133 = vadd.f32 %v1921, %v2033
        %v2134 = vadd.f32 %v1922, %v2038
        %v2135 = vadd.f32 %v1923, %v2041
        %v2136 = vadd.f32 %v1924, %v2046
        %v2137 = vadd.f32 %v1925, %v2049
        %v2138 = vadd.f32 %v1926, %v2054
        %v2139 = vadd.f32 %v1927, %v2057
        %v2140 = vadd.f32 %v1928, %v2062
        %v2141 = vadd.f32 %v1929, %v2065
        %v2142 = vadd.f32 %v1930, %v2070
        %v2143 = vadd.f32 %v1931, %v2073
        %v2144 = vadd.f32 %v1932, %v2078
        %v2145 = vadd.f32 %v1933, %v2081
        %v2146 = vadd.f32 %v1934, %v2086
        %v2147 = vadd.f32 %v1935, %v2089
        %v2148 = vadd.f32 %v1936, %v2094
        %v2149 = vadd.f32 %v1937, %v2097
        %v2150 = vadd.f32 %v1938, %v2102
        %v2151 = vadd.f32 %v1939, %v2105
        %v2152 = vadd.f32 %v1940, %v2110
        %v2153 = vadd.f32 %v1941, %v2113
        %v2154 = vadd.f32 %v1942, %v2118
        %v2155 = vadd.f32 %v1943, %v2121
        %v2156 = vld [vmem:[%s3 + $0x50] sm:$0xf]
        %v2157 = vld [vmem:[%s3 + $0x54] sm:$0xf]
        %v2158 = vld [vmem:[%s3 + $0x58] sm:$0xf]
        %v2159 = vld [vmem:[%s3 + $0x5c] sm:$0xf]
        %v2164 = vunpack.c.l.b16 %v2156
        %v2165 = vunpack.c.l.b16 %v2157
        %v2166 = vunpack.c.l.b16 %v2158
        %v2167 = vunpack.c.l.b16 %v2159
        %v2168 = vpack.c.b16 %v2165, %v2164
        %v2169 = vpack.c.b16 %v2167, %v2166
        %v2173 = vsel %vm1089, %v935, 0
        %2175 = vmatprep.subr.bf16.mxu0 0
        %2176 = vmatpush1.bf16.msra.mxu0 %v2168
        %2177 = vmatprep.subr.bf16.mxu0 0
        %2178 = vmatpush1.bf16.msra.mxu0 %v2169
        %2179 = vmatprep.subr.bf16.mxu0 0
        %2180 = vmatpush1.bf16.msra.mxu0 0
        %2181 = vmatprep.subr.bf16.mxu0 0
        %2182 = vmatpush1.bf16.msra.mxu0 0
        %2183 = vmatprep.subr.bf16.mxu0 0
        %2184 = vmatpush1.bf16.msra.mxu0 0
        %2185 = vmatprep.subr.bf16.mxu0 0
        %2186 = vmatpush1.bf16.msra.mxu0 0
        %2187 = vmatprep.subr.bf16.mxu0 0
        %2188 = vmatpush1.bf16.msra.mxu0 0
        %2189 = vmatprep.subr.bf16.mxu0 0
        %2190 = vmatpush1.bf16.msra.mxu0 0
        %2191 = vmatprep.subr.bf16.mxu0 0
        %2192 = vmatpush1.bf16.msra.mxu0 0
        %2193 = vmatprep.subr.bf16.mxu0 0
        %2194 = vmatpush1.bf16.msra.mxu0 0
        %2195 = vmatprep.subr.bf16.mxu0 0
        %2196 = vmatpush1.bf16.msra.mxu0 0
        %2197 = vmatprep.subr.bf16.mxu0 0
        %2198 = vmatpush1.bf16.msra.mxu0 0
        %2199 = vmatprep.subr.bf16.mxu0 0
        %2200 = vmatpush1.bf16.msra.mxu0 0
        %2201 = vmatprep.subr.bf16.mxu0 0
        %2202 = vmatpush1.bf16.msra.mxu0 0
        %2203 = vmatprep.subr.bf16.mxu0 0
        %2204 = vmatpush1.bf16.msra.mxu0 0
        %2205 = vmatprep.subr.bf16.mxu0 0
        %2206 = vmatpush1.bf16.msra.mxu0 0
        %2207 = vmatprep.mubr.bf16.mxu0 0
        %2208 = vmatmul.mubr.bf16.gmra.mrb[0].mxu0 %v1710
        %v2209 = vpop.f32.mrb[0].mxu0
        %v2210 = vadd.f32 0.0, %v2209
        %v2211 = vpop.f32.mrb[0].mxu0
        %v2212 = vpop.f32.mrb[0].mxu0
        %v2213 = vadd.f32 0.0, %v2212
        %v2214 = vpop.f32.mrb[0].mxu0
        %2215 = vmatprep.mubr.bf16.mxu0 0
        %2216 = vmatmul.mubr.bf16.gmra.mrb[0].mxu0 %v1713
        %v2217 = vpop.f32.mrb[0].mxu0
        %v2218 = vadd.f32 0.0, %v2217
        %v2219 = vpop.f32.mrb[0].mxu0
        %v2220 = vpop.f32.mrb[0].mxu0
        %v2221 = vadd.f32 0.0, %v2220
        %v2222 = vpop.f32.mrb[0].mxu0
        %2223 = vmatprep.mubr.bf16.mxu0 0
        %2224 = vmatmul.mubr.bf16.gmra.mrb[0].mxu0 %v1716
        %v2225 = vpop.f32.mrb[0].mxu0
        %v2226 = vadd.f32 0.0, %v2225
        %v2227 = vpop.f32.mrb[0].mxu0
        %v2228 = vpop.f32.mrb[0].mxu0
        %v2229 = vadd.f32 0.0, %v2228
        %v2230 = vpop.f32.mrb[0].mxu0
        %2231 = vmatprep.mubr.bf16.mxu0 0
        %2232 = vmatmul.mubr.bf16.gmra.mrb[0].mxu0 %v1719
        %v2233 = vpop.f32.mrb[0].mxu0
        %v2234 = vadd.f32 0.0, %v2233
        %v2235 = vpop.f32.mrb[0].mxu0
        %v2236 = vpop.f32.mrb[0].mxu0
        %v2237 = vadd.f32 0.0, %v2236
        %v2238 = vpop.f32.mrb[0].mxu0
        %2239 = vmatprep.mubr.bf16.mxu0 0
        %2240 = vmatmul.mubr.bf16.gmra.mrb[0].mxu0 %v1722
        %v2241 = vpop.f32.mrb[0].mxu0
        %v2242 = vadd.f32 0.0, %v2241
        %v2243 = vpop.f32.mrb[0].mxu0
        %v2244 = vpop.f32.mrb[0].mxu0
        %v2245 = vadd.f32 0.0, %v2244
        %v2246 = vpop.f32.mrb[0].mxu0
        %2247 = vmatprep.mubr.bf16.mxu0 0
        %2248 = vmatmul.mubr.bf16.gmra.mrb[0].mxu0 %v1725
        %v2249 = vpop.f32.mrb[0].mxu0
        %v2250 = vadd.f32 0.0, %v2249
        %v2251 = vpop.f32.mrb[0].mxu0
        %v2252 = vpop.f32.mrb[0].mxu0
        %v2253 = vadd.f32 0.0, %v2252
        %v2254 = vpop.f32.mrb[0].mxu0
        %2255 = vmatprep.mubr.bf16.mxu0 0
        %2256 = vmatmul.mubr.bf16.gmra.mrb[0].mxu0 %v1728
        %v2257 = vpop.f32.mrb[0].mxu0
        %v2258 = vadd.f32 0.0, %v2257
        %v2259 = vpop.f32.mrb[0].mxu0
        %v2260 = vpop.f32.mrb[0].mxu0
        %v2261 = vadd.f32 0.0, %v2260
        %v2262 = vpop.f32.mrb[0].mxu0
        %2263 = vmatprep.mubr.bf16.mxu0 0
        %2264 = vmatmul.mubr.bf16.gmra.mrb[0].mxu0 %v1731
        %v2265 = vpop.f32.mrb[0].mxu0
        %v2266 = vadd.f32 0.0, %v2265
        %v2267 = vpop.f32.mrb[0].mxu0
        %v2268 = vpop.f32.mrb[0].mxu0
        %v2269 = vadd.f32 0.0, %v2268
        %v2270 = vpop.f32.mrb[0].mxu0
        %2271 = vmatprep.mubr.bf16.mxu0 0
        %2272 = vmatmul.mubr.bf16.gmra.mrb[0].mxu0 %v1734
        %v2273 = vpop.f32.mrb[0].mxu0
        %v2274 = vadd.f32 0.0, %v2273
        %v2275 = vpop.f32.mrb[0].mxu0
        %v2276 = vpop.f32.mrb[0].mxu0
        %v2277 = vadd.f32 0.0, %v2276
        %v2278 = vpop.f32.mrb[0].mxu0
        %2279 = vmatprep.mubr.bf16.mxu0 0
        %2280 = vmatmul.mubr.bf16.gmra.mrb[0].mxu0 %v1737
        %v2281 = vpop.f32.mrb[0].mxu0
        %v2282 = vadd.f32 0.0, %v2281
        %v2283 = vpop.f32.mrb[0].mxu0
        %v2284 = vpop.f32.mrb[0].mxu0
        %v2285 = vadd.f32 0.0, %v2284
        %v2286 = vpop.f32.mrb[0].mxu0
        %2287 = vmatprep.mubr.bf16.mxu0 0
        %2288 = vmatmul.mubr.bf16.gmra.mrb[0].mxu0 %v1740
        %v2289 = vpop.f32.mrb[0].mxu0
        %v2290 = vadd.f32 0.0, %v2289
        %v2291 = vpop.f32.mrb[0].mxu0
        %v2292 = vpop.f32.mrb[0].mxu0
        %v2293 = vadd.f32 0.0, %v2292
        %v2294 = vpop.f32.mrb[0].mxu0
        %2295 = vmatprep.mubr.bf16.mxu0 0
        %2296 = vmatmul.mubr.bf16.gmra.mrb[0].mxu0 %v1743
        %v2297 = vpop.f32.mrb[0].mxu0
        %v2298 = vadd.f32 0.0, %v2297
        %v2299 = vpop.f32.mrb[0].mxu0
        %v2300 = vpop.f32.mrb[0].mxu0
        %v2301 = vadd.f32 0.0, %v2300
        %v2302 = vpop.f32.mrb[0].mxu0
        %2303 = vmatprep.mubr.bf16.mxu0 0
        %2304 = vmatmul.mubr.bf16.gmra.mrb[0].mxu0 %v1746
        %v2305 = vpop.f32.mrb[0].mxu0
        %v2306 = vadd.f32 0.0, %v2305
        %v2307 = vpop.f32.mrb[0].mxu0
        %v2308 = vpop.f32.mrb[0].mxu0
        %v2309 = vadd.f32 0.0, %v2308
        %v2310 = vpop.f32.mrb[0].mxu0
        %2311 = vmatprep.mubr.bf16.mxu0 0
        %2312 = vmatmul.mubr.bf16.gmra.mrb[0].mxu0 %v1749
        %v2313 = vpop.f32.mrb[0].mxu0
        %v2314 = vadd.f32 0.0, %v2313
        %v2315 = vpop.f32.mrb[0].mxu0
        %v2316 = vpop.f32.mrb[0].mxu0
        %v2317 = vadd.f32 0.0, %v2316
        %v2318 = vpop.f32.mrb[0].mxu0
        %2319 = vmatprep.mubr.bf16.mxu0 0
        %2320 = vmatmul.mubr.bf16.gmra.mrb[0].mxu0 %v1961
        %v2321 = vpop.f32.mrb[0].mxu0
        %v2322 = vadd.f32 0.0, %v2321
        %v2323 = vpop.f32.mrb[0].mxu0
        %v2324 = vpop.f32.mrb[0].mxu0
        %v2325 = vadd.f32 0.0, %v2324
        %v2326 = vpop.f32.mrb[0].mxu0
        %2327 = vmatprep.mubr.bf16.mxu0 0
        %2328 = vmatmul.mubr.bf16.gmra.mrb[0].mxu0 %v2173
        %v2329 = vpop.f32.mrb[0].mxu0
        %v2330 = vadd.f32 0.0, %v2329
        %v2331 = vpop.f32.mrb[0].mxu0
        %v2332 = vpop.f32.mrb[0].mxu0
        %v2333 = vadd.f32 0.0, %v2332
        %v2334 = vpop.f32.mrb[0].mxu0
        %2335 = vdwg.mxu0
        %v2336 = vadd.f32 %v2124, %v2210
        %v2337 = vadd.f32 %v2125, %v2213
        %v2338 = vadd.f32 %v2126, %v2218
        %v2339 = vadd.f32 %v2127, %v2221
        %v2340 = vadd.f32 %v2128, %v2226
        %v2341 = vadd.f32 %v2129, %v2229
        %v2342 = vadd.f32 %v2130, %v2234
        %v2343 = vadd.f32 %v2131, %v2237
        %v2344 = vadd.f32 %v2132, %v2242
        %v2345 = vadd.f32 %v2133, %v2245
        %v2346 = vadd.f32 %v2134, %v2250
        %v2347 = vadd.f32 %v2135, %v2253
        %v2348 = vadd.f32 %v2136, %v2258
        %v2349 = vadd.f32 %v2137, %v2261
        %v2350 = vadd.f32 %v2138, %v2266
        %v2351 = vadd.f32 %v2139, %v2269
        %v2352 = vadd.f32 %v2140, %v2274
        %v2353 = vadd.f32 %v2141, %v2277
        %v2354 = vadd.f32 %v2142, %v2282
        %v2355 = vadd.f32 %v2143, %v2285
        %v2356 = vadd.f32 %v2144, %v2290
        %v2357 = vadd.f32 %v2145, %v2293
        %v2358 = vadd.f32 %v2146, %v2298
        %v2359 = vadd.f32 %v2147, %v2301
        %v2360 = vadd.f32 %v2148, %v2306
        %v2361 = vadd.f32 %v2149, %v2309
        %v2362 = vadd.f32 %v2150, %v2314
        %v2363 = vadd.f32 %v2151, %v2317
        %v2364 = vadd.f32 %v2152, %v2322
        %v2365 = vadd.f32 %v2153, %v2325
        %v2366 = vadd.f32 %v2154, %v2330
        %v2367 = vadd.f32 %v2155, %v2333
        %v2368 = vld [vmem:[%s3 + $0x60] sm:$0xf]
        %v2369 = vld [vmem:[%s3 + $0x64] sm:$0xf]
        %v2370 = vld [vmem:[%s3 + $0x68] sm:$0xf]
        %v2371 = vld [vmem:[%s3 + $0x6c] sm:$0xf]
        %v2376 = vunpack.c.l.b16 %v2368
        %v2377 = vunpack.c.l.b16 %v2369
        %v2378 = vunpack.c.l.b16 %v2370
        %v2379 = vunpack.c.l.b16 %v2371
        %v2380 = vpack.c.b16 %v2377, %v2376
        %v2381 = vpack.c.b16 %v2379, %v2378
        %v2385 = vsel %vm1089, %v1051, 0
        %v2388 = vsel %vm1089, %v1052, 0
        %v2391 = vsel %vm1089, %v1053, 0
        %v2394 = vsel %vm1089, %v1054, 0
        %v2397 = vsel %vm1089, %v1055, 0
        %v2400 = vsel %vm1089, %v1056, 0
        %v2403 = vsel %vm1089, %v1057, 0
        %v2406 = vsel %vm1089, %v1058, 0
        %v2409 = vsel %vm1089, %v1059, 0
        %v2412 = vsel %vm1089, %v1060, 0
        %v2415 = vsel %vm1089, %v1061, 0
        %v2418 = vsel %vm1089, %v1062, 0
        %v2421 = vsel %vm1089, %v1063, 0
        %v2424 = vsel %vm1089, %v1064, 0
        %v2427 = vsel %vm1089, %v1065, 0
        %v2430 = vsel %vm1089, %v1066, 0
        %2432 = vmatprep.subr.bf16.mxu0 0
        %2433 = vmatpush1.bf16.msra.mxu0 %v2380
        %2434 = vmatprep.subr.bf16.mxu0 0
        %2435 = vmatpush1.bf16.msra.mxu0 %v2381
        %2436 = vmatprep.subr.bf16.mxu0 0
        %2437 = vmatpush1.bf16.msra.mxu0 0
        %2438 = vmatprep.subr.bf16.mxu0 0
        %2439 = vmatpush1.bf16.msra.mxu0 0
        %2440 = vmatprep.subr.bf16.mxu0 0
        %2441 = vmatpush1.bf16.msra.mxu0 0
        %2442 = vmatprep.subr.bf16.mxu0 0
        %2443 = vmatpush1.bf16.msra.mxu0 0
        %2444 = vmatprep.subr.bf16.mxu0 0
        %2445 = vmatpush1.bf16.msra.mxu0 0
        %2446 = vmatprep.subr.bf16.mxu0 0
        %2447 = vmatpush1.bf16.msra.mxu0 0
        %2448 = vmatprep.subr.bf16.mxu0 0
        %2449 = vmatpush1.bf16.msra.mxu0 0
        %2450 = vmatprep.subr.bf16.mxu0 0
        %2451 = vmatpush1.bf16.msra.mxu0 0
        %2452 = vmatprep.subr.bf16.mxu0 0
        %2453 = vmatpush1.bf16.msra.mxu0 0
        %2454 = vmatprep.subr.bf16.mxu0 0
        %2455 = vmatpush1.bf16.msra.mxu0 0
        %2456 = vmatprep.subr.bf16.mxu0 0
        %2457 = vmatpush1.bf16.msra.mxu0 0
        %2458 = vmatprep.subr.bf16.mxu0 0
        %2459 = vmatpush1.bf16.msra.mxu0 0
        %2460 = vmatprep.subr.bf16.mxu0 0
        %2461 = vmatpush1.bf16.msra.mxu0 0
        %2462 = vmatprep.subr.bf16.mxu0 0
        %2463 = vmatpush1.bf16.msra.mxu0 0
        %2464 = vmatprep.mubr.bf16.mxu0 0
        %2465 = vmatmul.mubr.bf16.gmra.mrb[0].mxu0 %v2385
        %v2466 = vpop.f32.mrb[0].mxu0
        %v2467 = vadd.f32 0.0, %v2466
        %v2468 = vpop.f32.mrb[0].mxu0
        %v2469 = vpop.f32.mrb[0].mxu0
        %v2470 = vadd.f32 0.0, %v2469
        %v2471 = vpop.f32.mrb[0].mxu0
        %2472 = vmatprep.mubr.bf16.mxu0 0
        %2473 = vmatmul.mubr.bf16.gmra.mrb[0].mxu0 %v2388
        %v2474 = vpop.f32.mrb[0].mxu0
        %v2475 = vadd.f32 0.0, %v2474
        %v2476 = vpop.f32.mrb[0].mxu0
        %v2477 = vpop.f32.mrb[0].mxu0
        %v2478 = vadd.f32 0.0, %v2477
        %v2479 = vpop.f32.mrb[0].mxu0
        %2480 = vmatprep.mubr.bf16.mxu0 0
        %2481 = vmatmul.mubr.bf16.gmra.mrb[0].mxu0 %v2391
        %v2482 = vpop.f32.mrb[0].mxu0
        %v2483 = vadd.f32 0.0, %v2482
        %v2484 = vpop.f32.mrb[0].mxu0
        %v2485 = vpop.f32.mrb[0].mxu0
        %v2486 = vadd.f32 0.0, %v2485
        %v2487 = vpop.f32.mrb[0].mxu0
        %2488 = vmatprep.mubr.bf16.mxu0 0
        %2489 = vmatmul.mubr.bf16.gmra.mrb[0].mxu0 %v2394
        %v2490 = vpop.f32.mrb[0].mxu0
        %v2491 = vadd.f32 0.0, %v2490
        %v2492 = vpop.f32.mrb[0].mxu0
        %v2493 = vpop.f32.mrb[0].mxu0
        %v2494 = vadd.f32 0.0, %v2493
        %v2495 = vpop.f32.mrb[0].mxu0
        %2496 = vmatprep.mubr.bf16.mxu0 0
        %2497 = vmatmul.mubr.bf16.gmra.mrb[0].mxu0 %v2397
        %v2498 = vpop.f32.mrb[0].mxu0
        %v2499 = vadd.f32 0.0, %v2498
        %v2500 = vpop.f32.mrb[0].mxu0
        %v2501 = vpop.f32.mrb[0].mxu0
        %v2502 = vadd.f32 0.0, %v2501
        %v2503 = vpop.f32.mrb[0].mxu0
        %2504 = vmatprep.mubr.bf16.mxu0 0
        %2505 = vmatmul.mubr.bf16.gmra.mrb[0].mxu0 %v2400
        %v2506 = vpop.f32.mrb[0].mxu0
        %v2507 = vadd.f32 0.0, %v2506
        %v2508 = vpop.f32.mrb[0].mxu0
        %v2509 = vpop.f32.mrb[0].mxu0
        %v2510 = vadd.f32 0.0, %v2509
        %v2511 = vpop.f32.mrb[0].mxu0
        %2512 = vmatprep.mubr.bf16.mxu0 0
        %2513 = vmatmul.mubr.bf16.gmra.mrb[0].mxu0 %v2403
        %v2514 = vpop.f32.mrb[0].mxu0
        %v2515 = vadd.f32 0.0, %v2514
        %v2516 = vpop.f32.mrb[0].mxu0
        %v2517 = vpop.f32.mrb[0].mxu0
        %v2518 = vadd.f32 0.0, %v2517
        %v2519 = vpop.f32.mrb[0].mxu0
        %2520 = vmatprep.mubr.bf16.mxu0 0
        %2521 = vmatmul.mubr.bf16.gmra.mrb[0].mxu0 %v2406
        %v2522 = vpop.f32.mrb[0].mxu0
        %v2523 = vadd.f32 0.0, %v2522
        %v2524 = vpop.f32.mrb[0].mxu0
        %v2525 = vpop.f32.mrb[0].mxu0
        %v2526 = vadd.f32 0.0, %v2525
        %v2527 = vpop.f32.mrb[0].mxu0
        %2528 = vmatprep.mubr.bf16.mxu0 0
        %2529 = vmatmul.mubr.bf16.gmra.mrb[0].mxu0 %v2409
        %v2530 = vpop.f32.mrb[0].mxu0
        %v2531 = vadd.f32 0.0, %v2530
        %v2532 = vpop.f32.mrb[0].mxu0
        %v2533 = vpop.f32.mrb[0].mxu0
        %v2534 = vadd.f32 0.0, %v2533
        %v2535 = vpop.f32.mrb[0].mxu0
        %2536 = vmatprep.mubr.bf16.mxu0 0
        %2537 = vmatmul.mubr.bf16.gmra.mrb[0].mxu0 %v2412
        %v2538 = vpop.f32.mrb[0].mxu0
        %v2539 = vadd.f32 0.0, %v2538
        %v2540 = vpop.f32.mrb[0].mxu0
        %v2541 = vpop.f32.mrb[0].mxu0
        %v2542 = vadd.f32 0.0, %v2541
        %v2543 = vpop.f32.mrb[0].mxu0
        %2544 = vmatprep.mubr.bf16.mxu0 0
        %2545 = vmatmul.mubr.bf16.gmra.mrb[0].mxu0 %v2415
        %v2546 = vpop.f32.mrb[0].mxu0
        %v2547 = vadd.f32 0.0, %v2546
        %v2548 = vpop.f32.mrb[0].mxu0
        %v2549 = vpop.f32.mrb[0].mxu0
        %v2550 = vadd.f32 0.0, %v2549
        %v2551 = vpop.f32.mrb[0].mxu0
        %2552 = vmatprep.mubr.bf16.mxu0 0
        %2553 = vmatmul.mubr.bf16.gmra.mrb[0].mxu0 %v2418
        %v2554 = vpop.f32.mrb[0].mxu0
        %v2555 = vadd.f32 0.0, %v2554
        %v2556 = vpop.f32.mrb[0].mxu0
        %v2557 = vpop.f32.mrb[0].mxu0
        %v2558 = vadd.f32 0.0, %v2557
        %v2559 = vpop.f32.mrb[0].mxu0
        %2560 = vmatprep.mubr.bf16.mxu0 0
        %2561 = vmatmul.mubr.bf16.gmra.mrb[0].mxu0 %v2421
        %v2562 = vpop.f32.mrb[0].mxu0
        %v2563 = vadd.f32 0.0, %v2562
        %v2564 = vpop.f32.mrb[0].mxu0
        %v2565 = vpop.f32.mrb[0].mxu0
        %v2566 = vadd.f32 0.0, %v2565
        %v2567 = vpop.f32.mrb[0].mxu0
        %2568 = vmatprep.mubr.bf16.mxu0 0
        %2569 = vmatmul.mubr.bf16.gmra.mrb[0].mxu0 %v2424
        %v2570 = vpop.f32.mrb[0].mxu0
        %v2571 = vadd.f32 0.0, %v2570
        %v2572 = vpop.f32.mrb[0].mxu0
        %v2573 = vpop.f32.mrb[0].mxu0
        %v2574 = vadd.f32 0.0, %v2573
        %v2575 = vpop.f32.mrb[0].mxu0
        %2576 = vmatprep.mubr.bf16.mxu0 0
        %2577 = vmatmul.mubr.bf16.gmra.mrb[0].mxu0 %v2427
        %v2578 = vpop.f32.mrb[0].mxu0
        %v2579 = vadd.f32 0.0, %v2578
        %v2580 = vpop.f32.mrb[0].mxu0
        %v2581 = vpop.f32.mrb[0].mxu0
        %v2582 = vadd.f32 0.0, %v2581
        %v2583 = vpop.f32.mrb[0].mxu0
        %2584 = vmatprep.mubr.bf16.mxu0 0
        %2585 = vmatmul.mubr.bf16.gmra.mrb[0].mxu0 %v2430
        %v2586 = vpop.f32.mrb[0].mxu0
        %v2587 = vadd.f32 0.0, %v2586
        %v2588 = vpop.f32.mrb[0].mxu0
        %v2589 = vpop.f32.mrb[0].mxu0
        %v2590 = vadd.f32 0.0, %v2589
        %v2591 = vpop.f32.mrb[0].mxu0
        %2592 = vdwg.mxu0
        %v2593 = vadd.f32 %v2336, %v2467
        %v2594 = vadd.f32 %v2337, %v2470
        %v2595 = vadd.f32 %v2338, %v2475
        %v2596 = vadd.f32 %v2339, %v2478
        %v2597 = vadd.f32 %v2340, %v2483
        %v2598 = vadd.f32 %v2341, %v2486
        %v2599 = vadd.f32 %v2342, %v2491
        %v2600 = vadd.f32 %v2343, %v2494
        %v2601 = vadd.f32 %v2344, %v2499
        %v2602 = vadd.f32 %v2345, %v2502
        %v2603 = vadd.f32 %v2346, %v2507
        %v2604 = vadd.f32 %v2347, %v2510
        %v2605 = vadd.f32 %v2348, %v2515
        %v2606 = vadd.f32 %v2349, %v2518
        %v2607 = vadd.f32 %v2350, %v2523
        %v2608 = vadd.f32 %v2351, %v2526
        %v2609 = vadd.f32 %v2352, %v2531
        %v2610 = vadd.f32 %v2353, %v2534
        %v2611 = vadd.f32 %v2354, %v2539
        %v2612 = vadd.f32 %v2355, %v2542
        %v2613 = vadd.f32 %v2356, %v2547
        %v2614 = vadd.f32 %v2357, %v2550
        %v2615 = vadd.f32 %v2358, %v2555
        %v2616 = vadd.f32 %v2359, %v2558
        %v2617 = vadd.f32 %v2360, %v2563
        %v2618 = vadd.f32 %v2361, %v2566
        %v2619 = vadd.f32 %v2362, %v2571
        %v2620 = vadd.f32 %v2363, %v2574
        %v2621 = vadd.f32 %v2364, %v2579
        %v2622 = vadd.f32 %v2365, %v2582
        %v2623 = vadd.f32 %v2366, %v2587
        %v2624 = vadd.f32 %v2367, %v2590
        %v2625 = vld [vmem:[%s3 + $0x70] sm:$0xf]
        %v2626 = vld [vmem:[%s3 + $0x74] sm:$0xf]
        %v2627 = vld [vmem:[%s3 + $0x78] sm:$0xf]
        %v2628 = vld [vmem:[%s3 + $0x7c] sm:$0xf]
        %v2633 = vunpack.c.l.b16 %v2625
        %v2634 = vunpack.c.l.b16 %v2626
        %v2635 = vunpack.c.l.b16 %v2627
        %v2636 = vunpack.c.l.b16 %v2628
        %v2637 = vpack.c.b16 %v2634, %v2633
        %v2638 = vpack.c.b16 %v2636, %v2635
        %v2642 = vsel %vm1089, %v1067, 0
        %2644 = vmatprep.subr.bf16.mxu0 0
        %2645 = vmatpush1.bf16.msra.mxu0 %v2637
        %2646 = vmatprep.subr.bf16.mxu0 0
        %2647 = vmatpush1.bf16.msra.mxu0 %v2638
        %2648 = vmatprep.subr.bf16.mxu0 0
        %2649 = vmatpush1.bf16.msra.mxu0 0
        %2650 = vmatprep.subr.bf16.mxu0 0
        %2651 = vmatpush1.bf16.msra.mxu0 0
        %2652 = vmatprep.subr.bf16.mxu0 0
        %2653 = vmatpush1.bf16.msra.mxu0 0
        %2654 = vmatprep.subr.bf16.mxu0 0
        %2655 = vmatpush1.bf16.msra.mxu0 0
        %2656 = vmatprep.subr.bf16.mxu0 0
        %2657 = vmatpush1.bf16.msra.mxu0 0
        %2658 = vmatprep.subr.bf16.mxu0 0
        %2659 = vmatpush1.bf16.msra.mxu0 0
        %2660 = vmatprep.subr.bf16.mxu0 0
        %2661 = vmatpush1.bf16.msra.mxu0 0
        %2662 = vmatprep.subr.bf16.mxu0 0
        %2663 = vmatpush1.bf16.msra.mxu0 0
        %2664 = vmatprep.subr.bf16.mxu0 0
        %2665 = vmatpush1.bf16.msra.mxu0 0
        %2666 = vmatprep.subr.bf16.mxu0 0
        %2667 = vmatpush1.bf16.msra.mxu0 0
        %2668 = vmatprep.subr.bf16.mxu0 0
        %2669 = vmatpush1.bf16.msra.mxu0 0
        %2670 = vmatprep.subr.bf16.mxu0 0
        %2671 = vmatpush1.bf16.msra.mxu0 0
        %2672 = vmatprep.subr.bf16.mxu0 0
        %2673 = vmatpush1.bf16.msra.mxu0 0
        %2674 = vmatprep.subr.bf16.mxu0 0
        %2675 = vmatpush1.bf16.msra.mxu0 0
        %2676 = vmatprep.mubr.bf16.mxu0 0
        %2677 = vmatmul.mubr.bf16.gmra.mrb[0].mxu0 %v2388
        %v2678 = vpop.f32.mrb[0].mxu0
        %v2679 = vadd.f32 0.0, %v2678
        %v2680 = vpop.f32.mrb[0].mxu0
        %v2681 = vpop.f32.mrb[0].mxu0
        %v2682 = vadd.f32 0.0, %v2681
        %v2683 = vpop.f32.mrb[0].mxu0
        %2684 = vmatprep.mubr.bf16.mxu0 0
        %2685 = vmatmul.mubr.bf16.gmra.mrb[0].mxu0 %v2391
        %v2686 = vpop.f32.mrb[0].mxu0
        %v2687 = vadd.f32 0.0, %v2686
        %v2688 = vpop.f32.mrb[0].mxu0
        %v2689 = vpop.f32.mrb[0].mxu0
        %v2690 = vadd.f32 0.0, %v2689
        %v2691 = vpop.f32.mrb[0].mxu0
        %2692 = vmatprep.mubr.bf16.mxu0 0
        %2693 = vmatmul.mubr.bf16.gmra.mrb[0].mxu0 %v2394
        %v2694 = vpop.f32.mrb[0].mxu0
        %v2695 = vadd.f32 0.0, %v2694
        %v2696 = vpop.f32.mrb[0].mxu0
        %v2697 = vpop.f32.mrb[0].mxu0
        %v2698 = vadd.f32 0.0, %v2697
        %v2699 = vpop.f32.mrb[0].mxu0
        %2700 = vmatprep.mubr.bf16.mxu0 0
        %2701 = vmatmul.mubr.bf16.gmra.mrb[0].mxu0 %v2397
        %v2702 = vpop.f32.mrb[0].mxu0
        %v2703 = vadd.f32 0.0, %v2702
        %v2704 = vpop.f32.mrb[0].mxu0
        %v2705 = vpop.f32.mrb[0].mxu0
        %v2706 = vadd.f32 0.0, %v2705
        %v2707 = vpop.f32.mrb[0].mxu0
        %2708 = vmatprep.mubr.bf16.mxu0 0
        %2709 = vmatmul.mubr.bf16.gmra.mrb[0].mxu0 %v2400
        %v2710 = vpop.f32.mrb[0].mxu0
        %v2711 = vadd.f32 0.0, %v2710
        %v2712 = vpop.f32.mrb[0].mxu0
        %v2713 = vpop.f32.mrb[0].mxu0
        %v2714 = vadd.f32 0.0, %v2713
        %v2715 = vpop.f32.mrb[0].mxu0
        %2716 = vmatprep.mubr.bf16.mxu0 0
        %2717 = vmatmul.mubr.bf16.gmra.mrb[0].mxu0 %v2403
        %v2718 = vpop.f32.mrb[0].mxu0
        %v2719 = vadd.f32 0.0, %v2718
        %v2720 = vpop.f32.mrb[0].mxu0
        %v2721 = vpop.f32.mrb[0].mxu0
        %v2722 = vadd.f32 0.0, %v2721
        %v2723 = vpop.f32.mrb[0].mxu0
        %2724 = vmatprep.mubr.bf16.mxu0 0
        %2725 = vmatmul.mubr.bf16.gmra.mrb[0].mxu0 %v2406
        %v2726 = vpop.f32.mrb[0].mxu0
        %v2727 = vadd.f32 0.0, %v2726
        %v2728 = vpop.f32.mrb[0].mxu0
        %v2729 = vpop.f32.mrb[0].mxu0
        %v2730 = vadd.f32 0.0, %v2729
        %v2731 = vpop.f32.mrb[0].mxu0
        %2732 = vmatprep.mubr.bf16.mxu0 0
        %2733 = vmatmul.mubr.bf16.gmra.mrb[0].mxu0 %v2409
        %v2734 = vpop.f32.mrb[0].mxu0
        %v2735 = vadd.f32 0.0, %v2734
        %v2736 = vpop.f32.mrb[0].mxu0
        %v2737 = vpop.f32.mrb[0].mxu0
        %v2738 = vadd.f32 0.0, %v2737
        %v2739 = vpop.f32.mrb[0].mxu0
        %2740 = vmatprep.mubr.bf16.mxu0 0
        %2741 = vmatmul.mubr.bf16.gmra.mrb[0].mxu0 %v2412
        %v2742 = vpop.f32.mrb[0].mxu0
        %v2743 = vadd.f32 0.0, %v2742
        %v2744 = vpop.f32.mrb[0].mxu0
        %v2745 = vpop.f32.mrb[0].mxu0
        %v2746 = vadd.f32 0.0, %v2745
        %v2747 = vpop.f32.mrb[0].mxu0
        %2748 = vmatprep.mubr.bf16.mxu0 0
        %2749 = vmatmul.mubr.bf16.gmra.mrb[0].mxu0 %v2415
        %v2750 = vpop.f32.mrb[0].mxu0
        %v2751 = vadd.f32 0.0, %v2750
        %v2752 = vpop.f32.mrb[0].mxu0
        %v2753 = vpop.f32.mrb[0].mxu0
        %v2754 = vadd.f32 0.0, %v2753
        %v2755 = vpop.f32.mrb[0].mxu0
        %2756 = vmatprep.mubr.bf16.mxu0 0
        %2757 = vmatmul.mubr.bf16.gmra.mrb[0].mxu0 %v2418
        %v2758 = vpop.f32.mrb[0].mxu0
        %v2759 = vadd.f32 0.0, %v2758
        %v2760 = vpop.f32.mrb[0].mxu0
        %v2761 = vpop.f32.mrb[0].mxu0
        %v2762 = vadd.f32 0.0, %v2761
        %v2763 = vpop.f32.mrb[0].mxu0
        %2764 = vmatprep.mubr.bf16.mxu0 0
        %2765 = vmatmul.mubr.bf16.gmra.mrb[0].mxu0 %v2421
        %v2766 = vpop.f32.mrb[0].mxu0
        %v2767 = vadd.f32 0.0, %v2766
        %v2768 = vpop.f32.mrb[0].mxu0
        %v2769 = vpop.f32.mrb[0].mxu0
        %v2770 = vadd.f32 0.0, %v2769
        %v2771 = vpop.f32.mrb[0].mxu0
        %2772 = vmatprep.mubr.bf16.mxu0 0
        %2773 = vmatmul.mubr.bf16.gmra.mrb[0].mxu0 %v2424
        %v2774 = vpop.f32.mrb[0].mxu0
        %v2775 = vadd.f32 0.0, %v2774
        %v2776 = vpop.f32.mrb[0].mxu0
        %v2777 = vpop.f32.mrb[0].mxu0
        %v2778 = vadd.f32 0.0, %v2777
        %v2779 = vpop.f32.mrb[0].mxu0
        %2780 = vmatprep.mubr.bf16.mxu0 0
        %2781 = vmatmul.mubr.bf16.gmra.mrb[0].mxu0 %v2427
        %v2782 = vpop.f32.mrb[0].mxu0
        %v2783 = vadd.f32 0.0, %v2782
        %v2784 = vpop.f32.mrb[0].mxu0
        %v2785 = vpop.f32.mrb[0].mxu0
        %v2786 = vadd.f32 0.0, %v2785
        %v2787 = vpop.f32.mrb[0].mxu0
        %2788 = vmatprep.mubr.bf16.mxu0 0
        %2789 = vmatmul.mubr.bf16.gmra.mrb[0].mxu0 %v2430
        %v2790 = vpop.f32.mrb[0].mxu0
        %v2791 = vadd.f32 0.0, %v2790
        %v2792 = vpop.f32.mrb[0].mxu0
        %v2793 = vpop.f32.mrb[0].mxu0
        %v2794 = vadd.f32 0.0, %v2793
        %v2795 = vpop.f32.mrb[0].mxu0
        %2796 = vmatprep.mubr.bf16.mxu0 0
        %2797 = vmatmul.mubr.bf16.gmra.mrb[0].mxu0 %v2642
        %v2798 = vpop.f32.mrb[0].mxu0
        %v2799 = vadd.f32 0.0, %v2798
        %v2800 = vpop.f32.mrb[0].mxu0
        %v2801 = vpop.f32.mrb[0].mxu0
        %v2802 = vadd.f32 0.0, %v2801
        %v2803 = vpop.f32.mrb[0].mxu0
        %2804 = vdwg.mxu0
        %v2805 = vadd.f32 %v2593, %v2679
        %v2806 = vadd.f32 %v2594, %v2682
        %v2807 = vadd.f32 %v2595, %v2687
        %v2808 = vadd.f32 %v2596, %v2690
        %v2809 = vadd.f32 %v2597, %v2695
        %v2810 = vadd.f32 %v2598, %v2698
        %v2811 = vadd.f32 %v2599, %v2703
        %v2812 = vadd.f32 %v2600, %v2706
        %v2813 = vadd.f32 %v2601, %v2711
        %v2814 = vadd.f32 %v2602, %v2714
        %v2815 = vadd.f32 %v2603, %v2719
        %v2816 = vadd.f32 %v2604, %v2722
        %v2817 = vadd.f32 %v2605, %v2727
        %v2818 = vadd.f32 %v2606, %v2730
        %v2819 = vadd.f32 %v2607, %v2735
        %v2820 = vadd.f32 %v2608, %v2738
        %v2821 = vadd.f32 %v2609, %v2743
        %v2822 = vadd.f32 %v2610, %v2746
        %v2823 = vadd.f32 %v2611, %v2751
        %v2824 = vadd.f32 %v2612, %v2754
        %v2825 = vadd.f32 %v2613, %v2759
        %v2826 = vadd.f32 %v2614, %v2762
        %v2827 = vadd.f32 %v2615, %v2767
        %v2828 = vadd.f32 %v2616, %v2770
        %v2829 = vadd.f32 %v2617, %v2775
        %v2830 = vadd.f32 %v2618, %v2778
        %v2831 = vadd.f32 %v2619, %v2783
        %v2832 = vadd.f32 %v2620, %v2786
        %v2833 = vadd.f32 %v2621, %v2791
        %v2834 = vadd.f32 %v2622, %v2794
        %v2835 = vadd.f32 %v2623, %v2799
        %v2836 = vadd.f32 %v2624, %v2802
        %v2837 = vld [vmem:[%s3 + $0x80] sm:$0xf]
        %v2838 = vld [vmem:[%s3 + $0x84] sm:$0xf]
        %v2839 = vld [vmem:[%s3 + $0x88] sm:$0xf]
        %v2840 = vld [vmem:[%s3 + $0x8c] sm:$0xf]
        %v2845 = vunpack.c.l.b16 %v2837
        %v2846 = vunpack.c.l.b16 %v2838
        %v2847 = vunpack.c.l.b16 %v2839
        %v2848 = vunpack.c.l.b16 %v2840
        %v2849 = vpack.c.b16 %v2846, %v2845
        %v2850 = vpack.c.b16 %v2848, %v2847
        %v2854 = vsel %vm1089, %v1068, 0
        %2856 = vmatprep.subr.bf16.mxu0 0
        %2857 = vmatpush1.bf16.msra.mxu0 %v2849
        %2858 = vmatprep.subr.bf16.mxu0 0
        %2859 = vmatpush1.bf16.msra.mxu0 %v2850
        %2860 = vmatprep.subr.bf16.mxu0 0
        %2861 = vmatpush1.bf16.msra.mxu0 0
        %2862 = vmatprep.subr.bf16.mxu0 0
        %2863 = vmatpush1.bf16.msra.mxu0 0
        %2864 = vmatprep.subr.bf16.mxu0 0
        %2865 = vmatpush1.bf16.msra.mxu0 0
        %2866 = vmatprep.subr.bf16.mxu0 0
        %2867 = vmatpush1.bf16.msra.mxu0 0
        %2868 = vmatprep.subr.bf16.mxu0 0
        %2869 = vmatpush1.bf16.msra.mxu0 0
        %2870 = vmatprep.subr.bf16.mxu0 0
        %2871 = vmatpush1.bf16.msra.mxu0 0
        %2872 = vmatprep.subr.bf16.mxu0 0
        %2873 = vmatpush1.bf16.msra.mxu0 0
        %2874 = vmatprep.subr.bf16.mxu0 0
        %2875 = vmatpush1.bf16.msra.mxu0 0
        %2876 = vmatprep.subr.bf16.mxu0 0
        %2877 = vmatpush1.bf16.msra.mxu0 0
        %2878 = vmatprep.subr.bf16.mxu0 0
        %2879 = vmatpush1.bf16.msra.mxu0 0
        %2880 = vmatprep.subr.bf16.mxu0 0
        %2881 = vmatpush1.bf16.msra.mxu0 0
        %2882 = vmatprep.subr.bf16.mxu0 0
        %2883 = vmatpush1.bf16.msra.mxu0 0
        %2884 = vmatprep.subr.bf16.mxu0 0
        %2885 = vmatpush1.bf16.msra.mxu0 0
        %2886 = vmatprep.subr.bf16.mxu0 0
        %2887 = vmatpush1.bf16.msra.mxu0 0
        %2888 = vmatprep.mubr.bf16.mxu0 0
        %2889 = vmatmul.mubr.bf16.gmra.mrb[0].mxu0 %v2391
        %v2890 = vpop.f32.mrb[0].mxu0
        %v2891 = vadd.f32 0.0, %v2890
        %v2892 = vpop.f32.mrb[0].mxu0
        %v2893 = vpop.f32.mrb[0].mxu0
        %v2894 = vadd.f32 0.0, %v2893
        %v2895 = vpop.f32.mrb[0].mxu0
        %2896 = vmatprep.mubr.bf16.mxu0 0
        %2897 = vmatmul.mubr.bf16.gmra.mrb[0].mxu0 %v2394
        %v2898 = vpop.f32.mrb[0].mxu0
        %v2899 = vadd.f32 0.0, %v2898
        %v2900 = vpop.f32.mrb[0].mxu0
        %v2901 = vpop.f32.mrb[0].mxu0
        %v2902 = vadd.f32 0.0, %v2901
        %v2903 = vpop.f32.mrb[0].mxu0
        %2904 = vmatprep.mubr.bf16.mxu0 0
        %2905 = vmatmul.mubr.bf16.gmra.mrb[0].mxu0 %v2397
        %v2906 = vpop.f32.mrb[0].mxu0
        %v2907 = vadd.f32 0.0, %v2906
        %v2908 = vpop.f32.mrb[0].mxu0
        %v2909 = vpop.f32.mrb[0].mxu0
        %v2910 = vadd.f32 0.0, %v2909
        %v2911 = vpop.f32.mrb[0].mxu0
        %2912 = vmatprep.mubr.bf16.mxu0 0
        %2913 = vmatmul.mubr.bf16.gmra.mrb[0].mxu0 %v2400
        %v2914 = vpop.f32.mrb[0].mxu0
        %v2915 = vadd.f32 0.0, %v2914
        %v2916 = vpop.f32.mrb[0].mxu0
        %v2917 = vpop.f32.mrb[0].mxu0
        %v2918 = vadd.f32 0.0, %v2917
        %v2919 = vpop.f32.mrb[0].mxu0
        %2920 = vmatprep.mubr.bf16.mxu0 0
        %2921 = vmatmul.mubr.bf16.gmra.mrb[0].mxu0 %v2403
        %v2922 = vpop.f32.mrb[0].mxu0
        %v2923 = vadd.f32 0.0, %v2922
        %v2924 = vpop.f32.mrb[0].mxu0
        %v2925 = vpop.f32.mrb[0].mxu0
        %v2926 = vadd.f32 0.0, %v2925
        %v2927 = vpop.f32.mrb[0].mxu0
        %2928 = vmatprep.mubr.bf16.mxu0 0
        %2929 = vmatmul.mubr.bf16.gmra.mrb[0].mxu0 %v2406
        %v2930 = vpop.f32.mrb[0].mxu0
        %v2931 = vadd.f32 0.0, %v2930
        %v2932 = vpop.f32.mrb[0].mxu0
        %v2933 = vpop.f32.mrb[0].mxu0
        %v2934 = vadd.f32 0.0, %v2933
        %v2935 = vpop.f32.mrb[0].mxu0
        %2936 = vmatprep.mubr.bf16.mxu0 0
        %2937 = vmatmul.mubr.bf16.gmra.mrb[0].mxu0 %v2409
        %v2938 = vpop.f32.mrb[0].mxu0
        %v2939 = vadd.f32 0.0, %v2938
        %v2940 = vpop.f32.mrb[0].mxu0
        %v2941 = vpop.f32.mrb[0].mxu0
        %v2942 = vadd.f32 0.0, %v2941
        %v2943 = vpop.f32.mrb[0].mxu0
        %2944 = vmatprep.mubr.bf16.mxu0 0
        %2945 = vmatmul.mubr.bf16.gmra.mrb[0].mxu0 %v2412
        %v2946 = vpop.f32.mrb[0].mxu0
        %v2947 = vadd.f32 0.0, %v2946
        %v2948 = vpop.f32.mrb[0].mxu0
        %v2949 = vpop.f32.mrb[0].mxu0
        %v2950 = vadd.f32 0.0, %v2949
        %v2951 = vpop.f32.mrb[0].mxu0
        %2952 = vmatprep.mubr.bf16.mxu0 0
        %2953 = vmatmul.mubr.bf16.gmra.mrb[0].mxu0 %v2415
        %v2954 = vpop.f32.mrb[0].mxu0
        %v2955 = vadd.f32 0.0, %v2954
        %v2956 = vpop.f32.mrb[0].mxu0
        %v2957 = vpop.f32.mrb[0].mxu0
        %v2958 = vadd.f32 0.0, %v2957
        %v2959 = vpop.f32.mrb[0].mxu0
        %2960 = vmatprep.mubr.bf16.mxu0 0
        %2961 = vmatmul.mubr.bf16.gmra.mrb[0].mxu0 %v2418
        %v2962 = vpop.f32.mrb[0].mxu0
        %v2963 = vadd.f32 0.0, %v2962
        %v2964 = vpop.f32.mrb[0].mxu0
        %v2965 = vpop.f32.mrb[0].mxu0
        %v2966 = vadd.f32 0.0, %v2965
        %v2967 = vpop.f32.mrb[0].mxu0
        %2968 = vmatprep.mubr.bf16.mxu0 0
        %2969 = vmatmul.mubr.bf16.gmra.mrb[0].mxu0 %v2421
        %v2970 = vpop.f32.mrb[0].mxu0
        %v2971 = vadd.f32 0.0, %v2970
        %v2972 = vpop.f32.mrb[0].mxu0
        %v2973 = vpop.f32.mrb[0].mxu0
        %v2974 = vadd.f32 0.0, %v2973
        %v2975 = vpop.f32.mrb[0].mxu0
        %2976 = vmatprep.mubr.bf16.mxu0 0
        %2977 = vmatmul.mubr.bf16.gmra.mrb[0].mxu0 %v2424
        %v2978 = vpop.f32.mrb[0].mxu0
        %v2979 = vadd.f32 0.0, %v2978
        %v2980 = vpop.f32.mrb[0].mxu0
        %v2981 = vpop.f32.mrb[0].mxu0
        %v2982 = vadd.f32 0.0, %v2981
        %v2983 = vpop.f32.mrb[0].mxu0
        %2984 = vmatprep.mubr.bf16.mxu0 0
        %2985 = vmatmul.mubr.bf16.gmra.mrb[0].mxu0 %v2427
        %v2986 = vpop.f32.mrb[0].mxu0
        %v2987 = vadd.f32 0.0, %v2986
        %v2988 = vpop.f32.mrb[0].mxu0
        %v2989 = vpop.f32.mrb[0].mxu0
        %v2990 = vadd.f32 0.0, %v2989
        %v2991 = vpop.f32.mrb[0].mxu0
        %2992 = vmatprep.mubr.bf16.mxu0 0
        %2993 = vmatmul.mubr.bf16.gmra.mrb[0].mxu0 %v2430
        %v2994 = vpop.f32.mrb[0].mxu0
        %v2995 = vadd.f32 0.0, %v2994
        %v2996 = vpop.f32.mrb[0].mxu0
        %v2997 = vpop.f32.mrb[0].mxu0
        %v2998 = vadd.f32 0.0, %v2997
        %v2999 = vpop.f32.mrb[0].mxu0
        %3000 = vmatprep.mubr.bf16.mxu0 0
        %3001 = vmatmul.mubr.bf16.gmra.mrb[0].mxu0 %v2642
        %v3002 = vpop.f32.mrb[0].mxu0
        %v3003 = vadd.f32 0.0, %v3002
        %v3004 = vpop.f32.mrb[0].mxu0
        %v3005 = vpop.f32.mrb[0].mxu0
        %v3006 = vadd.f32 0.0, %v3005
        %v3007 = vpop.f32.mrb[0].mxu0
        %3008 = vmatprep.mubr.bf16.mxu0 0
        %3009 = vmatmul.mubr.bf16.gmra.mrb[0].mxu0 %v2854
        %v3010 = vpop.f32.mrb[0].mxu0
        %v3011 = vadd.f32 0.0, %v3010
        %v3012 = vpop.f32.mrb[0].mxu0
        %v3013 = vpop.f32.mrb[0].mxu0
        %v3014 = vadd.f32 0.0, %v3013
        %v3015 = vpop.f32.mrb[0].mxu0
        %3016 = vdwg.mxu0
        %v3017 = vadd.f32 %v2805, %v2891
        %v3018 = vadd.f32 %v2806, %v2894
        %v3019 = vadd.f32 %v2807, %v2899
        %v3020 = vadd.f32 %v2808, %v2902
        %v3021 = vadd.f32 %v2809, %v2907
        %v3022 = vadd.f32 %v2810, %v2910
        %v3023 = vadd.f32 %v2811, %v2915
        %v3024 = vadd.f32 %v2812, %v2918
        %v3025 = vadd.f32 %v2813, %v2923
        %v3026 = vadd.f32 %v2814, %v2926
        %v3027 = vadd.f32 %v2815, %v2931
        %v3028 = vadd.f32 %v2816, %v2934
        %v3029 = vadd.f32 %v2817, %v2939
        %v3030 = vadd.f32 %v2818, %v2942
        %v3031 = vadd.f32 %v2819, %v2947
        %v3032 = vadd.f32 %v2820, %v2950
        %v3033 = vadd.f32 %v2821, %v2955
        %v3034 = vadd.f32 %v2822, %v2958
        %v3035 = vadd.f32 %v2823, %v2963
        %v3036 = vadd.f32 %v2824, %v2966
        %v3037 = vadd.f32 %v2825, %v2971
        %v3038 = vadd.f32 %v2826, %v2974
        %v3039 = vadd.f32 %v2827, %v2979
        %v3040 = vadd.f32 %v2828, %v2982
        %v3041 = vadd.f32 %v2829, %v2987
        %v3042 = vadd.f32 %v2830, %v2990
        %v3043 = vadd.f32 %v2831, %v2995
        %v3044 = vadd.f32 %v2832, %v2998
        %v3045 = vadd.f32 %v2833, %v3003
        %v3046 = vadd.f32 %v2834, %v3006
        %v3047 = vadd.f32 %v2835, %v3011
        %v3048 = vadd.f32 %v2836, %v3014
        %v3049 = vld [vmem:[%s4] sm:$0x1]
        %v3051 = vlaneseq
        %v3052 = vshrl.u32 %v3051, 7
        %v3053 = vsub.s32 0, %v3052
        %v3054 = vrot.slane %v3049, %v3053
        %v3056 = vadd.f32 %v3017, %v3054
        %v3057 = vadd.f32 %v3018, %v3054
        %v3058 = vadd.f32 %v3019, %v3054
        %v3059 = vadd.f32 %v3020, %v3054
        %v3060 = vadd.f32 %v3021, %v3054
        %v3061 = vadd.f32 %v3022, %v3054
        %v3062 = vadd.f32 %v3023, %v3054
        %v3063 = vadd.f32 %v3024, %v3054
        %v3064 = vadd.f32 %v3025, %v3054
        %v3065 = vadd.f32 %v3026, %v3054
        %v3066 = vadd.f32 %v3027, %v3054
        %v3067 = vadd.f32 %v3028, %v3054
        %v3068 = vadd.f32 %v3029, %v3054
        %v3069 = vadd.f32 %v3030, %v3054
        %v3070 = vadd.f32 %v3031, %v3054
        %v3071 = vadd.f32 %v3032, %v3054
        %v3072 = vadd.f32 %v3033, %v3054
        %v3073 = vadd.f32 %v3034, %v3054
        %v3074 = vadd.f32 %v3035, %v3054
        %v3075 = vadd.f32 %v3036, %v3054
        %v3076 = vadd.f32 %v3037, %v3054
        %v3077 = vadd.f32 %v3038, %v3054
        %v3078 = vadd.f32 %v3039, %v3054
        %v3079 = vadd.f32 %v3040, %v3054
        %v3080 = vadd.f32 %v3041, %v3054
        %v3081 = vadd.f32 %v3042, %v3054
        %v3082 = vadd.f32 %v3043, %v3054
        %v3083 = vadd.f32 %v3044, %v3054
        %v3084 = vadd.f32 %v3045, %v3054
        %v3085 = vadd.f32 %v3046, %v3054
        %v3086 = vadd.f32 %v3047, %v3054
        %v3087 = vadd.f32 %v3048, %v3054
        %v3088 = vmax.f32 %v3056, 0.0
        %v3089 = vmax.f32 %v3057, 0.0
        %v3090 = vmax.f32 %v3058, 0.0
        %v3091 = vmax.f32 %v3059, 0.0
        %v3092 = vmax.f32 %v3060, 0.0
        %v3093 = vmax.f32 %v3061, 0.0
        %v3094 = vmax.f32 %v3062, 0.0
        %v3095 = vmax.f32 %v3063, 0.0
        %v3096 = vmax.f32 %v3064, 0.0
        %v3097 = vmax.f32 %v3065, 0.0
        %v3098 = vmax.f32 %v3066, 0.0
        %v3099 = vmax.f32 %v3067, 0.0
        %v3100 = vmax.f32 %v3068, 0.0
        %v3101 = vmax.f32 %v3069, 0.0
        %v3102 = vmax.f32 %v3070, 0.0
        %v3103 = vmax.f32 %v3071, 0.0
        %v3104 = vmax.f32 %v3072, 0.0
        %v3105 = vmax.f32 %v3073, 0.0
        %v3106 = vmax.f32 %v3074, 0.0
        %v3107 = vmax.f32 %v3075, 0.0
        %v3108 = vmax.f32 %v3076, 0.0
        %v3109 = vmax.f32 %v3077, 0.0
        %v3110 = vmax.f32 %v3078, 0.0
        %v3111 = vmax.f32 %v3079, 0.0
        %v3112 = vmax.f32 %v3080, 0.0
        %v3113 = vmax.f32 %v3081, 0.0
        %v3114 = vmax.f32 %v3082, 0.0
        %v3115 = vmax.f32 %v3083, 0.0
        %v3116 = vmax.f32 %v3084, 0.0
        %v3117 = vmax.f32 %v3085, 0.0
        %v3118 = vmax.f32 %v3086, 0.0
        %v3119 = vmax.f32 %v3087, 0.0
        %v3120 = vpack.c.bf16 %v3089, %v3088
        %v3121 = vpack.c.bf16 %v3091, %v3090
        %v3122 = vpack.c.bf16 %v3093, %v3092
        %v3123 = vpack.c.bf16 %v3095, %v3094
        %v3124 = vpack.c.bf16 %v3097, %v3096
        %v3125 = vpack.c.bf16 %v3099, %v3098
        %v3126 = vpack.c.bf16 %v3101, %v3100
        %v3127 = vpack.c.bf16 %v3103, %v3102
        %v3128 = vpack.c.bf16 %v3105, %v3104
        %v3129 = vpack.c.bf16 %v3107, %v3106
        %v3130 = vpack.c.bf16 %v3109, %v3108
        %v3131 = vpack.c.bf16 %v3111, %v3110
        %v3132 = vpack.c.bf16 %v3113, %v3112
        %v3133 = vpack.c.bf16 %v3115, %v3114
        %v3134 = vpack.c.bf16 %v3117, %v3116
        %v3135 = vpack.c.bf16 %v3119, %v3118
        %v3136 = vld [vmem:[%s5] sm:$0xf]
        %v3137 = vld [vmem:[%s5 + $0x4] sm:$0xf]
        %v3138 = vld [vmem:[%s5 + $0x8] sm:$0xf]
        %v3139 = vld [vmem:[%s5 + $0xc] sm:$0xf]
        %v3140 = vld [vmem:[%s6] sm:$0x1]
        %v3142 = vlaneseq
        %v3143 = vshrl.u32 %v3142, 7
        %v3144 = vsub.s32 0, %v3143
        %v3145 = vrot.slane %v3140, %v3144
        %v3151 = vunpack.c.l.b16 %v3136
        %v3152 = vunpack.c.l.b16 %v3137
        %v3153 = vunpack.c.l.b16 %v3138
        %v3154 = vunpack.c.l.b16 %v3139
        %v3155 = vpack.c.b16 %v3152, %v3151
        %v3156 = vpack.c.b16 %v3154, %v3153
        %v3160 = vsel %vm1089, %v3120, 0
        %v3163 = vsel %vm1089, %v3121, 0
        %v3166 = vsel %vm1089, %v3122, 0
        %v3169 = vsel %vm1089, %v3123, 0
        %v3172 = vsel %vm1089, %v3124, 0
        %v3175 = vsel %vm1089, %v3125, 0
        %v3178 = vsel %vm1089, %v3126, 0
        %v3181 = vsel %vm1089, %v3127, 0
        %v3184 = vsel %vm1089, %v3128, 0
        %v3187 = vsel %vm1089, %v3129, 0
        %v3190 = vsel %vm1089, %v3130, 0
        %v3193 = vsel %vm1089, %v3131, 0
        %v3196 = vsel %vm1089, %v3132, 0
        %v3199 = vsel %vm1089, %v3133, 0
        %v3202 = vsel %vm1089, %v3134, 0
        %v3205 = vsel %vm1089, %v3135, 0
        %3207 = vmatprep.subr.bf16.mxu0 0
        %3208 = vmatpush1.bf16.msra.mxu0 %v3155
        %3209 = vmatprep.subr.bf16.mxu0 0
        %3210 = vmatpush1.bf16.msra.mxu0 %v3156
        %3211 = vmatprep.subr.bf16.mxu0 0
        %3212 = vmatpush1.bf16.msra.mxu0 0
        %3213 = vmatprep.subr.bf16.mxu0 0
        %3214 = vmatpush1.bf16.msra.mxu0 0
        %3215 = vmatprep.subr.bf16.mxu0 0
        %3216 = vmatpush1.bf16.msra.mxu0 0
        %3217 = vmatprep.subr.bf16.mxu0 0
        %3218 = vmatpush1.bf16.msra.mxu0 0
        %3219 = vmatprep.subr.bf16.mxu0 0
        %3220 = vmatpush1.bf16.msra.mxu0 0
        %3221 = vmatprep.subr.bf16.mxu0 0
        %3222 = vmatpush1.bf16.msra.mxu0 0
        %3223 = vmatprep.subr.bf16.mxu0 0
        %3224 = vmatpush1.bf16.msra.mxu0 0
        %3225 = vmatprep.subr.bf16.mxu0 0
        %3226 = vmatpush1.bf16.msra.mxu0 0
        %3227 = vmatprep.subr.bf16.mxu0 0
        %3228 = vmatpush1.bf16.msra.mxu0 0
        %3229 = vmatprep.subr.bf16.mxu0 0
        %3230 = vmatpush1.bf16.msra.mxu0 0
        %3231 = vmatprep.subr.bf16.mxu0 0
        %3232 = vmatpush1.bf16.msra.mxu0 0
        %3233 = vmatprep.subr.bf16.mxu0 0
        %3234 = vmatpush1.bf16.msra.mxu0 0
        %3235 = vmatprep.subr.bf16.mxu0 0
        %3236 = vmatpush1.bf16.msra.mxu0 0
        %3237 = vmatprep.subr.bf16.mxu0 0
        %3238 = vmatpush1.bf16.msra.mxu0 0
        %3239 = vmatprep.mubr.bf16.mxu0 0
        %3240 = vmatmul.mubr.bf16.gmra.mrb[0].mxu0 %v3160
        %v3241 = vpop.f32.mrb[0].mxu0
        %v3242 = vadd.f32 %v3145, %v3241
        %v3243 = vpop.f32.mrb[0].mxu0
        %v3244 = vpop.f32.mrb[0].mxu0
        %v3245 = vadd.f32 %v3145, %v3244
        %v3246 = vpop.f32.mrb[0].mxu0
        %3247 = vmatprep.mubr.bf16.mxu0 0
        %3248 = vmatmul.mubr.bf16.gmra.mrb[0].mxu0 %v3163
        %v3249 = vpop.f32.mrb[0].mxu0
        %v3250 = vadd.f32 %v3145, %v3249
        %v3251 = vpop.f32.mrb[0].mxu0
        %v3252 = vpop.f32.mrb[0].mxu0
        %v3253 = vadd.f32 %v3145, %v3252
        %v3254 = vpop.f32.mrb[0].mxu0
        %3255 = vmatprep.mubr.bf16.mxu0 0
        %3256 = vmatmul.mubr.bf16.gmra.mrb[0].mxu0 %v3166
        %v3257 = vpop.f32.mrb[0].mxu0
        %v3258 = vadd.f32 %v3145, %v3257
        %v3259 = vpop.f32.mrb[0].mxu0
        %v3260 = vpop.f32.mrb[0].mxu0
        %v3261 = vadd.f32 %v3145, %v3260
        %v3262 = vpop.f32.mrb[0].mxu0
        %3263 = vmatprep.mubr.bf16.mxu0 0
        %3264 = vmatmul.mubr.bf16.gmra.mrb[0].mxu0 %v3169
        %v3265 = vpop.f32.mrb[0].mxu0
        %v3266 = vadd.f32 %v3145, %v3265
        %v3267 = vpop.f32.mrb[0].mxu0
        %v3268 = vpop.f32.mrb[0].mxu0
        %v3269 = vadd.f32 %v3145, %v3268
        %v3270 = vpop.f32.mrb[0].mxu0
        %3271 = vmatprep.mubr.bf16.mxu0 0
        %3272 = vmatmul.mubr.bf16.gmra.mrb[0].mxu0 %v3172
        %v3273 = vpop.f32.mrb[0].mxu0
        %v3274 = vadd.f32 %v3145, %v3273
        %v3275 = vpop.f32.mrb[0].mxu0
        %v3276 = vpop.f32.mrb[0].mxu0
        %v3277 = vadd.f32 %v3145, %v3276
        %v3278 = vpop.f32.mrb[0].mxu0
        %3279 = vmatprep.mubr.bf16.mxu0 0
        %3280 = vmatmul.mubr.bf16.gmra.mrb[0].mxu0 %v3175
        %v3281 = vpop.f32.mrb[0].mxu0
        %v3282 = vadd.f32 %v3145, %v3281
        %v3283 = vpop.f32.mrb[0].mxu0
        %v3284 = vpop.f32.mrb[0].mxu0
        %v3285 = vadd.f32 %v3145, %v3284
        %v3286 = vpop.f32.mrb[0].mxu0
        %3287 = vmatprep.mubr.bf16.mxu0 0
        %3288 = vmatmul.mubr.bf16.gmra.mrb[0].mxu0 %v3178
        %v3289 = vpop.f32.mrb[0].mxu0
        %v3290 = vadd.f32 %v3145, %v3289
        %v3291 = vpop.f32.mrb[0].mxu0
        %v3292 = vpop.f32.mrb[0].mxu0
        %v3293 = vadd.f32 %v3145, %v3292
        %v3294 = vpop.f32.mrb[0].mxu0
        %3295 = vmatprep.mubr.bf16.mxu0 0
        %3296 = vmatmul.mubr.bf16.gmra.mrb[0].mxu0 %v3181
        %v3297 = vpop.f32.mrb[0].mxu0
        %v3298 = vadd.f32 %v3145, %v3297
        %v3299 = vpop.f32.mrb[0].mxu0
        %v3300 = vpop.f32.mrb[0].mxu0
        %v3301 = vadd.f32 %v3145, %v3300
        %v3302 = vpop.f32.mrb[0].mxu0
        %3303 = vmatprep.mubr.bf16.mxu0 0
        %3304 = vmatmul.mubr.bf16.gmra.mrb[0].mxu0 %v3184
        %v3305 = vpop.f32.mrb[0].mxu0
        %v3306 = vadd.f32 %v3145, %v3305
        %v3307 = vpop.f32.mrb[0].mxu0
        %v3308 = vpop.f32.mrb[0].mxu0
        %v3309 = vadd.f32 %v3145, %v3308
        %v3310 = vpop.f32.mrb[0].mxu0
        %3311 = vmatprep.mubr.bf16.mxu0 0
        %3312 = vmatmul.mubr.bf16.gmra.mrb[0].mxu0 %v3187
        %v3313 = vpop.f32.mrb[0].mxu0
        %v3314 = vadd.f32 %v3145, %v3313
        %v3315 = vpop.f32.mrb[0].mxu0
        %v3316 = vpop.f32.mrb[0].mxu0
        %v3317 = vadd.f32 %v3145, %v3316
        %v3318 = vpop.f32.mrb[0].mxu0
        %3319 = vmatprep.mubr.bf16.mxu0 0
        %3320 = vmatmul.mubr.bf16.gmra.mrb[0].mxu0 %v3190
        %v3321 = vpop.f32.mrb[0].mxu0
        %v3322 = vadd.f32 %v3145, %v3321
        %v3323 = vpop.f32.mrb[0].mxu0
        %v3324 = vpop.f32.mrb[0].mxu0
        %v3325 = vadd.f32 %v3145, %v3324
        %v3326 = vpop.f32.mrb[0].mxu0
        %3327 = vmatprep.mubr.bf16.mxu0 0
        %3328 = vmatmul.mubr.bf16.gmra.mrb[0].mxu0 %v3193
        %v3329 = vpop.f32.mrb[0].mxu0
        %v3330 = vadd.f32 %v3145, %v3329
        %v3331 = vpop.f32.mrb[0].mxu0
        %v3332 = vpop.f32.mrb[0].mxu0
        %v3333 = vadd.f32 %v3145, %v3332
        %v3334 = vpop.f32.mrb[0].mxu0
        %3335 = vmatprep.mubr.bf16.mxu0 0
        %3336 = vmatmul.mubr.bf16.gmra.mrb[0].mxu0 %v3196
        %v3337 = vpop.f32.mrb[0].mxu0
        %v3338 = vadd.f32 %v3145, %v3337
        %v3339 = vpop.f32.mrb[0].mxu0
        %v3340 = vpop.f32.mrb[0].mxu0
        %v3341 = vadd.f32 %v3145, %v3340
        %v3342 = vpop.f32.mrb[0].mxu0
        %3343 = vmatprep.mubr.bf16.mxu0 0
        %3344 = vmatmul.mubr.bf16.gmra.mrb[0].mxu0 %v3199
        %v3345 = vpop.f32.mrb[0].mxu0
        %v3346 = vadd.f32 %v3145, %v3345
        %v3347 = vpop.f32.mrb[0].mxu0
        %v3348 = vpop.f32.mrb[0].mxu0
        %v3349 = vadd.f32 %v3145, %v3348
        %v3350 = vpop.f32.mrb[0].mxu0
        %3351 = vmatprep.mubr.bf16.mxu0 0
        %3352 = vmatmul.mubr.bf16.gmra.mrb[0].mxu0 %v3202
        %v3353 = vpop.f32.mrb[0].mxu0
        %v3354 = vadd.f32 %v3145, %v3353
        %v3355 = vpop.f32.mrb[0].mxu0
        %v3356 = vpop.f32.mrb[0].mxu0
        %v3357 = vadd.f32 %v3145, %v3356
        %v3358 = vpop.f32.mrb[0].mxu0
        %3359 = vmatprep.mubr.bf16.mxu0 0
        %3360 = vmatmul.mubr.bf16.gmra.mrb[0].mxu0 %v3205
        %v3361 = vpop.f32.mrb[0].mxu0
        %v3362 = vadd.f32 %v3145, %v3361
        %v3363 = vpop.f32.mrb[0].mxu0
        %v3364 = vpop.f32.mrb[0].mxu0
        %v3365 = vadd.f32 %v3145, %v3364
        %v3366 = vpop.f32.mrb[0].mxu0
        %3367 = vdwg.mxu0
        %v3368 = vunpack.c.l.bf16 %v297
        %v3369 = vunpack.c.l.bf16 %v298
        %v3370 = vunpack.c.l.bf16 %v299
        %v3371 = vunpack.c.l.bf16 %v300
        %v3372 = vunpack.c.l.bf16 %v301
        %v3373 = vunpack.c.l.bf16 %v302
        %v3374 = vunpack.c.l.bf16 %v303
        %v3375 = vunpack.c.l.bf16 %v304
        %v3376 = vunpack.c.l.bf16 %v305
        %v3377 = vunpack.c.l.bf16 %v306
        %v3378 = vunpack.c.l.bf16 %v307
        %v3379 = vunpack.c.l.bf16 %v308
        %v3380 = vunpack.c.l.bf16 %v309
        %v3381 = vunpack.c.l.bf16 %v310
        %v3382 = vunpack.c.l.bf16 %v311
        %v3383 = vunpack.c.l.bf16 %v312
        %v3384 = vunpack.c.l.bf16 %v313
        %v3385 = vunpack.c.l.bf16 %v314
        %v3386 = vunpack.c.l.bf16 %v315
        %v3387 = vunpack.c.l.bf16 %v316
        %v3388 = vunpack.c.l.bf16 %v317
        %v3389 = vunpack.c.l.bf16 %v318
        %v3390 = vunpack.c.l.bf16 %v319
        %v3391 = vunpack.c.l.bf16 %v320
        %v3392 = vunpack.c.l.bf16 %v321
        %v3393 = vunpack.c.l.bf16 %v322
        %v3394 = vunpack.c.l.bf16 %v323
        %v3395 = vunpack.c.l.bf16 %v324
        %v3396 = vunpack.c.l.bf16 %v325
        %v3397 = vunpack.c.l.bf16 %v326
        %v3398 = vunpack.c.l.bf16 %v327
        %v3399 = vunpack.c.l.bf16 %v328
        %v3400 = vadd.f32 %v3242, %v3368
        %v3401 = vadd.f32 %v3245, %v3369
        %v3402 = vadd.f32 %v3250, %v3370
        %v3403 = vadd.f32 %v3253, %v3371
        %v3404 = vadd.f32 %v3258, %v3372
        %v3405 = vadd.f32 %v3261, %v3373
        %v3406 = vadd.f32 %v3266, %v3374
        %v3407 = vadd.f32 %v3269, %v3375
        %v3408 = vadd.f32 %v3274, %v3376
        %v3409 = vadd.f32 %v3277, %v3377
        %v3410 = vadd.f32 %v3282, %v3378
        %v3411 = vadd.f32 %v3285, %v3379
        %v3412 = vadd.f32 %v3290, %v3380
        %v3413 = vadd.f32 %v3293, %v3381
        %v3414 = vadd.f32 %v3298, %v3382
        %v3415 = vadd.f32 %v3301, %v3383
        %v3416 = vadd.f32 %v3306, %v3384
        %v3417 = vadd.f32 %v3309, %v3385
        %v3418 = vadd.f32 %v3314, %v3386
        %v3419 = vadd.f32 %v3317, %v3387
        %v3420 = vadd.f32 %v3322, %v3388
        %v3421 = vadd.f32 %v3325, %v3389
        %v3422 = vadd.f32 %v3330, %v3390
        %v3423 = vadd.f32 %v3333, %v3391
        %v3424 = vadd.f32 %v3338, %v3392
        %v3425 = vadd.f32 %v3341, %v3393
        %v3426 = vadd.f32 %v3346, %v3394
        %v3427 = vadd.f32 %v3349, %v3395
        %v3428 = vadd.f32 %v3354, %v3396
        %v3429 = vadd.f32 %v3357, %v3397
        %v3430 = vadd.f32 %v3362, %v3398
        %v3431 = vadd.f32 %v3365, %v3399
        %v3432 = vmax.f32 %v3400, 0.0
        %v3433 = vmax.f32 %v3401, 0.0
        %v3434 = vmax.f32 %v3402, 0.0
        %v3435 = vmax.f32 %v3403, 0.0
        %v3436 = vmax.f32 %v3404, 0.0
        %v3437 = vmax.f32 %v3405, 0.0
        %v3438 = vmax.f32 %v3406, 0.0
        %v3439 = vmax.f32 %v3407, 0.0
        %v3440 = vmax.f32 %v3408, 0.0
        %v3441 = vmax.f32 %v3409, 0.0
        %v3442 = vmax.f32 %v3410, 0.0
        %v3443 = vmax.f32 %v3411, 0.0
        %v3444 = vmax.f32 %v3412, 0.0
        %v3445 = vmax.f32 %v3413, 0.0
        %v3446 = vmax.f32 %v3414, 0.0
        %v3447 = vmax.f32 %v3415, 0.0
        %v3448 = vmax.f32 %v3416, 0.0
        %v3449 = vmax.f32 %v3417, 0.0
        %v3450 = vmax.f32 %v3418, 0.0
        %v3451 = vmax.f32 %v3419, 0.0
        %v3452 = vmax.f32 %v3420, 0.0
        %v3453 = vmax.f32 %v3421, 0.0
        %v3454 = vmax.f32 %v3422, 0.0
        %v3455 = vmax.f32 %v3423, 0.0
        %v3456 = vmax.f32 %v3424, 0.0
        %v3457 = vmax.f32 %v3425, 0.0
        %v3458 = vmax.f32 %v3426, 0.0
        %v3459 = vmax.f32 %v3427, 0.0
        %v3460 = vmax.f32 %v3428, 0.0
        %v3461 = vmax.f32 %v3429, 0.0
        %v3462 = vmax.f32 %v3430, 0.0
        %v3463 = vmax.f32 %v3431, 0.0
        %v3464 = vpack.c.bf16 %v3433, %v3432
        %v3465 = vpack.c.bf16 %v3435, %v3434
        %v3466 = vpack.c.bf16 %v3437, %v3436
        %v3467 = vpack.c.bf16 %v3439, %v3438
        %v3468 = vpack.c.bf16 %v3441, %v3440
        %v3469 = vpack.c.bf16 %v3443, %v3442
        %v3470 = vpack.c.bf16 %v3445, %v3444
        %v3471 = vpack.c.bf16 %v3447, %v3446
        %v3472 = vpack.c.bf16 %v3449, %v3448
        %v3473 = vpack.c.bf16 %v3451, %v3450
        %v3474 = vpack.c.bf16 %v3453, %v3452
        %v3475 = vpack.c.bf16 %v3455, %v3454
        %v3476 = vpack.c.bf16 %v3457, %v3456
        %v3477 = vpack.c.bf16 %v3459, %v3458
        %v3478 = vpack.c.bf16 %v3461, %v3460
        %v3479 = vpack.c.bf16 %v3463, %v3462
        %v3496 = vunpack.c.l.b16 %v3464
        %v3497 = vunpack.c.h.b16 %v3464
        %v3498 = vunpack.c.l.b16 %v3465
        %v3499 = vunpack.c.h.b16 %v3465
        %v3500 = vunpack.c.l.b16 %v3466
        %v3501 = vunpack.c.h.b16 %v3466
        %v3502 = vunpack.c.l.b16 %v3467
        %v3503 = vunpack.c.h.b16 %v3467
        %v3504 = vunpack.c.l.b16 %v3468
        %v3505 = vunpack.c.h.b16 %v3468
        %v3506 = vunpack.c.l.b16 %v3469
        %v3507 = vunpack.c.h.b16 %v3469
        %v3508 = vunpack.c.l.b16 %v3470
        %v3509 = vunpack.c.h.b16 %v3470
        %v3510 = vunpack.c.l.b16 %v3471
        %v3511 = vunpack.c.h.b16 %v3471
        %v3512 = vunpack.c.l.b16 %v3472
        %v3513 = vunpack.c.h.b16 %v3472
        %v3514 = vunpack.c.l.b16 %v3473
        %v3515 = vunpack.c.h.b16 %v3473
        %v3516 = vunpack.c.l.b16 %v3474
        %v3517 = vunpack.c.h.b16 %v3474
        %v3518 = vunpack.c.l.b16 %v3475
        %v3519 = vunpack.c.h.b16 %v3475
        %v3520 = vunpack.c.l.b16 %v3476
        %v3521 = vunpack.c.h.b16 %v3476
        %v3522 = vunpack.c.l.b16 %v3477
        %v3523 = vunpack.c.h.b16 %v3477
        %v3524 = vunpack.c.l.b16 %v3478
        %v3525 = vunpack.c.h.b16 %v3478
        %v3526 = vunpack.c.l.b16 %v3479
        %v3527 = vunpack.c.h.b16 %v3479
        %v3528 = vpack.c.b16 %v3496, %v3496
        %v3529 = vpack.c.b16 %v3497, %v3497
        %v3530 = vpack.c.b16 %v3498, %v3498
        %v3531 = vpack.c.b16 %v3499, %v3499
        %v3532 = vpack.c.b16 %v3500, %v3500
        %v3533 = vpack.c.b16 %v3501, %v3501
        %v3534 = vpack.c.b16 %v3502, %v3502
        %v3535 = vpack.c.b16 %v3503, %v3503
        %v3536 = vpack.c.b16 %v3504, %v3504
        %v3537 = vpack.c.b16 %v3505, %v3505
        %v3538 = vpack.c.b16 %v3506, %v3506
        %v3539 = vpack.c.b16 %v3507, %v3507
        %v3540 = vpack.c.b16 %v3508, %v3508
        %v3541 = vpack.c.b16 %v3509, %v3509
        %v3542 = vpack.c.b16 %v3510, %v3510
        %v3543 = vpack.c.b16 %v3511, %v3511
        %v3544 = vpack.c.b16 %v3512, %v3512
        %v3545 = vpack.c.b16 %v3513, %v3513
        %v3546 = vpack.c.b16 %v3514, %v3514
        %v3547 = vpack.c.b16 %v3515, %v3515
        %v3548 = vpack.c.b16 %v3516, %v3516
        %v3549 = vpack.c.b16 %v3517, %v3517
        %v3550 = vpack.c.b16 %v3518, %v3518
        %v3551 = vpack.c.b16 %v3519, %v3519
        %v3552 = vpack.c.b16 %v3520, %v3520
        %v3553 = vpack.c.b16 %v3521, %v3521
        %v3554 = vpack.c.b16 %v3522, %v3522
        %v3555 = vpack.c.b16 %v3523, %v3523
        %v3556 = vpack.c.b16 %v3524, %v3524
        %v3557 = vpack.c.b16 %v3525, %v3525
        %v3558 = vpack.c.b16 %v3526, %v3526
        %v3559 = vpack.c.b16 %v3527, %v3527
        %3592 = vst [vmem:[%s285] sm:$0xf] %v3528
        %3593 = vst [vmem:[%s285 + $0x4] sm:$0xf] %v3529
        %3594 = vst [vmem:[%s285 + $0x8] sm:$0xf] %v3530
        %3595 = vst [vmem:[%s285 + $0xc] sm:$0xf] %v3531
        %3596 = vst [vmem:[%s285 + $0x10] sm:$0xf] %v3532
        %3597 = vst [vmem:[%s285 + $0x14] sm:$0xf] %v3533
        %3598 = vst [vmem:[%s285 + $0x18] sm:$0xf] %v3534
        %3599 = vst [vmem:[%s285 + $0x1c] sm:$0xf] %v3535
        %3600 = vst [vmem:[%s285 + $0x20] sm:$0xf] %v3536
        %3601 = vst [vmem:[%s285 + $0x24] sm:$0xf] %v3537
        %3602 = vst [vmem:[%s285 + $0x28] sm:$0xf] %v3538
        %3603 = vst [vmem:[%s285 + $0x2c] sm:$0xf] %v3539
        %3604 = vst [vmem:[%s285 + $0x30] sm:$0xf] %v3540
        %3605 = vst [vmem:[%s285 + $0x34] sm:$0xf] %v3541
        %3606 = vst [vmem:[%s285 + $0x38] sm:$0xf] %v3542
        %3607 = vst [vmem:[%s285 + $0x3c] sm:$0xf] %v3543
        %3608 = vst [vmem:[%s285 + $0x40] sm:$0xf] %v3544
        %3609 = vst [vmem:[%s285 + $0x44] sm:$0xf] %v3545
        %3610 = vst [vmem:[%s285 + $0x48] sm:$0xf] %v3546
        %3611 = vst [vmem:[%s285 + $0x4c] sm:$0xf] %v3547
        %3612 = vst [vmem:[%s285 + $0x50] sm:$0xf] %v3548
        %3613 = vst [vmem:[%s285 + $0x54] sm:$0xf] %v3549
        %3614 = vst [vmem:[%s285 + $0x58] sm:$0xf] %v3550
        %3615 = vst [vmem:[%s285 + $0x5c] sm:$0xf] %v3551
        %3616 = vst [vmem:[%s285 + $0x60] sm:$0xf] %v3552
        %3617 = vst [vmem:[%s285 + $0x64] sm:$0xf] %v3553
        %3618 = vst [vmem:[%s285 + $0x68] sm:$0xf] %v3554
        %3619 = vst [vmem:[%s285 + $0x6c] sm:$0xf] %v3555
        %3620 = vst [vmem:[%s285 + $0x70] sm:$0xf] %v3556
        %3621 = vst [vmem:[%s285 + $0x74] sm:$0xf] %v3557
        %3622 = vst [vmem:[%s285 + $0x78] sm:$0xf] %v3558
        %3623 = vst [vmem:[%s285 + $0x7c] sm:$0xf] %v3559
        %s3624 = sand.u32 %s195, 1
        %s3625 = scalar_lea.sflag [#allocation3], %s3624
        %s3626 = sand.u32 %s195, 1
        %s3627 = smul.addr %s3626, 128
        %s3628 = scalar_lea.vmem [#allocation2], %s3627
        // Predicated region
        $region49: #{tpu_custom_call.1} parent=47 // pred_check
          %p3629 = pneg %p205
        $region50: #{tpu_custom_call.1} parent=47 // pred_check_branch
          %3631 = sbr.rel (%p3629) target = $region52
        $region51: #{tpu_custom_call.1} parent=47 // pred_region
          %s3632 = smul.u32 16, %s26
          %s3634 = ssub.s32 2048, 2048
          %3635 = vsyncadd %s3625, %s3634
          %s3636 = smul.addr %s3632, 2
          %s3637 = smul.addr %s25, 32
          %s3638 = sadd.s32 %s3636, %s3637
          %s3639 = smul.addr %s3638, 64
          %s3640 = scalar_lea.hbm %s7, %s3639
          %s3641 = sshll.u32 %s3628, 4
          %s3642 = int_to_ptr.vmem [resolvable:$true] %s3641
          %3647 = dma.vmem_to_hbm [thread:$0]  %s3642, 2048, %s3640, %s3625, 64, 64, 4
        $region52: #{tpu_custom_call.1} parent=47 // pred_fallthru
          _
      $region48: #{tpu_custom_call.1} parent=5 // pred_fallthru
        _
      %p3648 = scmp.le.s32.totalorder 2, %s16
      // Predicated region
      $region53: #{tpu_custom_call.1} parent=5 // pred_check
        %p3649 = pneg %p3648
      $region54: #{tpu_custom_call.1} parent=5 // pred_check_branch
        %3651 = sbr.rel (%p3649) target = $region56
      $region55: #{tpu_custom_call.1} parent=5 // pred_region
        %s3652 = ssub.s32 %s16, 2
        // Predicated region
        $region57: #{tpu_custom_call.1} parent=55 // pred_check
          %p3653 = pneg %p211
        $region58: #{tpu_custom_call.1} parent=55 // pred_check_branch
          %3655 = sbr.rel (%p3653) target = $region60
        $region59: #{tpu_custom_call.1} parent=55 // pred_region
          %s3656 = sand.u32 %s196, 1
          %s3657 = scalar_lea.sflag [#allocation3], %s3656
          %s3658 = sand.u32 %s196, 1
          %s3659 = smul.addr %s3658, 128
          %s3660 = scalar_lea.vmem [#allocation2], %s3659
          %3661 = dma.done %s3657, 2048
        $region60: #{tpu_custom_call.1} parent=55 // pred_fallthru
          _
      $region56: #{tpu_custom_call.1} parent=5 // pred_fallthru
        _
    $region6: #{tpu_custom_call.1} parent=1 // loop_footer
      %s20 = sadd.s32 1, %s16
    $region7: #{tpu_custom_call.1} parent=1 // loop_footer_branch
      %15 = sbr.rel target = $region3
    $region8: #{tpu_custom_call.1} parent=1 // loop_exit
      _
    %3662 = vsyncpa [#allocation3], 1
    %s3663 = scalar_lea.sflag [#allocation3], 1
    %3664 = vsyncpa %s3663, 1

</llo_original>
